<compile_context>
chip_gen: v7x
topology: tpu7x:2x2x1
jax: 0.10.0
libtpu: 0.0.40
codegen_flags: <defaults>
</compile_context>

<pallas_src>
import functools
import math

import numpy as np

import jax
import jax.numpy as jnp
from jax import lax
from jax.experimental import pallas as pl
from jax.experimental.pallas import tpu as pltpu

EPS = 1e-6                      # matches nn.LayerNorm(hidden_dim, eps=1e-06)

N_BLOCK_ARGS = 16               # ln1_g,ln1_b,ln2_g,ln2_b,wq,bq,wk,bk,wv,bv,wo,bo,w1,b1,w2,b2
N_REPATCH_ARGS = 3              # G(4,Rout,Rin), W4(4,D,D), bias(1,D)


# --------------------------- in-kernel helpers ------------------------------

def _layer_norm(x, g, b):
    mu = jnp.mean(x, axis=-1, keepdims=True)
    d = x - mu
    var = jnp.mean(d * d, axis=-1, keepdims=True)        # biased, like torch
    return (d * lax.rsqrt(var + EPS)) * g + b


def _linear(x, w, b, relu=False):
    y = jnp.dot(x, w, preferred_element_type=jnp.float32) + b
    if relu:
        y = jnp.maximum(y, 0.0)
    return y


def _encoder_block(x2, blk, head_mask, *, A, N, D, num_heads):
    """One EncoderBlock on a lane-dense (A*N, D) activation (row = a*N + n)."""
    (ln1_g, ln1_b, ln2_g, ln2_b,
     wq, bq, wk, bk, wv, bv, wo, bo, w1, b1, w2, b2) = blk

    # LN1 + Q/K/V projections (1/sqrt(head_dim) pre-folded into wq/bq).
    h = _layer_norm(x2, ln1_g, ln1_b)
    q = _linear(h, wq, bq)                                # (A*N, D)
    k = _linear(h, wk, bk)
    v = _linear(h, wv, bv)

    # Attention over dim0 (length A, tiny); N*heads is the attention batch.
    qs = [q[i * N:(i + 1) * N, :] for i in range(A)]      # each (N, D)
    ks = [k[i * N:(i + 1) * N, :] for i in range(A)]
    vs = [v[i * N:(i + 1) * N, :] for i in range(A)]

    # s[i][j][n, d] = sum_{d' in head(d)} q_i[n,d'] * k_j[n,d']
    # (block-diagonal head_mask broadcasts each head's score across its lanes)
    s = [[jnp.dot(qs[i] * ks[j], head_mask, preferred_element_type=jnp.float32)
          for j in range(A)] for i in range(A)]

    outs = []
    for i in range(A):
        m = s[i][0]
        for j in range(1, A):
            m = jnp.maximum(m, s[i][j])
        e = [jnp.exp(s[i][j] - m) for j in range(A)]
        denom = e[0]
        for j in range(1, A):
            denom = denom + e[j]
        inv = pl.reciprocal(denom, approx=True)           # EUP slot, ~free
        o = (e[0] * inv) * vs[0]
        for j in range(1, A):
            o = o + (e[j] * inv) * vs[j]
        outs.append(o)
    attn = jnp.concatenate(outs, axis=0) if A > 1 else outs[0]   # (A*N, D)

    attn = _linear(attn, wo, bo)
    x_res = x2 + attn                                     # residual 1

    y = _layer_norm(x_res, ln2_g, ln2_b)
    y = _linear(y, w1, b1, relu=True)
    y = _linear(y, w2, b2)
    return x_res + y                                      # residual 2


def _repatch(x2, G, W4, cb):
    """2x2/stride-2 conv as 4 (one-hot row gather, weight matmul) taps."""
    acc = cb
    for t in range(4):
        xt = jnp.dot(G[t], x2, preferred_element_type=jnp.float32)   # (Rout, D)
        acc = acc + jnp.dot(xt, W4[t], preferred_element_type=jnp.float32)
    return acc


# ------------------------------- the kernel ---------------------------------

def _encoder_kernel(*refs, A, tokens, D, num_heads):
    n_in = 2 + 3 * N_BLOCK_ARGS + 2 * N_REPATCH_ARGS
    it = iter(refs[:n_in])
    out_refs = refs[n_in:]

    x = next(it)[...]                                     # (A*tokens[0], D)
    head_mask = next(it)[...]                             # (D, D)

    for b in range(3):
        blk = [next(it)[...] for _ in range(N_BLOCK_ARGS)]
        x = _encoder_block(x, blk, head_mask,
                           A=A, N=tokens[b], D=D, num_heads=num_heads)
        out_refs[b][...] = x.astype(out_refs[b].dtype)
        if b < 2:
            G = next(it)[...]
            W4 = next(it)[...]
            cb = next(it)[...]
            x = _repatch(x, G, W4, cb)                    # (A*tokens[b+1], D)


def _zero_map(i, nd):
    return (0,) * nd


def build_encoder_forward(num_heads, hidden_dim, scale, batch):
    D = hidden_dim
    A = batch
    tokens = tuple(s[0] * s[1] for s in scale)            # e.g. (64, 16, 4)
    kernel = functools.partial(_encoder_kernel, A=A, tokens=tokens, D=D,
                               num_heads=num_heads)

    def forward(x, flat_args):
        x2 = x.reshape(A * tokens[0], D)
        inputs = [x2] + list(flat_args)
        in_specs = [pl.BlockSpec(a.shape, functools.partial(_zero_map, nd=a.ndim))
                    for a in inputs]
        out_shape = tuple(jax.ShapeDtypeStruct((A * t, D), x.dtype)
                          for t in tokens)
        out_specs = tuple(pl.BlockSpec((A * t, D),
                                       functools.partial(_zero_map, nd=2))
                          for t in tokens)
        o1, o2, o3 = pl.pallas_call(
            kernel,
            out_shape=out_shape,
            grid=(1,),
            in_specs=in_specs,
            out_specs=out_specs,
            compiler_params=pltpu.CompilerParams(
                dimension_semantics=("arbitrary",)),
        )(*inputs)
        return (o1.reshape(A, tokens[0], D),
                o2.reshape(A, tokens[1], D),
                o3.reshape(A, tokens[2], D))

    return forward


# -------------------------- one-time parameter prep -------------------------

def make_head_mask(D, num_heads):
    hd = D // num_heads
    idx = np.arange(D) // hd
    return jnp.asarray((idx[:, None] == idx[None, :]).astype(np.float32))


def prepare_encoder_args(params, num_heads, hidden_dim, scale, batch):
    """Repack torch-layout params once: transposes, bias reshapes, q-scale
    folding, block-diag head mask, conv-tap weights and one-hot row gathers."""
    D = hidden_dim
    hd = D // num_heads
    qscale = 1.0 / math.sqrt(hd)

    def block_args(bp):
        wq = bp['in_proj_w'][:D].T * qscale
        bq = bp['in_proj_b'][:D] * qscale
        wk = bp['in_proj_w'][D:2 * D].T
        bk = bp['in_proj_b'][D:2 * D]
        wv = bp['in_proj_w'][2 * D:].T
        bv = bp['in_proj_b'][2 * D:]
        return [
            bp['ln1_g'].reshape(1, D), bp['ln1_b'].reshape(1, D),
            bp['ln2_g'].reshape(1, D), bp['ln2_b'].reshape(1, D),
            wq, bq.reshape(1, D), wk, bk.reshape(1, D), wv, bv.reshape(1, D),
            bp['out_proj_w'].T, bp['out_proj_b'].reshape(1, D),
            bp['fc1_w'].T, bp['fc1_b'].reshape(1, -1),
            bp['fc2_w'].T, bp['fc2_b'].reshape(1, D),
        ]

    def repatch_args(conv_w, conv_b, hw_in):
        H, W = hw_in
        OH, OW = H // 2, W // 2
        B = batch
        Rin, Rout = B * H * W, B * OH * OW
        G = np.zeros((4, Rout, Rin), np.float32)
        for b in range(B):
            for oh in range(OH):
                for ow in range(OW):
                    ro = b * OH * OW + oh * OW + ow
                    for ki in range(2):
                        for kj in range(2):
                            t = ki * 2 + kj
                            ri = b * H * W + (2 * oh + ki) * W + (2 * ow + kj)
                            G[t, ro, ri] = 1.0
        W4 = jnp.stack([conv_w[:, :, ki, kj].T
                        for ki in range(2) for kj in range(2)], axis=0)
        return [jnp.asarray(G), W4, conv_b.reshape(1, D)]

    args = [make_head_mask(D, num_heads)]
    args += block_args(params['block1'])
    args += repatch_args(params['conv1_w'], params['conv1_b'], scale[0])
    args += block_args(params['block2'])
    args += repatch_args(params['conv2_w'], params['conv2_b'], scale[1])
    args += block_args(params['block3'])
    return args


# ------------------------------ param init ----------------------------------

def init_block_params(key, hidden_dim, mlp_dim):
    ks = jax.random.split(key, 4)
    s = 0.02
    return {
        'ln1_g': jnp.ones((hidden_dim,), jnp.float32),
        'ln1_b': jnp.zeros((hidden_dim,), jnp.float32),
        'ln2_g': jnp.ones((hidden_dim,), jnp.float32),
        'ln2_b': jnp.zeros((hidden_dim,), jnp.float32),
        'in_proj_w': s * jax.random.normal(ks[0], (3 * hidden_dim, hidden_dim), jnp.float32),
        'in_proj_b': jnp.zeros((3 * hidden_dim,), jnp.float32),
        'out_proj_w': s * jax.random.normal(ks[1], (hidden_dim, hidden_dim), jnp.float32),
        'out_proj_b': jnp.zeros((hidden_dim,), jnp.float32),
        'fc1_w': s * jax.random.normal(ks[2], (mlp_dim, hidden_dim), jnp.float32),
        'fc1_b': jnp.zeros((mlp_dim,), jnp.float32),
        'fc2_w': s * jax.random.normal(ks[3], (hidden_dim, mlp_dim), jnp.float32),
        'fc2_b': jnp.zeros((hidden_dim,), jnp.float32),
    }


def init_params(key, hidden_dim, mlp_dim):
    k1, k2, k3, k4, k5 = jax.random.split(key, 5)
    return {
        'block1': init_block_params(k1, hidden_dim, mlp_dim),
        'block2': init_block_params(k2, hidden_dim, mlp_dim),
        'block3': init_block_params(k3, hidden_dim, mlp_dim),
        'conv1_w': 0.02 * jax.random.normal(k4, (hidden_dim, hidden_dim, 2, 2), jnp.float32),
        'conv1_b': jnp.zeros((hidden_dim,), jnp.float32),
        'conv2_w': 0.02 * jax.random.normal(k5, (hidden_dim, hidden_dim, 2, 2), jnp.float32),
        'conv2_b': jnp.zeros((hidden_dim,), jnp.float32),
    }


# ---------------------------------- main -------------------------------------

if __name__ == "__main__":
    num_heads = 4
    hidden_dim = 32
    mlp_dim = 64
    scale = [[8, 8], [4, 4], [2, 2]]       # token counts: 64 -> 16 -> 4
    batch = 2

    key = jax.random.PRNGKey(0)
    kx, kp = jax.random.split(key)
    x = jax.random.normal(kx, (batch, scale[0][0] * scale[0][1], hidden_dim),
                          jnp.float32)
    params = init_params(kp, hidden_dim, mlp_dim)

    flat_args = prepare_encoder_args(params, num_heads, hidden_dim, scale, batch)
    forward = build_encoder_forward(num_heads, hidden_dim, scale, batch)
    fwd = jax.jit(forward)

    x1, x2, x3 = fwd(x, flat_args)
    jax.block_until_ready((x1, x2, x3))

    assert x1.shape == (batch, 64, hidden_dim)
    assert x2.shape == (batch, 16, hidden_dim)
    assert x3.shape == (batch, 4, hidden_dim)
    print("KERNEL_OK")
</pallas_src>

<mosaic_0001>
module attributes {stable_mosaic.version = 11 : i64} {
  func.func @_encoder_kernel(%arg0: i32, %arg1: memref<128x32xf32, #tpu.memory_space<vmem>>, %arg2: memref<32x32xf32, #tpu.memory_space<vmem>>, %arg3: memref<1x32xf32, #tpu.memory_space<vmem>>, %arg4: memref<1x32xf32, #tpu.memory_space<vmem>>, %arg5: memref<1x32xf32, #tpu.memory_space<vmem>>, %arg6: memref<1x32xf32, #tpu.memory_space<vmem>>, %arg7: memref<32x32xf32, #tpu.memory_space<vmem>>, %arg8: memref<1x32xf32, #tpu.memory_space<vmem>>, %arg9: memref<32x32xf32, #tpu.memory_space<vmem>>, %arg10: memref<1x32xf32, #tpu.memory_space<vmem>>, %arg11: memref<32x32xf32, #tpu.memory_space<vmem>>, %arg12: memref<1x32xf32, #tpu.memory_space<vmem>>, %arg13: memref<32x32xf32, #tpu.memory_space<vmem>>, %arg14: memref<1x32xf32, #tpu.memory_space<vmem>>, %arg15: memref<32x64xf32, #tpu.memory_space<vmem>>, %arg16: memref<1x64xf32, #tpu.memory_space<vmem>>, %arg17: memref<64x32xf32, #tpu.memory_space<vmem>>, %arg18: memref<1x32xf32, #tpu.memory_space<vmem>>, %arg19: memref<4x32x128xf32, #tpu.memory_space<vmem>>, %arg20: memref<4x32x32xf32, #tpu.memory_space<vmem>>, %arg21: memref<1x32xf32, #tpu.memory_space<vmem>>, %arg22: memref<1x32xf32, #tpu.memory_space<vmem>>, %arg23: memref<1x32xf32, #tpu.memory_space<vmem>>, %arg24: memref<1x32xf32, #tpu.memory_space<vmem>>, %arg25: memref<1x32xf32, #tpu.memory_space<vmem>>, %arg26: memref<32x32xf32, #tpu.memory_space<vmem>>, %arg27: memref<1x32xf32, #tpu.memory_space<vmem>>, %arg28: memref<32x32xf32, #tpu.memory_space<vmem>>, %arg29: memref<1x32xf32, #tpu.memory_space<vmem>>, %arg30: memref<32x32xf32, #tpu.memory_space<vmem>>, %arg31: memref<1x32xf32, #tpu.memory_space<vmem>>, %arg32: memref<32x32xf32, #tpu.memory_space<vmem>>, %arg33: memref<1x32xf32, #tpu.memory_space<vmem>>, %arg34: memref<32x64xf32, #tpu.memory_space<vmem>>, %arg35: memref<1x64xf32, #tpu.memory_space<vmem>>, %arg36: memref<64x32xf32, #tpu.memory_space<vmem>>, %arg37: memref<1x32xf32, #tpu.memory_space<vmem>>, %arg38: memref<4x8x32xf32, #tpu.memory_space<vmem>>, %arg39: memref<4x32x32xf32, #tpu.memory_space<vmem>>, %arg40: memref<1x32xf32, #tpu.memory_space<vmem>>, %arg41: memref<1x32xf32, #tpu.memory_space<vmem>>, %arg42: memref<1x32xf32, #tpu.memory_space<vmem>>, %arg43: memref<1x32xf32, #tpu.memory_space<vmem>>, %arg44: memref<1x32xf32, #tpu.memory_space<vmem>>, %arg45: memref<32x32xf32, #tpu.memory_space<vmem>>, %arg46: memref<1x32xf32, #tpu.memory_space<vmem>>, %arg47: memref<32x32xf32, #tpu.memory_space<vmem>>, %arg48: memref<1x32xf32, #tpu.memory_space<vmem>>, %arg49: memref<32x32xf32, #tpu.memory_space<vmem>>, %arg50: memref<1x32xf32, #tpu.memory_space<vmem>>, %arg51: memref<32x32xf32, #tpu.memory_space<vmem>>, %arg52: memref<1x32xf32, #tpu.memory_space<vmem>>, %arg53: memref<32x64xf32, #tpu.memory_space<vmem>>, %arg54: memref<1x64xf32, #tpu.memory_space<vmem>>, %arg55: memref<64x32xf32, #tpu.memory_space<vmem>>, %arg56: memref<1x32xf32, #tpu.memory_space<vmem>>, %arg57: memref<128x32xf32, #tpu.memory_space<vmem>>, %arg58: memref<32x32xf32, #tpu.memory_space<vmem>>, %arg59: memref<8x32xf32, #tpu.memory_space<vmem>>) attributes {dimension_semantics = [#tpu.dimension_semantics<arbitrary>], iteration_bounds = array<i64: 1>, scalar_prefetch = 0 : i64, scratch_operands = 0 : i64, tpu.core_type = #tpu.core_type<tc>, window_params = [{pipeline_mode = #tpu.pipeline_mode<synchronous>, transform_indices = @transform_0, window_bounds = array<i64: 128, 32>}, {pipeline_mode = #tpu.pipeline_mode<synchronous>, transform_indices = @transform_1, window_bounds = array<i64: 32, 32>}, {pipeline_mode = #tpu.pipeline_mode<synchronous>, transform_indices = @transform_2, window_bounds = array<i64: 1, 32>}, {pipeline_mode = #tpu.pipeline_mode<synchronous>, transform_indices = @transform_3, window_bounds = array<i64: 1, 32>}, {pipeline_mode = #tpu.pipeline_mode<synchronous>, transform_indices = @transform_4, window_bounds = array<i64: 1, 32>}, {pipeline_mode = #tpu.pipeline_mode<synchronous>, transform_indices = @transform_5, window_bounds = array<i64: 1, 32>}, {pipeline_mode = #tpu.pipeline_mode<synchronous>, transform_indices = @transform_6, window_bounds = array<i64: 32, 32>}, {pipeline_mode = #tpu.pipeline_mode<synchronous>, transform_indices = @transform_7, window_bounds = array<i64: 1, 32>}, {pipeline_mode = #tpu.pipeline_mode<synchronous>, transform_indices = @transform_8, window_bounds = array<i64: 32, 32>}, {pipeline_mode = #tpu.pipeline_mode<synchronous>, transform_indices = @transform_9, window_bounds = array<i64: 1, 32>}, {pipeline_mode = #tpu.pipeline_mode<synchronous>, transform_indices = @transform_10, window_bounds = array<i64: 32, 32>}, {pipeline_mode = #tpu.pipeline_mode<synchronous>, transform_indices = @transform_11, window_bounds = array<i64: 1, 32>}, {pipeline_mode = #tpu.pipeline_mode<synchronous>, transform_indices = @transform_12, window_bounds = array<i64: 32, 32>}, {pipeline_mode = #tpu.pipeline_mode<synchronous>, transform_indices = @transform_13, window_bounds = array<i64: 1, 32>}, {pipeline_mode = #tpu.pipeline_mode<synchronous>, transform_indices = @transform_14, window_bounds = array<i64: 32, 64>}, {pipeline_mode = #tpu.pipeline_mode<synchronous>, transform_indices = @transform_15, window_bounds = array<i64: 1, 64>}, {pipeline_mode = #tpu.pipeline_mode<synchronous>, transform_indices = @transform_16, window_bounds = array<i64: 64, 32>}, {pipeline_mode = #tpu.pipeline_mode<synchronous>, transform_indices = @transform_17, window_bounds = array<i64: 1, 32>}, {pipeline_mode = #tpu.pipeline_mode<synchronous>, transform_indices = @transform_18, window_bounds = array<i64: 4, 32, 128>}, {pipeline_mode = #tpu.pipeline_mode<synchronous>, transform_indices = @transform_19, window_bounds = array<i64: 4, 32, 32>}, {pipeline_mode = #tpu.pipeline_mode<synchronous>, transform_indices = @transform_20, window_bounds = array<i64: 1, 32>}, {pipeline_mode = #tpu.pipeline_mode<synchronous>, transform_indices = @transform_21, window_bounds = array<i64: 1, 32>}, {pipeline_mode = #tpu.pipeline_mode<synchronous>, transform_indices = @transform_22, window_bounds = array<i64: 1, 32>}, {pipeline_mode = #tpu.pipeline_mode<synchronous>, transform_indices = @transform_23, window_bounds = array<i64: 1, 32>}, {pipeline_mode = #tpu.pipeline_mode<synchronous>, transform_indices = @transform_24, window_bounds = array<i64: 1, 32>}, {pipeline_mode = #tpu.pipeline_mode<synchronous>, transform_indices = @transform_25, window_bounds = array<i64: 32, 32>}, {pipeline_mode = #tpu.pipeline_mode<synchronous>, transform_indices = @transform_26, window_bounds = array<i64: 1, 32>}, {pipeline_mode = #tpu.pipeline_mode<synchronous>, transform_indices = @transform_27, window_bounds = array<i64: 32, 32>}, {pipeline_mode = #tpu.pipeline_mode<synchronous>, transform_indices = @transform_28, window_bounds = array<i64: 1, 32>}, {pipeline_mode = #tpu.pipeline_mode<synchronous>, transform_indices = @transform_29, window_bounds = array<i64: 32, 32>}, {pipeline_mode = #tpu.pipeline_mode<synchronous>, transform_indices = @transform_30, window_bounds = array<i64: 1, 32>}, {pipeline_mode = #tpu.pipeline_mode<synchronous>, transform_indices = @transform_31, window_bounds = array<i64: 32, 32>}, {pipeline_mode = #tpu.pipeline_mode<synchronous>, transform_indices = @transform_32, window_bounds = array<i64: 1, 32>}, {pipeline_mode = #tpu.pipeline_mode<synchronous>, transform_indices = @transform_33, window_bounds = array<i64: 32, 64>}, {pipeline_mode = #tpu.pipeline_mode<synchronous>, transform_indices = @transform_34, window_bounds = array<i64: 1, 64>}, {pipeline_mode = #tpu.pipeline_mode<synchronous>, transform_indices = @transform_35, window_bounds = array<i64: 64, 32>}, {pipeline_mode = #tpu.pipeline_mode<synchronous>, transform_indices = @transform_36, window_bounds = array<i64: 1, 32>}, {pipeline_mode = #tpu.pipeline_mode<synchronous>, transform_indices = @transform_37, window_bounds = array<i64: 4, 8, 32>}, {pipeline_mode = #tpu.pipeline_mode<synchronous>, transform_indices = @transform_38, window_bounds = array<i64: 4, 32, 32>}, {pipeline_mode = #tpu.pipeline_mode<synchronous>, transform_indices = @transform_39, window_bounds = array<i64: 1, 32>}, {pipeline_mode = #tpu.pipeline_mode<synchronous>, transform_indices = @transform_40, window_bounds = array<i64: 1, 32>}, {pipeline_mode = #tpu.pipeline_mode<synchronous>, transform_indices = @transform_41, window_bounds = array<i64: 1, 32>}, {pipeline_mode = #tpu.pipeline_mode<synchronous>, transform_indices = @transform_42, window_bounds = array<i64: 1, 32>}, {pipeline_mode = #tpu.pipeline_mode<synchronous>, transform_indices = @transform_43, window_bounds = array<i64: 1, 32>}, {pipeline_mode = #tpu.pipeline_mode<synchronous>, transform_indices = @transform_44, window_bounds = array<i64: 32, 32>}, {pipeline_mode = #tpu.pipeline_mode<synchronous>, transform_indices = @transform_45, window_bounds = array<i64: 1, 32>}, {pipeline_mode = #tpu.pipeline_mode<synchronous>, transform_indices = @transform_46, window_bounds = array<i64: 32, 32>}, {pipeline_mode = #tpu.pipeline_mode<synchronous>, transform_indices = @transform_47, window_bounds = array<i64: 1, 32>}, {pipeline_mode = #tpu.pipeline_mode<synchronous>, transform_indices = @transform_48, window_bounds = array<i64: 32, 32>}, {pipeline_mode = #tpu.pipeline_mode<synchronous>, transform_indices = @transform_49, window_bounds = array<i64: 1, 32>}, {pipeline_mode = #tpu.pipeline_mode<synchronous>, transform_indices = @transform_50, window_bounds = array<i64: 32, 32>}, {pipeline_mode = #tpu.pipeline_mode<synchronous>, transform_indices = @transform_51, window_bounds = array<i64: 1, 32>}, {pipeline_mode = #tpu.pipeline_mode<synchronous>, transform_indices = @transform_52, window_bounds = array<i64: 32, 64>}, {pipeline_mode = #tpu.pipeline_mode<synchronous>, transform_indices = @transform_53, window_bounds = array<i64: 1, 64>}, {pipeline_mode = #tpu.pipeline_mode<synchronous>, transform_indices = @transform_54, window_bounds = array<i64: 64, 32>}, {pipeline_mode = #tpu.pipeline_mode<synchronous>, transform_indices = @transform_55, window_bounds = array<i64: 1, 32>}, {pipeline_mode = #tpu.pipeline_mode<synchronous>, transform_indices = @transform_56, window_bounds = array<i64: 128, 32>}, {pipeline_mode = #tpu.pipeline_mode<synchronous>, transform_indices = @transform_57, window_bounds = array<i64: 32, 32>}, {pipeline_mode = #tpu.pipeline_mode<synchronous>, transform_indices = @transform_58, window_bounds = array<i64: 8, 32>}]} {
    %c0 = arith.constant 0 : index
    %c0_0 = arith.constant 0 : index
    %0 = vector.load %arg1[%c0, %c0_0] : memref<128x32xf32, #tpu.memory_space<vmem>>, vector<128x32xf32>
    %c0_1 = arith.constant 0 : index
    %c0_2 = arith.constant 0 : index
    %1 = vector.load %arg2[%c0_1, %c0_2] : memref<32x32xf32, #tpu.memory_space<vmem>>, vector<32x32xf32>
    %c0_3 = arith.constant 0 : index
    %c0_4 = arith.constant 0 : index
    %2 = vector.load %arg3[%c0_3, %c0_4] : memref<1x32xf32, #tpu.memory_space<vmem>>, vector<1x32xf32>
    %c0_5 = arith.constant 0 : index
    %c0_6 = arith.constant 0 : index
    %3 = vector.load %arg4[%c0_5, %c0_6] : memref<1x32xf32, #tpu.memory_space<vmem>>, vector<1x32xf32>
    %c0_7 = arith.constant 0 : index
    %c0_8 = arith.constant 0 : index
    %4 = vector.load %arg5[%c0_7, %c0_8] : memref<1x32xf32, #tpu.memory_space<vmem>>, vector<1x32xf32>
    %c0_9 = arith.constant 0 : index
    %c0_10 = arith.constant 0 : index
    %5 = vector.load %arg6[%c0_9, %c0_10] : memref<1x32xf32, #tpu.memory_space<vmem>>, vector<1x32xf32>
    %c0_11 = arith.constant 0 : index
    %c0_12 = arith.constant 0 : index
    %6 = vector.load %arg7[%c0_11, %c0_12] : memref<32x32xf32, #tpu.memory_space<vmem>>, vector<32x32xf32>
    %c0_13 = arith.constant 0 : index
    %c0_14 = arith.constant 0 : index
    %7 = vector.load %arg8[%c0_13, %c0_14] : memref<1x32xf32, #tpu.memory_space<vmem>>, vector<1x32xf32>
    %c0_15 = arith.constant 0 : index
    %c0_16 = arith.constant 0 : index
    %8 = vector.load %arg9[%c0_15, %c0_16] : memref<32x32xf32, #tpu.memory_space<vmem>>, vector<32x32xf32>
    %c0_17 = arith.constant 0 : index
    %c0_18 = arith.constant 0 : index
    %9 = vector.load %arg10[%c0_17, %c0_18] : memref<1x32xf32, #tpu.memory_space<vmem>>, vector<1x32xf32>
    %c0_19 = arith.constant 0 : index
    %c0_20 = arith.constant 0 : index
    %10 = vector.load %arg11[%c0_19, %c0_20] : memref<32x32xf32, #tpu.memory_space<vmem>>, vector<32x32xf32>
    %c0_21 = arith.constant 0 : index
    %c0_22 = arith.constant 0 : index
    %11 = vector.load %arg12[%c0_21, %c0_22] : memref<1x32xf32, #tpu.memory_space<vmem>>, vector<1x32xf32>
    %c0_23 = arith.constant 0 : index
    %c0_24 = arith.constant 0 : index
    %12 = vector.load %arg13[%c0_23, %c0_24] : memref<32x32xf32, #tpu.memory_space<vmem>>, vector<32x32xf32>
    %c0_25 = arith.constant 0 : index
    %c0_26 = arith.constant 0 : index
    %13 = vector.load %arg14[%c0_25, %c0_26] : memref<1x32xf32, #tpu.memory_space<vmem>>, vector<1x32xf32>
    %c0_27 = arith.constant 0 : index
    %c0_28 = arith.constant 0 : index
    %14 = vector.load %arg15[%c0_27, %c0_28] : memref<32x64xf32, #tpu.memory_space<vmem>>, vector<32x64xf32>
    %c0_29 = arith.constant 0 : index
    %c0_30 = arith.constant 0 : index
    %15 = vector.load %arg16[%c0_29, %c0_30] : memref<1x64xf32, #tpu.memory_space<vmem>>, vector<1x64xf32>
    %c0_31 = arith.constant 0 : index
    %c0_32 = arith.constant 0 : index
    %16 = vector.load %arg17[%c0_31, %c0_32] : memref<64x32xf32, #tpu.memory_space<vmem>>, vector<64x32xf32>
    %c0_33 = arith.constant 0 : index
    %c0_34 = arith.constant 0 : index
    %17 = vector.load %arg18[%c0_33, %c0_34] : memref<1x32xf32, #tpu.memory_space<vmem>>, vector<1x32xf32>
    %cst = arith.constant dense<0.000000e+00> : vector<128xf32>
    %18 = vector.multi_reduction <add>, %0, %cst [1] : vector<128x32xf32> to vector<128xf32>
    %19 = vector.shape_cast %18 : vector<128xf32> to vector<128x1xf32>
    %cst_35 = arith.constant 3.200000e+01 : f32
    %20 = vector.broadcast %cst_35 : f32 to vector<128x1xf32>
    %21 = arith.divf %19, %20 : vector<128x1xf32>
    %22 = vector.broadcast %21 : vector<128x1xf32> to vector<128x32xf32>
    %23 = arith.subf %0, %22 : vector<128x32xf32>
    %24 = arith.mulf %23, %23 : vector<128x32xf32>
    %cst_36 = arith.constant dense<0.000000e+00> : vector<128xf32>
    %25 = vector.multi_reduction <add>, %24, %cst_36 [1] : vector<128x32xf32> to vector<128xf32>
    %26 = vector.shape_cast %25 : vector<128xf32> to vector<128x1xf32>
    %cst_37 = arith.constant 3.200000e+01 : f32
    %27 = vector.broadcast %cst_37 : f32 to vector<128x1xf32>
    %28 = arith.divf %26, %27 : vector<128x1xf32>
    %cst_38 = arith.constant 9.99999997E-7 : f32
    %29 = vector.broadcast %cst_38 : f32 to vector<128x1xf32>
    %30 = arith.addf %28, %29 : vector<128x1xf32>
    %31 = math.rsqrt %30 : vector<128x1xf32>
    %32 = vector.broadcast %31 : vector<128x1xf32> to vector<128x32xf32>
    %33 = arith.mulf %23, %32 : vector<128x32xf32>
    %34 = vector.broadcast %2 : vector<1x32xf32> to vector<128x32xf32>
    %35 = arith.mulf %33, %34 : vector<128x32xf32>
    %36 = vector.broadcast %3 : vector<1x32xf32> to vector<128x32xf32>
    %37 = arith.addf %35, %36 : vector<128x32xf32>
    %cst_39 = arith.constant dense<0.000000e+00> : vector<128x32xf32>
    %38 = tpu.matmul %37, %6, %cst_39 {dimension_numbers = #tpu.dot_dimension_numbers<[1], [0], [0], [1], [0, 0, 1, 1], [], []>} : vector<128x32xf32>, vector<32x32xf32>, vector<128x32xf32> -> vector<128x32xf32>
    %39 = vector.broadcast %7 : vector<1x32xf32> to vector<128x32xf32>
    %40 = arith.addf %38, %39 : vector<128x32xf32>
    %cst_40 = arith.constant dense<0.000000e+00> : vector<128x32xf32>
    %41 = tpu.matmul %37, %8, %cst_40 {dimension_numbers = #tpu.dot_dimension_numbers<[1], [0], [0], [1], [0, 0, 1, 1], [], []>} : vector<128x32xf32>, vector<32x32xf32>, vector<128x32xf32> -> vector<128x32xf32>
    %42 = vector.broadcast %9 : vector<1x32xf32> to vector<128x32xf32>
    %43 = arith.addf %41, %42 : vector<128x32xf32>
    %cst_41 = arith.constant dense<0.000000e+00> : vector<128x32xf32>
    %44 = tpu.matmul %37, %10, %cst_41 {dimension_numbers = #tpu.dot_dimension_numbers<[1], [0], [0], [1], [0, 0, 1, 1], [], []>} : vector<128x32xf32>, vector<32x32xf32>, vector<128x32xf32> -> vector<128x32xf32>
    %45 = vector.broadcast %11 : vector<1x32xf32> to vector<128x32xf32>
    %46 = arith.addf %44, %45 : vector<128x32xf32>
    %47 = vector.extract_strided_slice %40 {offsets = [0, 0], sizes = [64, 32], strides = [1, 1]} : vector<128x32xf32> to vector<64x32xf32>
    %48 = vector.extract_strided_slice %40 {offsets = [64, 0], sizes = [64, 32], strides = [1, 1]} : vector<128x32xf32> to vector<64x32xf32>
    %49 = vector.extract_strided_slice %43 {offsets = [0, 0], sizes = [64, 32], strides = [1, 1]} : vector<128x32xf32> to vector<64x32xf32>
    %50 = vector.extract_strided_slice %43 {offsets = [64, 0], sizes = [64, 32], strides = [1, 1]} : vector<128x32xf32> to vector<64x32xf32>
    %51 = vector.extract_strided_slice %46 {offsets = [0, 0], sizes = [64, 32], strides = [1, 1]} : vector<128x32xf32> to vector<64x32xf32>
    %52 = vector.extract_strided_slice %46 {offsets = [64, 0], sizes = [64, 32], strides = [1, 1]} : vector<128x32xf32> to vector<64x32xf32>
    %53 = arith.mulf %47, %49 : vector<64x32xf32>
    %cst_42 = arith.constant dense<0.000000e+00> : vector<64x32xf32>
    %54 = tpu.matmul %53, %1, %cst_42 {dimension_numbers = #tpu.dot_dimension_numbers<[1], [0], [0], [1], [0, 0, 1, 1], [], []>} : vector<64x32xf32>, vector<32x32xf32>, vector<64x32xf32> -> vector<64x32xf32>
    %55 = arith.mulf %47, %50 : vector<64x32xf32>
    %cst_43 = arith.constant dense<0.000000e+00> : vector<64x32xf32>
    %56 = tpu.matmul %55, %1, %cst_43 {dimension_numbers = #tpu.dot_dimension_numbers<[1], [0], [0], [1], [0, 0, 1, 1], [], []>} : vector<64x32xf32>, vector<32x32xf32>, vector<64x32xf32> -> vector<64x32xf32>
    %57 = arith.mulf %48, %49 : vector<64x32xf32>
    %cst_44 = arith.constant dense<0.000000e+00> : vector<64x32xf32>
    %58 = tpu.matmul %57, %1, %cst_44 {dimension_numbers = #tpu.dot_dimension_numbers<[1], [0], [0], [1], [0, 0, 1, 1], [], []>} : vector<64x32xf32>, vector<32x32xf32>, vector<64x32xf32> -> vector<64x32xf32>
    %59 = arith.mulf %48, %50 : vector<64x32xf32>
    %cst_45 = arith.constant dense<0.000000e+00> : vector<64x32xf32>
    %60 = tpu.matmul %59, %1, %cst_45 {dimension_numbers = #tpu.dot_dimension_numbers<[1], [0], [0], [1], [0, 0, 1, 1], [], []>} : vector<64x32xf32>, vector<32x32xf32>, vector<64x32xf32> -> vector<64x32xf32>
    %61 = arith.maximumf %54, %56 : vector<64x32xf32>
    %62 = arith.subf %54, %61 : vector<64x32xf32>
    %63 = math.exp %62 : vector<64x32xf32>
    %64 = arith.subf %56, %61 : vector<64x32xf32>
    %65 = math.exp %64 : vector<64x32xf32>
    %66 = arith.addf %63, %65 : vector<64x32xf32>
    %67 = tpu.reciprocal %66 {approx = true} : vector<64x32xf32> -> vector<64x32xf32>
    %68 = arith.mulf %63, %67 : vector<64x32xf32>
    %69 = arith.mulf %68, %51 : vector<64x32xf32>
    %70 = arith.mulf %65, %67 : vector<64x32xf32>
    %71 = arith.mulf %70, %52 : vector<64x32xf32>
    %72 = arith.addf %69, %71 : vector<64x32xf32>
    %73 = arith.maximumf %58, %60 : vector<64x32xf32>
    %74 = arith.subf %58, %73 : vector<64x32xf32>
    %75 = math.exp %74 : vector<64x32xf32>
    %76 = arith.subf %60, %73 : vector<64x32xf32>
    %77 = math.exp %76 : vector<64x32xf32>
    %78 = arith.addf %75, %77 : vector<64x32xf32>
    %79 = tpu.reciprocal %78 {approx = true} : vector<64x32xf32> -> vector<64x32xf32>
    %80 = arith.mulf %75, %79 : vector<64x32xf32>
    %81 = arith.mulf %80, %51 : vector<64x32xf32>
    %82 = arith.mulf %77, %79 : vector<64x32xf32>
    %83 = arith.mulf %82, %52 : vector<64x32xf32>
    %84 = arith.addf %81, %83 : vector<64x32xf32>
    %85 = tpu.concatenate %72, %84 in 0 : vector<64x32xf32>, vector<64x32xf32> -> vector<128x32xf32>
    %cst_46 = arith.constant dense<0.000000e+00> : vector<128x32xf32>
    %86 = tpu.matmul %85, %12, %cst_46 {dimension_numbers = #tpu.dot_dimension_numbers<[1], [0], [0], [1], [0, 0, 1, 1], [], []>} : vector<128x32xf32>, vector<32x32xf32>, vector<128x32xf32> -> vector<128x32xf32>
    %87 = vector.broadcast %13 : vector<1x32xf32> to vector<128x32xf32>
    %88 = arith.addf %86, %87 : vector<128x32xf32>
    %89 = arith.addf %0, %88 : vector<128x32xf32>
    %cst_47 = arith.constant dense<0.000000e+00> : vector<128xf32>
    %90 = vector.multi_reduction <add>, %89, %cst_47 [1] : vector<128x32xf32> to vector<128xf32>
    %91 = vector.shape_cast %90 : vector<128xf32> to vector<128x1xf32>
    %cst_48 = arith.constant 3.200000e+01 : f32
    %92 = vector.broadcast %cst_48 : f32 to vector<128x1xf32>
    %93 = arith.divf %91, %92 : vector<128x1xf32>
    %94 = vector.broadcast %93 : vector<128x1xf32> to vector<128x32xf32>
    %95 = arith.subf %89, %94 : vector<128x32xf32>
    %96 = arith.mulf %95, %95 : vector<128x32xf32>
    %cst_49 = arith.constant dense<0.000000e+00> : vector<128xf32>
    %97 = vector.multi_reduction <add>, %96, %cst_49 [1] : vector<128x32xf32> to vector<128xf32>
    %98 = vector.shape_cast %97 : vector<128xf32> to vector<128x1xf32>
    %cst_50 = arith.constant 3.200000e+01 : f32
    %99 = vector.broadcast %cst_50 : f32 to vector<128x1xf32>
    %100 = arith.divf %98, %99 : vector<128x1xf32>
    %cst_51 = arith.constant 9.99999997E-7 : f32
    %101 = vector.broadcast %cst_51 : f32 to vector<128x1xf32>
    %102 = arith.addf %100, %101 : vector<128x1xf32>
    %103 = math.rsqrt %102 : vector<128x1xf32>
    %104 = vector.broadcast %103 : vector<128x1xf32> to vector<128x32xf32>
    %105 = arith.mulf %95, %104 : vector<128x32xf32>
    %106 = vector.broadcast %4 : vector<1x32xf32> to vector<128x32xf32>
    %107 = arith.mulf %105, %106 : vector<128x32xf32>
    %108 = vector.broadcast %5 : vector<1x32xf32> to vector<128x32xf32>
    %109 = arith.addf %107, %108 : vector<128x32xf32>
    %cst_52 = arith.constant dense<0.000000e+00> : vector<128x64xf32>
    %110 = tpu.matmul %109, %14, %cst_52 {dimension_numbers = #tpu.dot_dimension_numbers<[1], [0], [0], [1], [0, 0, 1, 1], [], []>} : vector<128x32xf32>, vector<32x64xf32>, vector<128x64xf32> -> vector<128x64xf32>
    %111 = vector.broadcast %15 : vector<1x64xf32> to vector<128x64xf32>
    %112 = arith.addf %110, %111 : vector<128x64xf32>
    %cst_53 = arith.constant 0.000000e+00 : f32
    %113 = vector.broadcast %cst_53 : f32 to vector<128x64xf32>
    %114 = arith.maximumf %112, %113 : vector<128x64xf32>
    %cst_54 = arith.constant dense<0.000000e+00> : vector<128x32xf32>
    %115 = tpu.matmul %114, %16, %cst_54 {dimension_numbers = #tpu.dot_dimension_numbers<[1], [0], [0], [1], [0, 0, 1, 1], [], []>} : vector<128x64xf32>, vector<64x32xf32>, vector<128x32xf32> -> vector<128x32xf32>
    %116 = vector.broadcast %17 : vector<1x32xf32> to vector<128x32xf32>
    %117 = arith.addf %115, %116 : vector<128x32xf32>
    %118 = arith.addf %89, %117 : vector<128x32xf32>
    %c0_55 = arith.constant 0 : index
    %c0_56 = arith.constant 0 : index
    %119 = vector.load %arg57[%c0_55, %c0_56] : memref<128x32xf32, #tpu.memory_space<vmem>>, vector<128x32xf32>
    tpu.vector_store %arg57[%c0_55, %c0_56], %118 {strides = array<i32>} : memref<128x32xf32, #tpu.memory_space<vmem>>, vector<128x32xf32>,
    %c0_57 = arith.constant 0 : index
    %c0_58 = arith.constant 0 : index
    %c0_59 = arith.constant 0 : index
    %120 = vector.load %arg19[%c0_57, %c0_58, %c0_59] : memref<4x32x128xf32, #tpu.memory_space<vmem>>, vector<4x32x128xf32>
    %c0_60 = arith.constant 0 : index
    %c0_61 = arith.constant 0 : index
    %c0_62 = arith.constant 0 : index
    %121 = vector.load %arg20[%c0_60, %c0_61, %c0_62] : memref<4x32x32xf32, #tpu.memory_space<vmem>>, vector<4x32x32xf32>
    %c0_63 = arith.constant 0 : index
    %c0_64 = arith.constant 0 : index
    %122 = vector.load %arg21[%c0_63, %c0_64] : memref<1x32xf32, #tpu.memory_space<vmem>>, vector<1x32xf32>
    %123 = vector.extract_strided_slice %120 {offsets = [0, 0, 0], sizes = [1, 32, 128], strides = [1, 1, 1]} : vector<4x32x128xf32> to vector<1x32x128xf32>
    %124 = vector.shape_cast %123 : vector<1x32x128xf32> to vector<32x128xf32>
    %cst_65 = arith.constant dense<0.000000e+00> : vector<32x32xf32>
    %125 = tpu.matmul %124, %118, %cst_65 {dimension_numbers = #tpu.dot_dimension_numbers<[1], [0], [0], [1], [0, 0, 1, 1], [], []>} : vector<32x128xf32>, vector<128x32xf32>, vector<32x32xf32> -> vector<32x32xf32>
    %126 = vector.extract_strided_slice %121 {offsets = [0, 0, 0], sizes = [1, 32, 32], strides = [1, 1, 1]} : vector<4x32x32xf32> to vector<1x32x32xf32>
    %127 = vector.shape_cast %126 : vector<1x32x32xf32> to vector<32x32xf32>
    %cst_66 = arith.constant dense<0.000000e+00> : vector<32x32xf32>
    %128 = tpu.matmul %125, %127, %cst_66 {dimension_numbers = #tpu.dot_dimension_numbers<[1], [0], [0], [1], [0, 0, 1, 1], [], []>} : vector<32x32xf32>, vector<32x32xf32>, vector<32x32xf32> -> vector<32x32xf32>
    %129 = vector.broadcast %122 : vector<1x32xf32> to vector<32x32xf32>
    %130 = arith.addf %129, %128 : vector<32x32xf32>
    %131 = vector.extract_strided_slice %120 {offsets = [1, 0, 0], sizes = [1, 32, 128], strides = [1, 1, 1]} : vector<4x32x128xf32> to vector<1x32x128xf32>
    %132 = vector.shape_cast %131 : vector<1x32x128xf32> to vector<32x128xf32>
    %cst_67 = arith.constant dense<0.000000e+00> : vector<32x32xf32>
    %133 = tpu.matmul %132, %118, %cst_67 {dimension_numbers = #tpu.dot_dimension_numbers<[1], [0], [0], [1], [0, 0, 1, 1], [], []>} : vector<32x128xf32>, vector<128x32xf32>, vector<32x32xf32> -> vector<32x32xf32>
    %134 = vector.extract_strided_slice %121 {offsets = [1, 0, 0], sizes = [1, 32, 32], strides = [1, 1, 1]} : vector<4x32x32xf32> to vector<1x32x32xf32>
    %135 = vector.shape_cast %134 : vector<1x32x32xf32> to vector<32x32xf32>
    %cst_68 = arith.constant dense<0.000000e+00> : vector<32x32xf32>
    %136 = tpu.matmul %133, %135, %cst_68 {dimension_numbers = #tpu.dot_dimension_numbers<[1], [0], [0], [1], [0, 0, 1, 1], [], []>} : vector<32x32xf32>, vector<32x32xf32>, vector<32x32xf32> -> vector<32x32xf32>
    %137 = arith.addf %130, %136 : vector<32x32xf32>
    %138 = vector.extract_strided_slice %120 {offsets = [2, 0, 0], sizes = [1, 32, 128], strides = [1, 1, 1]} : vector<4x32x128xf32> to vector<1x32x128xf32>
    %139 = vector.shape_cast %138 : vector<1x32x128xf32> to vector<32x128xf32>
    %cst_69 = arith.constant dense<0.000000e+00> : vector<32x32xf32>
    %140 = tpu.matmul %139, %118, %cst_69 {dimension_numbers = #tpu.dot_dimension_numbers<[1], [0], [0], [1], [0, 0, 1, 1], [], []>} : vector<32x128xf32>, vector<128x32xf32>, vector<32x32xf32> -> vector<32x32xf32>
    %141 = vector.extract_strided_slice %121 {offsets = [2, 0, 0], sizes = [1, 32, 32], strides = [1, 1, 1]} : vector<4x32x32xf32> to vector<1x32x32xf32>
    %142 = vector.shape_cast %141 : vector<1x32x32xf32> to vector<32x32xf32>
    %cst_70 = arith.constant dense<0.000000e+00> : vector<32x32xf32>
    %143 = tpu.matmul %140, %142, %cst_70 {dimension_numbers = #tpu.dot_dimension_numbers<[1], [0], [0], [1], [0, 0, 1, 1], [], []>} : vector<32x32xf32>, vector<32x32xf32>, vector<32x32xf32> -> vector<32x32xf32>
    %144 = arith.addf %137, %143 : vector<32x32xf32>
    %145 = vector.extract_strided_slice %120 {offsets = [3, 0, 0], sizes = [1, 32, 128], strides = [1, 1, 1]} : vector<4x32x128xf32> to vector<1x32x128xf32>
    %146 = vector.shape_cast %145 : vector<1x32x128xf32> to vector<32x128xf32>
    %cst_71 = arith.constant dense<0.000000e+00> : vector<32x32xf32>
    %147 = tpu.matmul %146, %118, %cst_71 {dimension_numbers = #tpu.dot_dimension_numbers<[1], [0], [0], [1], [0, 0, 1, 1], [], []>} : vector<32x128xf32>, vector<128x32xf32>, vector<32x32xf32> -> vector<32x32xf32>
    %148 = vector.extract_strided_slice %121 {offsets = [3, 0, 0], sizes = [1, 32, 32], strides = [1, 1, 1]} : vector<4x32x32xf32> to vector<1x32x32xf32>
    %149 = vector.shape_cast %148 : vector<1x32x32xf32> to vector<32x32xf32>
    %cst_72 = arith.constant dense<0.000000e+00> : vector<32x32xf32>
    %150 = tpu.matmul %147, %149, %cst_72 {dimension_numbers = #tpu.dot_dimension_numbers<[1], [0], [0], [1], [0, 0, 1, 1], [], []>} : vector<32x32xf32>, vector<32x32xf32>, vector<32x32xf32> -> vector<32x32xf32>
    %151 = arith.addf %144, %150 : vector<32x32xf32>
    %c0_73 = arith.constant 0 : index
    %c0_74 = arith.constant 0 : index
    %152 = vector.load %arg22[%c0_73, %c0_74] : memref<1x32xf32, #tpu.memory_space<vmem>>, vector<1x32xf32>
    %c0_75 = arith.constant 0 : index
    %c0_76 = arith.constant 0 : index
    %153 = vector.load %arg23[%c0_75, %c0_76] : memref<1x32xf32, #tpu.memory_space<vmem>>, vector<1x32xf32>
    %c0_77 = arith.constant 0 : index
    %c0_78 = arith.constant 0 : index
    %154 = vector.load %arg24[%c0_77, %c0_78] : memref<1x32xf32, #tpu.memory_space<vmem>>, vector<1x32xf32>
    %c0_79 = arith.constant 0 : index
    %c0_80 = arith.constant 0 : index
    %155 = vector.load %arg25[%c0_79, %c0_80] : memref<1x32xf32, #tpu.memory_space<vmem>>, vector<1x32xf32>
    %c0_81 = arith.constant 0 : index
    %c0_82 = arith.constant 0 : index
    %156 = vector.load %arg26[%c0_81, %c0_82] : memref<32x32xf32, #tpu.memory_space<vmem>>, vector<32x32xf32>
    %c0_83 = arith.constant 0 : index
    %c0_84 = arith.constant 0 : index
    %157 = vector.load %arg27[%c0_83, %c0_84] : memref<1x32xf32, #tpu.memory_space<vmem>>, vector<1x32xf32>
    %c0_85 = arith.constant 0 : index
    %c0_86 = arith.constant 0 : index
    %158 = vector.load %arg28[%c0_85, %c0_86] : memref<32x32xf32, #tpu.memory_space<vmem>>, vector<32x32xf32>
    %c0_87 = arith.constant 0 : index
    %c0_88 = arith.constant 0 : index
    %159 = vector.load %arg29[%c0_87, %c0_88] : memref<1x32xf32, #tpu.memory_space<vmem>>, vector<1x32xf32>
    %c0_89 = arith.constant 0 : index
    %c0_90 = arith.constant 0 : index
    %160 = vector.load %arg30[%c0_89, %c0_90] : memref<32x32xf32, #tpu.memory_space<vmem>>, vector<32x32xf32>
    %c0_91 = arith.constant 0 : index
    %c0_92 = arith.constant 0 : index
    %161 = vector.load %arg31[%c0_91, %c0_92] : memref<1x32xf32, #tpu.memory_space<vmem>>, vector<1x32xf32>
    %c0_93 = arith.constant 0 : index
    %c0_94 = arith.constant 0 : index
    %162 = vector.load %arg32[%c0_93, %c0_94] : memref<32x32xf32, #tpu.memory_space<vmem>>, vector<32x32xf32>
    %c0_95 = arith.constant 0 : index
    %c0_96 = arith.constant 0 : index
    %163 = vector.load %arg33[%c0_95, %c0_96] : memref<1x32xf32, #tpu.memory_space<vmem>>, vector<1x32xf32>
    %c0_97 = arith.constant 0 : index
    %c0_98 = arith.constant 0 : index
    %164 = vector.load %arg34[%c0_97, %c0_98] : memref<32x64xf32, #tpu.memory_space<vmem>>, vector<32x64xf32>
    %c0_99 = arith.constant 0 : index
    %c0_100 = arith.constant 0 : index
    %165 = vector.load %arg35[%c0_99, %c0_100] : memref<1x64xf32, #tpu.memory_space<vmem>>, vector<1x64xf32>
    %c0_101 = arith.constant 0 : index
    %c0_102 = arith.constant 0 : index
    %166 = vector.load %arg36[%c0_101, %c0_102] : memref<64x32xf32, #tpu.memory_space<vmem>>, vector<64x32xf32>
    %c0_103 = arith.constant 0 : index
    %c0_104 = arith.constant 0 : index
    %167 = vector.load %arg37[%c0_103, %c0_104] : memref<1x32xf32, #tpu.memory_space<vmem>>, vector<1x32xf32>
    %cst_105 = arith.constant dense<0.000000e+00> : vector<32xf32>
    %168 = vector.multi_reduction <add>, %151, %cst_105 [1] : vector<32x32xf32> to vector<32xf32>
    %169 = vector.shape_cast %168 : vector<32xf32> to vector<32x1xf32>
    %cst_106 = arith.constant 3.200000e+01 : f32
    %170 = vector.broadcast %cst_106 : f32 to vector<32x1xf32>
    %171 = arith.divf %169, %170 : vector<32x1xf32>
    %172 = vector.broadcast %171 : vector<32x1xf32> to vector<32x32xf32>
    %173 = arith.subf %151, %172 : vector<32x32xf32>
    %174 = arith.mulf %173, %173 : vector<32x32xf32>
    %cst_107 = arith.constant dense<0.000000e+00> : vector<32xf32>
    %175 = vector.multi_reduction <add>, %174, %cst_107 [1] : vector<32x32xf32> to vector<32xf32>
    %176 = vector.shape_cast %175 : vector<32xf32> to vector<32x1xf32>
    %cst_108 = arith.constant 3.200000e+01 : f32
    %177 = vector.broadcast %cst_108 : f32 to vector<32x1xf32>
    %178 = arith.divf %176, %177 : vector<32x1xf32>
    %cst_109 = arith.constant 9.99999997E-7 : f32
    %179 = vector.broadcast %cst_109 : f32 to vector<32x1xf32>
    %180 = arith.addf %178, %179 : vector<32x1xf32>
    %181 = math.rsqrt %180 : vector<32x1xf32>
    %182 = vector.broadcast %181 : vector<32x1xf32> to vector<32x32xf32>
    %183 = arith.mulf %173, %182 : vector<32x32xf32>
    %184 = vector.broadcast %152 : vector<1x32xf32> to vector<32x32xf32>
    %185 = arith.mulf %183, %184 : vector<32x32xf32>
    %186 = vector.broadcast %153 : vector<1x32xf32> to vector<32x32xf32>
    %187 = arith.addf %185, %186 : vector<32x32xf32>
    %cst_110 = arith.constant dense<0.000000e+00> : vector<32x32xf32>
    %188 = tpu.matmul %187, %156, %cst_110 {dimension_numbers = #tpu.dot_dimension_numbers<[1], [0], [0], [1], [0, 0, 1, 1], [], []>} : vector<32x32xf32>, vector<32x32xf32>, vector<32x32xf32> -> vector<32x32xf32>
    %189 = vector.broadcast %157 : vector<1x32xf32> to vector<32x32xf32>
    %190 = arith.addf %188, %189 : vector<32x32xf32>
    %cst_111 = arith.constant dense<0.000000e+00> : vector<32x32xf32>
    %191 = tpu.matmul %187, %158, %cst_111 {dimension_numbers = #tpu.dot_dimension_numbers<[1], [0], [0], [1], [0, 0, 1, 1], [], []>} : vector<32x32xf32>, vector<32x32xf32>, vector<32x32xf32> -> vector<32x32xf32>
    %192 = vector.broadcast %159 : vector<1x32xf32> to vector<32x32xf32>
    %193 = arith.addf %191, %192 : vector<32x32xf32>
    %cst_112 = arith.constant dense<0.000000e+00> : vector<32x32xf32>
    %194 = tpu.matmul %187, %160, %cst_112 {dimension_numbers = #tpu.dot_dimension_numbers<[1], [0], [0], [1], [0, 0, 1, 1], [], []>} : vector<32x32xf32>, vector<32x32xf32>, vector<32x32xf32> -> vector<32x32xf32>
    %195 = vector.broadcast %161 : vector<1x32xf32> to vector<32x32xf32>
    %196 = arith.addf %194, %195 : vector<32x32xf32>
    %197 = vector.extract_strided_slice %190 {offsets = [0, 0], sizes = [16, 32], strides = [1, 1]} : vector<32x32xf32> to vector<16x32xf32>
    %198 = vector.extract_strided_slice %190 {offsets = [16, 0], sizes = [16, 32], strides = [1, 1]} : vector<32x32xf32> to vector<16x32xf32>
    %199 = vector.extract_strided_slice %193 {offsets = [0, 0], sizes = [16, 32], strides = [1, 1]} : vector<32x32xf32> to vector<16x32xf32>
    %200 = vector.extract_strided_slice %193 {offsets = [16, 0], sizes = [16, 32], strides = [1, 1]} : vector<32x32xf32> to vector<16x32xf32>
    %201 = vector.extract_strided_slice %196 {offsets = [0, 0], sizes = [16, 32], strides = [1, 1]} : vector<32x32xf32> to vector<16x32xf32>
    %202 = vector.extract_strided_slice %196 {offsets = [16, 0], sizes = [16, 32], strides = [1, 1]} : vector<32x32xf32> to vector<16x32xf32>
    %203 = arith.mulf %197, %199 : vector<16x32xf32>
    %cst_113 = arith.constant dense<0.000000e+00> : vector<16x32xf32>
    %204 = tpu.matmul %203, %1, %cst_113 {dimension_numbers = #tpu.dot_dimension_numbers<[1], [0], [0], [1], [0, 0, 1, 1], [], []>} : vector<16x32xf32>, vector<32x32xf32>, vector<16x32xf32> -> vector<16x32xf32>
    %205 = arith.mulf %197, %200 : vector<16x32xf32>
    %cst_114 = arith.constant dense<0.000000e+00> : vector<16x32xf32>
    %206 = tpu.matmul %205, %1, %cst_114 {dimension_numbers = #tpu.dot_dimension_numbers<[1], [0], [0], [1], [0, 0, 1, 1], [], []>} : vector<16x32xf32>, vector<32x32xf32>, vector<16x32xf32> -> vector<16x32xf32>
    %207 = arith.mulf %198, %199 : vector<16x32xf32>
    %cst_115 = arith.constant dense<0.000000e+00> : vector<16x32xf32>
    %208 = tpu.matmul %207, %1, %cst_115 {dimension_numbers = #tpu.dot_dimension_numbers<[1], [0], [0], [1], [0, 0, 1, 1], [], []>} : vector<16x32xf32>, vector<32x32xf32>, vector<16x32xf32> -> vector<16x32xf32>
    %209 = arith.mulf %198, %200 : vector<16x32xf32>
    %cst_116 = arith.constant dense<0.000000e+00> : vector<16x32xf32>
    %210 = tpu.matmul %209, %1, %cst_116 {dimension_numbers = #tpu.dot_dimension_numbers<[1], [0], [0], [1], [0, 0, 1, 1], [], []>} : vector<16x32xf32>, vector<32x32xf32>, vector<16x32xf32> -> vector<16x32xf32>
    %211 = arith.maximumf %204, %206 : vector<16x32xf32>
    %212 = arith.subf %204, %211 : vector<16x32xf32>
    %213 = math.exp %212 : vector<16x32xf32>
    %214 = arith.subf %206, %211 : vector<16x32xf32>
    %215 = math.exp %214 : vector<16x32xf32>
    %216 = arith.addf %213, %215 : vector<16x32xf32>
    %217 = tpu.reciprocal %216 {approx = true} : vector<16x32xf32> -> vector<16x32xf32>
    %218 = arith.mulf %213, %217 : vector<16x32xf32>
    %219 = arith.mulf %218, %201 : vector<16x32xf32>
    %220 = arith.mulf %215, %217 : vector<16x32xf32>
    %221 = arith.mulf %220, %202 : vector<16x32xf32>
    %222 = arith.addf %219, %221 : vector<16x32xf32>
    %223 = arith.maximumf %208, %210 : vector<16x32xf32>
    %224 = arith.subf %208, %223 : vector<16x32xf32>
    %225 = math.exp %224 : vector<16x32xf32>
    %226 = arith.subf %210, %223 : vector<16x32xf32>
    %227 = math.exp %226 : vector<16x32xf32>
    %228 = arith.addf %225, %227 : vector<16x32xf32>
    %229 = tpu.reciprocal %228 {approx = true} : vector<16x32xf32> -> vector<16x32xf32>
    %230 = arith.mulf %225, %229 : vector<16x32xf32>
    %231 = arith.mulf %230, %201 : vector<16x32xf32>
    %232 = arith.mulf %227, %229 : vector<16x32xf32>
    %233 = arith.mulf %232, %202 : vector<16x32xf32>
    %234 = arith.addf %231, %233 : vector<16x32xf32>
    %235 = tpu.concatenate %222, %234 in 0 : vector<16x32xf32>, vector<16x32xf32> -> vector<32x32xf32>
    %cst_117 = arith.constant dense<0.000000e+00> : vector<32x32xf32>
    %236 = tpu.matmul %235, %162, %cst_117 {dimension_numbers = #tpu.dot_dimension_numbers<[1], [0], [0], [1], [0, 0, 1, 1], [], []>} : vector<32x32xf32>, vector<32x32xf32>, vector<32x32xf32> -> vector<32x32xf32>
    %237 = vector.broadcast %163 : vector<1x32xf32> to vector<32x32xf32>
    %238 = arith.addf %236, %237 : vector<32x32xf32>
    %239 = arith.addf %151, %238 : vector<32x32xf32>
    %cst_118 = arith.constant dense<0.000000e+00> : vector<32xf32>
    %240 = vector.multi_reduction <add>, %239, %cst_118 [1] : vector<32x32xf32> to vector<32xf32>
    %241 = vector.shape_cast %240 : vector<32xf32> to vector<32x1xf32>
    %cst_119 = arith.constant 3.200000e+01 : f32
    %242 = vector.broadcast %cst_119 : f32 to vector<32x1xf32>
    %243 = arith.divf %241, %242 : vector<32x1xf32>
    %244 = vector.broadcast %243 : vector<32x1xf32> to vector<32x32xf32>
    %245 = arith.subf %239, %244 : vector<32x32xf32>
    %246 = arith.mulf %245, %245 : vector<32x32xf32>
    %cst_120 = arith.constant dense<0.000000e+00> : vector<32xf32>
    %247 = vector.multi_reduction <add>, %246, %cst_120 [1] : vector<32x32xf32> to vector<32xf32>
    %248 = vector.shape_cast %247 : vector<32xf32> to vector<32x1xf32>
    %cst_121 = arith.constant 3.200000e+01 : f32
    %249 = vector.broadcast %cst_121 : f32 to vector<32x1xf32>
    %250 = arith.divf %248, %249 : vector<32x1xf32>
    %cst_122 = arith.constant 9.99999997E-7 : f32
    %251 = vector.broadcast %cst_122 : f32 to vector<32x1xf32>
    %252 = arith.addf %250, %251 : vector<32x1xf32>
    %253 = math.rsqrt %252 : vector<32x1xf32>
    %254 = vector.broadcast %253 : vector<32x1xf32> to vector<32x32xf32>
    %255 = arith.mulf %245, %254 : vector<32x32xf32>
    %256 = vector.broadcast %154 : vector<1x32xf32> to vector<32x32xf32>
    %257 = arith.mulf %255, %256 : vector<32x32xf32>
    %258 = vector.broadcast %155 : vector<1x32xf32> to vector<32x32xf32>
    %259 = arith.addf %257, %258 : vector<32x32xf32>
    %cst_123 = arith.constant dense<0.000000e+00> : vector<32x64xf32>
    %260 = tpu.matmul %259, %164, %cst_123 {dimension_numbers = #tpu.dot_dimension_numbers<[1], [0], [0], [1], [0, 0, 1, 1], [], []>} : vector<32x32xf32>, vector<32x64xf32>, vector<32x64xf32> -> vector<32x64xf32>
    %261 = vector.broadcast %165 : vector<1x64xf32> to vector<32x64xf32>
    %262 = arith.addf %260, %261 : vector<32x64xf32>
    %cst_124 = arith.constant 0.000000e+00 : f32
    %263 = vector.broadcast %cst_124 : f32 to vector<32x64xf32>
    %264 = arith.maximumf %262, %263 : vector<32x64xf32>
    %cst_125 = arith.constant dense<0.000000e+00> : vector<32x32xf32>
    %265 = tpu.matmul %264, %166, %cst_125 {dimension_numbers = #tpu.dot_dimension_numbers<[1], [0], [0], [1], [0, 0, 1, 1], [], []>} : vector<32x64xf32>, vector<64x32xf32>, vector<32x32xf32> -> vector<32x32xf32>
    %266 = vector.broadcast %167 : vector<1x32xf32> to vector<32x32xf32>
    %267 = arith.addf %265, %266 : vector<32x32xf32>
    %268 = arith.addf %239, %267 : vector<32x32xf32>
    %c0_126 = arith.constant 0 : index
    %c0_127 = arith.constant 0 : index
    %269 = vector.load %arg58[%c0_126, %c0_127] : memref<32x32xf32, #tpu.memory_space<vmem>>, vector<32x32xf32>
    tpu.vector_store %arg58[%c0_126, %c0_127], %268 {strides = array<i32>} : memref<32x32xf32, #tpu.memory_space<vmem>>, vector<32x32xf32>,
    %c0_128 = arith.constant 0 : index
    %c0_129 = arith.constant 0 : index
    %c0_130 = arith.constant 0 : index
    %270 = vector.load %arg38[%c0_128, %c0_129, %c0_130] : memref<4x8x32xf32, #tpu.memory_space<vmem>>, vector<4x8x32xf32>
    %c0_131 = arith.constant 0 : index
    %c0_132 = arith.constant 0 : index
    %c0_133 = arith.constant 0 : index
    %271 = vector.load %arg39[%c0_131, %c0_132, %c0_133] : memref<4x32x32xf32, #tpu.memory_space<vmem>>, vector<4x32x32xf32>
    %c0_134 = arith.constant 0 : index
    %c0_135 = arith.constant 0 : index
    %272 = vector.load %arg40[%c0_134, %c0_135] : memref<1x32xf32, #tpu.memory_space<vmem>>, vector<1x32xf32>
    %273 = vector.extract_strided_slice %270 {offsets = [0, 0, 0], sizes = [1, 8, 32], strides = [1, 1, 1]} : vector<4x8x32xf32> to vector<1x8x32xf32>
    %274 = vector.shape_cast %273 : vector<1x8x32xf32> to vector<8x32xf32>
    %cst_136 = arith.constant dense<0.000000e+00> : vector<8x32xf32>
    %275 = tpu.matmul %274, %268, %cst_136 {dimension_numbers = #tpu.dot_dimension_numbers<[1], [0], [0], [1], [0, 0, 1, 1], [], []>} : vector<8x32xf32>, vector<32x32xf32>, vector<8x32xf32> -> vector<8x32xf32>
    %276 = vector.extract_strided_slice %271 {offsets = [0, 0, 0], sizes = [1, 32, 32], strides = [1, 1, 1]} : vector<4x32x32xf32> to vector<1x32x32xf32>
    %277 = vector.shape_cast %276 : vector<1x32x32xf32> to vector<32x32xf32>
    %cst_137 = arith.constant dense<0.000000e+00> : vector<8x32xf32>
    %278 = tpu.matmul %275, %277, %cst_137 {dimension_numbers = #tpu.dot_dimension_numbers<[1], [0], [0], [1], [0, 0, 1, 1], [], []>} : vector<8x32xf32>, vector<32x32xf32>, vector<8x32xf32> -> vector<8x32xf32>
    %279 = vector.broadcast %272 : vector<1x32xf32> to vector<8x32xf32>
    %280 = arith.addf %279, %278 : vector<8x32xf32>
    %281 = vector.extract_strided_slice %270 {offsets = [1, 0, 0], sizes = [1, 8, 32], strides = [1, 1, 1]} : vector<4x8x32xf32> to vector<1x8x32xf32>
    %282 = vector.shape_cast %281 : vector<1x8x32xf32> to vector<8x32xf32>
    %cst_138 = arith.constant dense<0.000000e+00> : vector<8x32xf32>
    %283 = tpu.matmul %282, %268, %cst_138 {dimension_numbers = #tpu.dot_dimension_numbers<[1], [0], [0], [1], [0, 0, 1, 1], [], []>} : vector<8x32xf32>, vector<32x32xf32>, vector<8x32xf32> -> vector<8x32xf32>
    %284 = vector.extract_strided_slice %271 {offsets = [1, 0, 0], sizes = [1, 32, 32], strides = [1, 1, 1]} : vector<4x32x32xf32> to vector<1x32x32xf32>
    %285 = vector.shape_cast %284 : vector<1x32x32xf32> to vector<32x32xf32>
    %cst_139 = arith.constant dense<0.000000e+00> : vector<8x32xf32>
    %286 = tpu.matmul %283, %285, %cst_139 {dimension_numbers = #tpu.dot_dimension_numbers<[1], [0], [0], [1], [0, 0, 1, 1], [], []>} : vector<8x32xf32>, vector<32x32xf32>, vector<8x32xf32> -> vector<8x32xf32>
    %287 = arith.addf %280, %286 : vector<8x32xf32>
    %288 = vector.extract_strided_slice %270 {offsets = [2, 0, 0], sizes = [1, 8, 32], strides = [1, 1, 1]} : vector<4x8x32xf32> to vector<1x8x32xf32>
    %289 = vector.shape_cast %288 : vector<1x8x32xf32> to vector<8x32xf32>
    %cst_140 = arith.constant dense<0.000000e+00> : vector<8x32xf32>
    %290 = tpu.matmul %289, %268, %cst_140 {dimension_numbers = #tpu.dot_dimension_numbers<[1], [0], [0], [1], [0, 0, 1, 1], [], []>} : vector<8x32xf32>, vector<32x32xf32>, vector<8x32xf32> -> vector<8x32xf32>
    %291 = vector.extract_strided_slice %271 {offsets = [2, 0, 0], sizes = [1, 32, 32], strides = [1, 1, 1]} : vector<4x32x32xf32> to vector<1x32x32xf32>
    %292 = vector.shape_cast %291 : vector<1x32x32xf32> to vector<32x32xf32>
    %cst_141 = arith.constant dense<0.000000e+00> : vector<8x32xf32>
    %293 = tpu.matmul %290, %292, %cst_141 {dimension_numbers = #tpu.dot_dimension_numbers<[1], [0], [0], [1], [0, 0, 1, 1], [], []>} : vector<8x32xf32>, vector<32x32xf32>, vector<8x32xf32> -> vector<8x32xf32>
    %294 = arith.addf %287, %293 : vector<8x32xf32>
    %295 = vector.extract_strided_slice %270 {offsets = [3, 0, 0], sizes = [1, 8, 32], strides = [1, 1, 1]} : vector<4x8x32xf32> to vector<1x8x32xf32>
    %296 = vector.shape_cast %295 : vector<1x8x32xf32> to vector<8x32xf32>
    %cst_142 = arith.constant dense<0.000000e+00> : vector<8x32xf32>
    %297 = tpu.matmul %296, %268, %cst_142 {dimension_numbers = #tpu.dot_dimension_numbers<[1], [0], [0], [1], [0, 0, 1, 1], [], []>} : vector<8x32xf32>, vector<32x32xf32>, vector<8x32xf32> -> vector<8x32xf32>
    %298 = vector.extract_strided_slice %271 {offsets = [3, 0, 0], sizes = [1, 32, 32], strides = [1, 1, 1]} : vector<4x32x32xf32> to vector<1x32x32xf32>
    %299 = vector.shape_cast %298 : vector<1x32x32xf32> to vector<32x32xf32>
    %cst_143 = arith.constant dense<0.000000e+00> : vector<8x32xf32>
    %300 = tpu.matmul %297, %299, %cst_143 {dimension_numbers = #tpu.dot_dimension_numbers<[1], [0], [0], [1], [0, 0, 1, 1], [], []>} : vector<8x32xf32>, vector<32x32xf32>, vector<8x32xf32> -> vector<8x32xf32>
    %301 = arith.addf %294, %300 : vector<8x32xf32>
    %c0_144 = arith.constant 0 : index
    %c0_145 = arith.constant 0 : index
    %302 = vector.load %arg41[%c0_144, %c0_145] : memref<1x32xf32, #tpu.memory_space<vmem>>, vector<1x32xf32>
    %c0_146 = arith.constant 0 : index
    %c0_147 = arith.constant 0 : index
    %303 = vector.load %arg42[%c0_146, %c0_147] : memref<1x32xf32, #tpu.memory_space<vmem>>, vector<1x32xf32>
    %c0_148 = arith.constant 0 : index
    %c0_149 = arith.constant 0 : index
    %304 = vector.load %arg43[%c0_148, %c0_149] : memref<1x32xf32, #tpu.memory_space<vmem>>, vector<1x32xf32>
    %c0_150 = arith.constant 0 : index
    %c0_151 = arith.constant 0 : index
    %305 = vector.load %arg44[%c0_150, %c0_151] : memref<1x32xf32, #tpu.memory_space<vmem>>, vector<1x32xf32>
    %c0_152 = arith.constant 0 : index
    %c0_153 = arith.constant 0 : index
    %306 = vector.load %arg45[%c0_152, %c0_153] : memref<32x32xf32, #tpu.memory_space<vmem>>, vector<32x32xf32>
    %c0_154 = arith.constant 0 : index
    %c0_155 = arith.constant 0 : index
    %307 = vector.load %arg46[%c0_154, %c0_155] : memref<1x32xf32, #tpu.memory_space<vmem>>, vector<1x32xf32>
    %c0_156 = arith.constant 0 : index
    %c0_157 = arith.constant 0 : index
    %308 = vector.load %arg47[%c0_156, %c0_157] : memref<32x32xf32, #tpu.memory_space<vmem>>, vector<32x32xf32>
    %c0_158 = arith.constant 0 : index
    %c0_159 = arith.constant 0 : index
    %309 = vector.load %arg48[%c0_158, %c0_159] : memref<1x32xf32, #tpu.memory_space<vmem>>, vector<1x32xf32>
    %c0_160 = arith.constant 0 : index
    %c0_161 = arith.constant 0 : index
    %310 = vector.load %arg49[%c0_160, %c0_161] : memref<32x32xf32, #tpu.memory_space<vmem>>, vector<32x32xf32>
    %c0_162 = arith.constant 0 : index
    %c0_163 = arith.constant 0 : index
    %311 = vector.load %arg50[%c0_162, %c0_163] : memref<1x32xf32, #tpu.memory_space<vmem>>, vector<1x32xf32>
    %c0_164 = arith.constant 0 : index
    %c0_165 = arith.constant 0 : index
    %312 = vector.load %arg51[%c0_164, %c0_165] : memref<32x32xf32, #tpu.memory_space<vmem>>, vector<32x32xf32>
    %c0_166 = arith.constant 0 : index
    %c0_167 = arith.constant 0 : index
    %313 = vector.load %arg52[%c0_166, %c0_167] : memref<1x32xf32, #tpu.memory_space<vmem>>, vector<1x32xf32>
    %c0_168 = arith.constant 0 : index
    %c0_169 = arith.constant 0 : index
    %314 = vector.load %arg53[%c0_168, %c0_169] : memref<32x64xf32, #tpu.memory_space<vmem>>, vector<32x64xf32>
    %c0_170 = arith.constant 0 : index
    %c0_171 = arith.constant 0 : index
    %315 = vector.load %arg54[%c0_170, %c0_171] : memref<1x64xf32, #tpu.memory_space<vmem>>, vector<1x64xf32>
    %c0_172 = arith.constant 0 : index
    %c0_173 = arith.constant 0 : index
    %316 = vector.load %arg55[%c0_172, %c0_173] : memref<64x32xf32, #tpu.memory_space<vmem>>, vector<64x32xf32>
    %c0_174 = arith.constant 0 : index
    %c0_175 = arith.constant 0 : index
    %317 = vector.load %arg56[%c0_174, %c0_175] : memref<1x32xf32, #tpu.memory_space<vmem>>, vector<1x32xf32>
    %cst_176 = arith.constant dense<0.000000e+00> : vector<8xf32>
    %318 = vector.multi_reduction <add>, %301, %cst_176 [1] : vector<8x32xf32> to vector<8xf32>
    %319 = vector.shape_cast %318 : vector<8xf32> to vector<8x1xf32>
    %cst_177 = arith.constant 3.200000e+01 : f32
    %320 = vector.broadcast %cst_177 : f32 to vector<8x1xf32>
    %321 = arith.divf %319, %320 : vector<8x1xf32>
    %322 = vector.broadcast %321 : vector<8x1xf32> to vector<8x32xf32>
    %323 = arith.subf %301, %322 : vector<8x32xf32>
    %324 = arith.mulf %323, %323 : vector<8x32xf32>
    %cst_178 = arith.constant dense<0.000000e+00> : vector<8xf32>
    %325 = vector.multi_reduction <add>, %324, %cst_178 [1] : vector<8x32xf32> to vector<8xf32>
    %326 = vector.shape_cast %325 : vector<8xf32> to vector<8x1xf32>
    %cst_179 = arith.constant 3.200000e+01 : f32
    %327 = vector.broadcast %cst_179 : f32 to vector<8x1xf32>
    %328 = arith.divf %326, %327 : vector<8x1xf32>
    %cst_180 = arith.constant 9.99999997E-7 : f32
    %329 = vector.broadcast %cst_180 : f32 to vector<8x1xf32>
    %330 = arith.addf %328, %329 : vector<8x1xf32>
    %331 = math.rsqrt %330 : vector<8x1xf32>
    %332 = vector.broadcast %331 : vector<8x1xf32> to vector<8x32xf32>
    %333 = arith.mulf %323, %332 : vector<8x32xf32>
    %334 = vector.broadcast %302 : vector<1x32xf32> to vector<8x32xf32>
    %335 = arith.mulf %333, %334 : vector<8x32xf32>
    %336 = vector.broadcast %303 : vector<1x32xf32> to vector<8x32xf32>
    %337 = arith.addf %335, %336 : vector<8x32xf32>
    %cst_181 = arith.constant dense<0.000000e+00> : vector<8x32xf32>
    %338 = tpu.matmul %337, %306, %cst_181 {dimension_numbers = #tpu.dot_dimension_numbers<[1], [0], [0], [1], [0, 0, 1, 1], [], []>} : vector<8x32xf32>, vector<32x32xf32>, vector<8x32xf32> -> vector<8x32xf32>
    %339 = vector.broadcast %307 : vector<1x32xf32> to vector<8x32xf32>
    %340 = arith.addf %338, %339 : vector<8x32xf32>
    %cst_182 = arith.constant dense<0.000000e+00> : vector<8x32xf32>
    %341 = tpu.matmul %337, %308, %cst_182 {dimension_numbers = #tpu.dot_dimension_numbers<[1], [0], [0], [1], [0, 0, 1, 1], [], []>} : vector<8x32xf32>, vector<32x32xf32>, vector<8x32xf32> -> vector<8x32xf32>
    %342 = vector.broadcast %309 : vector<1x32xf32> to vector<8x32xf32>
    %343 = arith.addf %341, %342 : vector<8x32xf32>
    %cst_183 = arith.constant dense<0.000000e+00> : vector<8x32xf32>
    %344 = tpu.matmul %337, %310, %cst_183 {dimension_numbers = #tpu.dot_dimension_numbers<[1], [0], [0], [1], [0, 0, 1, 1], [], []>} : vector<8x32xf32>, vector<32x32xf32>, vector<8x32xf32> -> vector<8x32xf32>
    %345 = vector.broadcast %311 : vector<1x32xf32> to vector<8x32xf32>
    %346 = arith.addf %344, %345 : vector<8x32xf32>
    %347 = vector.extract_strided_slice %340 {offsets = [0, 0], sizes = [4, 32], strides = [1, 1]} : vector<8x32xf32> to vector<4x32xf32>
    %348 = vector.extract_strided_slice %340 {offsets = [4, 0], sizes = [4, 32], strides = [1, 1]} : vector<8x32xf32> to vector<4x32xf32>
    %349 = vector.extract_strided_slice %343 {offsets = [0, 0], sizes = [4, 32], strides = [1, 1]} : vector<8x32xf32> to vector<4x32xf32>
    %350 = vector.extract_strided_slice %343 {offsets = [4, 0], sizes = [4, 32], strides = [1, 1]} : vector<8x32xf32> to vector<4x32xf32>
    %351 = vector.extract_strided_slice %346 {offsets = [0, 0], sizes = [4, 32], strides = [1, 1]} : vector<8x32xf32> to vector<4x32xf32>
    %352 = vector.extract_strided_slice %346 {offsets = [4, 0], sizes = [4, 32], strides = [1, 1]} : vector<8x32xf32> to vector<4x32xf32>
    %353 = arith.mulf %347, %349 : vector<4x32xf32>
    %cst_184 = arith.constant dense<0.000000e+00> : vector<4x32xf32>
    %354 = tpu.matmul %353, %1, %cst_184 {dimension_numbers = #tpu.dot_dimension_numbers<[1], [0], [0], [1], [0, 0, 1, 1], [], []>} : vector<4x32xf32>, vector<32x32xf32>, vector<4x32xf32> -> vector<4x32xf32>
    %355 = arith.mulf %347, %350 : vector<4x32xf32>
    %cst_185 = arith.constant dense<0.000000e+00> : vector<4x32xf32>
    %356 = tpu.matmul %355, %1, %cst_185 {dimension_numbers = #tpu.dot_dimension_numbers<[1], [0], [0], [1], [0, 0, 1, 1], [], []>} : vector<4x32xf32>, vector<32x32xf32>, vector<4x32xf32> -> vector<4x32xf32>
    %357 = arith.mulf %348, %349 : vector<4x32xf32>
    %cst_186 = arith.constant dense<0.000000e+00> : vector<4x32xf32>
    %358 = tpu.matmul %357, %1, %cst_186 {dimension_numbers = #tpu.dot_dimension_numbers<[1], [0], [0], [1], [0, 0, 1, 1], [], []>} : vector<4x32xf32>, vector<32x32xf32>, vector<4x32xf32> -> vector<4x32xf32>
    %359 = arith.mulf %348, %350 : vector<4x32xf32>
    %cst_187 = arith.constant dense<0.000000e+00> : vector<4x32xf32>
    %360 = tpu.matmul %359, %1, %cst_187 {dimension_numbers = #tpu.dot_dimension_numbers<[1], [0], [0], [1], [0, 0, 1, 1], [], []>} : vector<4x32xf32>, vector<32x32xf32>, vector<4x32xf32> -> vector<4x32xf32>
    %361 = arith.maximumf %354, %356 : vector<4x32xf32>
    %362 = arith.subf %354, %361 : vector<4x32xf32>
    %363 = math.exp %362 : vector<4x32xf32>
    %364 = arith.subf %356, %361 : vector<4x32xf32>
    %365 = math.exp %364 : vector<4x32xf32>
    %366 = arith.addf %363, %365 : vector<4x32xf32>
    %367 = tpu.reciprocal %366 {approx = true} : vector<4x32xf32> -> vector<4x32xf32>
    %368 = arith.mulf %363, %367 : vector<4x32xf32>
    %369 = arith.mulf %368, %351 : vector<4x32xf32>
    %370 = arith.mulf %365, %367 : vector<4x32xf32>
    %371 = arith.mulf %370, %352 : vector<4x32xf32>
    %372 = arith.addf %369, %371 : vector<4x32xf32>
    %373 = arith.maximumf %358, %360 : vector<4x32xf32>
    %374 = arith.subf %358, %373 : vector<4x32xf32>
    %375 = math.exp %374 : vector<4x32xf32>
    %376 = arith.subf %360, %373 : vector<4x32xf32>
    %377 = math.exp %376 : vector<4x32xf32>
    %378 = arith.addf %375, %377 : vector<4x32xf32>
    %379 = tpu.reciprocal %378 {approx = true} : vector<4x32xf32> -> vector<4x32xf32>
    %380 = arith.mulf %375, %379 : vector<4x32xf32>
    %381 = arith.mulf %380, %351 : vector<4x32xf32>
    %382 = arith.mulf %377, %379 : vector<4x32xf32>
    %383 = arith.mulf %382, %352 : vector<4x32xf32>
    %384 = arith.addf %381, %383 : vector<4x32xf32>
    %385 = tpu.concatenate %372, %384 in 0 : vector<4x32xf32>, vector<4x32xf32> -> vector<8x32xf32>
    %cst_188 = arith.constant dense<0.000000e+00> : vector<8x32xf32>
    %386 = tpu.matmul %385, %312, %cst_188 {dimension_numbers = #tpu.dot_dimension_numbers<[1], [0], [0], [1], [0, 0, 1, 1], [], []>} : vector<8x32xf32>, vector<32x32xf32>, vector<8x32xf32> -> vector<8x32xf32>
    %387 = vector.broadcast %313 : vector<1x32xf32> to vector<8x32xf32>
    %388 = arith.addf %386, %387 : vector<8x32xf32>
    %389 = arith.addf %301, %388 : vector<8x32xf32>
    %cst_189 = arith.constant dense<0.000000e+00> : vector<8xf32>
    %390 = vector.multi_reduction <add>, %389, %cst_189 [1] : vector<8x32xf32> to vector<8xf32>
    %391 = vector.shape_cast %390 : vector<8xf32> to vector<8x1xf32>
    %cst_190 = arith.constant 3.200000e+01 : f32
    %392 = vector.broadcast %cst_190 : f32 to vector<8x1xf32>
    %393 = arith.divf %391, %392 : vector<8x1xf32>
    %394 = vector.broadcast %393 : vector<8x1xf32> to vector<8x32xf32>
    %395 = arith.subf %389, %394 : vector<8x32xf32>
    %396 = arith.mulf %395, %395 : vector<8x32xf32>
    %cst_191 = arith.constant dense<0.000000e+00> : vector<8xf32>
    %397 = vector.multi_reduction <add>, %396, %cst_191 [1] : vector<8x32xf32> to vector<8xf32>
    %398 = vector.shape_cast %397 : vector<8xf32> to vector<8x1xf32>
    %cst_192 = arith.constant 3.200000e+01 : f32
    %399 = vector.broadcast %cst_192 : f32 to vector<8x1xf32>
    %400 = arith.divf %398, %399 : vector<8x1xf32>
    %cst_193 = arith.constant 9.99999997E-7 : f32
    %401 = vector.broadcast %cst_193 : f32 to vector<8x1xf32>
    %402 = arith.addf %400, %401 : vector<8x1xf32>
    %403 = math.rsqrt %402 : vector<8x1xf32>
    %404 = vector.broadcast %403 : vector<8x1xf32> to vector<8x32xf32>
    %405 = arith.mulf %395, %404 : vector<8x32xf32>
    %406 = vector.broadcast %304 : vector<1x32xf32> to vector<8x32xf32>
    %407 = arith.mulf %405, %406 : vector<8x32xf32>
    %408 = vector.broadcast %305 : vector<1x32xf32> to vector<8x32xf32>
    %409 = arith.addf %407, %408 : vector<8x32xf32>
    %cst_194 = arith.constant dense<0.000000e+00> : vector<8x64xf32>
    %410 = tpu.matmul %409, %314, %cst_194 {dimension_numbers = #tpu.dot_dimension_numbers<[1], [0], [0], [1], [0, 0, 1, 1], [], []>} : vector<8x32xf32>, vector<32x64xf32>, vector<8x64xf32> -> vector<8x64xf32>
    %411 = vector.broadcast %315 : vector<1x64xf32> to vector<8x64xf32>
    %412 = arith.addf %410, %411 : vector<8x64xf32>
    %cst_195 = arith.constant 0.000000e+00 : f32
    %413 = vector.broadcast %cst_195 : f32 to vector<8x64xf32>
    %414 = arith.maximumf %412, %413 : vector<8x64xf32>
    %cst_196 = arith.constant dense<0.000000e+00> : vector<8x32xf32>
    %415 = tpu.matmul %414, %316, %cst_196 {dimension_numbers = #tpu.dot_dimension_numbers<[1], [0], [0], [1], [0, 0, 1, 1], [], []>} : vector<8x64xf32>, vector<64x32xf32>, vector<8x32xf32> -> vector<8x32xf32>
    %416 = vector.broadcast %317 : vector<1x32xf32> to vector<8x32xf32>
    %417 = arith.addf %415, %416 : vector<8x32xf32>
    %418 = arith.addf %389, %417 : vector<8x32xf32>
    %c0_197 = arith.constant 0 : index
    %c0_198 = arith.constant 0 : index
    %419 = vector.load %arg59[%c0_197, %c0_198] : memref<8x32xf32, #tpu.memory_space<vmem>>, vector<8x32xf32>
    tpu.vector_store %arg59[%c0_197, %c0_198], %418 {strides = array<i32>} : memref<8x32xf32, #tpu.memory_space<vmem>>, vector<8x32xf32>,
    return
  }
  func.func @transform_0(%arg0: i32) -> (i32, i32) {
    %c0_i32 = arith.constant 0 : i32
    %c0_i32_0 = arith.constant 0 : i32
    %c0_i32_1 = arith.constant 0 : i32
    return %c0_i32, %c0_i32_0 : i32, i32
  }
  func.func @transform_1(%arg0: i32) -> (i32, i32) {
    %c0_i32 = arith.constant 0 : i32
    %c0_i32_0 = arith.constant 0 : i32
    %c0_i32_1 = arith.constant 0 : i32
    return %c0_i32, %c0_i32_0 : i32, i32
  }
  func.func @transform_2(%arg0: i32) -> (i32, i32) {
    %c0_i32 = arith.constant 0 : i32
    %c0_i32_0 = arith.constant 0 : i32
    %c0_i32_1 = arith.constant 0 : i32
    return %c0_i32, %c0_i32_0 : i32, i32
  }
  func.func @transform_3(%arg0: i32) -> (i32, i32) {
    %c0_i32 = arith.constant 0 : i32
    %c0_i32_0 = arith.constant 0 : i32
    %c0_i32_1 = arith.constant 0 : i32
    return %c0_i32, %c0_i32_0 : i32, i32
  }
  func.func @transform_4(%arg0: i32) -> (i32, i32) {
    %c0_i32 = arith.constant 0 : i32
    %c0_i32_0 = arith.constant 0 : i32
    %c0_i32_1 = arith.constant 0 : i32
    return %c0_i32, %c0_i32_0 : i32, i32
  }
  func.func @transform_5(%arg0: i32) -> (i32, i32) {
    %c0_i32 = arith.constant 0 : i32
    %c0_i32_0 = arith.constant 0 : i32
    %c0_i32_1 = arith.constant 0 : i32
    return %c0_i32, %c0_i32_0 : i32, i32
  }
  func.func @transform_6(%arg0: i32) -> (i32, i32) {
    %c0_i32 = arith.constant 0 : i32
    %c0_i32_0 = arith.constant 0 : i32
    %c0_i32_1 = arith.constant 0 : i32
    return %c0_i32, %c0_i32_0 : i32, i32
  }
  func.func @transform_7(%arg0: i32) -> (i32, i32) {
    %c0_i32 = arith.constant 0 : i32
    %c0_i32_0 = arith.constant 0 : i32
    %c0_i32_1 = arith.constant 0 : i32
    return %c0_i32, %c0_i32_0 : i32, i32
  }
  func.func @transform_8(%arg0: i32) -> (i32, i32) {
    %c0_i32 = arith.constant 0 : i32
    %c0_i32_0 = arith.constant 0 : i32
    %c0_i32_1 = arith.constant 0 : i32
    return %c0_i32, %c0_i32_0 : i32, i32
  }
  func.func @transform_9(%arg0: i32) -> (i32, i32) {
    %c0_i32 = arith.constant 0 : i32
    %c0_i32_0 = arith.constant 0 : i32
    %c0_i32_1 = arith.constant 0 : i32
    return %c0_i32, %c0_i32_0 : i32, i32
  }
  func.func @transform_10(%arg0: i32) -> (i32, i32) {
    %c0_i32 = arith.constant 0 : i32
    %c0_i32_0 = arith.constant 0 : i32
    %c0_i32_1 = arith.constant 0 : i32
    return %c0_i32, %c0_i32_0 : i32, i32
  }
  func.func @transform_11(%arg0: i32) -> (i32, i32) {
    %c0_i32 = arith.constant 0 : i32
    %c0_i32_0 = arith.constant 0 : i32
    %c0_i32_1 = arith.constant 0 : i32
    return %c0_i32, %c0_i32_0 : i32, i32
  }
  func.func @transform_12(%arg0: i32) -> (i32, i32) {
    %c0_i32 = arith.constant 0 : i32
    %c0_i32_0 = arith.constant 0 : i32
    %c0_i32_1 = arith.constant 0 : i32
    return %c0_i32, %c0_i32_0 : i32, i32
  }
  func.func @transform_13(%arg0: i32) -> (i32, i32) {
    %c0_i32 = arith.constant 0 : i32
    %c0_i32_0 = arith.constant 0 : i32
    %c0_i32_1 = arith.constant 0 : i32
    return %c0_i32, %c0_i32_0 : i32, i32
  }
  func.func @transform_14(%arg0: i32) -> (i32, i32) {
    %c0_i32 = arith.constant 0 : i32
    %c0_i32_0 = arith.constant 0 : i32
    %c0_i32_1 = arith.constant 0 : i32
    return %c0_i32, %c0_i32_0 : i32, i32
  }
  func.func @transform_15(%arg0: i32) -> (i32, i32) {
    %c0_i32 = arith.constant 0 : i32
    %c0_i32_0 = arith.constant 0 : i32
    %c0_i32_1 = arith.constant 0 : i32
    return %c0_i32, %c0_i32_0 : i32, i32
  }
  func.func @transform_16(%arg0: i32) -> (i32, i32) {
    %c0_i32 = arith.constant 0 : i32
    %c0_i32_0 = arith.constant 0 : i32
    %c0_i32_1 = arith.constant 0 : i32
    return %c0_i32, %c0_i32_0 : i32, i32
  }
  func.func @transform_17(%arg0: i32) -> (i32, i32) {
    %c0_i32 = arith.constant 0 : i32
    %c0_i32_0 = arith.constant 0 : i32
    %c0_i32_1 = arith.constant 0 : i32
    return %c0_i32, %c0_i32_0 : i32, i32
  }
  func.func @transform_18(%arg0: i32) -> (i32, i32, i32) {
    %c0_i32 = arith.constant 0 : i32
    %c0_i32_0 = arith.constant 0 : i32
    %c0_i32_1 = arith.constant 0 : i32
    %c0_i32_2 = arith.constant 0 : i32
    return %c0_i32, %c0_i32_0, %c0_i32_1 : i32, i32, i32
  }
  func.func @transform_19(%arg0: i32) -> (i32, i32, i32) {
    %c0_i32 = arith.constant 0 : i32
    %c0_i32_0 = arith.constant 0 : i32
    %c0_i32_1 = arith.constant 0 : i32
    %c0_i32_2 = arith.constant 0 : i32
    return %c0_i32, %c0_i32_0, %c0_i32_1 : i32, i32, i32
  }
  func.func @transform_20(%arg0: i32) -> (i32, i32) {
    %c0_i32 = arith.constant 0 : i32
    %c0_i32_0 = arith.constant 0 : i32
    %c0_i32_1 = arith.constant 0 : i32
    return %c0_i32, %c0_i32_0 : i32, i32
  }
  func.func @transform_21(%arg0: i32) -> (i32, i32) {
    %c0_i32 = arith.constant 0 : i32
    %c0_i32_0 = arith.constant 0 : i32
    %c0_i32_1 = arith.constant 0 : i32
    return %c0_i32, %c0_i32_0 : i32, i32
  }
  func.func @transform_22(%arg0: i32) -> (i32, i32) {
    %c0_i32 = arith.constant 0 : i32
    %c0_i32_0 = arith.constant 0 : i32
    %c0_i32_1 = arith.constant 0 : i32
    return %c0_i32, %c0_i32_0 : i32, i32
  }
  func.func @transform_23(%arg0: i32) -> (i32, i32) {
    %c0_i32 = arith.constant 0 : i32
    %c0_i32_0 = arith.constant 0 : i32
    %c0_i32_1 = arith.constant 0 : i32
    return %c0_i32, %c0_i32_0 : i32, i32
  }
  func.func @transform_24(%arg0: i32) -> (i32, i32) {
    %c0_i32 = arith.constant 0 : i32
    %c0_i32_0 = arith.constant 0 : i32
    %c0_i32_1 = arith.constant 0 : i32
    return %c0_i32, %c0_i32_0 : i32, i32
  }
  func.func @transform_25(%arg0: i32) -> (i32, i32) {
    %c0_i32 = arith.constant 0 : i32
    %c0_i32_0 = arith.constant 0 : i32
    %c0_i32_1 = arith.constant 0 : i32
    return %c0_i32, %c0_i32_0 : i32, i32
  }
  func.func @transform_26(%arg0: i32) -> (i32, i32) {
    %c0_i32 = arith.constant 0 : i32
    %c0_i32_0 = arith.constant 0 : i32
    %c0_i32_1 = arith.constant 0 : i32
    return %c0_i32, %c0_i32_0 : i32, i32
  }
  func.func @transform_27(%arg0: i32) -> (i32, i32) {
    %c0_i32 = arith.constant 0 : i32
    %c0_i32_0 = arith.constant 0 : i32
    %c0_i32_1 = arith.constant 0 : i32
    return %c0_i32, %c0_i32_0 : i32, i32
  }
  func.func @transform_28(%arg0: i32) -> (i32, i32) {
    %c0_i32 = arith.constant 0 : i32
    %c0_i32_0 = arith.constant 0 : i32
    %c0_i32_1 = arith.constant 0 : i32
    return %c0_i32, %c0_i32_0 : i32, i32
  }
  func.func @transform_29(%arg0: i32) -> (i32, i32) {
    %c0_i32 = arith.constant 0 : i32
    %c0_i32_0 = arith.constant 0 : i32
    %c0_i32_1 = arith.constant 0 : i32
    return %c0_i32, %c0_i32_0 : i32, i32
  }
  func.func @transform_30(%arg0: i32) -> (i32, i32) {
    %c0_i32 = arith.constant 0 : i32
    %c0_i32_0 = arith.constant 0 : i32
    %c0_i32_1 = arith.constant 0 : i32
    return %c0_i32, %c0_i32_0 : i32, i32
  }
  func.func @transform_31(%arg0: i32) -> (i32, i32) {
    %c0_i32 = arith.constant 0 : i32
    %c0_i32_0 = arith.constant 0 : i32
    %c0_i32_1 = arith.constant 0 : i32
    return %c0_i32, %c0_i32_0 : i32, i32
  }
  func.func @transform_32(%arg0: i32) -> (i32, i32) {
    %c0_i32 = arith.constant 0 : i32
    %c0_i32_0 = arith.constant 0 : i32
    %c0_i32_1 = arith.constant 0 : i32
    return %c0_i32, %c0_i32_0 : i32, i32
  }
  func.func @transform_33(%arg0: i32) -> (i32, i32) {
    %c0_i32 = arith.constant 0 : i32
    %c0_i32_0 = arith.constant 0 : i32
    %c0_i32_1 = arith.constant 0 : i32
    return %c0_i32, %c0_i32_0 : i32, i32
  }
  func.func @transform_34(%arg0: i32) -> (i32, i32) {
    %c0_i32 = arith.constant 0 : i32
    %c0_i32_0 = arith.constant 0 : i32
    %c0_i32_1 = arith.constant 0 : i32
    return %c0_i32, %c0_i32_0 : i32, i32
  }
  func.func @transform_35(%arg0: i32) -> (i32, i32) {
    %c0_i32 = arith.constant 0 : i32
    %c0_i32_0 = arith.constant 0 : i32
    %c0_i32_1 = arith.constant 0 : i32
    return %c0_i32, %c0_i32_0 : i32, i32
  }
  func.func @transform_36(%arg0: i32) -> (i32, i32) {
    %c0_i32 = arith.constant 0 : i32
    %c0_i32_0 = arith.constant 0 : i32
    %c0_i32_1 = arith.constant 0 : i32
    return %c0_i32, %c0_i32_0 : i32, i32
  }
  func.func @transform_37(%arg0: i32) -> (i32, i32, i32) {
    %c0_i32 = arith.constant 0 : i32
    %c0_i32_0 = arith.constant 0 : i32
    %c0_i32_1 = arith.constant 0 : i32
    %c0_i32_2 = arith.constant 0 : i32
    return %c0_i32, %c0_i32_0, %c0_i32_1 : i32, i32, i32
  }
  func.func @transform_38(%arg0: i32) -> (i32, i32, i32) {
    %c0_i32 = arith.constant 0 : i32
    %c0_i32_0 = arith.constant 0 : i32
    %c0_i32_1 = arith.constant 0 : i32
    %c0_i32_2 = arith.constant 0 : i32
    return %c0_i32, %c0_i32_0, %c0_i32_1 : i32, i32, i32
  }
  func.func @transform_39(%arg0: i32) -> (i32, i32) {
    %c0_i32 = arith.constant 0 : i32
    %c0_i32_0 = arith.constant 0 : i32
    %c0_i32_1 = arith.constant 0 : i32
    return %c0_i32, %c0_i32_0 : i32, i32
  }
  func.func @transform_40(%arg0: i32) -> (i32, i32) {
    %c0_i32 = arith.constant 0 : i32
    %c0_i32_0 = arith.constant 0 : i32
    %c0_i32_1 = arith.constant 0 : i32
    return %c0_i32, %c0_i32_0 : i32, i32
  }
  func.func @transform_41(%arg0: i32) -> (i32, i32) {
    %c0_i32 = arith.constant 0 : i32
    %c0_i32_0 = arith.constant 0 : i32
    %c0_i32_1 = arith.constant 0 : i32
    return %c0_i32, %c0_i32_0 : i32, i32
  }
  func.func @transform_42(%arg0: i32) -> (i32, i32) {
    %c0_i32 = arith.constant 0 : i32
    %c0_i32_0 = arith.constant 0 : i32
    %c0_i32_1 = arith.constant 0 : i32
    return %c0_i32, %c0_i32_0 : i32, i32
  }
  func.func @transform_43(%arg0: i32) -> (i32, i32) {
    %c0_i32 = arith.constant 0 : i32
    %c0_i32_0 = arith.constant 0 : i32
    %c0_i32_1 = arith.constant 0 : i32
    return %c0_i32, %c0_i32_0 : i32, i32
  }
  func.func @transform_44(%arg0: i32) -> (i32, i32) {
    %c0_i32 = arith.constant 0 : i32
    %c0_i32_0 = arith.constant 0 : i32
    %c0_i32_1 = arith.constant 0 : i32
    return %c0_i32, %c0_i32_0 : i32, i32
  }
  func.func @transform_45(%arg0: i32) -> (i32, i32) {
    %c0_i32 = arith.constant 0 : i32
    %c0_i32_0 = arith.constant 0 : i32
    %c0_i32_1 = arith.constant 0 : i32
    return %c0_i32, %c0_i32_0 : i32, i32
  }
  func.func @transform_46(%arg0: i32) -> (i32, i32) {
    %c0_i32 = arith.constant 0 : i32
    %c0_i32_0 = arith.constant 0 : i32
    %c0_i32_1 = arith.constant 0 : i32
    return %c0_i32, %c0_i32_0 : i32, i32
  }
  func.func @transform_47(%arg0: i32) -> (i32, i32) {
    %c0_i32 = arith.constant 0 : i32
    %c0_i32_0 = arith.constant 0 : i32
    %c0_i32_1 = arith.constant 0 : i32
    return %c0_i32, %c0_i32_0 : i32, i32
  }
  func.func @transform_48(%arg0: i32) -> (i32, i32) {
    %c0_i32 = arith.constant 0 : i32
    %c0_i32_0 = arith.constant 0 : i32
    %c0_i32_1 = arith.constant 0 : i32
    return %c0_i32, %c0_i32_0 : i32, i32
  }
  func.func @transform_49(%arg0: i32) -> (i32, i32) {
    %c0_i32 = arith.constant 0 : i32
    %c0_i32_0 = arith.constant 0 : i32
    %c0_i32_1 = arith.constant 0 : i32
    return %c0_i32, %c0_i32_0 : i32, i32
  }
  func.func @transform_50(%arg0: i32) -> (i32, i32) {
    %c0_i32 = arith.constant 0 : i32
    %c0_i32_0 = arith.constant 0 : i32
    %c0_i32_1 = arith.constant 0 : i32
    return %c0_i32, %c0_i32_0 : i32, i32
  }
  func.func @transform_51(%arg0: i32) -> (i32, i32) {
    %c0_i32 = arith.constant 0 : i32
    %c0_i32_0 = arith.constant 0 : i32
    %c0_i32_1 = arith.constant 0 : i32
    return %c0_i32, %c0_i32_0 : i32, i32
  }
  func.func @transform_52(%arg0: i32) -> (i32, i32) {
    %c0_i32 = arith.constant 0 : i32
    %c0_i32_0 = arith.constant 0 : i32
    %c0_i32_1 = arith.constant 0 : i32
    return %c0_i32, %c0_i32_0 : i32, i32
  }
  func.func @transform_53(%arg0: i32) -> (i32, i32) {
    %c0_i32 = arith.constant 0 : i32
    %c0_i32_0 = arith.constant 0 : i32
    %c0_i32_1 = arith.constant 0 : i32
    return %c0_i32, %c0_i32_0 : i32, i32
  }
  func.func @transform_54(%arg0: i32) -> (i32, i32) {
    %c0_i32 = arith.constant 0 : i32
    %c0_i32_0 = arith.constant 0 : i32
    %c0_i32_1 = arith.constant 0 : i32
    return %c0_i32, %c0_i32_0 : i32, i32
  }
  func.func @transform_55(%arg0: i32) -> (i32, i32) {
    %c0_i32 = arith.constant 0 : i32
    %c0_i32_0 = arith.constant 0 : i32
    %c0_i32_1 = arith.constant 0 : i32
    return %c0_i32, %c0_i32_0 : i32, i32
  }
  func.func @transform_56(%arg0: i32) -> (i32, i32) {
    %c0_i32 = arith.constant 0 : i32
    %c0_i32_0 = arith.constant 0 : i32
    %c0_i32_1 = arith.constant 0 : i32
    return %c0_i32, %c0_i32_0 : i32, i32
  }
  func.func @transform_57(%arg0: i32) -> (i32, i32) {
    %c0_i32 = arith.constant 0 : i32
    %c0_i32_0 = arith.constant 0 : i32
    %c0_i32_1 = arith.constant 0 : i32
    return %c0_i32, %c0_i32_0 : i32, i32
  }
  func.func @transform_58(%arg0: i32) -> (i32, i32) {
    %c0_i32 = arith.constant 0 : i32
    %c0_i32_0 = arith.constant 0 : i32
    %c0_i32_1 = arith.constant 0 : i32
    return %c0_i32, %c0_i32_0 : i32, i32
  }
}

</mosaic_0001>

<llo_original>
// kernel: forward.1
$region0: #{forward.1}
  #allocation0 [shape = 'u32[]', space=smem, size = 0x4, offset = 0x4, fixed_abs, tag = 'smem constant byte address 0x4 - core index']
  #allocation1 [shape = 'u32[144,128]{1,0:T(1,128)}', space=vmem, size = 0x12000, scoped, tag = 'internal scratch']
  %s0 = inlined_call_operand.smem [shape: u32[59], index: -1, kind: input, shape index: {}]
  %s1 = sld [smem:[%s0]]
  %s2 = scalar_lea.smem %s0, 1
  %s3 = sld [smem:[%s2]]
  %s4 = scalar_lea.smem %s0, 2
  %s5 = sld [smem:[%s4]]
  %s6 = scalar_lea.smem %s0, 3
  %s7 = sld [smem:[%s6]]
  %s8 = scalar_lea.smem %s0, 4
  %s9 = sld [smem:[%s8]]
  %s10 = scalar_lea.smem %s0, 5
  %s11 = sld [smem:[%s10]]
  %s12 = scalar_lea.smem %s0, 6
  %s13 = sld [smem:[%s12]]
  %s14 = scalar_lea.smem %s0, 7
  %s15 = sld [smem:[%s14]]
  %s16 = scalar_lea.smem %s0, 8
  %s17 = sld [smem:[%s16]]
  %s18 = scalar_lea.smem %s0, 9
  %s19 = sld [smem:[%s18]]
  %s20 = scalar_lea.smem %s0, 10
  %s21 = sld [smem:[%s20]]
  %s22 = scalar_lea.smem %s0, 11
  %s23 = sld [smem:[%s22]]
  %s24 = scalar_lea.smem %s0, 12
  %s25 = sld [smem:[%s24]]
  %s26 = scalar_lea.smem %s0, 13
  %s27 = sld [smem:[%s26]]
  %s28 = scalar_lea.smem %s0, 14
  %s29 = sld [smem:[%s28]]
  %s30 = scalar_lea.smem %s0, 15
  %s31 = sld [smem:[%s30]]
  %s32 = scalar_lea.smem %s0, 16
  %s33 = sld [smem:[%s32]]
  %s34 = scalar_lea.smem %s0, 17
  %s35 = sld [smem:[%s34]]
  %s36 = scalar_lea.smem %s0, 18
  %s37 = sld [smem:[%s36]]
  %s38 = scalar_lea.smem %s0, 19
  %s39 = sld [smem:[%s38]]
  %s40 = scalar_lea.smem %s0, 20
  %s41 = sld [smem:[%s40]]
  %s42 = scalar_lea.smem %s0, 21
  %s43 = sld [smem:[%s42]]
  %s44 = scalar_lea.smem %s0, 22
  %s45 = sld [smem:[%s44]]
  %s46 = scalar_lea.smem %s0, 23
  %s47 = sld [smem:[%s46]]
  %s48 = scalar_lea.smem %s0, 24
  %s49 = sld [smem:[%s48]]
  %s50 = scalar_lea.smem %s0, 25
  %s51 = sld [smem:[%s50]]
  %s52 = scalar_lea.smem %s0, 26
  %s53 = sld [smem:[%s52]]
  %s54 = scalar_lea.smem %s0, 27
  %s55 = sld [smem:[%s54]]
  %s56 = scalar_lea.smem %s0, 28
  %s57 = sld [smem:[%s56]]
  %s58 = scalar_lea.smem %s0, 29
  %s59 = sld [smem:[%s58]]
  %s60 = scalar_lea.smem %s0, 30
  %s61 = sld [smem:[%s60]]
  %s62 = scalar_lea.smem %s0, 31
  %s63 = sld [smem:[%s62]]
  %s64 = scalar_lea.smem %s0, 32
  %s65 = sld [smem:[%s64]]
  %s66 = scalar_lea.smem %s0, 33
  %s67 = sld [smem:[%s66]]
  %s68 = scalar_lea.smem %s0, 34
  %s69 = sld [smem:[%s68]]
  %s70 = scalar_lea.smem %s0, 35
  %s71 = sld [smem:[%s70]]
  %s72 = scalar_lea.smem %s0, 36
  %s73 = sld [smem:[%s72]]
  %s74 = scalar_lea.smem %s0, 37
  %s75 = sld [smem:[%s74]]
  %s76 = scalar_lea.smem %s0, 38
  %s77 = sld [smem:[%s76]]
  %s78 = scalar_lea.smem %s0, 39
  %s79 = sld [smem:[%s78]]
  %s80 = scalar_lea.smem %s0, 40
  %s81 = sld [smem:[%s80]]
  %s82 = scalar_lea.smem %s0, 41
  %s83 = sld [smem:[%s82]]
  %s84 = scalar_lea.smem %s0, 42
  %s85 = sld [smem:[%s84]]
  %s86 = scalar_lea.smem %s0, 43
  %s87 = sld [smem:[%s86]]
  %s88 = scalar_lea.smem %s0, 44
  %s89 = sld [smem:[%s88]]
  %s90 = scalar_lea.smem %s0, 45
  %s91 = sld [smem:[%s90]]
  %s92 = scalar_lea.smem %s0, 46
  %s93 = sld [smem:[%s92]]
  %s94 = scalar_lea.smem %s0, 47
  %s95 = sld [smem:[%s94]]
  %s96 = scalar_lea.smem %s0, 48
  %s97 = sld [smem:[%s96]]
  %s98 = scalar_lea.smem %s0, 49
  %s99 = sld [smem:[%s98]]
  %s100 = scalar_lea.smem %s0, 50
  %s101 = sld [smem:[%s100]]
  %s102 = scalar_lea.smem %s0, 51
  %s103 = sld [smem:[%s102]]
  %s104 = scalar_lea.smem %s0, 52
  %s105 = sld [smem:[%s104]]
  %s106 = scalar_lea.smem %s0, 53
  %s107 = sld [smem:[%s106]]
  %s108 = scalar_lea.smem %s0, 54
  %s109 = sld [smem:[%s108]]
  %s110 = scalar_lea.smem %s0, 55
  %s111 = sld [smem:[%s110]]
  %s112 = scalar_lea.smem %s0, 56
  %s113 = sld [smem:[%s112]]
  %s114 = scalar_lea.smem %s0, 57
  %s115 = sld [smem:[%s114]]
  %s116 = scalar_lea.smem %s0, 58
  %s117 = sld [smem:[%s116]]
  %118 = xla_tuple %s113, %s115, %s117
  %s119 = sld [smem:[#allocation0]]
  $region398: #{forward.1} parent=0
    _
  %s121 = ssub.s32 1, %s119
  %s122 = scalar_select 0, %s121, %s119
  $region1: #{forward.1} parent=0
    #allocation2 [shape = 'u8[16384]{0}', space=vmem, size = 0x4000, scoped, tag = 'input window, operand 1, single buffered']
    #allocation3 [shape = 's32[1]{0}', space=sflag, size = 0x4, scoped, tag = 'scoped memory for forward.1']
    #allocation4 [shape = 's32[1]{0}', space=sflag, size = 0x4, scoped, tag = 'scoped memory for forward.1']
    #allocation5 [shape = 'u8[512]{0}', space=vmem, size = 0x400, scoped, tag = 'input window, operand 5, single buffered']
    #allocation6 [shape = 's32[1]{0}', space=sflag, size = 0x4, scoped, tag = 'scoped memory for forward.1']
    #allocation7 [shape = 'u8[16384]{0}', space=vmem, size = 0x4000, scoped, tag = 'input window, operand 6, single buffered']
    #allocation8 [shape = 'u8[512]{0}', space=vmem, size = 0x400, scoped, tag = 'input window, operand 7, single buffered']
    #allocation9 [shape = 's32[1]{0}', space=sflag, size = 0x4, scoped, tag = 'scoped memory for forward.1']
    #allocation10 [shape = 'u8[16384]{0}', space=vmem, size = 0x4000, scoped, tag = 'input window, operand 8, single buffered']
    #allocation11 [shape = 'u8[512]{0}', space=vmem, size = 0x400, scoped, tag = 'input window, operand 9, single buffered']
    #allocation12 [shape = 's32[1]{0}', space=sflag, size = 0x4, scoped, tag = 'scoped memory for forward.1']
    #allocation13 [shape = 'u8[16384]{0}', space=vmem, size = 0x4000, scoped, tag = 'input window, operand 10, single buffered']
    #allocation14 [shape = 'u8[512]{0}', space=vmem, size = 0x400, scoped, tag = 'input window, operand 11, single buffered']
    #allocation15 [shape = 's32[1]{0}', space=sflag, size = 0x4, scoped, tag = 'scoped memory for forward.1']
    #allocation16 [shape = 'u8[16384]{0}', space=vmem, size = 0x4000, scoped, tag = 'input window, operand 12, single buffered']
    #allocation17 [shape = 'u8[512]{0}', space=vmem, size = 0x400, scoped, tag = 'input window, operand 13, single buffered']
    #allocation18 [shape = 's32[1]{0}', space=sflag, size = 0x4, scoped, tag = 'scoped memory for forward.1']
    #allocation19 [shape = 'u8[16384]{0}', space=vmem, size = 0x4000, scoped, tag = 'input window, operand 14, single buffered']
    #allocation20 [shape = 'u8[512]{0}', space=vmem, size = 0x400, scoped, tag = 'input window, operand 15, single buffered']
    #allocation21 [shape = 's32[1]{0}', space=sflag, size = 0x4, scoped, tag = 'scoped memory for forward.1']
    #allocation22 [shape = 'u8[512]{0}', space=vmem, size = 0x400, scoped, tag = 'input window, operand 17, single buffered']
    #allocation23 [shape = 'u8[512]{0}', space=vmem, size = 0x400, scoped, tag = 'input window, operand 20, single buffered']
    #allocation24 [shape = 's32[1]{0}', space=sflag, size = 0x4, scoped, tag = 'scoped memory for forward.1']
    #allocation25 [shape = 'u8[512]{0}', space=vmem, size = 0x400, scoped, tag = 'input window, operand 21, single buffered']
    #allocation26 [shape = 'u8[512]{0}', space=vmem, size = 0x400, scoped, tag = 'input window, operand 22, single buffered']
    #allocation27 [shape = 's32[1]{0}', space=sflag, size = 0x4, scoped, tag = 'scoped memory for forward.1']
    #allocation28 [shape = 'u8[512]{0}', space=vmem, size = 0x400, scoped, tag = 'input window, operand 23, single buffered']
    #allocation29 [shape = 'u8[512]{0}', space=vmem, size = 0x400, scoped, tag = 'input window, operand 24, single buffered']
    #allocation30 [shape = 's32[1]{0}', space=sflag, size = 0x4, scoped, tag = 'scoped memory for forward.1']
    #allocation31 [shape = 'u8[16384]{0}', space=vmem, size = 0x4000, scoped, tag = 'input window, operand 25, single buffered']
    #allocation32 [shape = 'u8[512]{0}', space=vmem, size = 0x400, scoped, tag = 'input window, operand 26, single buffered']
    #allocation33 [shape = 's32[1]{0}', space=sflag, size = 0x4, scoped, tag = 'scoped memory for forward.1']
    #allocation34 [shape = 'u8[512]{0}', space=vmem, size = 0x400, scoped, tag = 'input window, operand 28, single buffered']
    #allocation35 [shape = 'u8[16384]{0}', space=vmem, size = 0x4000, scoped, tag = 'input window, operand 29, single buffered']
    #allocation36 [shape = 's32[1]{0}', space=sflag, size = 0x4, scoped, tag = 'scoped memory for forward.1']
    #allocation37 [shape = 'u8[512]{0}', space=vmem, size = 0x400, scoped, tag = 'input window, operand 30, single buffered']
    #allocation38 [shape = 'u8[16384]{0}', space=vmem, size = 0x4000, scoped, tag = 'input window, operand 31, single buffered']
    #allocation39 [shape = 's32[1]{0}', space=sflag, size = 0x4, scoped, tag = 'scoped memory for forward.1']
    #allocation40 [shape = 'u8[512]{0}', space=vmem, size = 0x400, scoped, tag = 'input window, operand 32, single buffered']
    #allocation41 [shape = 'u8[16384]{0}', space=vmem, size = 0x4000, scoped, tag = 'input window, operand 33, single buffered']
    #allocation42 [shape = 's32[1]{0}', space=sflag, size = 0x4, scoped, tag = 'scoped memory for forward.1']
    #allocation43 [shape = 'u8[512]{0}', space=vmem, size = 0x400, scoped, tag = 'input window, operand 34, single buffered']
    #allocation44 [shape = 'u8[512]{0}', space=vmem, size = 0x400, scoped, tag = 'input window, operand 42, single buffered']
    #allocation45 [shape = 's32[1]{0}', space=sflag, size = 0x4, scoped, tag = 'scoped memory for forward.1']
    #allocation46 [shape = 'u8[512]{0}', space=vmem, size = 0x400, scoped, tag = 'input window, operand 43, single buffered']
    #allocation47 [shape = 'u8[512]{0}', space=vmem, size = 0x400, scoped, tag = 'input window, operand 45, single buffered']
    #allocation48 [shape = 's32[1]{0}', space=sflag, size = 0x4, scoped, tag = 'scoped memory for forward.1']
    #allocation49 [shape = 'u8[16384]{0}', space=vmem, size = 0x4000, scoped, tag = 'input window, operand 46, single buffered']
    #allocation50 [shape = 'u8[512]{0}', space=vmem, size = 0x400, scoped, tag = 'input window, operand 47, single buffered']
    #allocation51 [shape = 's32[1]{0}', space=sflag, size = 0x4, scoped, tag = 'scoped memory for forward.1']
    #allocation52 [shape = 'u8[16384]{0}', space=vmem, size = 0x4000, scoped, tag = 'input window, operand 48, single buffered']
    #allocation53 [shape = 'u8[512]{0}', space=vmem, size = 0x400, scoped, tag = 'input window, operand 49, single buffered']
    #allocation54 [shape = 's32[1]{0}', space=sflag, size = 0x4, scoped, tag = 'scoped memory for forward.1']
    #allocation55 [shape = 'u8[16384]{0}', space=vmem, size = 0x4000, scoped, tag = 'input window, operand 50, single buffered']
    #allocation56 [shape = 'u8[512]{0}', space=vmem, size = 0x400, scoped, tag = 'input window, operand 51, single buffered']
    #allocation57 [shape = 's32[1]{0}', space=sflag, size = 0x4, scoped, tag = 'scoped memory for forward.1']
    #allocation58 [shape = 'u8[512]{0}', space=vmem, size = 0x400, scoped, tag = 'input window, operand 53, single buffered']
    #allocation59 [shape = 'u8[16384]{0}', space=vmem, size = 0x4000, scoped, tag = 'output window, operand 1, single buffered']
    #allocation60 [shape = 'u8[4096]{0}', space=vmem, size = 0x1000, scoped, tag = 'output window, operand 2, single buffered']
    #allocation61 [shape = 's32[1]{0}', space=sflag, size = 0x4, scoped, tag = 'scoped memory for forward.1']
    %123 = vsyncpa [#allocation3], 0
    %124 = vsyncpa [#allocation6], 0
    %125 = vsyncpa [#allocation9], 0
    %126 = vsyncpa [#allocation12], 0
    %127 = vsyncpa [#allocation15], 0
    %128 = vsyncpa [#allocation18], 0
    %129 = vsyncpa [#allocation21], 0
    %130 = vsyncpa [#allocation24], 0
    %131 = vsyncpa [#allocation27], 0
    %132 = vsyncpa [#allocation30], 0
    %133 = vsyncpa [#allocation33], 0
    %134 = vsyncpa [#allocation36], 0
    %135 = vsyncpa [#allocation39], 0
    %136 = vsyncpa [#allocation42], 0
    %137 = vsyncpa [#allocation45], 0
    %138 = vsyncpa [#allocation48], 0
    %139 = vsyncpa [#allocation51], 0
    %140 = vsyncpa [#allocation54], 0
    %141 = vsyncpa [#allocation57], 0
    %142 = vsyncpa [#allocation4], 0
    %143 = vsyncpa [#allocation61], 0
    // Predicated region
    $region2: #{forward.1} parent=1 // pred_check
      _
    $region3: #{forward.1} parent=1 // pred_check_branch
      %145 = sbr.rel (0) target = $region5
    $region4: #{forward.1} parent=1 // pred_region
      _
    $region5: #{forward.1} parent=1 // pred_fallthru
      _
    // Predicated region
    $region6: #{forward.1} parent=1 // pred_check
      _
    $region7: #{forward.1} parent=1 // pred_check_branch
      %147 = sbr.rel (0) target = $region9
    $region8: #{forward.1} parent=1 // pred_region
      %s149 = ssub.s32 512, 512
      %150 = vsyncadd [#allocation3], %s149
      %s151 = sshll.u32 [#allocation2], 4
      %s152 = int_to_ptr.vmem [resolvable:$true] %s151
      %157 = dma.hbm_to_vmem [thread:$0]  %s3, 512, %s152, [#allocation3], 128, 128, 8
    $region9: #{forward.1} parent=1 // pred_fallthru
      _
    // Predicated region
    $region10: #{forward.1} parent=1 // pred_check
      _
    $region11: #{forward.1} parent=1 // pred_check_branch
      %159 = sbr.rel (0) target = $region13
    $region12: #{forward.1} parent=1 // pred_region
      _
    $region13: #{forward.1} parent=1 // pred_fallthru
      _
    // Predicated region
    $region14: #{forward.1} parent=1 // pred_check
      _
    $region15: #{forward.1} parent=1 // pred_check_branch
      %161 = sbr.rel (0) target = $region17
    $region16: #{forward.1} parent=1 // pred_region
      _
    $region17: #{forward.1} parent=1 // pred_fallthru
      _
    // Predicated region
    $region18: #{forward.1} parent=1 // pred_check
      _
    $region19: #{forward.1} parent=1 // pred_check_branch
      %163 = sbr.rel (0) target = $region21
    $region20: #{forward.1} parent=1 // pred_region
      _
    $region21: #{forward.1} parent=1 // pred_fallthru
      _
    // Predicated region
    $region22: #{forward.1} parent=1 // pred_check
      _
    $region23: #{forward.1} parent=1 // pred_check_branch
      %165 = sbr.rel (0) target = $region25
    $region24: #{forward.1} parent=1 // pred_region
      %s167 = ssub.s32 16, 16
      %168 = vsyncadd [#allocation6], %s167
      %s170 = sshll.u32 [#allocation5], 4
      %s171 = int_to_ptr.vmem [resolvable:$true] %s170
      %173 = dma.hbm_to_vmem [thread:$0]  %s11, 16, %s171, [#allocation6]
    $region25: #{forward.1} parent=1 // pred_fallthru
      _
    // Predicated region
    $region26: #{forward.1} parent=1 // pred_check
      _
    $region27: #{forward.1} parent=1 // pred_check_branch
      %175 = sbr.rel (0) target = $region29
    $region28: #{forward.1} parent=1 // pred_region
      %s177 = ssub.s32 512, 512
      %178 = vsyncadd [#allocation6], %s177
      %s179 = sshll.u32 [#allocation7], 4
      %s180 = int_to_ptr.vmem [resolvable:$true] %s179
      %185 = dma.hbm_to_vmem [thread:$0]  %s13, 512, %s180, [#allocation6], 128, 128, 8
    $region29: #{forward.1} parent=1 // pred_fallthru
      _
    // Predicated region
    $region30: #{forward.1} parent=1 // pred_check
      _
    $region31: #{forward.1} parent=1 // pred_check_branch
      %187 = sbr.rel (0) target = $region33
    $region32: #{forward.1} parent=1 // pred_region
      %s189 = ssub.s32 16, 16
      %190 = vsyncadd [#allocation9], %s189
      %s192 = sshll.u32 [#allocation8], 4
      %s193 = int_to_ptr.vmem [resolvable:$true] %s192
      %195 = dma.hbm_to_vmem [thread:$0]  %s15, 16, %s193, [#allocation9]
    $region33: #{forward.1} parent=1 // pred_fallthru
      _
    // Predicated region
    $region34: #{forward.1} parent=1 // pred_check
      _
    $region35: #{forward.1} parent=1 // pred_check_branch
      %197 = sbr.rel (0) target = $region37
    $region36: #{forward.1} parent=1 // pred_region
      %s199 = ssub.s32 512, 512
      %200 = vsyncadd [#allocation9], %s199
      %s201 = sshll.u32 [#allocation10], 4
      %s202 = int_to_ptr.vmem [resolvable:$true] %s201
      %207 = dma.hbm_to_vmem [thread:$0]  %s17, 512, %s202, [#allocation9], 128, 128, 8
    $region37: #{forward.1} parent=1 // pred_fallthru
      _
    // Predicated region
    $region38: #{forward.1} parent=1 // pred_check
      _
    $region39: #{forward.1} parent=1 // pred_check_branch
      %209 = sbr.rel (0) target = $region41
    $region40: #{forward.1} parent=1 // pred_region
      %s211 = ssub.s32 16, 16
      %212 = vsyncadd [#allocation12], %s211
      %s214 = sshll.u32 [#allocation11], 4
      %s215 = int_to_ptr.vmem [resolvable:$true] %s214
      %217 = dma.hbm_to_vmem [thread:$0]  %s19, 16, %s215, [#allocation12]
    $region41: #{forward.1} parent=1 // pred_fallthru
      _
    // Predicated region
    $region42: #{forward.1} parent=1 // pred_check
      _
    $region43: #{forward.1} parent=1 // pred_check_branch
      %219 = sbr.rel (0) target = $region45
    $region44: #{forward.1} parent=1 // pred_region
      %s221 = ssub.s32 512, 512
      %222 = vsyncadd [#allocation12], %s221
      %s223 = sshll.u32 [#allocation13], 4
      %s224 = int_to_ptr.vmem [resolvable:$true] %s223
      %229 = dma.hbm_to_vmem [thread:$0]  %s21, 512, %s224, [#allocation12], 128, 128, 8
    $region45: #{forward.1} parent=1 // pred_fallthru
      _
    // Predicated region
    $region46: #{forward.1} parent=1 // pred_check
      _
    $region47: #{forward.1} parent=1 // pred_check_branch
      %231 = sbr.rel (0) target = $region49
    $region48: #{forward.1} parent=1 // pred_region
      %s233 = ssub.s32 16, 16
      %234 = vsyncadd [#allocation15], %s233
      %s236 = sshll.u32 [#allocation14], 4
      %s237 = int_to_ptr.vmem [resolvable:$true] %s236
      %239 = dma.hbm_to_vmem [thread:$0]  %s23, 16, %s237, [#allocation15]
    $region49: #{forward.1} parent=1 // pred_fallthru
      _
    // Predicated region
    $region50: #{forward.1} parent=1 // pred_check
      _
    $region51: #{forward.1} parent=1 // pred_check_branch
      %241 = sbr.rel (0) target = $region53
    $region52: #{forward.1} parent=1 // pred_region
      %s243 = ssub.s32 512, 512
      %244 = vsyncadd [#allocation15], %s243
      %s245 = sshll.u32 [#allocation16], 4
      %s246 = int_to_ptr.vmem [resolvable:$true] %s245
      %251 = dma.hbm_to_vmem [thread:$0]  %s25, 512, %s246, [#allocation15], 128, 128, 8
    $region53: #{forward.1} parent=1 // pred_fallthru
      _
    // Predicated region
    $region54: #{forward.1} parent=1 // pred_check
      _
    $region55: #{forward.1} parent=1 // pred_check_branch
      %253 = sbr.rel (0) target = $region57
    $region56: #{forward.1} parent=1 // pred_region
      %s255 = ssub.s32 16, 16
      %256 = vsyncadd [#allocation18], %s255
      %s258 = sshll.u32 [#allocation17], 4
      %s259 = int_to_ptr.vmem [resolvable:$true] %s258
      %261 = dma.hbm_to_vmem [thread:$0]  %s27, 16, %s259, [#allocation18]
    $region57: #{forward.1} parent=1 // pred_fallthru
      _
    // Predicated region
    $region58: #{forward.1} parent=1 // pred_check
      _
    $region59: #{forward.1} parent=1 // pred_check_branch
      %263 = sbr.rel (0) target = $region61
    $region60: #{forward.1} parent=1 // pred_region
      %s265 = ssub.s32 512, 512
      %266 = vsyncadd [#allocation18], %s265
      %s267 = sshll.u32 [#allocation19], 4
      %s268 = int_to_ptr.vmem [resolvable:$true] %s267
      %273 = dma.hbm_to_vmem [thread:$0]  %s29, 512, %s268, [#allocation18], 128, 128, 8
    $region61: #{forward.1} parent=1 // pred_fallthru
      _
    // Predicated region
    $region62: #{forward.1} parent=1 // pred_check
      _
    $region63: #{forward.1} parent=1 // pred_check_branch
      %275 = sbr.rel (0) target = $region65
    $region64: #{forward.1} parent=1 // pred_region
      %s277 = ssub.s32 16, 16
      %278 = vsyncadd [#allocation21], %s277
      %s280 = sshll.u32 [#allocation20], 4
      %s281 = int_to_ptr.vmem [resolvable:$true] %s280
      %283 = dma.hbm_to_vmem [thread:$0]  %s31, 16, %s281, [#allocation21]
    $region65: #{forward.1} parent=1 // pred_fallthru
      _
    // Predicated region
    $region66: #{forward.1} parent=1 // pred_check
      _
    $region67: #{forward.1} parent=1 // pred_check_branch
      %285 = sbr.rel (0) target = $region69
    $region68: #{forward.1} parent=1 // pred_region
      _
    $region69: #{forward.1} parent=1 // pred_fallthru
      _
    // Predicated region
    $region70: #{forward.1} parent=1 // pred_check
      _
    $region71: #{forward.1} parent=1 // pred_check_branch
      %287 = sbr.rel (0) target = $region73
    $region72: #{forward.1} parent=1 // pred_region
      %s289 = ssub.s32 16, 16
      %290 = vsyncadd [#allocation21], %s289
      %s292 = sshll.u32 [#allocation22], 4
      %s293 = int_to_ptr.vmem [resolvable:$true] %s292
      %295 = dma.hbm_to_vmem [thread:$0]  %s35, 16, %s293, [#allocation21]
    $region73: #{forward.1} parent=1 // pred_fallthru
      _
    // Predicated region
    $region74: #{forward.1} parent=1 // pred_check
      _
    $region75: #{forward.1} parent=1 // pred_check_branch
      %297 = sbr.rel (0) target = $region77
    $region76: #{forward.1} parent=1 // pred_region
      _
    $region77: #{forward.1} parent=1 // pred_fallthru
      _
    // Predicated region
    $region78: #{forward.1} parent=1 // pred_check
      _
    $region79: #{forward.1} parent=1 // pred_check_branch
      %299 = sbr.rel (0) target = $region81
    $region80: #{forward.1} parent=1 // pred_region
      _
    $region81: #{forward.1} parent=1 // pred_fallthru
      _
    // Predicated region
    $region82: #{forward.1} parent=1 // pred_check
      _
    $region83: #{forward.1} parent=1 // pred_check_branch
      %301 = sbr.rel (0) target = $region85
    $region84: #{forward.1} parent=1 // pred_region
      %s303 = ssub.s32 16, 16
      %304 = vsyncadd [#allocation24], %s303
      %s306 = sshll.u32 [#allocation23], 4
      %s307 = int_to_ptr.vmem [resolvable:$true] %s306
      %309 = dma.hbm_to_vmem [thread:$0]  %s41, 16, %s307, [#allocation24]
    $region85: #{forward.1} parent=1 // pred_fallthru
      _
    // Predicated region
    $region86: #{forward.1} parent=1 // pred_check
      _
    $region87: #{forward.1} parent=1 // pred_check_branch
      %311 = sbr.rel (0) target = $region89
    $region88: #{forward.1} parent=1 // pred_region
      %s313 = ssub.s32 16, 16
      %314 = vsyncadd [#allocation24], %s313
      %s316 = sshll.u32 [#allocation25], 4
      %s317 = int_to_ptr.vmem [resolvable:$true] %s316
      %319 = dma.hbm_to_vmem [thread:$0]  %s43, 16, %s317, [#allocation24]
    $region89: #{forward.1} parent=1 // pred_fallthru
      _
    // Predicated region
    $region90: #{forward.1} parent=1 // pred_check
      _
    $region91: #{forward.1} parent=1 // pred_check_branch
      %321 = sbr.rel (0) target = $region93
    $region92: #{forward.1} parent=1 // pred_region
      %s323 = ssub.s32 16, 16
      %324 = vsyncadd [#allocation27], %s323
      %s326 = sshll.u32 [#allocation26], 4
      %s327 = int_to_ptr.vmem [resolvable:$true] %s326
      %329 = dma.hbm_to_vmem [thread:$0]  %s45, 16, %s327, [#allocation27]
    $region93: #{forward.1} parent=1 // pred_fallthru
      _
    // Predicated region
    $region94: #{forward.1} parent=1 // pred_check
      _
    $region95: #{forward.1} parent=1 // pred_check_branch
      %331 = sbr.rel (0) target = $region97
    $region96: #{forward.1} parent=1 // pred_region
      %s333 = ssub.s32 16, 16
      %334 = vsyncadd [#allocation27], %s333
      %s336 = sshll.u32 [#allocation28], 4
      %s337 = int_to_ptr.vmem [resolvable:$true] %s336
      %339 = dma.hbm_to_vmem [thread:$0]  %s47, 16, %s337, [#allocation27]
    $region97: #{forward.1} parent=1 // pred_fallthru
      _
    // Predicated region
    $region98: #{forward.1} parent=1 // pred_check
      _
    $region99: #{forward.1} parent=1 // pred_check_branch
      %341 = sbr.rel (0) target = $region101
    $region100: #{forward.1} parent=1 // pred_region
      %s343 = ssub.s32 16, 16
      %344 = vsyncadd [#allocation30], %s343
      %s346 = sshll.u32 [#allocation29], 4
      %s347 = int_to_ptr.vmem [resolvable:$true] %s346
      %349 = dma.hbm_to_vmem [thread:$0]  %s49, 16, %s347, [#allocation30]
    $region101: #{forward.1} parent=1 // pred_fallthru
      _
    // Predicated region
    $region102: #{forward.1} parent=1 // pred_check
      _
    $region103: #{forward.1} parent=1 // pred_check_branch
      %351 = sbr.rel (0) target = $region105
    $region104: #{forward.1} parent=1 // pred_region
      %s353 = ssub.s32 512, 512
      %354 = vsyncadd [#allocation30], %s353
      %s355 = sshll.u32 [#allocation31], 4
      %s356 = int_to_ptr.vmem [resolvable:$true] %s355
      %361 = dma.hbm_to_vmem [thread:$0]  %s51, 512, %s356, [#allocation30], 128, 128, 8
    $region105: #{forward.1} parent=1 // pred_fallthru
      _
    // Predicated region
    $region106: #{forward.1} parent=1 // pred_check
      _
    $region107: #{forward.1} parent=1 // pred_check_branch
      %363 = sbr.rel (0) target = $region109
    $region108: #{forward.1} parent=1 // pred_region
      %s365 = ssub.s32 16, 16
      %366 = vsyncadd [#allocation33], %s365
      %s368 = sshll.u32 [#allocation32], 4
      %s369 = int_to_ptr.vmem [resolvable:$true] %s368
      %371 = dma.hbm_to_vmem [thread:$0]  %s53, 16, %s369, [#allocation33]
    $region109: #{forward.1} parent=1 // pred_fallthru
      _
    // Predicated region
    $region110: #{forward.1} parent=1 // pred_check
      _
    $region111: #{forward.1} parent=1 // pred_check_branch
      %373 = sbr.rel (0) target = $region113
    $region112: #{forward.1} parent=1 // pred_region
      _
    $region113: #{forward.1} parent=1 // pred_fallthru
      _
    // Predicated region
    $region114: #{forward.1} parent=1 // pred_check
      _
    $region115: #{forward.1} parent=1 // pred_check_branch
      %375 = sbr.rel (0) target = $region117
    $region116: #{forward.1} parent=1 // pred_region
      %s377 = ssub.s32 16, 16
      %378 = vsyncadd [#allocation33], %s377
      %s380 = sshll.u32 [#allocation34], 4
      %s381 = int_to_ptr.vmem [resolvable:$true] %s380
      %383 = dma.hbm_to_vmem [thread:$0]  %s57, 16, %s381, [#allocation33]
    $region117: #{forward.1} parent=1 // pred_fallthru
      _
    // Predicated region
    $region118: #{forward.1} parent=1 // pred_check
      _
    $region119: #{forward.1} parent=1 // pred_check_branch
      %385 = sbr.rel (0) target = $region121
    $region120: #{forward.1} parent=1 // pred_region
      %s387 = ssub.s32 512, 512
      %388 = vsyncadd [#allocation36], %s387
      %s389 = sshll.u32 [#allocation35], 4
      %s390 = int_to_ptr.vmem [resolvable:$true] %s389
      %395 = dma.hbm_to_vmem [thread:$0]  %s59, 512, %s390, [#allocation36], 128, 128, 8
    $region121: #{forward.1} parent=1 // pred_fallthru
      _
    // Predicated region
    $region122: #{forward.1} parent=1 // pred_check
      _
    $region123: #{forward.1} parent=1 // pred_check_branch
      %397 = sbr.rel (0) target = $region125
    $region124: #{forward.1} parent=1 // pred_region
      %s399 = ssub.s32 16, 16
      %400 = vsyncadd [#allocation36], %s399
      %s402 = sshll.u32 [#allocation37], 4
      %s403 = int_to_ptr.vmem [resolvable:$true] %s402
      %405 = dma.hbm_to_vmem [thread:$0]  %s61, 16, %s403, [#allocation36]
    $region125: #{forward.1} parent=1 // pred_fallthru
      _
    // Predicated region
    $region126: #{forward.1} parent=1 // pred_check
      _
    $region127: #{forward.1} parent=1 // pred_check_branch
      %407 = sbr.rel (0) target = $region129
    $region128: #{forward.1} parent=1 // pred_region
      %s409 = ssub.s32 512, 512
      %410 = vsyncadd [#allocation39], %s409
      %s411 = sshll.u32 [#allocation38], 4
      %s412 = int_to_ptr.vmem [resolvable:$true] %s411
      %417 = dma.hbm_to_vmem [thread:$0]  %s63, 512, %s412, [#allocation39], 128, 128, 8
    $region129: #{forward.1} parent=1 // pred_fallthru
      _
    // Predicated region
    $region130: #{forward.1} parent=1 // pred_check
      _
    $region131: #{forward.1} parent=1 // pred_check_branch
      %419 = sbr.rel (0) target = $region133
    $region132: #{forward.1} parent=1 // pred_region
      %s421 = ssub.s32 16, 16
      %422 = vsyncadd [#allocation39], %s421
      %s424 = sshll.u32 [#allocation40], 4
      %s425 = int_to_ptr.vmem [resolvable:$true] %s424
      %427 = dma.hbm_to_vmem [thread:$0]  %s65, 16, %s425, [#allocation39]
    $region133: #{forward.1} parent=1 // pred_fallthru
      _
    // Predicated region
    $region134: #{forward.1} parent=1 // pred_check
      _
    $region135: #{forward.1} parent=1 // pred_check_branch
      %429 = sbr.rel (0) target = $region137
    $region136: #{forward.1} parent=1 // pred_region
      %s431 = ssub.s32 512, 512
      %432 = vsyncadd [#allocation42], %s431
      %s433 = sshll.u32 [#allocation41], 4
      %s434 = int_to_ptr.vmem [resolvable:$true] %s433
      %439 = dma.hbm_to_vmem [thread:$0]  %s67, 512, %s434, [#allocation42], 128, 128, 8
    $region137: #{forward.1} parent=1 // pred_fallthru
      _
    // Predicated region
    $region138: #{forward.1} parent=1 // pred_check
      _
    $region139: #{forward.1} parent=1 // pred_check_branch
      %441 = sbr.rel (0) target = $region141
    $region140: #{forward.1} parent=1 // pred_region
      %s443 = ssub.s32 16, 16
      %444 = vsyncadd [#allocation42], %s443
      %s446 = sshll.u32 [#allocation43], 4
      %s447 = int_to_ptr.vmem [resolvable:$true] %s446
      %449 = dma.hbm_to_vmem [thread:$0]  %s69, 16, %s447, [#allocation42]
    $region141: #{forward.1} parent=1 // pred_fallthru
      _
    // Predicated region
    $region142: #{forward.1} parent=1 // pred_check
      _
    $region143: #{forward.1} parent=1 // pred_check_branch
      %451 = sbr.rel (0) target = $region145
    $region144: #{forward.1} parent=1 // pred_region
      _
    $region145: #{forward.1} parent=1 // pred_fallthru
      _
    // Predicated region
    $region146: #{forward.1} parent=1 // pred_check
      _
    $region147: #{forward.1} parent=1 // pred_check_branch
      %453 = sbr.rel (0) target = $region149
    $region148: #{forward.1} parent=1 // pred_region
      _
    $region149: #{forward.1} parent=1 // pred_fallthru
      _
    // Predicated region
    $region150: #{forward.1} parent=1 // pred_check
      _
    $region151: #{forward.1} parent=1 // pred_check_branch
      %455 = sbr.rel (0) target = $region153
    $region152: #{forward.1} parent=1 // pred_region
      _
    $region153: #{forward.1} parent=1 // pred_fallthru
      _
    // Predicated region
    $region154: #{forward.1} parent=1 // pred_check
      _
    $region155: #{forward.1} parent=1 // pred_check_branch
      %457 = sbr.rel (0) target = $region157
    $region156: #{forward.1} parent=1 // pred_region
      _
    $region157: #{forward.1} parent=1 // pred_fallthru
      _
    // Predicated region
    $region158: #{forward.1} parent=1 // pred_check
      _
    $region159: #{forward.1} parent=1 // pred_check_branch
      %459 = sbr.rel (0) target = $region161
    $region160: #{forward.1} parent=1 // pred_region
      _
    $region161: #{forward.1} parent=1 // pred_fallthru
      _
    // Predicated region
    $region162: #{forward.1} parent=1 // pred_check
      _
    $region163: #{forward.1} parent=1 // pred_check_branch
      %461 = sbr.rel (0) target = $region165
    $region164: #{forward.1} parent=1 // pred_region
      _
    $region165: #{forward.1} parent=1 // pred_fallthru
      _
    // Predicated region
    $region166: #{forward.1} parent=1 // pred_check
      _
    $region167: #{forward.1} parent=1 // pred_check_branch
      %463 = sbr.rel (0) target = $region169
    $region168: #{forward.1} parent=1 // pred_region
      _
    $region169: #{forward.1} parent=1 // pred_fallthru
      _
    // Predicated region
    $region170: #{forward.1} parent=1 // pred_check
      _
    $region171: #{forward.1} parent=1 // pred_check_branch
      %465 = sbr.rel (0) target = $region173
    $region172: #{forward.1} parent=1 // pred_region
      %s467 = ssub.s32 16, 16
      %468 = vsyncadd [#allocation45], %s467
      %s470 = sshll.u32 [#allocation44], 4
      %s471 = int_to_ptr.vmem [resolvable:$true] %s470
      %473 = dma.hbm_to_vmem [thread:$0]  %s85, 16, %s471, [#allocation45]
    $region173: #{forward.1} parent=1 // pred_fallthru
      _
    // Predicated region
    $region174: #{forward.1} parent=1 // pred_check
      _
    $region175: #{forward.1} parent=1 // pred_check_branch
      %475 = sbr.rel (0) target = $region177
    $region176: #{forward.1} parent=1 // pred_region
      %s477 = ssub.s32 16, 16
      %478 = vsyncadd [#allocation45], %s477
      %s480 = sshll.u32 [#allocation46], 4
      %s481 = int_to_ptr.vmem [resolvable:$true] %s480
      %483 = dma.hbm_to_vmem [thread:$0]  %s87, 16, %s481, [#allocation45]
    $region177: #{forward.1} parent=1 // pred_fallthru
      _
    // Predicated region
    $region178: #{forward.1} parent=1 // pred_check
      _
    $region179: #{forward.1} parent=1 // pred_check_branch
      %485 = sbr.rel (0) target = $region181
    $region180: #{forward.1} parent=1 // pred_region
      _
    $region181: #{forward.1} parent=1 // pred_fallthru
      _
    // Predicated region
    $region182: #{forward.1} parent=1 // pred_check
      _
    $region183: #{forward.1} parent=1 // pred_check_branch
      %487 = sbr.rel (0) target = $region185
    $region184: #{forward.1} parent=1 // pred_region
      %s489 = ssub.s32 16, 16
      %490 = vsyncadd [#allocation48], %s489
      %s492 = sshll.u32 [#allocation47], 4
      %s493 = int_to_ptr.vmem [resolvable:$true] %s492
      %495 = dma.hbm_to_vmem [thread:$0]  %s91, 16, %s493, [#allocation48]
    $region185: #{forward.1} parent=1 // pred_fallthru
      _
    // Predicated region
    $region186: #{forward.1} parent=1 // pred_check
      _
    $region187: #{forward.1} parent=1 // pred_check_branch
      %497 = sbr.rel (0) target = $region189
    $region188: #{forward.1} parent=1 // pred_region
      %s499 = ssub.s32 512, 512
      %500 = vsyncadd [#allocation48], %s499
      %s501 = sshll.u32 [#allocation49], 4
      %s502 = int_to_ptr.vmem [resolvable:$true] %s501
      %507 = dma.hbm_to_vmem [thread:$0]  %s93, 512, %s502, [#allocation48], 128, 128, 8
    $region189: #{forward.1} parent=1 // pred_fallthru
      _
    // Predicated region
    $region190: #{forward.1} parent=1 // pred_check
      _
    $region191: #{forward.1} parent=1 // pred_check_branch
      %509 = sbr.rel (0) target = $region193
    $region192: #{forward.1} parent=1 // pred_region
      %s511 = ssub.s32 16, 16
      %512 = vsyncadd [#allocation51], %s511
      %s514 = sshll.u32 [#allocation50], 4
      %s515 = int_to_ptr.vmem [resolvable:$true] %s514
      %517 = dma.hbm_to_vmem [thread:$0]  %s95, 16, %s515, [#allocation51]
    $region193: #{forward.1} parent=1 // pred_fallthru
      _
    // Predicated region
    $region194: #{forward.1} parent=1 // pred_check
      _
    $region195: #{forward.1} parent=1 // pred_check_branch
      %519 = sbr.rel (0) target = $region197
    $region196: #{forward.1} parent=1 // pred_region
      %s521 = ssub.s32 512, 512
      %522 = vsyncadd [#allocation51], %s521
      %s523 = sshll.u32 [#allocation52], 4
      %s524 = int_to_ptr.vmem [resolvable:$true] %s523
      %529 = dma.hbm_to_vmem [thread:$0]  %s97, 512, %s524, [#allocation51], 128, 128, 8
    $region197: #{forward.1} parent=1 // pred_fallthru
      _
    // Predicated region
    $region198: #{forward.1} parent=1 // pred_check
      _
    $region199: #{forward.1} parent=1 // pred_check_branch
      %531 = sbr.rel (0) target = $region201
    $region200: #{forward.1} parent=1 // pred_region
      %s533 = ssub.s32 16, 16
      %534 = vsyncadd [#allocation54], %s533
      %s536 = sshll.u32 [#allocation53], 4
      %s537 = int_to_ptr.vmem [resolvable:$true] %s536
      %539 = dma.hbm_to_vmem [thread:$0]  %s99, 16, %s537, [#allocation54]
    $region201: #{forward.1} parent=1 // pred_fallthru
      _
    // Predicated region
    $region202: #{forward.1} parent=1 // pred_check
      _
    $region203: #{forward.1} parent=1 // pred_check_branch
      %541 = sbr.rel (0) target = $region205
    $region204: #{forward.1} parent=1 // pred_region
      %s543 = ssub.s32 512, 512
      %544 = vsyncadd [#allocation54], %s543
      %s545 = sshll.u32 [#allocation55], 4
      %s546 = int_to_ptr.vmem [resolvable:$true] %s545
      %551 = dma.hbm_to_vmem [thread:$0]  %s101, 512, %s546, [#allocation54], 128, 128, 8
    $region205: #{forward.1} parent=1 // pred_fallthru
      _
    // Predicated region
    $region206: #{forward.1} parent=1 // pred_check
      _
    $region207: #{forward.1} parent=1 // pred_check_branch
      %553 = sbr.rel (0) target = $region209
    $region208: #{forward.1} parent=1 // pred_region
      %s555 = ssub.s32 16, 16
      %556 = vsyncadd [#allocation57], %s555
      %s558 = sshll.u32 [#allocation56], 4
      %s559 = int_to_ptr.vmem [resolvable:$true] %s558
      %561 = dma.hbm_to_vmem [thread:$0]  %s103, 16, %s559, [#allocation57]
    $region209: #{forward.1} parent=1 // pred_fallthru
      _
    // Predicated region
    $region210: #{forward.1} parent=1 // pred_check
      _
    $region211: #{forward.1} parent=1 // pred_check_branch
      %563 = sbr.rel (0) target = $region213
    $region212: #{forward.1} parent=1 // pred_region
      _
    $region213: #{forward.1} parent=1 // pred_fallthru
      _
    // Predicated region
    $region214: #{forward.1} parent=1 // pred_check
      _
    $region215: #{forward.1} parent=1 // pred_check_branch
      %565 = sbr.rel (0) target = $region217
    $region216: #{forward.1} parent=1 // pred_region
      %s567 = ssub.s32 16, 16
      %568 = vsyncadd [#allocation57], %s567
      %s570 = sshll.u32 [#allocation58], 4
      %s571 = int_to_ptr.vmem [resolvable:$true] %s570
      %573 = dma.hbm_to_vmem [thread:$0]  %s107, 16, %s571, [#allocation57]
    $region217: #{forward.1} parent=1 // pred_fallthru
      _
    // Predicated region
    $region218: #{forward.1} parent=1 // pred_check
      _
    $region219: #{forward.1} parent=1 // pred_check_branch
      %575 = sbr.rel (0) target = $region221
    $region220: #{forward.1} parent=1 // pred_region
      _
    $region221: #{forward.1} parent=1 // pred_fallthru
      _
    // Predicated region
    $region222: #{forward.1} parent=1 // pred_check
      _
    $region223: #{forward.1} parent=1 // pred_check_branch
      %577 = sbr.rel (0) target = $region225
    $region224: #{forward.1} parent=1 // pred_region
      _
    $region225: #{forward.1} parent=1 // pred_fallthru
      _
    // Predicated region
    $region226: #{forward.1} parent=1 // pred_check
      _
    $region227: #{forward.1} parent=1 // pred_check_branch
      %579 = sbr.rel (0) target = $region229
    $region228: #{forward.1} parent=1 // pred_region
      %580 = dma.done [#allocation3], 512
    $region229: #{forward.1} parent=1 // pred_fallthru
      _
    // Predicated region
    $region230: #{forward.1} parent=1 // pred_check
      _
    $region231: #{forward.1} parent=1 // pred_check_branch
      %582 = sbr.rel (0) target = $region233
    $region232: #{forward.1} parent=1 // pred_region
      %583 = dma.done [#allocation6], 16
    $region233: #{forward.1} parent=1 // pred_fallthru
      _
    // Predicated region
    $region234: #{forward.1} parent=1 // pred_check
      _
    $region235: #{forward.1} parent=1 // pred_check_branch
      %585 = sbr.rel (0) target = $region237
    $region236: #{forward.1} parent=1 // pred_region
      %586 = dma.done [#allocation6], 512
    $region237: #{forward.1} parent=1 // pred_fallthru
      _
    // Predicated region
    $region238: #{forward.1} parent=1 // pred_check
      _
    $region239: #{forward.1} parent=1 // pred_check_branch
      %588 = sbr.rel (0) target = $region241
    $region240: #{forward.1} parent=1 // pred_region
      %589 = dma.done [#allocation9], 16
    $region241: #{forward.1} parent=1 // pred_fallthru
      _
    // Predicated region
    $region242: #{forward.1} parent=1 // pred_check
      _
    $region243: #{forward.1} parent=1 // pred_check_branch
      %591 = sbr.rel (0) target = $region245
    $region244: #{forward.1} parent=1 // pred_region
      %592 = dma.done [#allocation9], 512
    $region245: #{forward.1} parent=1 // pred_fallthru
      _
    // Predicated region
    $region246: #{forward.1} parent=1 // pred_check
      _
    $region247: #{forward.1} parent=1 // pred_check_branch
      %594 = sbr.rel (0) target = $region249
    $region248: #{forward.1} parent=1 // pred_region
      %595 = dma.done [#allocation12], 16
    $region249: #{forward.1} parent=1 // pred_fallthru
      _
    // Predicated region
    $region250: #{forward.1} parent=1 // pred_check
      _
    $region251: #{forward.1} parent=1 // pred_check_branch
      %597 = sbr.rel (0) target = $region253
    $region252: #{forward.1} parent=1 // pred_region
      %598 = dma.done [#allocation12], 512
    $region253: #{forward.1} parent=1 // pred_fallthru
      _
    // Predicated region
    $region254: #{forward.1} parent=1 // pred_check
      _
    $region255: #{forward.1} parent=1 // pred_check_branch
      %600 = sbr.rel (0) target = $region257
    $region256: #{forward.1} parent=1 // pred_region
      %601 = dma.done [#allocation15], 16
    $region257: #{forward.1} parent=1 // pred_fallthru
      _
    // Predicated region
    $region258: #{forward.1} parent=1 // pred_check
      _
    $region259: #{forward.1} parent=1 // pred_check_branch
      %603 = sbr.rel (0) target = $region261
    $region260: #{forward.1} parent=1 // pred_region
      %604 = dma.done [#allocation15], 512
    $region261: #{forward.1} parent=1 // pred_fallthru
      _
    // Predicated region
    $region262: #{forward.1} parent=1 // pred_check
      _
    $region263: #{forward.1} parent=1 // pred_check_branch
      %606 = sbr.rel (0) target = $region265
    $region264: #{forward.1} parent=1 // pred_region
      %607 = dma.done [#allocation18], 16
    $region265: #{forward.1} parent=1 // pred_fallthru
      _
    // Predicated region
    $region266: #{forward.1} parent=1 // pred_check
      _
    $region267: #{forward.1} parent=1 // pred_check_branch
      %609 = sbr.rel (0) target = $region269
    $region268: #{forward.1} parent=1 // pred_region
      %610 = dma.done [#allocation18], 512
    $region269: #{forward.1} parent=1 // pred_fallthru
      _
    // Predicated region
    $region270: #{forward.1} parent=1 // pred_check
      _
    $region271: #{forward.1} parent=1 // pred_check_branch
      %612 = sbr.rel (0) target = $region273
    $region272: #{forward.1} parent=1 // pred_region
      %613 = dma.done [#allocation21], 16
    $region273: #{forward.1} parent=1 // pred_fallthru
      _
    // Predicated region
    $region274: #{forward.1} parent=1 // pred_check
      _
    $region275: #{forward.1} parent=1 // pred_check_branch
      %615 = sbr.rel (0) target = $region277
    $region276: #{forward.1} parent=1 // pred_region
      %616 = dma.done [#allocation21], 16
    $region277: #{forward.1} parent=1 // pred_fallthru
      _
    // Predicated region
    $region278: #{forward.1} parent=1 // pred_check
      _
    $region279: #{forward.1} parent=1 // pred_check_branch
      %618 = sbr.rel (0) target = $region281
    $region280: #{forward.1} parent=1 // pred_region
      %619 = dma.done [#allocation24], 16
    $region281: #{forward.1} parent=1 // pred_fallthru
      _
    // Predicated region
    $region282: #{forward.1} parent=1 // pred_check
      _
    $region283: #{forward.1} parent=1 // pred_check_branch
      %621 = sbr.rel (0) target = $region285
    $region284: #{forward.1} parent=1 // pred_region
      %622 = dma.done [#allocation24], 16
    $region285: #{forward.1} parent=1 // pred_fallthru
      _
    // Predicated region
    $region286: #{forward.1} parent=1 // pred_check
      _
    $region287: #{forward.1} parent=1 // pred_check_branch
      %624 = sbr.rel (0) target = $region289
    $region288: #{forward.1} parent=1 // pred_region
      %625 = dma.done [#allocation27], 16
    $region289: #{forward.1} parent=1 // pred_fallthru
      _
    // Predicated region
    $region290: #{forward.1} parent=1 // pred_check
      _
    $region291: #{forward.1} parent=1 // pred_check_branch
      %627 = sbr.rel (0) target = $region293
    $region292: #{forward.1} parent=1 // pred_region
      %628 = dma.done [#allocation27], 16
    $region293: #{forward.1} parent=1 // pred_fallthru
      _
    // Predicated region
    $region294: #{forward.1} parent=1 // pred_check
      _
    $region295: #{forward.1} parent=1 // pred_check_branch
      %630 = sbr.rel (0) target = $region297
    $region296: #{forward.1} parent=1 // pred_region
      %631 = dma.done [#allocation30], 16
    $region297: #{forward.1} parent=1 // pred_fallthru
      _
    // Predicated region
    $region298: #{forward.1} parent=1 // pred_check
      _
    $region299: #{forward.1} parent=1 // pred_check_branch
      %633 = sbr.rel (0) target = $region301
    $region300: #{forward.1} parent=1 // pred_region
      %634 = dma.done [#allocation30], 512
    $region301: #{forward.1} parent=1 // pred_fallthru
      _
    // Predicated region
    $region302: #{forward.1} parent=1 // pred_check
      _
    $region303: #{forward.1} parent=1 // pred_check_branch
      %636 = sbr.rel (0) target = $region305
    $region304: #{forward.1} parent=1 // pred_region
      %637 = dma.done [#allocation33], 16
    $region305: #{forward.1} parent=1 // pred_fallthru
      _
    // Predicated region
    $region306: #{forward.1} parent=1 // pred_check
      _
    $region307: #{forward.1} parent=1 // pred_check_branch
      %639 = sbr.rel (0) target = $region309
    $region308: #{forward.1} parent=1 // pred_region
      %640 = dma.done [#allocation33], 16
    $region309: #{forward.1} parent=1 // pred_fallthru
      _
    // Predicated region
    $region310: #{forward.1} parent=1 // pred_check
      _
    $region311: #{forward.1} parent=1 // pred_check_branch
      %642 = sbr.rel (0) target = $region313
    $region312: #{forward.1} parent=1 // pred_region
      %643 = dma.done [#allocation36], 512
    $region313: #{forward.1} parent=1 // pred_fallthru
      _
    // Predicated region
    $region314: #{forward.1} parent=1 // pred_check
      _
    $region315: #{forward.1} parent=1 // pred_check_branch
      %645 = sbr.rel (0) target = $region317
    $region316: #{forward.1} parent=1 // pred_region
      %646 = dma.done [#allocation36], 16
    $region317: #{forward.1} parent=1 // pred_fallthru
      _
    // Predicated region
    $region318: #{forward.1} parent=1 // pred_check
      _
    $region319: #{forward.1} parent=1 // pred_check_branch
      %648 = sbr.rel (0) target = $region321
    $region320: #{forward.1} parent=1 // pred_region
      %649 = dma.done [#allocation39], 512
    $region321: #{forward.1} parent=1 // pred_fallthru
      _
    // Predicated region
    $region322: #{forward.1} parent=1 // pred_check
      _
    $region323: #{forward.1} parent=1 // pred_check_branch
      %651 = sbr.rel (0) target = $region325
    $region324: #{forward.1} parent=1 // pred_region
      %652 = dma.done [#allocation39], 16
    $region325: #{forward.1} parent=1 // pred_fallthru
      _
    // Predicated region
    $region326: #{forward.1} parent=1 // pred_check
      _
    $region327: #{forward.1} parent=1 // pred_check_branch
      %654 = sbr.rel (0) target = $region329
    $region328: #{forward.1} parent=1 // pred_region
      %655 = dma.done [#allocation42], 512
    $region329: #{forward.1} parent=1 // pred_fallthru
      _
    // Predicated region
    $region330: #{forward.1} parent=1 // pred_check
      _
    $region331: #{forward.1} parent=1 // pred_check_branch
      %657 = sbr.rel (0) target = $region333
    $region332: #{forward.1} parent=1 // pred_region
      %658 = dma.done [#allocation42], 16
    $region333: #{forward.1} parent=1 // pred_fallthru
      _
    // Predicated region
    $region334: #{forward.1} parent=1 // pred_check
      _
    $region335: #{forward.1} parent=1 // pred_check_branch
      %660 = sbr.rel (0) target = $region337
    $region336: #{forward.1} parent=1 // pred_region
      %661 = dma.done [#allocation45], 16
    $region337: #{forward.1} parent=1 // pred_fallthru
      _
    // Predicated region
    $region338: #{forward.1} parent=1 // pred_check
      _
    $region339: #{forward.1} parent=1 // pred_check_branch
      %663 = sbr.rel (0) target = $region341
    $region340: #{forward.1} parent=1 // pred_region
      %664 = dma.done [#allocation45], 16
    $region341: #{forward.1} parent=1 // pred_fallthru
      _
    // Predicated region
    $region342: #{forward.1} parent=1 // pred_check
      _
    $region343: #{forward.1} parent=1 // pred_check_branch
      %666 = sbr.rel (0) target = $region345
    $region344: #{forward.1} parent=1 // pred_region
      %667 = dma.done [#allocation48], 16
    $region345: #{forward.1} parent=1 // pred_fallthru
      _
    // Predicated region
    $region346: #{forward.1} parent=1 // pred_check
      _
    $region347: #{forward.1} parent=1 // pred_check_branch
      %669 = sbr.rel (0) target = $region349
    $region348: #{forward.1} parent=1 // pred_region
      %670 = dma.done [#allocation48], 512
    $region349: #{forward.1} parent=1 // pred_fallthru
      _
    // Predicated region
    $region350: #{forward.1} parent=1 // pred_check
      _
    $region351: #{forward.1} parent=1 // pred_check_branch
      %672 = sbr.rel (0) target = $region353
    $region352: #{forward.1} parent=1 // pred_region
      %673 = dma.done [#allocation51], 16
    $region353: #{forward.1} parent=1 // pred_fallthru
      _
    // Predicated region
    $region354: #{forward.1} parent=1 // pred_check
      _
    $region355: #{forward.1} parent=1 // pred_check_branch
      %675 = sbr.rel (0) target = $region357
    $region356: #{forward.1} parent=1 // pred_region
      %676 = dma.done [#allocation51], 512
    $region357: #{forward.1} parent=1 // pred_fallthru
      _
    // Predicated region
    $region358: #{forward.1} parent=1 // pred_check
      _
    $region359: #{forward.1} parent=1 // pred_check_branch
      %678 = sbr.rel (0) target = $region361
    $region360: #{forward.1} parent=1 // pred_region
      %679 = dma.done [#allocation54], 16
    $region361: #{forward.1} parent=1 // pred_fallthru
      _
    // Predicated region
    $region362: #{forward.1} parent=1 // pred_check
      _
    $region363: #{forward.1} parent=1 // pred_check_branch
      %681 = sbr.rel (0) target = $region365
    $region364: #{forward.1} parent=1 // pred_region
      %682 = dma.done [#allocation54], 512
    $region365: #{forward.1} parent=1 // pred_fallthru
      _
    // Predicated region
    $region366: #{forward.1} parent=1 // pred_check
      _
    $region367: #{forward.1} parent=1 // pred_check_branch
      %684 = sbr.rel (0) target = $region369
    $region368: #{forward.1} parent=1 // pred_region
      %685 = dma.done [#allocation57], 16
    $region369: #{forward.1} parent=1 // pred_fallthru
      _
    // Predicated region
    $region370: #{forward.1} parent=1 // pred_check
      _
    $region371: #{forward.1} parent=1 // pred_check_branch
      %687 = sbr.rel (0) target = $region373
    $region372: #{forward.1} parent=1 // pred_region
      %688 = dma.done [#allocation57], 16
    $region373: #{forward.1} parent=1 // pred_fallthru
      _
    %v689 = vld [vmem:[%s1] sm:$0xff]
    %v690 = vld [vmem:[%s1 + $0x8] sm:$0xff]
    %v691 = vld [vmem:[%s1 + $0x10] sm:$0xff]
    %v692 = vld [vmem:[%s1 + $0x18] sm:$0xff]
    %v693 = vld [vmem:[%s1 + $0x20] sm:$0xff]
    %v694 = vld [vmem:[%s1 + $0x28] sm:$0xff]
    %v695 = vld [vmem:[%s1 + $0x30] sm:$0xff]
    %v696 = vld [vmem:[%s1 + $0x38] sm:$0xff]
    %v697 = vld [vmem:[%s1 + $0x40] sm:$0xff]
    %v698 = vld [vmem:[%s1 + $0x48] sm:$0xff]
    %v699 = vld [vmem:[%s1 + $0x50] sm:$0xff]
    %v700 = vld [vmem:[%s1 + $0x58] sm:$0xff]
    %v701 = vld [vmem:[%s1 + $0x60] sm:$0xff]
    %v702 = vld [vmem:[%s1 + $0x68] sm:$0xff]
    %v703 = vld [vmem:[%s1 + $0x70] sm:$0xff]
    %v704 = vld [vmem:[%s1 + $0x78] sm:$0xff]
    %v705 = vld [vmem:[#allocation2] sm:$0xff]
    %v706 = vld [vmem:[#allocation2 + $0x8] sm:$0xff]
    %v707 = vld [vmem:[#allocation2 + $0x10] sm:$0xff]
    %v708 = vld [vmem:[#allocation2 + $0x18] sm:$0xff]
    %v709 = vld [vmem:[%s5] sm:$0x1]
    %v710 = vld [vmem:[%s7] sm:$0x1]
    %v711 = vld [vmem:[%s9] sm:$0x1]
    %v712 = vld [vmem:[#allocation5] sm:$0x1]
    %v713 = vld [vmem:[#allocation7] sm:$0xff]
    %v714 = vld [vmem:[#allocation7 + $0x8] sm:$0xff]
    %v715 = vld [vmem:[#allocation7 + $0x10] sm:$0xff]
    %v716 = vld [vmem:[#allocation7 + $0x18] sm:$0xff]
    %v717 = vld [vmem:[#allocation8] sm:$0x1]
    %v718 = vld [vmem:[#allocation10] sm:$0xff]
    %v719 = vld [vmem:[#allocation10 + $0x8] sm:$0xff]
    %v720 = vld [vmem:[#allocation10 + $0x10] sm:$0xff]
    %v721 = vld [vmem:[#allocation10 + $0x18] sm:$0xff]
    %v722 = vld [vmem:[#allocation11] sm:$0x1]
    %v723 = vld [vmem:[#allocation13] sm:$0xff]
    %v724 = vld [vmem:[#allocation13 + $0x8] sm:$0xff]
    %v725 = vld [vmem:[#allocation13 + $0x10] sm:$0xff]
    %v726 = vld [vmem:[#allocation13 + $0x18] sm:$0xff]
    %v727 = vld [vmem:[#allocation14] sm:$0x1]
    %v728 = vld [vmem:[#allocation16] sm:$0xff]
    %v729 = vld [vmem:[#allocation16 + $0x8] sm:$0xff]
    %v730 = vld [vmem:[#allocation16 + $0x10] sm:$0xff]
    %v731 = vld [vmem:[#allocation16 + $0x18] sm:$0xff]
    %v732 = vld [vmem:[#allocation17] sm:$0x1]
    %v733 = vld [vmem:[#allocation19] sm:$0xff]
    %v734 = vld [vmem:[#allocation19 + $0x8] sm:$0xff]
    %v735 = vld [vmem:[#allocation19 + $0x10] sm:$0xff]
    %v736 = vld [vmem:[#allocation19 + $0x18] sm:$0xff]
    %v737 = vld [vmem:[#allocation20] sm:$0x1]
    %v738 = vld [vmem:[%s33] sm:$0xff]
    %v739 = vld [vmem:[%s33 + $0x8] sm:$0xff]
    %v740 = vld [vmem:[%s33 + $0x10] sm:$0xff]
    %v741 = vld [vmem:[%s33 + $0x18] sm:$0xff]
    %v742 = vld [vmem:[%s33 + $0x20] sm:$0xff]
    %v743 = vld [vmem:[%s33 + $0x28] sm:$0xff]
    %v744 = vld [vmem:[%s33 + $0x30] sm:$0xff]
    %v745 = vld [vmem:[%s33 + $0x38] sm:$0xff]
    %v746 = vld [vmem:[#allocation22] sm:$0x1]
    %vm747 = vcmask 261120
    %v748 = vsel %vm747, %v689, 0.0
    %749 = vadd.xlane.f32.xlu0 %v748
    %v750 = vpop.xlane.xlu0 %749
    %v751 = vsel %vm747, %v690, 0.0
    %752 = vadd.xlane.f32.xlu0 %v751
    %v753 = vpop.xlane.xlu0 %752
    %v754 = vsel %vm747, %v691, 0.0
    %755 = vadd.xlane.f32.xlu0 %v754
    %v756 = vpop.xlane.xlu0 %755
    %v757 = vsel %vm747, %v692, 0.0
    %758 = vadd.xlane.f32.xlu0 %v757
    %v759 = vpop.xlane.xlu0 %758
    %v760 = vsel %vm747, %v693, 0.0
    %761 = vadd.xlane.f32.xlu0 %v760
    %v762 = vpop.xlane.xlu0 %761
    %v763 = vsel %vm747, %v694, 0.0
    %764 = vadd.xlane.f32.xlu0 %v763
    %v765 = vpop.xlane.xlu0 %764
    %v766 = vsel %vm747, %v695, 0.0
    %767 = vadd.xlane.f32.xlu0 %v766
    %v768 = vpop.xlane.xlu0 %767
    %v769 = vsel %vm747, %v696, 0.0
    %770 = vadd.xlane.f32.xlu0 %v769
    %v771 = vpop.xlane.xlu0 %770
    %v772 = vsel %vm747, %v697, 0.0
    %773 = vadd.xlane.f32.xlu0 %v772
    %v774 = vpop.xlane.xlu0 %773
    %v775 = vsel %vm747, %v698, 0.0
    %776 = vadd.xlane.f32.xlu0 %v775
    %v777 = vpop.xlane.xlu0 %776
    %v778 = vsel %vm747, %v699, 0.0
    %779 = vadd.xlane.f32.xlu0 %v778
    %v780 = vpop.xlane.xlu0 %779
    %v781 = vsel %vm747, %v700, 0.0
    %782 = vadd.xlane.f32.xlu0 %v781
    %v783 = vpop.xlane.xlu0 %782
    %v784 = vsel %vm747, %v701, 0.0
    %785 = vadd.xlane.f32.xlu0 %v784
    %v786 = vpop.xlane.xlu0 %785
    %v787 = vsel %vm747, %v702, 0.0
    %788 = vadd.xlane.f32.xlu0 %v787
    %v789 = vpop.xlane.xlu0 %788
    %v790 = vsel %vm747, %v703, 0.0
    %791 = vadd.xlane.f32.xlu0 %v790
    %v792 = vpop.xlane.xlu0 %791
    %v793 = vsel %vm747, %v704, 0.0
    %794 = vadd.xlane.f32.xlu0 %v793
    %v795 = vpop.xlane.xlu0 %794
    %v796 = vrcp.pop 32.0
    %v797 = vmul.f32 %v750, %v796
    %v798 = vmul.f32 %v753, %v796
    %v799 = vmul.f32 %v756, %v796
    %v800 = vmul.f32 %v759, %v796
    %v801 = vmul.f32 %v762, %v796
    %v802 = vmul.f32 %v765, %v796
    %v803 = vmul.f32 %v768, %v796
    %v804 = vmul.f32 %v771, %v796
    %v805 = vmul.f32 %v774, %v796
    %v806 = vmul.f32 %v777, %v796
    %v807 = vmul.f32 %v780, %v796
    %v808 = vmul.f32 %v783, %v796
    %v809 = vmul.f32 %v786, %v796
    %v810 = vmul.f32 %v789, %v796
    %v811 = vmul.f32 %v792, %v796
    %v812 = vmul.f32 %v795, %v796
    %v813 = vsub.f32 %v689, %v797
    %v814 = vsub.f32 %v690, %v798
    %v815 = vsub.f32 %v691, %v799
    %v816 = vsub.f32 %v692, %v800
    %v817 = vsub.f32 %v693, %v801
    %v818 = vsub.f32 %v694, %v802
    %v819 = vsub.f32 %v695, %v803
    %v820 = vsub.f32 %v696, %v804
    %v821 = vsub.f32 %v697, %v805
    %v822 = vsub.f32 %v698, %v806
    %v823 = vsub.f32 %v699, %v807
    %v824 = vsub.f32 %v700, %v808
    %v825 = vsub.f32 %v701, %v809
    %v826 = vsub.f32 %v702, %v810
    %v827 = vsub.f32 %v703, %v811
    %v828 = vsub.f32 %v704, %v812
    %v829 = vmul.f32 %v813, %v813
    %v830 = vmul.f32 %v814, %v814
    %v831 = vmul.f32 %v815, %v815
    %v832 = vmul.f32 %v816, %v816
    %v833 = vmul.f32 %v817, %v817
    %v834 = vmul.f32 %v818, %v818
    %v835 = vmul.f32 %v819, %v819
    %v836 = vmul.f32 %v820, %v820
    %v837 = vmul.f32 %v821, %v821
    %v838 = vmul.f32 %v822, %v822
    %v839 = vmul.f32 %v823, %v823
    %v840 = vmul.f32 %v824, %v824
    %v841 = vmul.f32 %v825, %v825
    %v842 = vmul.f32 %v826, %v826
    %v843 = vmul.f32 %v827, %v827
    %v844 = vmul.f32 %v828, %v828
    %v845 = vsel %vm747, %v829, 0.0
    %846 = vadd.xlane.f32.xlu0 %v845
    %v847 = vpop.xlane.xlu0 %846
    %v848 = vsel %vm747, %v830, 0.0
    %849 = vadd.xlane.f32.xlu0 %v848
    %v850 = vpop.xlane.xlu0 %849
    %v851 = vsel %vm747, %v831, 0.0
    %852 = vadd.xlane.f32.xlu0 %v851
    %v853 = vpop.xlane.xlu0 %852
    %v854 = vsel %vm747, %v832, 0.0
    %855 = vadd.xlane.f32.xlu0 %v854
    %v856 = vpop.xlane.xlu0 %855
    %v857 = vsel %vm747, %v833, 0.0
    %858 = vadd.xlane.f32.xlu0 %v857
    %v859 = vpop.xlane.xlu0 %858
    %v860 = vsel %vm747, %v834, 0.0
    %861 = vadd.xlane.f32.xlu0 %v860
    %v862 = vpop.xlane.xlu0 %861
    %v863 = vsel %vm747, %v835, 0.0
    %864 = vadd.xlane.f32.xlu0 %v863
    %v865 = vpop.xlane.xlu0 %864
    %v866 = vsel %vm747, %v836, 0.0
    %867 = vadd.xlane.f32.xlu0 %v866
    %v868 = vpop.xlane.xlu0 %867
    %v869 = vsel %vm747, %v837, 0.0
    %870 = vadd.xlane.f32.xlu0 %v869
    %v871 = vpop.xlane.xlu0 %870
    %v872 = vsel %vm747, %v838, 0.0
    %873 = vadd.xlane.f32.xlu0 %v872
    %v874 = vpop.xlane.xlu0 %873
    %v875 = vsel %vm747, %v839, 0.0
    %876 = vadd.xlane.f32.xlu0 %v875
    %v877 = vpop.xlane.xlu0 %876
    %v878 = vsel %vm747, %v840, 0.0
    %879 = vadd.xlane.f32.xlu0 %v878
    %v880 = vpop.xlane.xlu0 %879
    %v881 = vsel %vm747, %v841, 0.0
    %882 = vadd.xlane.f32.xlu0 %v881
    %v883 = vpop.xlane.xlu0 %882
    %v884 = vsel %vm747, %v842, 0.0
    %885 = vadd.xlane.f32.xlu0 %v884
    %v886 = vpop.xlane.xlu0 %885
    %v887 = vsel %vm747, %v843, 0.0
    %888 = vadd.xlane.f32.xlu0 %v887
    %v889 = vpop.xlane.xlu0 %888
    %v890 = vsel %vm747, %v844, 0.0
    %891 = vadd.xlane.f32.xlu0 %v890
    %v892 = vpop.xlane.xlu0 %891
    %v893 = vmul.f32 %v847, %v796
    %v894 = vmul.f32 %v850, %v796
    %v895 = vmul.f32 %v853, %v796
    %v896 = vmul.f32 %v856, %v796
    %v897 = vmul.f32 %v859, %v796
    %v898 = vmul.f32 %v862, %v796
    %v899 = vmul.f32 %v865, %v796
    %v900 = vmul.f32 %v868, %v796
    %v901 = vmul.f32 %v871, %v796
    %v902 = vmul.f32 %v874, %v796
    %v903 = vmul.f32 %v877, %v796
    %v904 = vmul.f32 %v880, %v796
    %v905 = vmul.f32 %v883, %v796
    %v906 = vmul.f32 %v886, %v796
    %v907 = vmul.f32 %v889, %v796
    %v908 = vmul.f32 %v892, %v796
    %v909 = vadd.f32 %v893, 1e-06
    %v910 = vadd.f32 %v894, 1e-06
    %v911 = vadd.f32 %v895, 1e-06
    %v912 = vadd.f32 %v896, 1e-06
    %v913 = vadd.f32 %v897, 1e-06
    %v914 = vadd.f32 %v898, 1e-06
    %v915 = vadd.f32 %v899, 1e-06
    %v916 = vadd.f32 %v900, 1e-06
    %v917 = vadd.f32 %v901, 1e-06
    %v918 = vadd.f32 %v902, 1e-06
    %v919 = vadd.f32 %v903, 1e-06
    %v920 = vadd.f32 %v904, 1e-06
    %v921 = vadd.f32 %v905, 1e-06
    %v922 = vadd.f32 %v906, 1e-06
    %v923 = vadd.f32 %v907, 1e-06
    %v924 = vadd.f32 %v908, 1e-06
    %v925 = vrsqrt.pop %v909
    %v926 = vrsqrt.pop %v910
    %v927 = vrsqrt.pop %v911
    %v928 = vrsqrt.pop %v912
    %v929 = vrsqrt.pop %v913
    %v930 = vrsqrt.pop %v914
    %v931 = vrsqrt.pop %v915
    %v932 = vrsqrt.pop %v916
    %v933 = vrsqrt.pop %v917
    %v934 = vrsqrt.pop %v918
    %v935 = vrsqrt.pop %v919
    %v936 = vrsqrt.pop %v920
    %v937 = vrsqrt.pop %v921
    %v938 = vrsqrt.pop %v922
    %v939 = vrsqrt.pop %v923
    %v940 = vrsqrt.pop %v924
    %v941 = vmul.f32 %v813, %v925
    %v942 = vmul.f32 %v814, %v926
    %v943 = vmul.f32 %v815, %v927
    %v944 = vmul.f32 %v816, %v928
    %v945 = vmul.f32 %v817, %v929
    %v946 = vmul.f32 %v818, %v930
    %v947 = vmul.f32 %v819, %v931
    %v948 = vmul.f32 %v820, %v932
    %v949 = vmul.f32 %v821, %v933
    %v950 = vmul.f32 %v822, %v934
    %v951 = vmul.f32 %v823, %v935
    %v952 = vmul.f32 %v824, %v936
    %v953 = vmul.f32 %v825, %v937
    %v954 = vmul.f32 %v826, %v938
    %v955 = vmul.f32 %v827, %v939
    %v956 = vmul.f32 %v828, %v940
    %v958 = vlaneseq
    %v959 = vshrl.u32 %v958, 7
    %v960 = vsub.s32 0, %v959
    %v961 = vrot.slane %v709, %v960
    %v963 = vmul.f32 %v941, %v961
    %v964 = vmul.f32 %v942, %v961
    %v965 = vmul.f32 %v943, %v961
    %v966 = vmul.f32 %v944, %v961
    %v967 = vmul.f32 %v945, %v961
    %v968 = vmul.f32 %v946, %v961
    %v969 = vmul.f32 %v947, %v961
    %v970 = vmul.f32 %v948, %v961
    %v971 = vmul.f32 %v949, %v961
    %v972 = vmul.f32 %v950, %v961
    %v973 = vmul.f32 %v951, %v961
    %v974 = vmul.f32 %v952, %v961
    %v975 = vmul.f32 %v953, %v961
    %v976 = vmul.f32 %v954, %v961
    %v977 = vmul.f32 %v955, %v961
    %v978 = vmul.f32 %v956, %v961
    %v980 = vlaneseq
    %v981 = vshrl.u32 %v980, 7
    %v982 = vsub.s32 0, %v981
    %v983 = vrot.slane %v710, %v982
    %v985 = vadd.f32 %v963, %v983
    %v986 = vadd.f32 %v964, %v983
    %v987 = vadd.f32 %v965, %v983
    %v988 = vadd.f32 %v966, %v983
    %v989 = vadd.f32 %v967, %v983
    %v990 = vadd.f32 %v968, %v983
    %v991 = vadd.f32 %v969, %v983
    %v992 = vadd.f32 %v970, %v983
    %v993 = vadd.f32 %v971, %v983
    %v994 = vadd.f32 %v972, %v983
    %v995 = vadd.f32 %v973, %v983
    %v996 = vadd.f32 %v974, %v983
    %v997 = vadd.f32 %v975, %v983
    %v998 = vadd.f32 %v976, %v983
    %v999 = vadd.f32 %v977, %v983
    %v1000 = vadd.f32 %v978, %v983
    %v1002 = vlaneseq
    %v1003 = vshrl.u32 %v1002, 7
    %v1004 = vsub.s32 0, %v1003
    %v1005 = vrot.slane %v717, %v1004
    %v1008 = vsel %vm747, %v985, 0
    %v1011 = vsel %vm747, %v986, 0
    %v1014 = vsel %vm747, %v987, 0
    %v1017 = vsel %vm747, %v988, 0
    %v1020 = vsel %vm747, %v989, 0
    %v1023 = vsel %vm747, %v990, 0
    %v1026 = vsel %vm747, %v991, 0
    %v1029 = vsel %vm747, %v992, 0
    %v1032 = vsel %vm747, %v993, 0
    %v1035 = vsel %vm747, %v994, 0
    %v1038 = vsel %vm747, %v995, 0
    %v1041 = vsel %vm747, %v996, 0
    %v1044 = vsel %vm747, %v997, 0
    %v1047 = vsel %vm747, %v998, 0
    %v1050 = vsel %vm747, %v999, 0
    %v1053 = vsel %vm747, %v1000, 0
    %1055 = vmatprep.subr.mxu0 0.0
    %1056 = vmatpush1.msra.mxu0 %v713
    %1057 = vmatprep.subr.mxu0 0.0
    %1058 = vmatpush1.msra.mxu0 %v714
    %1059 = vmatprep.subr.mxu0 0.0
    %1060 = vmatpush1.msra.mxu0 %v715
    %1061 = vmatprep.subr.mxu0 0.0
    %1062 = vmatpush1.msra.mxu0 %v716
    %1063 = vmatprep.subr.mxu0 0.0
    %1064 = vmatpush1.msra.mxu0 0.0
    %1065 = vmatprep.subr.mxu0 0.0
    %1066 = vmatpush1.msra.mxu0 0.0
    %1067 = vmatprep.subr.mxu0 0.0
    %1068 = vmatpush1.msra.mxu0 0.0
    %1069 = vmatprep.subr.mxu0 0.0
    %1070 = vmatpush1.msra.mxu0 0.0
    %1071 = vmatprep.subr.mxu0 0.0
    %1072 = vmatpush1.msra.mxu0 0.0
    %1073 = vmatprep.subr.mxu0 0.0
    %1074 = vmatpush1.msra.mxu0 0.0
    %1075 = vmatprep.subr.mxu0 0.0
    %1076 = vmatpush1.msra.mxu0 0.0
    %1077 = vmatprep.subr.mxu0 0.0
    %1078 = vmatpush1.msra.mxu0 0.0
    %1079 = vmatprep.subr.mxu0 0.0
    %1080 = vmatpush1.msra.mxu0 0.0
    %1081 = vmatprep.subr.mxu0 0.0
    %1082 = vmatpush1.msra.mxu0 0.0
    %1083 = vmatprep.subr.mxu0 0.0
    %1084 = vmatpush1.msra.mxu0 0.0
    %1085 = vmatprep.subr.mxu0 0.0
    %1086 = vmatpush1.msra.mxu0 0.0
    %1087 = vmatprep.subr.mxu0 0.0
    %1088 = vmatpush1.msra.mxu0 0.0
    %1089 = vmatprep.subr.mxu0 0.0
    %1090 = vmatpush1.msra.mxu0 0.0
    %1091 = vmatprep.subr.mxu0 0.0
    %1092 = vmatpush1.msra.mxu0 0.0
    %1093 = vmatprep.subr.mxu0 0.0
    %1094 = vmatpush1.msra.mxu0 0.0
    %1095 = vmatprep.subr.mxu0 0.0
    %1096 = vmatpush1.msra.mxu0 0.0
    %1097 = vmatprep.subr.mxu0 0.0
    %1098 = vmatpush1.msra.mxu0 0.0
    %1099 = vmatprep.subr.mxu0 0.0
    %1100 = vmatpush1.msra.mxu0 0.0
    %1101 = vmatprep.subr.mxu0 0.0
    %1102 = vmatpush1.msra.mxu0 0.0
    %1103 = vmatprep.subr.mxu0 0.0
    %1104 = vmatpush1.msra.mxu0 0.0
    %1105 = vmatprep.subr.mxu0 0.0
    %1106 = vmatpush1.msra.mxu0 0.0
    %1107 = vmatprep.subr.mxu0 0.0
    %1108 = vmatpush1.msra.mxu0 0.0
    %1109 = vmatprep.subr.mxu0 0.0
    %1110 = vmatpush1.msra.mxu0 0.0
    %1111 = vmatprep.subr.mxu0 0.0
    %1112 = vmatpush1.msra.mxu0 0.0
    %1113 = vmatprep.subr.mxu0 0.0
    %1114 = vmatpush1.msra.mxu0 0.0
    %1115 = vmatprep.subr.mxu0 0.0
    %1116 = vmatpush1.msra.mxu0 0.0
    %1117 = vmatprep.subr.mxu0 0.0
    %1118 = vmatpush1.msra.mxu0 0.0
    %1119 = vmatprep.mubr.f32.mxu0 0.0
    %1120 = vmatmul.mubr.f32.gmra.mrb[0].mxu0 %v1008
    %v1121 = vpop.f32.mrb[0].mxu0
    %v1122 = vadd.f32 %v1005, %v1121
    %v1123 = vpop.f32.mrb[0].mxu0
    %1124 = vmatprep.mubr.f32.mxu0 0.0
    %1125 = vmatmul.mubr.f32.gmra.mrb[0].mxu0 %v1011
    %v1126 = vpop.f32.mrb[0].mxu0
    %v1127 = vadd.f32 %v1005, %v1126
    %v1128 = vpop.f32.mrb[0].mxu0
    %1129 = vmatprep.mubr.f32.mxu0 0.0
    %1130 = vmatmul.mubr.f32.gmra.mrb[0].mxu0 %v1014
    %v1131 = vpop.f32.mrb[0].mxu0
    %v1132 = vadd.f32 %v1005, %v1131
    %v1133 = vpop.f32.mrb[0].mxu0
    %1134 = vmatprep.mubr.f32.mxu0 0.0
    %1135 = vmatmul.mubr.f32.gmra.mrb[0].mxu0 %v1017
    %v1136 = vpop.f32.mrb[0].mxu0
    %v1137 = vadd.f32 %v1005, %v1136
    %v1138 = vpop.f32.mrb[0].mxu0
    %1139 = vmatprep.mubr.f32.mxu0 0.0
    %1140 = vmatmul.mubr.f32.gmra.mrb[0].mxu0 %v1020
    %v1141 = vpop.f32.mrb[0].mxu0
    %v1142 = vadd.f32 %v1005, %v1141
    %v1143 = vpop.f32.mrb[0].mxu0
    %1144 = vmatprep.mubr.f32.mxu0 0.0
    %1145 = vmatmul.mubr.f32.gmra.mrb[0].mxu0 %v1023
    %v1146 = vpop.f32.mrb[0].mxu0
    %v1147 = vadd.f32 %v1005, %v1146
    %v1148 = vpop.f32.mrb[0].mxu0
    %1149 = vmatprep.mubr.f32.mxu0 0.0
    %1150 = vmatmul.mubr.f32.gmra.mrb[0].mxu0 %v1026
    %v1151 = vpop.f32.mrb[0].mxu0
    %v1152 = vadd.f32 %v1005, %v1151
    %v1153 = vpop.f32.mrb[0].mxu0
    %1154 = vmatprep.mubr.f32.mxu0 0.0
    %1155 = vmatmul.mubr.f32.gmra.mrb[0].mxu0 %v1029
    %v1156 = vpop.f32.mrb[0].mxu0
    %v1157 = vadd.f32 %v1005, %v1156
    %v1158 = vpop.f32.mrb[0].mxu0
    %1159 = vmatprep.mubr.f32.mxu0 0.0
    %1160 = vmatmul.mubr.f32.gmra.mrb[0].mxu0 %v1032
    %v1161 = vpop.f32.mrb[0].mxu0
    %v1162 = vadd.f32 %v1005, %v1161
    %v1163 = vpop.f32.mrb[0].mxu0
    %1164 = vmatprep.mubr.f32.mxu0 0.0
    %1165 = vmatmul.mubr.f32.gmra.mrb[0].mxu0 %v1035
    %v1166 = vpop.f32.mrb[0].mxu0
    %v1167 = vadd.f32 %v1005, %v1166
    %v1168 = vpop.f32.mrb[0].mxu0
    %1169 = vmatprep.mubr.f32.mxu0 0.0
    %1170 = vmatmul.mubr.f32.gmra.mrb[0].mxu0 %v1038
    %v1171 = vpop.f32.mrb[0].mxu0
    %v1172 = vadd.f32 %v1005, %v1171
    %v1173 = vpop.f32.mrb[0].mxu0
    %1174 = vmatprep.mubr.f32.mxu0 0.0
    %1175 = vmatmul.mubr.f32.gmra.mrb[0].mxu0 %v1041
    %v1176 = vpop.f32.mrb[0].mxu0
    %v1177 = vadd.f32 %v1005, %v1176
    %v1178 = vpop.f32.mrb[0].mxu0
    %1179 = vmatprep.mubr.f32.mxu0 0.0
    %1180 = vmatmul.mubr.f32.gmra.mrb[0].mxu0 %v1044
    %v1181 = vpop.f32.mrb[0].mxu0
    %v1182 = vadd.f32 %v1005, %v1181
    %v1183 = vpop.f32.mrb[0].mxu0
    %1184 = vmatprep.mubr.f32.mxu0 0.0
    %1185 = vmatmul.mubr.f32.gmra.mrb[0].mxu0 %v1047
    %v1186 = vpop.f32.mrb[0].mxu0
    %v1187 = vadd.f32 %v1005, %v1186
    %v1188 = vpop.f32.mrb[0].mxu0
    %1189 = vmatprep.mubr.f32.mxu0 0.0
    %1190 = vmatmul.mubr.f32.gmra.mrb[0].mxu0 %v1050
    %v1191 = vpop.f32.mrb[0].mxu0
    %v1192 = vadd.f32 %v1005, %v1191
    %v1193 = vpop.f32.mrb[0].mxu0
    %1194 = vmatprep.mubr.f32.mxu0 0.0
    %1195 = vmatmul.mubr.f32.gmra.mrb[0].mxu0 %v1053
    %v1196 = vpop.f32.mrb[0].mxu0
    %v1197 = vadd.f32 %v1005, %v1196
    %v1198 = vpop.f32.mrb[0].mxu0
    %1199 = vdwg.mxu0
    %v1201 = vlaneseq
    %v1202 = vshrl.u32 %v1201, 7
    %v1203 = vsub.s32 0, %v1202
    %v1204 = vrot.slane %v722, %v1203
    %1206 = vmatprep.subr.mxu0 0.0
    %1207 = vmatpush1.msra.mxu0 %v718
    %1208 = vmatprep.subr.mxu0 0.0
    %1209 = vmatpush1.msra.mxu0 %v719
    %1210 = vmatprep.subr.mxu0 0.0
    %1211 = vmatpush1.msra.mxu0 %v720
    %1212 = vmatprep.subr.mxu0 0.0
    %1213 = vmatpush1.msra.mxu0 %v721
    %1214 = vmatprep.subr.mxu0 0.0
    %1215 = vmatpush1.msra.mxu0 0.0
    %1216 = vmatprep.subr.mxu0 0.0
    %1217 = vmatpush1.msra.mxu0 0.0
    %1218 = vmatprep.subr.mxu0 0.0
    %1219 = vmatpush1.msra.mxu0 0.0
    %1220 = vmatprep.subr.mxu0 0.0
    %1221 = vmatpush1.msra.mxu0 0.0
    %1222 = vmatprep.subr.mxu0 0.0
    %1223 = vmatpush1.msra.mxu0 0.0
    %1224 = vmatprep.subr.mxu0 0.0
    %1225 = vmatpush1.msra.mxu0 0.0
    %1226 = vmatprep.subr.mxu0 0.0
    %1227 = vmatpush1.msra.mxu0 0.0
    %1228 = vmatprep.subr.mxu0 0.0
    %1229 = vmatpush1.msra.mxu0 0.0
    %1230 = vmatprep.subr.mxu0 0.0
    %1231 = vmatpush1.msra.mxu0 0.0
    %1232 = vmatprep.subr.mxu0 0.0
    %1233 = vmatpush1.msra.mxu0 0.0
    %1234 = vmatprep.subr.mxu0 0.0
    %1235 = vmatpush1.msra.mxu0 0.0
    %1236 = vmatprep.subr.mxu0 0.0
    %1237 = vmatpush1.msra.mxu0 0.0
    %1238 = vmatprep.subr.mxu0 0.0
    %1239 = vmatpush1.msra.mxu0 0.0
    %1240 = vmatprep.subr.mxu0 0.0
    %1241 = vmatpush1.msra.mxu0 0.0
    %1242 = vmatprep.subr.mxu0 0.0
    %1243 = vmatpush1.msra.mxu0 0.0
    %1244 = vmatprep.subr.mxu0 0.0
    %1245 = vmatpush1.msra.mxu0 0.0
    %1246 = vmatprep.subr.mxu0 0.0
    %1247 = vmatpush1.msra.mxu0 0.0
    %1248 = vmatprep.subr.mxu0 0.0
    %1249 = vmatpush1.msra.mxu0 0.0
    %1250 = vmatprep.subr.mxu0 0.0
    %1251 = vmatpush1.msra.mxu0 0.0
    %1252 = vmatprep.subr.mxu0 0.0
    %1253 = vmatpush1.msra.mxu0 0.0
    %1254 = vmatprep.subr.mxu0 0.0
    %1255 = vmatpush1.msra.mxu0 0.0
    %1256 = vmatprep.subr.mxu0 0.0
    %1257 = vmatpush1.msra.mxu0 0.0
    %1258 = vmatprep.subr.mxu0 0.0
    %1259 = vmatpush1.msra.mxu0 0.0
    %1260 = vmatprep.subr.mxu0 0.0
    %1261 = vmatpush1.msra.mxu0 0.0
    %1262 = vmatprep.subr.mxu0 0.0
    %1263 = vmatpush1.msra.mxu0 0.0
    %1264 = vmatprep.subr.mxu0 0.0
    %1265 = vmatpush1.msra.mxu0 0.0
    %1266 = vmatprep.subr.mxu0 0.0
    %1267 = vmatpush1.msra.mxu0 0.0
    %1268 = vmatprep.subr.mxu0 0.0
    %1269 = vmatpush1.msra.mxu0 0.0
    %1270 = vmatprep.mubr.f32.mxu0 0.0
    %1271 = vmatmul.mubr.f32.gmra.mrb[0].mxu0 %v1008
    %v1272 = vpop.f32.mrb[0].mxu0
    %v1273 = vadd.f32 %v1204, %v1272
    %v1274 = vpop.f32.mrb[0].mxu0
    %1275 = vmatprep.mubr.f32.mxu0 0.0
    %1276 = vmatmul.mubr.f32.gmra.mrb[0].mxu0 %v1011
    %v1277 = vpop.f32.mrb[0].mxu0
    %v1278 = vadd.f32 %v1204, %v1277
    %v1279 = vpop.f32.mrb[0].mxu0
    %1280 = vmatprep.mubr.f32.mxu0 0.0
    %1281 = vmatmul.mubr.f32.gmra.mrb[0].mxu0 %v1014
    %v1282 = vpop.f32.mrb[0].mxu0
    %v1283 = vadd.f32 %v1204, %v1282
    %v1284 = vpop.f32.mrb[0].mxu0
    %1285 = vmatprep.mubr.f32.mxu0 0.0
    %1286 = vmatmul.mubr.f32.gmra.mrb[0].mxu0 %v1017
    %v1287 = vpop.f32.mrb[0].mxu0
    %v1288 = vadd.f32 %v1204, %v1287
    %v1289 = vpop.f32.mrb[0].mxu0
    %1290 = vmatprep.mubr.f32.mxu0 0.0
    %1291 = vmatmul.mubr.f32.gmra.mrb[0].mxu0 %v1020
    %v1292 = vpop.f32.mrb[0].mxu0
    %v1293 = vadd.f32 %v1204, %v1292
    %v1294 = vpop.f32.mrb[0].mxu0
    %1295 = vmatprep.mubr.f32.mxu0 0.0
    %1296 = vmatmul.mubr.f32.gmra.mrb[0].mxu0 %v1023
    %v1297 = vpop.f32.mrb[0].mxu0
    %v1298 = vadd.f32 %v1204, %v1297
    %v1299 = vpop.f32.mrb[0].mxu0
    %1300 = vmatprep.mubr.f32.mxu0 0.0
    %1301 = vmatmul.mubr.f32.gmra.mrb[0].mxu0 %v1026
    %v1302 = vpop.f32.mrb[0].mxu0
    %v1303 = vadd.f32 %v1204, %v1302
    %v1304 = vpop.f32.mrb[0].mxu0
    %1305 = vmatprep.mubr.f32.mxu0 0.0
    %1306 = vmatmul.mubr.f32.gmra.mrb[0].mxu0 %v1029
    %v1307 = vpop.f32.mrb[0].mxu0
    %v1308 = vadd.f32 %v1204, %v1307
    %v1309 = vpop.f32.mrb[0].mxu0
    %1310 = vmatprep.mubr.f32.mxu0 0.0
    %1311 = vmatmul.mubr.f32.gmra.mrb[0].mxu0 %v1032
    %v1312 = vpop.f32.mrb[0].mxu0
    %v1313 = vadd.f32 %v1204, %v1312
    %v1314 = vpop.f32.mrb[0].mxu0
    %1315 = vmatprep.mubr.f32.mxu0 0.0
    %1316 = vmatmul.mubr.f32.gmra.mrb[0].mxu0 %v1035
    %v1317 = vpop.f32.mrb[0].mxu0
    %v1318 = vadd.f32 %v1204, %v1317
    %v1319 = vpop.f32.mrb[0].mxu0
    %1320 = vmatprep.mubr.f32.mxu0 0.0
    %1321 = vmatmul.mubr.f32.gmra.mrb[0].mxu0 %v1038
    %v1322 = vpop.f32.mrb[0].mxu0
    %v1323 = vadd.f32 %v1204, %v1322
    %v1324 = vpop.f32.mrb[0].mxu0
    %1325 = vmatprep.mubr.f32.mxu0 0.0
    %1326 = vmatmul.mubr.f32.gmra.mrb[0].mxu0 %v1041
    %v1327 = vpop.f32.mrb[0].mxu0
    %v1328 = vadd.f32 %v1204, %v1327
    %v1329 = vpop.f32.mrb[0].mxu0
    %1330 = vmatprep.mubr.f32.mxu0 0.0
    %1331 = vmatmul.mubr.f32.gmra.mrb[0].mxu0 %v1044
    %v1332 = vpop.f32.mrb[0].mxu0
    %v1333 = vadd.f32 %v1204, %v1332
    %v1334 = vpop.f32.mrb[0].mxu0
    %1335 = vmatprep.mubr.f32.mxu0 0.0
    %1336 = vmatmul.mubr.f32.gmra.mrb[0].mxu0 %v1047
    %v1337 = vpop.f32.mrb[0].mxu0
    %v1338 = vadd.f32 %v1204, %v1337
    %v1339 = vpop.f32.mrb[0].mxu0
    %1340 = vmatprep.mubr.f32.mxu0 0.0
    %1341 = vmatmul.mubr.f32.gmra.mrb[0].mxu0 %v1050
    %v1342 = vpop.f32.mrb[0].mxu0
    %v1343 = vadd.f32 %v1204, %v1342
    %v1344 = vpop.f32.mrb[0].mxu0
    %1345 = vmatprep.mubr.f32.mxu0 0.0
    %1346 = vmatmul.mubr.f32.gmra.mrb[0].mxu0 %v1053
    %v1347 = vpop.f32.mrb[0].mxu0
    %v1348 = vadd.f32 %v1204, %v1347
    %v1349 = vpop.f32.mrb[0].mxu0
    %1350 = vdwg.mxu0
    %v1352 = vlaneseq
    %v1353 = vshrl.u32 %v1352, 7
    %v1354 = vsub.s32 0, %v1353
    %v1355 = vrot.slane %v727, %v1354
    %1357 = vmatprep.subr.mxu0 0.0
    %1358 = vmatpush1.msra.mxu0 %v723
    %1359 = vmatprep.subr.mxu0 0.0
    %1360 = vmatpush1.msra.mxu0 %v724
    %1361 = vmatprep.subr.mxu0 0.0
    %1362 = vmatpush1.msra.mxu0 %v725
    %1363 = vmatprep.subr.mxu0 0.0
    %1364 = vmatpush1.msra.mxu0 %v726
    %1365 = vmatprep.subr.mxu0 0.0
    %1366 = vmatpush1.msra.mxu0 0.0
    %1367 = vmatprep.subr.mxu0 0.0
    %1368 = vmatpush1.msra.mxu0 0.0
    %1369 = vmatprep.subr.mxu0 0.0
    %1370 = vmatpush1.msra.mxu0 0.0
    %1371 = vmatprep.subr.mxu0 0.0
    %1372 = vmatpush1.msra.mxu0 0.0
    %1373 = vmatprep.subr.mxu0 0.0
    %1374 = vmatpush1.msra.mxu0 0.0
    %1375 = vmatprep.subr.mxu0 0.0
    %1376 = vmatpush1.msra.mxu0 0.0
    %1377 = vmatprep.subr.mxu0 0.0
    %1378 = vmatpush1.msra.mxu0 0.0
    %1379 = vmatprep.subr.mxu0 0.0
    %1380 = vmatpush1.msra.mxu0 0.0
    %1381 = vmatprep.subr.mxu0 0.0
    %1382 = vmatpush1.msra.mxu0 0.0
    %1383 = vmatprep.subr.mxu0 0.0
    %1384 = vmatpush1.msra.mxu0 0.0
    %1385 = vmatprep.subr.mxu0 0.0
    %1386 = vmatpush1.msra.mxu0 0.0
    %1387 = vmatprep.subr.mxu0 0.0
    %1388 = vmatpush1.msra.mxu0 0.0
    %1389 = vmatprep.subr.mxu0 0.0
    %1390 = vmatpush1.msra.mxu0 0.0
    %1391 = vmatprep.subr.mxu0 0.0
    %1392 = vmatpush1.msra.mxu0 0.0
    %1393 = vmatprep.subr.mxu0 0.0
    %1394 = vmatpush1.msra.mxu0 0.0
    %1395 = vmatprep.subr.mxu0 0.0
    %1396 = vmatpush1.msra.mxu0 0.0
    %1397 = vmatprep.subr.mxu0 0.0
    %1398 = vmatpush1.msra.mxu0 0.0
    %1399 = vmatprep.subr.mxu0 0.0
    %1400 = vmatpush1.msra.mxu0 0.0
    %1401 = vmatprep.subr.mxu0 0.0
    %1402 = vmatpush1.msra.mxu0 0.0
    %1403 = vmatprep.subr.mxu0 0.0
    %1404 = vmatpush1.msra.mxu0 0.0
    %1405 = vmatprep.subr.mxu0 0.0
    %1406 = vmatpush1.msra.mxu0 0.0
    %1407 = vmatprep.subr.mxu0 0.0
    %1408 = vmatpush1.msra.mxu0 0.0
    %1409 = vmatprep.subr.mxu0 0.0
    %1410 = vmatpush1.msra.mxu0 0.0
    %1411 = vmatprep.subr.mxu0 0.0
    %1412 = vmatpush1.msra.mxu0 0.0
    %1413 = vmatprep.subr.mxu0 0.0
    %1414 = vmatpush1.msra.mxu0 0.0
    %1415 = vmatprep.subr.mxu0 0.0
    %1416 = vmatpush1.msra.mxu0 0.0
    %1417 = vmatprep.subr.mxu0 0.0
    %1418 = vmatpush1.msra.mxu0 0.0
    %1419 = vmatprep.subr.mxu0 0.0
    %1420 = vmatpush1.msra.mxu0 0.0
    %1421 = vmatprep.mubr.f32.mxu0 0.0
    %1422 = vmatmul.mubr.f32.gmra.mrb[0].mxu0 %v1008
    %v1423 = vpop.f32.mrb[0].mxu0
    %v1424 = vadd.f32 %v1355, %v1423
    %v1425 = vpop.f32.mrb[0].mxu0
    %1426 = vmatprep.mubr.f32.mxu0 0.0
    %1427 = vmatmul.mubr.f32.gmra.mrb[0].mxu0 %v1011
    %v1428 = vpop.f32.mrb[0].mxu0
    %v1429 = vadd.f32 %v1355, %v1428
    %v1430 = vpop.f32.mrb[0].mxu0
    %1431 = vmatprep.mubr.f32.mxu0 0.0
    %1432 = vmatmul.mubr.f32.gmra.mrb[0].mxu0 %v1014
    %v1433 = vpop.f32.mrb[0].mxu0
    %v1434 = vadd.f32 %v1355, %v1433
    %v1435 = vpop.f32.mrb[0].mxu0
    %1436 = vmatprep.mubr.f32.mxu0 0.0
    %1437 = vmatmul.mubr.f32.gmra.mrb[0].mxu0 %v1017
    %v1438 = vpop.f32.mrb[0].mxu0
    %v1439 = vadd.f32 %v1355, %v1438
    %v1440 = vpop.f32.mrb[0].mxu0
    %1441 = vmatprep.mubr.f32.mxu0 0.0
    %1442 = vmatmul.mubr.f32.gmra.mrb[0].mxu0 %v1020
    %v1443 = vpop.f32.mrb[0].mxu0
    %v1444 = vadd.f32 %v1355, %v1443
    %v1445 = vpop.f32.mrb[0].mxu0
    %1446 = vmatprep.mubr.f32.mxu0 0.0
    %1447 = vmatmul.mubr.f32.gmra.mrb[0].mxu0 %v1023
    %v1448 = vpop.f32.mrb[0].mxu0
    %v1449 = vadd.f32 %v1355, %v1448
    %v1450 = vpop.f32.mrb[0].mxu0
    %1451 = vmatprep.mubr.f32.mxu0 0.0
    %1452 = vmatmul.mubr.f32.gmra.mrb[0].mxu0 %v1026
    %v1453 = vpop.f32.mrb[0].mxu0
    %v1454 = vadd.f32 %v1355, %v1453
    %v1455 = vpop.f32.mrb[0].mxu0
    %1456 = vmatprep.mubr.f32.mxu0 0.0
    %1457 = vmatmul.mubr.f32.gmra.mrb[0].mxu0 %v1029
    %v1458 = vpop.f32.mrb[0].mxu0
    %v1459 = vadd.f32 %v1355, %v1458
    %v1460 = vpop.f32.mrb[0].mxu0
    %1461 = vmatprep.mubr.f32.mxu0 0.0
    %1462 = vmatmul.mubr.f32.gmra.mrb[0].mxu0 %v1032
    %v1463 = vpop.f32.mrb[0].mxu0
    %v1464 = vadd.f32 %v1355, %v1463
    %v1465 = vpop.f32.mrb[0].mxu0
    %1466 = vmatprep.mubr.f32.mxu0 0.0
    %1467 = vmatmul.mubr.f32.gmra.mrb[0].mxu0 %v1035
    %v1468 = vpop.f32.mrb[0].mxu0
    %v1469 = vadd.f32 %v1355, %v1468
    %v1470 = vpop.f32.mrb[0].mxu0
    %1471 = vmatprep.mubr.f32.mxu0 0.0
    %1472 = vmatmul.mubr.f32.gmra.mrb[0].mxu0 %v1038
    %v1473 = vpop.f32.mrb[0].mxu0
    %v1474 = vadd.f32 %v1355, %v1473
    %v1475 = vpop.f32.mrb[0].mxu0
    %1476 = vmatprep.mubr.f32.mxu0 0.0
    %1477 = vmatmul.mubr.f32.gmra.mrb[0].mxu0 %v1041
    %v1478 = vpop.f32.mrb[0].mxu0
    %v1479 = vadd.f32 %v1355, %v1478
    %v1480 = vpop.f32.mrb[0].mxu0
    %1481 = vmatprep.mubr.f32.mxu0 0.0
    %1482 = vmatmul.mubr.f32.gmra.mrb[0].mxu0 %v1044
    %v1483 = vpop.f32.mrb[0].mxu0
    %v1484 = vadd.f32 %v1355, %v1483
    %v1485 = vpop.f32.mrb[0].mxu0
    %1486 = vmatprep.mubr.f32.mxu0 0.0
    %1487 = vmatmul.mubr.f32.gmra.mrb[0].mxu0 %v1047
    %v1488 = vpop.f32.mrb[0].mxu0
    %v1489 = vadd.f32 %v1355, %v1488
    %v1490 = vpop.f32.mrb[0].mxu0
    %1491 = vmatprep.mubr.f32.mxu0 0.0
    %1492 = vmatmul.mubr.f32.gmra.mrb[0].mxu0 %v1050
    %v1493 = vpop.f32.mrb[0].mxu0
    %v1494 = vadd.f32 %v1355, %v1493
    %v1495 = vpop.f32.mrb[0].mxu0
    %1496 = vmatprep.mubr.f32.mxu0 0.0
    %1497 = vmatmul.mubr.f32.gmra.mrb[0].mxu0 %v1053
    %v1498 = vpop.f32.mrb[0].mxu0
    %v1499 = vadd.f32 %v1355, %v1498
    %v1500 = vpop.f32.mrb[0].mxu0
    %1501 = vdwg.mxu0
    %v1502 = vmul.f32 %v1122, %v1273
    %v1503 = vmul.f32 %v1127, %v1278
    %v1504 = vmul.f32 %v1132, %v1283
    %v1505 = vmul.f32 %v1137, %v1288
    %v1506 = vmul.f32 %v1142, %v1293
    %v1507 = vmul.f32 %v1147, %v1298
    %v1508 = vmul.f32 %v1152, %v1303
    %v1509 = vmul.f32 %v1157, %v1308
    %v1511 = vsel %vm747, %v1502, 0
    %v1514 = vsel %vm747, %v1503, 0
    %v1517 = vsel %vm747, %v1504, 0
    %v1520 = vsel %vm747, %v1505, 0
    %v1523 = vsel %vm747, %v1506, 0
    %v1526 = vsel %vm747, %v1507, 0
    %v1529 = vsel %vm747, %v1508, 0
    %v1532 = vsel %vm747, %v1509, 0
    %1534 = vmatprep.subr.mxu0 0.0
    %1535 = vmatpush1.msra.mxu0 %v705
    %1536 = vmatprep.subr.mxu0 0.0
    %1537 = vmatpush1.msra.mxu0 %v706
    %1538 = vmatprep.subr.mxu0 0.0
    %1539 = vmatpush1.msra.mxu0 %v707
    %1540 = vmatprep.subr.mxu0 0.0
    %1541 = vmatpush1.msra.mxu0 %v708
    %1542 = vmatprep.subr.mxu0 0.0
    %1543 = vmatpush1.msra.mxu0 0.0
    %1544 = vmatprep.subr.mxu0 0.0
    %1545 = vmatpush1.msra.mxu0 0.0
    %1546 = vmatprep.subr.mxu0 0.0
    %1547 = vmatpush1.msra.mxu0 0.0
    %1548 = vmatprep.subr.mxu0 0.0
    %1549 = vmatpush1.msra.mxu0 0.0
    %1550 = vmatprep.subr.mxu0 0.0
    %1551 = vmatpush1.msra.mxu0 0.0
    %1552 = vmatprep.subr.mxu0 0.0
    %1553 = vmatpush1.msra.mxu0 0.0
    %1554 = vmatprep.subr.mxu0 0.0
    %1555 = vmatpush1.msra.mxu0 0.0
    %1556 = vmatprep.subr.mxu0 0.0
    %1557 = vmatpush1.msra.mxu0 0.0
    %1558 = vmatprep.subr.mxu0 0.0
    %1559 = vmatpush1.msra.mxu0 0.0
    %1560 = vmatprep.subr.mxu0 0.0
    %1561 = vmatpush1.msra.mxu0 0.0
    %1562 = vmatprep.subr.mxu0 0.0
    %1563 = vmatpush1.msra.mxu0 0.0
    %1564 = vmatprep.subr.mxu0 0.0
    %1565 = vmatpush1.msra.mxu0 0.0
    %1566 = vmatprep.subr.mxu0 0.0
    %1567 = vmatpush1.msra.mxu0 0.0
    %1568 = vmatprep.subr.mxu0 0.0
    %1569 = vmatpush1.msra.mxu0 0.0
    %1570 = vmatprep.subr.mxu0 0.0
    %1571 = vmatpush1.msra.mxu0 0.0
    %1572 = vmatprep.subr.mxu0 0.0
    %1573 = vmatpush1.msra.mxu0 0.0
    %1574 = vmatprep.subr.mxu0 0.0
    %1575 = vmatpush1.msra.mxu0 0.0
    %1576 = vmatprep.subr.mxu0 0.0
    %1577 = vmatpush1.msra.mxu0 0.0
    %1578 = vmatprep.subr.mxu0 0.0
    %1579 = vmatpush1.msra.mxu0 0.0
    %1580 = vmatprep.subr.mxu0 0.0
    %1581 = vmatpush1.msra.mxu0 0.0
    %1582 = vmatprep.subr.mxu0 0.0
    %1583 = vmatpush1.msra.mxu0 0.0
    %1584 = vmatprep.subr.mxu0 0.0
    %1585 = vmatpush1.msra.mxu0 0.0
    %1586 = vmatprep.subr.mxu0 0.0
    %1587 = vmatpush1.msra.mxu0 0.0
    %1588 = vmatprep.subr.mxu0 0.0
    %1589 = vmatpush1.msra.mxu0 0.0
    %1590 = vmatprep.subr.mxu0 0.0
    %1591 = vmatpush1.msra.mxu0 0.0
    %1592 = vmatprep.subr.mxu0 0.0
    %1593 = vmatpush1.msra.mxu0 0.0
    %1594 = vmatprep.subr.mxu0 0.0
    %1595 = vmatpush1.msra.mxu0 0.0
    %1596 = vmatprep.subr.mxu0 0.0
    %1597 = vmatpush1.msra.mxu0 0.0
    %1598 = vmatprep.mubr.f32.mxu0 0.0
    %1599 = vmatmul.mubr.f32.gmra.mrb[0].mxu0 %v1511
    %v1600 = vpop.f32.mrb[0].mxu0
    %v1601 = vadd.f32 0.0, %v1600
    %v1602 = vpop.f32.mrb[0].mxu0
    %1603 = vmatprep.mubr.f32.mxu0 0.0
    %1604 = vmatmul.mubr.f32.gmra.mrb[0].mxu0 %v1514
    %v1605 = vpop.f32.mrb[0].mxu0
    %v1606 = vadd.f32 0.0, %v1605
    %v1607 = vpop.f32.mrb[0].mxu0
    %1608 = vmatprep.mubr.f32.mxu0 0.0
    %1609 = vmatmul.mubr.f32.gmra.mrb[0].mxu0 %v1517
    %v1610 = vpop.f32.mrb[0].mxu0
    %v1611 = vadd.f32 0.0, %v1610
    %v1612 = vpop.f32.mrb[0].mxu0
    %1613 = vmatprep.mubr.f32.mxu0 0.0
    %1614 = vmatmul.mubr.f32.gmra.mrb[0].mxu0 %v1520
    %v1615 = vpop.f32.mrb[0].mxu0
    %v1616 = vadd.f32 0.0, %v1615
    %v1617 = vpop.f32.mrb[0].mxu0
    %1618 = vmatprep.mubr.f32.mxu0 0.0
    %1619 = vmatmul.mubr.f32.gmra.mrb[0].mxu0 %v1523
    %v1620 = vpop.f32.mrb[0].mxu0
    %v1621 = vadd.f32 0.0, %v1620
    %v1622 = vpop.f32.mrb[0].mxu0
    %1623 = vmatprep.mubr.f32.mxu0 0.0
    %1624 = vmatmul.mubr.f32.gmra.mrb[0].mxu0 %v1526
    %v1625 = vpop.f32.mrb[0].mxu0
    %v1626 = vadd.f32 0.0, %v1625
    %v1627 = vpop.f32.mrb[0].mxu0
    %1628 = vmatprep.mubr.f32.mxu0 0.0
    %1629 = vmatmul.mubr.f32.gmra.mrb[0].mxu0 %v1529
    %v1630 = vpop.f32.mrb[0].mxu0
    %v1631 = vadd.f32 0.0, %v1630
    %v1632 = vpop.f32.mrb[0].mxu0
    %1633 = vmatprep.mubr.f32.mxu0 0.0
    %1634 = vmatmul.mubr.f32.gmra.mrb[0].mxu0 %v1532
    %v1635 = vpop.f32.mrb[0].mxu0
    %v1636 = vadd.f32 0.0, %v1635
    %v1637 = vpop.f32.mrb[0].mxu0
    %1638 = vdwg.mxu0
    %v1639 = vmul.f32 %v1122, %v1313
    %v1640 = vmul.f32 %v1127, %v1318
    %v1641 = vmul.f32 %v1132, %v1323
    %v1642 = vmul.f32 %v1137, %v1328
    %v1643 = vmul.f32 %v1142, %v1333
    %v1644 = vmul.f32 %v1147, %v1338
    %v1645 = vmul.f32 %v1152, %v1343
    %v1646 = vmul.f32 %v1157, %v1348
    %v1648 = vsel %vm747, %v1639, 0
    %v1651 = vsel %vm747, %v1640, 0
    %v1654 = vsel %vm747, %v1641, 0
    %v1657 = vsel %vm747, %v1642, 0
    %v1660 = vsel %vm747, %v1643, 0
    %v1663 = vsel %vm747, %v1644, 0
    %v1666 = vsel %vm747, %v1645, 0
    %v1669 = vsel %vm747, %v1646, 0
    %1671 = vmatprep.subr.mxu0 0.0
    %1672 = vmatpush1.msra.mxu0 %v705
    %1673 = vmatprep.subr.mxu0 0.0
    %1674 = vmatpush1.msra.mxu0 %v706
    %1675 = vmatprep.subr.mxu0 0.0
    %1676 = vmatpush1.msra.mxu0 %v707
    %1677 = vmatprep.subr.mxu0 0.0
    %1678 = vmatpush1.msra.mxu0 %v708
    %1679 = vmatprep.subr.mxu0 0.0
    %1680 = vmatpush1.msra.mxu0 0.0
    %1681 = vmatprep.subr.mxu0 0.0
    %1682 = vmatpush1.msra.mxu0 0.0
    %1683 = vmatprep.subr.mxu0 0.0
    %1684 = vmatpush1.msra.mxu0 0.0
    %1685 = vmatprep.subr.mxu0 0.0
    %1686 = vmatpush1.msra.mxu0 0.0
    %1687 = vmatprep.subr.mxu0 0.0
    %1688 = vmatpush1.msra.mxu0 0.0
    %1689 = vmatprep.subr.mxu0 0.0
    %1690 = vmatpush1.msra.mxu0 0.0
    %1691 = vmatprep.subr.mxu0 0.0
    %1692 = vmatpush1.msra.mxu0 0.0
    %1693 = vmatprep.subr.mxu0 0.0
    %1694 = vmatpush1.msra.mxu0 0.0
    %1695 = vmatprep.subr.mxu0 0.0
    %1696 = vmatpush1.msra.mxu0 0.0
    %1697 = vmatprep.subr.mxu0 0.0
    %1698 = vmatpush1.msra.mxu0 0.0
    %1699 = vmatprep.subr.mxu0 0.0
    %1700 = vmatpush1.msra.mxu0 0.0
    %1701 = vmatprep.subr.mxu0 0.0
    %1702 = vmatpush1.msra.mxu0 0.0
    %1703 = vmatprep.subr.mxu0 0.0
    %1704 = vmatpush1.msra.mxu0 0.0
    %1705 = vmatprep.subr.mxu0 0.0
    %1706 = vmatpush1.msra.mxu0 0.0
    %1707 = vmatprep.subr.mxu0 0.0
    %1708 = vmatpush1.msra.mxu0 0.0
    %1709 = vmatprep.subr.mxu0 0.0
    %1710 = vmatpush1.msra.mxu0 0.0
    %1711 = vmatprep.subr.mxu0 0.0
    %1712 = vmatpush1.msra.mxu0 0.0
    %1713 = vmatprep.subr.mxu0 0.0
    %1714 = vmatpush1.msra.mxu0 0.0
    %1715 = vmatprep.subr.mxu0 0.0
    %1716 = vmatpush1.msra.mxu0 0.0
    %1717 = vmatprep.subr.mxu0 0.0
    %1718 = vmatpush1.msra.mxu0 0.0
    %1719 = vmatprep.subr.mxu0 0.0
    %1720 = vmatpush1.msra.mxu0 0.0
    %1721 = vmatprep.subr.mxu0 0.0
    %1722 = vmatpush1.msra.mxu0 0.0
    %1723 = vmatprep.subr.mxu0 0.0
    %1724 = vmatpush1.msra.mxu0 0.0
    %1725 = vmatprep.subr.mxu0 0.0
    %1726 = vmatpush1.msra.mxu0 0.0
    %1727 = vmatprep.subr.mxu0 0.0
    %1728 = vmatpush1.msra.mxu0 0.0
    %1729 = vmatprep.subr.mxu0 0.0
    %1730 = vmatpush1.msra.mxu0 0.0
    %1731 = vmatprep.subr.mxu0 0.0
    %1732 = vmatpush1.msra.mxu0 0.0
    %1733 = vmatprep.subr.mxu0 0.0
    %1734 = vmatpush1.msra.mxu0 0.0
    %1735 = vmatprep.mubr.f32.mxu0 0.0
    %1736 = vmatmul.mubr.f32.gmra.mrb[0].mxu0 %v1648
    %v1737 = vpop.f32.mrb[0].mxu0
    %v1738 = vadd.f32 0.0, %v1737
    %v1739 = vpop.f32.mrb[0].mxu0
    %1740 = vmatprep.mubr.f32.mxu0 0.0
    %1741 = vmatmul.mubr.f32.gmra.mrb[0].mxu0 %v1651
    %v1742 = vpop.f32.mrb[0].mxu0
    %v1743 = vadd.f32 0.0, %v1742
    %v1744 = vpop.f32.mrb[0].mxu0
    %1745 = vmatprep.mubr.f32.mxu0 0.0
    %1746 = vmatmul.mubr.f32.gmra.mrb[0].mxu0 %v1654
    %v1747 = vpop.f32.mrb[0].mxu0
    %v1748 = vadd.f32 0.0, %v1747
    %v1749 = vpop.f32.mrb[0].mxu0
    %1750 = vmatprep.mubr.f32.mxu0 0.0
    %1751 = vmatmul.mubr.f32.gmra.mrb[0].mxu0 %v1657
    %v1752 = vpop.f32.mrb[0].mxu0
    %v1753 = vadd.f32 0.0, %v1752
    %v1754 = vpop.f32.mrb[0].mxu0
    %1755 = vmatprep.mubr.f32.mxu0 0.0
    %1756 = vmatmul.mubr.f32.gmra.mrb[0].mxu0 %v1660
    %v1757 = vpop.f32.mrb[0].mxu0
    %v1758 = vadd.f32 0.0, %v1757
    %v1759 = vpop.f32.mrb[0].mxu0
    %1760 = vmatprep.mubr.f32.mxu0 0.0
    %1761 = vmatmul.mubr.f32.gmra.mrb[0].mxu0 %v1663
    %v1762 = vpop.f32.mrb[0].mxu0
    %v1763 = vadd.f32 0.0, %v1762
    %v1764 = vpop.f32.mrb[0].mxu0
    %1765 = vmatprep.mubr.f32.mxu0 0.0
    %1766 = vmatmul.mubr.f32.gmra.mrb[0].mxu0 %v1666
    %v1767 = vpop.f32.mrb[0].mxu0
    %v1768 = vadd.f32 0.0, %v1767
    %v1769 = vpop.f32.mrb[0].mxu0
    %1770 = vmatprep.mubr.f32.mxu0 0.0
    %1771 = vmatmul.mubr.f32.gmra.mrb[0].mxu0 %v1669
    %v1772 = vpop.f32.mrb[0].mxu0
    %v1773 = vadd.f32 0.0, %v1772
    %v1774 = vpop.f32.mrb[0].mxu0
    %1775 = vdwg.mxu0
    %v1776 = vmul.f32 %v1162, %v1273
    %v1777 = vmul.f32 %v1167, %v1278
    %v1778 = vmul.f32 %v1172, %v1283
    %v1779 = vmul.f32 %v1177, %v1288
    %v1780 = vmul.f32 %v1182, %v1293
    %v1781 = vmul.f32 %v1187, %v1298
    %v1782 = vmul.f32 %v1192, %v1303
    %v1783 = vmul.f32 %v1197, %v1308
    %v1785 = vsel %vm747, %v1776, 0
    %v1788 = vsel %vm747, %v1777, 0
    %v1791 = vsel %vm747, %v1778, 0
    %v1794 = vsel %vm747, %v1779, 0
    %v1797 = vsel %vm747, %v1780, 0
    %v1800 = vsel %vm747, %v1781, 0
    %v1803 = vsel %vm747, %v1782, 0
    %v1806 = vsel %vm747, %v1783, 0
    %1808 = vmatprep.subr.mxu0 0.0
    %1809 = vmatpush1.msra.mxu0 %v705
    %1810 = vmatprep.subr.mxu0 0.0
    %1811 = vmatpush1.msra.mxu0 %v706
    %1812 = vmatprep.subr.mxu0 0.0
    %1813 = vmatpush1.msra.mxu0 %v707
    %1814 = vmatprep.subr.mxu0 0.0
    %1815 = vmatpush1.msra.mxu0 %v708
    %1816 = vmatprep.subr.mxu0 0.0
    %1817 = vmatpush1.msra.mxu0 0.0
    %1818 = vmatprep.subr.mxu0 0.0
    %1819 = vmatpush1.msra.mxu0 0.0
    %1820 = vmatprep.subr.mxu0 0.0
    %1821 = vmatpush1.msra.mxu0 0.0
    %1822 = vmatprep.subr.mxu0 0.0
    %1823 = vmatpush1.msra.mxu0 0.0
    %1824 = vmatprep.subr.mxu0 0.0
    %1825 = vmatpush1.msra.mxu0 0.0
    %1826 = vmatprep.subr.mxu0 0.0
    %1827 = vmatpush1.msra.mxu0 0.0
    %1828 = vmatprep.subr.mxu0 0.0
    %1829 = vmatpush1.msra.mxu0 0.0
    %1830 = vmatprep.subr.mxu0 0.0
    %1831 = vmatpush1.msra.mxu0 0.0
    %1832 = vmatprep.subr.mxu0 0.0
    %1833 = vmatpush1.msra.mxu0 0.0
    %1834 = vmatprep.subr.mxu0 0.0
    %1835 = vmatpush1.msra.mxu0 0.0
    %1836 = vmatprep.subr.mxu0 0.0
    %1837 = vmatpush1.msra.mxu0 0.0
    %1838 = vmatprep.subr.mxu0 0.0
    %1839 = vmatpush1.msra.mxu0 0.0
    %1840 = vmatprep.subr.mxu0 0.0
    %1841 = vmatpush1.msra.mxu0 0.0
    %1842 = vmatprep.subr.mxu0 0.0
    %1843 = vmatpush1.msra.mxu0 0.0
    %1844 = vmatprep.subr.mxu0 0.0
    %1845 = vmatpush1.msra.mxu0 0.0
    %1846 = vmatprep.subr.mxu0 0.0
    %1847 = vmatpush1.msra.mxu0 0.0
    %1848 = vmatprep.subr.mxu0 0.0
    %1849 = vmatpush1.msra.mxu0 0.0
    %1850 = vmatprep.subr.mxu0 0.0
    %1851 = vmatpush1.msra.mxu0 0.0
    %1852 = vmatprep.subr.mxu0 0.0
    %1853 = vmatpush1.msra.mxu0 0.0
    %1854 = vmatprep.subr.mxu0 0.0
    %1855 = vmatpush1.msra.mxu0 0.0
    %1856 = vmatprep.subr.mxu0 0.0
    %1857 = vmatpush1.msra.mxu0 0.0
    %1858 = vmatprep.subr.mxu0 0.0
    %1859 = vmatpush1.msra.mxu0 0.0
    %1860 = vmatprep.subr.mxu0 0.0
    %1861 = vmatpush1.msra.mxu0 0.0
    %1862 = vmatprep.subr.mxu0 0.0
    %1863 = vmatpush1.msra.mxu0 0.0
    %1864 = vmatprep.subr.mxu0 0.0
    %1865 = vmatpush1.msra.mxu0 0.0
    %1866 = vmatprep.subr.mxu0 0.0
    %1867 = vmatpush1.msra.mxu0 0.0
    %1868 = vmatprep.subr.mxu0 0.0
    %1869 = vmatpush1.msra.mxu0 0.0
    %1870 = vmatprep.subr.mxu0 0.0
    %1871 = vmatpush1.msra.mxu0 0.0
    %1872 = vmatprep.mubr.f32.mxu0 0.0
    %1873 = vmatmul.mubr.f32.gmra.mrb[0].mxu0 %v1785
    %v1874 = vpop.f32.mrb[0].mxu0
    %v1875 = vadd.f32 0.0, %v1874
    %v1876 = vpop.f32.mrb[0].mxu0
    %1877 = vmatprep.mubr.f32.mxu0 0.0
    %1878 = vmatmul.mubr.f32.gmra.mrb[0].mxu0 %v1788
    %v1879 = vpop.f32.mrb[0].mxu0
    %v1880 = vadd.f32 0.0, %v1879
    %v1881 = vpop.f32.mrb[0].mxu0
    %1882 = vmatprep.mubr.f32.mxu0 0.0
    %1883 = vmatmul.mubr.f32.gmra.mrb[0].mxu0 %v1791
    %v1884 = vpop.f32.mrb[0].mxu0
    %v1885 = vadd.f32 0.0, %v1884
    %v1886 = vpop.f32.mrb[0].mxu0
    %1887 = vmatprep.mubr.f32.mxu0 0.0
    %1888 = vmatmul.mubr.f32.gmra.mrb[0].mxu0 %v1794
    %v1889 = vpop.f32.mrb[0].mxu0
    %v1890 = vadd.f32 0.0, %v1889
    %v1891 = vpop.f32.mrb[0].mxu0
    %1892 = vmatprep.mubr.f32.mxu0 0.0
    %1893 = vmatmul.mubr.f32.gmra.mrb[0].mxu0 %v1797
    %v1894 = vpop.f32.mrb[0].mxu0
    %v1895 = vadd.f32 0.0, %v1894
    %v1896 = vpop.f32.mrb[0].mxu0
    %1897 = vmatprep.mubr.f32.mxu0 0.0
    %1898 = vmatmul.mubr.f32.gmra.mrb[0].mxu0 %v1800
    %v1899 = vpop.f32.mrb[0].mxu0
    %v1900 = vadd.f32 0.0, %v1899
    %v1901 = vpop.f32.mrb[0].mxu0
    %1902 = vmatprep.mubr.f32.mxu0 0.0
    %1903 = vmatmul.mubr.f32.gmra.mrb[0].mxu0 %v1803
    %v1904 = vpop.f32.mrb[0].mxu0
    %v1905 = vadd.f32 0.0, %v1904
    %v1906 = vpop.f32.mrb[0].mxu0
    %1907 = vmatprep.mubr.f32.mxu0 0.0
    %1908 = vmatmul.mubr.f32.gmra.mrb[0].mxu0 %v1806
    %v1909 = vpop.f32.mrb[0].mxu0
    %v1910 = vadd.f32 0.0, %v1909
    %v1911 = vpop.f32.mrb[0].mxu0
    %1912 = vdwg.mxu0
    %v1913 = vmul.f32 %v1162, %v1313
    %v1914 = vmul.f32 %v1167, %v1318
    %v1915 = vmul.f32 %v1172, %v1323
    %v1916 = vmul.f32 %v1177, %v1328
    %v1917 = vmul.f32 %v1182, %v1333
    %v1918 = vmul.f32 %v1187, %v1338
    %v1919 = vmul.f32 %v1192, %v1343
    %v1920 = vmul.f32 %v1197, %v1348
    %v1922 = vsel %vm747, %v1913, 0
    %v1925 = vsel %vm747, %v1914, 0
    %v1928 = vsel %vm747, %v1915, 0
    %v1931 = vsel %vm747, %v1916, 0
    %v1934 = vsel %vm747, %v1917, 0
    %v1937 = vsel %vm747, %v1918, 0
    %v1940 = vsel %vm747, %v1919, 0
    %v1943 = vsel %vm747, %v1920, 0
    %1945 = vmatprep.subr.mxu0 0.0
    %1946 = vmatpush1.msra.mxu0 %v705
    %1947 = vmatprep.subr.mxu0 0.0
    %1948 = vmatpush1.msra.mxu0 %v706
    %1949 = vmatprep.subr.mxu0 0.0
    %1950 = vmatpush1.msra.mxu0 %v707
    %1951 = vmatprep.subr.mxu0 0.0
    %1952 = vmatpush1.msra.mxu0 %v708
    %1953 = vmatprep.subr.mxu0 0.0
    %1954 = vmatpush1.msra.mxu0 0.0
    %1955 = vmatprep.subr.mxu0 0.0
    %1956 = vmatpush1.msra.mxu0 0.0
    %1957 = vmatprep.subr.mxu0 0.0
    %1958 = vmatpush1.msra.mxu0 0.0
    %1959 = vmatprep.subr.mxu0 0.0
    %1960 = vmatpush1.msra.mxu0 0.0
    %1961 = vmatprep.subr.mxu0 0.0
    %1962 = vmatpush1.msra.mxu0 0.0
    %1963 = vmatprep.subr.mxu0 0.0
    %1964 = vmatpush1.msra.mxu0 0.0
    %1965 = vmatprep.subr.mxu0 0.0
    %1966 = vmatpush1.msra.mxu0 0.0
    %1967 = vmatprep.subr.mxu0 0.0
    %1968 = vmatpush1.msra.mxu0 0.0
    %1969 = vmatprep.subr.mxu0 0.0
    %1970 = vmatpush1.msra.mxu0 0.0
    %1971 = vmatprep.subr.mxu0 0.0
    %1972 = vmatpush1.msra.mxu0 0.0
    %1973 = vmatprep.subr.mxu0 0.0
    %1974 = vmatpush1.msra.mxu0 0.0
    %1975 = vmatprep.subr.mxu0 0.0
    %1976 = vmatpush1.msra.mxu0 0.0
    %1977 = vmatprep.subr.mxu0 0.0
    %1978 = vmatpush1.msra.mxu0 0.0
    %1979 = vmatprep.subr.mxu0 0.0
    %1980 = vmatpush1.msra.mxu0 0.0
    %1981 = vmatprep.subr.mxu0 0.0
    %1982 = vmatpush1.msra.mxu0 0.0
    %1983 = vmatprep.subr.mxu0 0.0
    %1984 = vmatpush1.msra.mxu0 0.0
    %1985 = vmatprep.subr.mxu0 0.0
    %1986 = vmatpush1.msra.mxu0 0.0
    %1987 = vmatprep.subr.mxu0 0.0
    %1988 = vmatpush1.msra.mxu0 0.0
    %1989 = vmatprep.subr.mxu0 0.0
    %1990 = vmatpush1.msra.mxu0 0.0
    %1991 = vmatprep.subr.mxu0 0.0
    %1992 = vmatpush1.msra.mxu0 0.0
    %1993 = vmatprep.subr.mxu0 0.0
    %1994 = vmatpush1.msra.mxu0 0.0
    %1995 = vmatprep.subr.mxu0 0.0
    %1996 = vmatpush1.msra.mxu0 0.0
    %1997 = vmatprep.subr.mxu0 0.0
    %1998 = vmatpush1.msra.mxu0 0.0
    %1999 = vmatprep.subr.mxu0 0.0
    %2000 = vmatpush1.msra.mxu0 0.0
    %2001 = vmatprep.subr.mxu0 0.0
    %2002 = vmatpush1.msra.mxu0 0.0
    %2003 = vmatprep.subr.mxu0 0.0
    %2004 = vmatpush1.msra.mxu0 0.0
    %2005 = vmatprep.subr.mxu0 0.0
    %2006 = vmatpush1.msra.mxu0 0.0
    %2007 = vmatprep.subr.mxu0 0.0
    %2008 = vmatpush1.msra.mxu0 0.0
    %2009 = vmatprep.mubr.f32.mxu0 0.0
    %2010 = vmatmul.mubr.f32.gmra.mrb[0].mxu0 %v1922
    %v2011 = vpop.f32.mrb[0].mxu0
    %v2012 = vadd.f32 0.0, %v2011
    %v2013 = vpop.f32.mrb[0].mxu0
    %2014 = vmatprep.mubr.f32.mxu0 0.0
    %2015 = vmatmul.mubr.f32.gmra.mrb[0].mxu0 %v1925
    %v2016 = vpop.f32.mrb[0].mxu0
    %v2017 = vadd.f32 0.0, %v2016
    %v2018 = vpop.f32.mrb[0].mxu0
    %2019 = vmatprep.mubr.f32.mxu0 0.0
    %2020 = vmatmul.mubr.f32.gmra.mrb[0].mxu0 %v1928
    %v2021 = vpop.f32.mrb[0].mxu0
    %v2022 = vadd.f32 0.0, %v2021
    %v2023 = vpop.f32.mrb[0].mxu0
    %2024 = vmatprep.mubr.f32.mxu0 0.0
    %2025 = vmatmul.mubr.f32.gmra.mrb[0].mxu0 %v1931
    %v2026 = vpop.f32.mrb[0].mxu0
    %v2027 = vadd.f32 0.0, %v2026
    %v2028 = vpop.f32.mrb[0].mxu0
    %2029 = vmatprep.mubr.f32.mxu0 0.0
    %2030 = vmatmul.mubr.f32.gmra.mrb[0].mxu0 %v1934
    %v2031 = vpop.f32.mrb[0].mxu0
    %v2032 = vadd.f32 0.0, %v2031
    %v2033 = vpop.f32.mrb[0].mxu0
    %2034 = vmatprep.mubr.f32.mxu0 0.0
    %2035 = vmatmul.mubr.f32.gmra.mrb[0].mxu0 %v1937
    %v2036 = vpop.f32.mrb[0].mxu0
    %v2037 = vadd.f32 0.0, %v2036
    %v2038 = vpop.f32.mrb[0].mxu0
    %2039 = vmatprep.mubr.f32.mxu0 0.0
    %2040 = vmatmul.mubr.f32.gmra.mrb[0].mxu0 %v1940
    %v2041 = vpop.f32.mrb[0].mxu0
    %v2042 = vadd.f32 0.0, %v2041
    %v2043 = vpop.f32.mrb[0].mxu0
    %2044 = vmatprep.mubr.f32.mxu0 0.0
    %2045 = vmatmul.mubr.f32.gmra.mrb[0].mxu0 %v1943
    %v2046 = vpop.f32.mrb[0].mxu0
    %v2047 = vadd.f32 0.0, %v2046
    %v2048 = vpop.f32.mrb[0].mxu0
    %2049 = vdwg.mxu0
    %v2050 = vmax.f32 %v1601, %v1738
    %v2051 = vmax.f32 %v1606, %v1743
    %v2052 = vmax.f32 %v1611, %v1748
    %v2053 = vmax.f32 %v1616, %v1753
    %v2054 = vmax.f32 %v1621, %v1758
    %v2055 = vmax.f32 %v1626, %v1763
    %v2056 = vmax.f32 %v1631, %v1768
    %v2057 = vmax.f32 %v1636, %v1773
    %v2058 = vsub.f32 %v1601, %v2050
    %v2059 = vsub.f32 %v1606, %v2051
    %v2060 = vsub.f32 %v1611, %v2052
    %v2061 = vsub.f32 %v1616, %v2053
    %v2062 = vsub.f32 %v1621, %v2054
    %v2063 = vsub.f32 %v1626, %v2055
    %v2064 = vsub.f32 %v1631, %v2056
    %v2065 = vsub.f32 %v1636, %v2057
    %v2066 = vmul.f32 %v2058, 1.442695
    %v2067 = vpow.pop %v2066
    %v2068 = vmul.f32 %v2059, 1.442695
    %v2069 = vpow.pop %v2068
    %v2070 = vmul.f32 %v2060, 1.442695
    %v2071 = vpow.pop %v2070
    %v2072 = vmul.f32 %v2061, 1.442695
    %v2073 = vpow.pop %v2072
    %v2074 = vmul.f32 %v2062, 1.442695
    %v2075 = vpow.pop %v2074
    %v2076 = vmul.f32 %v2063, 1.442695
    %v2077 = vpow.pop %v2076
    %v2078 = vmul.f32 %v2064, 1.442695
    %v2079 = vpow.pop %v2078
    %v2080 = vmul.f32 %v2065, 1.442695
    %v2081 = vpow.pop %v2080
    %v2082 = vsub.f32 %v1738, %v2050
    %v2083 = vsub.f32 %v1743, %v2051
    %v2084 = vsub.f32 %v1748, %v2052
    %v2085 = vsub.f32 %v1753, %v2053
    %v2086 = vsub.f32 %v1758, %v2054
    %v2087 = vsub.f32 %v1763, %v2055
    %v2088 = vsub.f32 %v1768, %v2056
    %v2089 = vsub.f32 %v1773, %v2057
    %v2090 = vmul.f32 %v2082, 1.442695
    %v2091 = vpow.pop %v2090
    %v2092 = vmul.f32 %v2083, 1.442695
    %v2093 = vpow.pop %v2092
    %v2094 = vmul.f32 %v2084, 1.442695
    %v2095 = vpow.pop %v2094
    %v2096 = vmul.f32 %v2085, 1.442695
    %v2097 = vpow.pop %v2096
    %v2098 = vmul.f32 %v2086, 1.442695
    %v2099 = vpow.pop %v2098
    %v2100 = vmul.f32 %v2087, 1.442695
    %v2101 = vpow.pop %v2100
    %v2102 = vmul.f32 %v2088, 1.442695
    %v2103 = vpow.pop %v2102
    %v2104 = vmul.f32 %v2089, 1.442695
    %v2105 = vpow.pop %v2104
    %v2106 = vadd.f32 %v2067, %v2091
    %v2107 = vadd.f32 %v2069, %v2093
    %v2108 = vadd.f32 %v2071, %v2095
    %v2109 = vadd.f32 %v2073, %v2097
    %v2110 = vadd.f32 %v2075, %v2099
    %v2111 = vadd.f32 %v2077, %v2101
    %v2112 = vadd.f32 %v2079, %v2103
    %v2113 = vadd.f32 %v2081, %v2105
    %v2114 = vrcp.pop %v2106
    %v2115 = vrcp.pop %v2107
    %v2116 = vrcp.pop %v2108
    %v2117 = vrcp.pop %v2109
    %v2118 = vrcp.pop %v2110
    %v2119 = vrcp.pop %v2111
    %v2120 = vrcp.pop %v2112
    %v2121 = vrcp.pop %v2113
    %v2122 = vmul.f32 %v2067, %v2114
    %v2123 = vmul.f32 %v2069, %v2115
    %v2124 = vmul.f32 %v2071, %v2116
    %v2125 = vmul.f32 %v2073, %v2117
    %v2126 = vmul.f32 %v2075, %v2118
    %v2127 = vmul.f32 %v2077, %v2119
    %v2128 = vmul.f32 %v2079, %v2120
    %v2129 = vmul.f32 %v2081, %v2121
    %v2130 = vmul.f32 %v2122, %v1424
    %v2131 = vmul.f32 %v2123, %v1429
    %v2132 = vmul.f32 %v2124, %v1434
    %v2133 = vmul.f32 %v2125, %v1439
    %v2134 = vmul.f32 %v2126, %v1444
    %v2135 = vmul.f32 %v2127, %v1449
    %v2136 = vmul.f32 %v2128, %v1454
    %v2137 = vmul.f32 %v2129, %v1459
    %v2138 = vmul.f32 %v2091, %v2114
    %v2139 = vmul.f32 %v2093, %v2115
    %v2140 = vmul.f32 %v2095, %v2116
    %v2141 = vmul.f32 %v2097, %v2117
    %v2142 = vmul.f32 %v2099, %v2118
    %v2143 = vmul.f32 %v2101, %v2119
    %v2144 = vmul.f32 %v2103, %v2120
    %v2145 = vmul.f32 %v2105, %v2121
    %v2146 = vmul.f32 %v2138, %v1464
    %v2147 = vmul.f32 %v2139, %v1469
    %v2148 = vmul.f32 %v2140, %v1474
    %v2149 = vmul.f32 %v2141, %v1479
    %v2150 = vmul.f32 %v2142, %v1484
    %v2151 = vmul.f32 %v2143, %v1489
    %v2152 = vmul.f32 %v2144, %v1494
    %v2153 = vmul.f32 %v2145, %v1499
    %v2154 = vadd.f32 %v2130, %v2146
    %v2155 = vadd.f32 %v2131, %v2147
    %v2156 = vadd.f32 %v2132, %v2148
    %v2157 = vadd.f32 %v2133, %v2149
    %v2158 = vadd.f32 %v2134, %v2150
    %v2159 = vadd.f32 %v2135, %v2151
    %v2160 = vadd.f32 %v2136, %v2152
    %v2161 = vadd.f32 %v2137, %v2153
    %v2162 = vmax.f32 %v1875, %v2012
    %v2163 = vmax.f32 %v1880, %v2017
    %v2164 = vmax.f32 %v1885, %v2022
    %v2165 = vmax.f32 %v1890, %v2027
    %v2166 = vmax.f32 %v1895, %v2032
    %v2167 = vmax.f32 %v1900, %v2037
    %v2168 = vmax.f32 %v1905, %v2042
    %v2169 = vmax.f32 %v1910, %v2047
    %v2170 = vsub.f32 %v1875, %v2162
    %v2171 = vsub.f32 %v1880, %v2163
    %v2172 = vsub.f32 %v1885, %v2164
    %v2173 = vsub.f32 %v1890, %v2165
    %v2174 = vsub.f32 %v1895, %v2166
    %v2175 = vsub.f32 %v1900, %v2167
    %v2176 = vsub.f32 %v1905, %v2168
    %v2177 = vsub.f32 %v1910, %v2169
    %v2178 = vmul.f32 %v2170, 1.442695
    %v2179 = vpow.pop %v2178
    %v2180 = vmul.f32 %v2171, 1.442695
    %v2181 = vpow.pop %v2180
    %v2182 = vmul.f32 %v2172, 1.442695
    %v2183 = vpow.pop %v2182
    %v2184 = vmul.f32 %v2173, 1.442695
    %v2185 = vpow.pop %v2184
    %v2186 = vmul.f32 %v2174, 1.442695
    %v2187 = vpow.pop %v2186
    %v2188 = vmul.f32 %v2175, 1.442695
    %v2189 = vpow.pop %v2188
    %v2190 = vmul.f32 %v2176, 1.442695
    %v2191 = vpow.pop %v2190
    %v2192 = vmul.f32 %v2177, 1.442695
    %v2193 = vpow.pop %v2192
    %v2194 = vsub.f32 %v2012, %v2162
    %v2195 = vsub.f32 %v2017, %v2163
    %v2196 = vsub.f32 %v2022, %v2164
    %v2197 = vsub.f32 %v2027, %v2165
    %v2198 = vsub.f32 %v2032, %v2166
    %v2199 = vsub.f32 %v2037, %v2167
    %v2200 = vsub.f32 %v2042, %v2168
    %v2201 = vsub.f32 %v2047, %v2169
    %v2202 = vmul.f32 %v2194, 1.442695
    %v2203 = vpow.pop %v2202
    %v2204 = vmul.f32 %v2195, 1.442695
    %v2205 = vpow.pop %v2204
    %v2206 = vmul.f32 %v2196, 1.442695
    %v2207 = vpow.pop %v2206
    %v2208 = vmul.f32 %v2197, 1.442695
    %v2209 = vpow.pop %v2208
    %v2210 = vmul.f32 %v2198, 1.442695
    %v2211 = vpow.pop %v2210
    %v2212 = vmul.f32 %v2199, 1.442695
    %v2213 = vpow.pop %v2212
    %v2214 = vmul.f32 %v2200, 1.442695
    %v2215 = vpow.pop %v2214
    %v2216 = vmul.f32 %v2201, 1.442695
    %v2217 = vpow.pop %v2216
    %v2218 = vadd.f32 %v2179, %v2203
    %v2219 = vadd.f32 %v2181, %v2205
    %v2220 = vadd.f32 %v2183, %v2207
    %v2221 = vadd.f32 %v2185, %v2209
    %v2222 = vadd.f32 %v2187, %v2211
    %v2223 = vadd.f32 %v2189, %v2213
    %v2224 = vadd.f32 %v2191, %v2215
    %v2225 = vadd.f32 %v2193, %v2217
    %v2226 = vrcp.pop %v2218
    %v2227 = vrcp.pop %v2219
    %v2228 = vrcp.pop %v2220
    %v2229 = vrcp.pop %v2221
    %v2230 = vrcp.pop %v2222
    %v2231 = vrcp.pop %v2223
    %v2232 = vrcp.pop %v2224
    %v2233 = vrcp.pop %v2225
    %v2234 = vmul.f32 %v2179, %v2226
    %v2235 = vmul.f32 %v2181, %v2227
    %v2236 = vmul.f32 %v2183, %v2228
    %v2237 = vmul.f32 %v2185, %v2229
    %v2238 = vmul.f32 %v2187, %v2230
    %v2239 = vmul.f32 %v2189, %v2231
    %v2240 = vmul.f32 %v2191, %v2232
    %v2241 = vmul.f32 %v2193, %v2233
    %v2242 = vmul.f32 %v2234, %v1424
    %v2243 = vmul.f32 %v2235, %v1429
    %v2244 = vmul.f32 %v2236, %v1434
    %v2245 = vmul.f32 %v2237, %v1439
    %v2246 = vmul.f32 %v2238, %v1444
    %v2247 = vmul.f32 %v2239, %v1449
    %v2248 = vmul.f32 %v2240, %v1454
    %v2249 = vmul.f32 %v2241, %v1459
    %v2250 = vmul.f32 %v2203, %v2226
    %v2251 = vmul.f32 %v2205, %v2227
    %v2252 = vmul.f32 %v2207, %v2228
    %v2253 = vmul.f32 %v2209, %v2229
    %v2254 = vmul.f32 %v2211, %v2230
    %v2255 = vmul.f32 %v2213, %v2231
    %v2256 = vmul.f32 %v2215, %v2232
    %v2257 = vmul.f32 %v2217, %v2233
    %v2258 = vmul.f32 %v2250, %v1464
    %v2259 = vmul.f32 %v2251, %v1469
    %v2260 = vmul.f32 %v2252, %v1474
    %v2261 = vmul.f32 %v2253, %v1479
    %v2262 = vmul.f32 %v2254, %v1484
    %v2263 = vmul.f32 %v2255, %v1489
    %v2264 = vmul.f32 %v2256, %v1494
    %v2265 = vmul.f32 %v2257, %v1499
    %v2266 = vadd.f32 %v2242, %v2258
    %v2267 = vadd.f32 %v2243, %v2259
    %v2268 = vadd.f32 %v2244, %v2260
    %v2269 = vadd.f32 %v2245, %v2261
    %v2270 = vadd.f32 %v2246, %v2262
    %v2271 = vadd.f32 %v2247, %v2263
    %v2272 = vadd.f32 %v2248, %v2264
    %v2273 = vadd.f32 %v2249, %v2265
    %v2275 = vlaneseq
    %v2276 = vshrl.u32 %v2275, 7
    %v2277 = vsub.s32 0, %v2276
    %v2278 = vrot.slane %v732, %v2277
    %v2281 = vsel %vm747, %v2154, 0
    %v2284 = vsel %vm747, %v2155, 0
    %v2287 = vsel %vm747, %v2156, 0
    %v2290 = vsel %vm747, %v2157, 0
    %v2293 = vsel %vm747, %v2158, 0
    %v2296 = vsel %vm747, %v2159, 0
    %v2299 = vsel %vm747, %v2160, 0
    %v2302 = vsel %vm747, %v2161, 0
    %v2305 = vsel %vm747, %v2266, 0
    %v2308 = vsel %vm747, %v2267, 0
    %v2311 = vsel %vm747, %v2268, 0
    %v2314 = vsel %vm747, %v2269, 0
    %v2317 = vsel %vm747, %v2270, 0
    %v2320 = vsel %vm747, %v2271, 0
    %v2323 = vsel %vm747, %v2272, 0
    %v2326 = vsel %vm747, %v2273, 0
    %2328 = vmatprep.subr.mxu0 0.0
    %2329 = vmatpush1.msra.mxu0 %v728
    %2330 = vmatprep.subr.mxu0 0.0
    %2331 = vmatpush1.msra.mxu0 %v729
    %2332 = vmatprep.subr.mxu0 0.0
    %2333 = vmatpush1.msra.mxu0 %v730
    %2334 = vmatprep.subr.mxu0 0.0
    %2335 = vmatpush1.msra.mxu0 %v731
    %2336 = vmatprep.subr.mxu0 0.0
    %2337 = vmatpush1.msra.mxu0 0.0
    %2338 = vmatprep.subr.mxu0 0.0
    %2339 = vmatpush1.msra.mxu0 0.0
    %2340 = vmatprep.subr.mxu0 0.0
    %2341 = vmatpush1.msra.mxu0 0.0
    %2342 = vmatprep.subr.mxu0 0.0
    %2343 = vmatpush1.msra.mxu0 0.0
    %2344 = vmatprep.subr.mxu0 0.0
    %2345 = vmatpush1.msra.mxu0 0.0
    %2346 = vmatprep.subr.mxu0 0.0
    %2347 = vmatpush1.msra.mxu0 0.0
    %2348 = vmatprep.subr.mxu0 0.0
    %2349 = vmatpush1.msra.mxu0 0.0
    %2350 = vmatprep.subr.mxu0 0.0
    %2351 = vmatpush1.msra.mxu0 0.0
    %2352 = vmatprep.subr.mxu0 0.0
    %2353 = vmatpush1.msra.mxu0 0.0
    %2354 = vmatprep.subr.mxu0 0.0
    %2355 = vmatpush1.msra.mxu0 0.0
    %2356 = vmatprep.subr.mxu0 0.0
    %2357 = vmatpush1.msra.mxu0 0.0
    %2358 = vmatprep.subr.mxu0 0.0
    %2359 = vmatpush1.msra.mxu0 0.0
    %2360 = vmatprep.subr.mxu0 0.0
    %2361 = vmatpush1.msra.mxu0 0.0
    %2362 = vmatprep.subr.mxu0 0.0
    %2363 = vmatpush1.msra.mxu0 0.0
    %2364 = vmatprep.subr.mxu0 0.0
    %2365 = vmatpush1.msra.mxu0 0.0
    %2366 = vmatprep.subr.mxu0 0.0
    %2367 = vmatpush1.msra.mxu0 0.0
    %2368 = vmatprep.subr.mxu0 0.0
    %2369 = vmatpush1.msra.mxu0 0.0
    %2370 = vmatprep.subr.mxu0 0.0
    %2371 = vmatpush1.msra.mxu0 0.0
    %2372 = vmatprep.subr.mxu0 0.0
    %2373 = vmatpush1.msra.mxu0 0.0
    %2374 = vmatprep.subr.mxu0 0.0
    %2375 = vmatpush1.msra.mxu0 0.0
    %2376 = vmatprep.subr.mxu0 0.0
    %2377 = vmatpush1.msra.mxu0 0.0
    %2378 = vmatprep.subr.mxu0 0.0
    %2379 = vmatpush1.msra.mxu0 0.0
    %2380 = vmatprep.subr.mxu0 0.0
    %2381 = vmatpush1.msra.mxu0 0.0
    %2382 = vmatprep.subr.mxu0 0.0
    %2383 = vmatpush1.msra.mxu0 0.0
    %2384 = vmatprep.subr.mxu0 0.0
    %2385 = vmatpush1.msra.mxu0 0.0
    %2386 = vmatprep.subr.mxu0 0.0
    %2387 = vmatpush1.msra.mxu0 0.0
    %2388 = vmatprep.subr.mxu0 0.0
    %2389 = vmatpush1.msra.mxu0 0.0
    %2390 = vmatprep.subr.mxu0 0.0
    %2391 = vmatpush1.msra.mxu0 0.0
    %2392 = vmatprep.mubr.f32.mxu0 0.0
    %2393 = vmatmul.mubr.f32.gmra.mrb[0].mxu0 %v2281
    %v2394 = vpop.f32.mrb[0].mxu0
    %v2395 = vadd.f32 %v2278, %v2394
    %v2396 = vpop.f32.mrb[0].mxu0
    %2397 = vmatprep.mubr.f32.mxu0 0.0
    %2398 = vmatmul.mubr.f32.gmra.mrb[0].mxu0 %v2284
    %v2399 = vpop.f32.mrb[0].mxu0
    %v2400 = vadd.f32 %v2278, %v2399
    %v2401 = vpop.f32.mrb[0].mxu0
    %2402 = vmatprep.mubr.f32.mxu0 0.0
    %2403 = vmatmul.mubr.f32.gmra.mrb[0].mxu0 %v2287
    %v2404 = vpop.f32.mrb[0].mxu0
    %v2405 = vadd.f32 %v2278, %v2404
    %v2406 = vpop.f32.mrb[0].mxu0
    %2407 = vmatprep.mubr.f32.mxu0 0.0
    %2408 = vmatmul.mubr.f32.gmra.mrb[0].mxu0 %v2290
    %v2409 = vpop.f32.mrb[0].mxu0
    %v2410 = vadd.f32 %v2278, %v2409
    %v2411 = vpop.f32.mrb[0].mxu0
    %2412 = vmatprep.mubr.f32.mxu0 0.0
    %2413 = vmatmul.mubr.f32.gmra.mrb[0].mxu0 %v2293
    %v2414 = vpop.f32.mrb[0].mxu0
    %v2415 = vadd.f32 %v2278, %v2414
    %v2416 = vpop.f32.mrb[0].mxu0
    %2417 = vmatprep.mubr.f32.mxu0 0.0
    %2418 = vmatmul.mubr.f32.gmra.mrb[0].mxu0 %v2296
    %v2419 = vpop.f32.mrb[0].mxu0
    %v2420 = vadd.f32 %v2278, %v2419
    %v2421 = vpop.f32.mrb[0].mxu0
    %2422 = vmatprep.mubr.f32.mxu0 0.0
    %2423 = vmatmul.mubr.f32.gmra.mrb[0].mxu0 %v2299
    %v2424 = vpop.f32.mrb[0].mxu0
    %v2425 = vadd.f32 %v2278, %v2424
    %v2426 = vpop.f32.mrb[0].mxu0
    %2427 = vmatprep.mubr.f32.mxu0 0.0
    %2428 = vmatmul.mubr.f32.gmra.mrb[0].mxu0 %v2302
    %v2429 = vpop.f32.mrb[0].mxu0
    %v2430 = vadd.f32 %v2278, %v2429
    %v2431 = vpop.f32.mrb[0].mxu0
    %2432 = vmatprep.mubr.f32.mxu0 0.0
    %2433 = vmatmul.mubr.f32.gmra.mrb[0].mxu0 %v2305
    %v2434 = vpop.f32.mrb[0].mxu0
    %v2435 = vadd.f32 %v2278, %v2434
    %v2436 = vpop.f32.mrb[0].mxu0
    %2437 = vmatprep.mubr.f32.mxu0 0.0
    %2438 = vmatmul.mubr.f32.gmra.mrb[0].mxu0 %v2308
    %v2439 = vpop.f32.mrb[0].mxu0
    %v2440 = vadd.f32 %v2278, %v2439
    %v2441 = vpop.f32.mrb[0].mxu0
    %2442 = vmatprep.mubr.f32.mxu0 0.0
    %2443 = vmatmul.mubr.f32.gmra.mrb[0].mxu0 %v2311
    %v2444 = vpop.f32.mrb[0].mxu0
    %v2445 = vadd.f32 %v2278, %v2444
    %v2446 = vpop.f32.mrb[0].mxu0
    %2447 = vmatprep.mubr.f32.mxu0 0.0
    %2448 = vmatmul.mubr.f32.gmra.mrb[0].mxu0 %v2314
    %v2449 = vpop.f32.mrb[0].mxu0
    %v2450 = vadd.f32 %v2278, %v2449
    %v2451 = vpop.f32.mrb[0].mxu0
    %2452 = vmatprep.mubr.f32.mxu0 0.0
    %2453 = vmatmul.mubr.f32.gmra.mrb[0].mxu0 %v2317
    %v2454 = vpop.f32.mrb[0].mxu0
    %v2455 = vadd.f32 %v2278, %v2454
    %v2456 = vpop.f32.mrb[0].mxu0
    %2457 = vmatprep.mubr.f32.mxu0 0.0
    %2458 = vmatmul.mubr.f32.gmra.mrb[0].mxu0 %v2320
    %v2459 = vpop.f32.mrb[0].mxu0
    %v2460 = vadd.f32 %v2278, %v2459
    %v2461 = vpop.f32.mrb[0].mxu0
    %2462 = vmatprep.mubr.f32.mxu0 0.0
    %2463 = vmatmul.mubr.f32.gmra.mrb[0].mxu0 %v2323
    %v2464 = vpop.f32.mrb[0].mxu0
    %v2465 = vadd.f32 %v2278, %v2464
    %v2466 = vpop.f32.mrb[0].mxu0
    %2467 = vmatprep.mubr.f32.mxu0 0.0
    %2468 = vmatmul.mubr.f32.gmra.mrb[0].mxu0 %v2326
    %v2469 = vpop.f32.mrb[0].mxu0
    %v2470 = vadd.f32 %v2278, %v2469
    %v2471 = vpop.f32.mrb[0].mxu0
    %2472 = vdwg.mxu0
    %v2473 = vadd.f32 %v689, %v2395
    %v2474 = vadd.f32 %v690, %v2400
    %v2475 = vadd.f32 %v691, %v2405
    %v2476 = vadd.f32 %v692, %v2410
    %v2477 = vadd.f32 %v693, %v2415
    %v2478 = vadd.f32 %v694, %v2420
    %v2479 = vadd.f32 %v695, %v2425
    %v2480 = vadd.f32 %v696, %v2430
    %v2481 = vadd.f32 %v697, %v2435
    %v2482 = vadd.f32 %v698, %v2440
    %v2483 = vadd.f32 %v699, %v2445
    %v2484 = vadd.f32 %v700, %v2450
    %v2485 = vadd.f32 %v701, %v2455
    %v2486 = vadd.f32 %v702, %v2460
    %v2487 = vadd.f32 %v703, %v2465
    %v2488 = vadd.f32 %v704, %v2470
    %v2489 = vsel %vm747, %v2473, 0.0
    %2490 = vadd.xlane.f32.xlu0 %v2489
    %v2491 = vpop.xlane.xlu0 %2490
    %v2492 = vsel %vm747, %v2474, 0.0
    %2493 = vadd.xlane.f32.xlu0 %v2492
    %v2494 = vpop.xlane.xlu0 %2493
    %v2495 = vsel %vm747, %v2475, 0.0
    %2496 = vadd.xlane.f32.xlu0 %v2495
    %v2497 = vpop.xlane.xlu0 %2496
    %v2498 = vsel %vm747, %v2476, 0.0
    %2499 = vadd.xlane.f32.xlu0 %v2498
    %v2500 = vpop.xlane.xlu0 %2499
    %v2501 = vsel %vm747, %v2477, 0.0
    %2502 = vadd.xlane.f32.xlu0 %v2501
    %v2503 = vpop.xlane.xlu0 %2502
    %v2504 = vsel %vm747, %v2478, 0.0
    %2505 = vadd.xlane.f32.xlu0 %v2504
    %v2506 = vpop.xlane.xlu0 %2505
    %v2507 = vsel %vm747, %v2479, 0.0
    %2508 = vadd.xlane.f32.xlu0 %v2507
    %v2509 = vpop.xlane.xlu0 %2508
    %v2510 = vsel %vm747, %v2480, 0.0
    %2511 = vadd.xlane.f32.xlu0 %v2510
    %v2512 = vpop.xlane.xlu0 %2511
    %v2513 = vsel %vm747, %v2481, 0.0
    %2514 = vadd.xlane.f32.xlu0 %v2513
    %v2515 = vpop.xlane.xlu0 %2514
    %v2516 = vsel %vm747, %v2482, 0.0
    %2517 = vadd.xlane.f32.xlu0 %v2516
    %v2518 = vpop.xlane.xlu0 %2517
    %v2519 = vsel %vm747, %v2483, 0.0
    %2520 = vadd.xlane.f32.xlu0 %v2519
    %v2521 = vpop.xlane.xlu0 %2520
    %v2522 = vsel %vm747, %v2484, 0.0
    %2523 = vadd.xlane.f32.xlu0 %v2522
    %v2524 = vpop.xlane.xlu0 %2523
    %v2525 = vsel %vm747, %v2485, 0.0
    %2526 = vadd.xlane.f32.xlu0 %v2525
    %v2527 = vpop.xlane.xlu0 %2526
    %v2528 = vsel %vm747, %v2486, 0.0
    %2529 = vadd.xlane.f32.xlu0 %v2528
    %v2530 = vpop.xlane.xlu0 %2529
    %v2531 = vsel %vm747, %v2487, 0.0
    %2532 = vadd.xlane.f32.xlu0 %v2531
    %v2533 = vpop.xlane.xlu0 %2532
    %v2534 = vsel %vm747, %v2488, 0.0
    %2535 = vadd.xlane.f32.xlu0 %v2534
    %v2536 = vpop.xlane.xlu0 %2535
    %v2537 = vmul.f32 %v2491, %v796
    %v2538 = vmul.f32 %v2494, %v796
    %v2539 = vmul.f32 %v2497, %v796
    %v2540 = vmul.f32 %v2500, %v796
    %v2541 = vmul.f32 %v2503, %v796
    %v2542 = vmul.f32 %v2506, %v796
    %v2543 = vmul.f32 %v2509, %v796
    %v2544 = vmul.f32 %v2512, %v796
    %v2545 = vmul.f32 %v2515, %v796
    %v2546 = vmul.f32 %v2518, %v796
    %v2547 = vmul.f32 %v2521, %v796
    %v2548 = vmul.f32 %v2524, %v796
    %v2549 = vmul.f32 %v2527, %v796
    %v2550 = vmul.f32 %v2530, %v796
    %v2551 = vmul.f32 %v2533, %v796
    %v2552 = vmul.f32 %v2536, %v796
    %v2553 = vsub.f32 %v2473, %v2537
    %v2554 = vsub.f32 %v2474, %v2538
    %v2555 = vsub.f32 %v2475, %v2539
    %v2556 = vsub.f32 %v2476, %v2540
    %v2557 = vsub.f32 %v2477, %v2541
    %v2558 = vsub.f32 %v2478, %v2542
    %v2559 = vsub.f32 %v2479, %v2543
    %v2560 = vsub.f32 %v2480, %v2544
    %v2561 = vsub.f32 %v2481, %v2545
    %v2562 = vsub.f32 %v2482, %v2546
    %v2563 = vsub.f32 %v2483, %v2547
    %v2564 = vsub.f32 %v2484, %v2548
    %v2565 = vsub.f32 %v2485, %v2549
    %v2566 = vsub.f32 %v2486, %v2550
    %v2567 = vsub.f32 %v2487, %v2551
    %v2568 = vsub.f32 %v2488, %v2552
    %v2569 = vmul.f32 %v2553, %v2553
    %v2570 = vmul.f32 %v2554, %v2554
    %v2571 = vmul.f32 %v2555, %v2555
    %v2572 = vmul.f32 %v2556, %v2556
    %v2573 = vmul.f32 %v2557, %v2557
    %v2574 = vmul.f32 %v2558, %v2558
    %v2575 = vmul.f32 %v2559, %v2559
    %v2576 = vmul.f32 %v2560, %v2560
    %v2577 = vmul.f32 %v2561, %v2561
    %v2578 = vmul.f32 %v2562, %v2562
    %v2579 = vmul.f32 %v2563, %v2563
    %v2580 = vmul.f32 %v2564, %v2564
    %v2581 = vmul.f32 %v2565, %v2565
    %v2582 = vmul.f32 %v2566, %v2566
    %v2583 = vmul.f32 %v2567, %v2567
    %v2584 = vmul.f32 %v2568, %v2568
    %v2585 = vsel %vm747, %v2569, 0.0
    %2586 = vadd.xlane.f32.xlu0 %v2585
    %v2587 = vpop.xlane.xlu0 %2586
    %v2588 = vsel %vm747, %v2570, 0.0
    %2589 = vadd.xlane.f32.xlu0 %v2588
    %v2590 = vpop.xlane.xlu0 %2589
    %v2591 = vsel %vm747, %v2571, 0.0
    %2592 = vadd.xlane.f32.xlu0 %v2591
    %v2593 = vpop.xlane.xlu0 %2592
    %v2594 = vsel %vm747, %v2572, 0.0
    %2595 = vadd.xlane.f32.xlu0 %v2594
    %v2596 = vpop.xlane.xlu0 %2595
    %v2597 = vsel %vm747, %v2573, 0.0
    %2598 = vadd.xlane.f32.xlu0 %v2597
    %v2599 = vpop.xlane.xlu0 %2598
    %v2600 = vsel %vm747, %v2574, 0.0
    %2601 = vadd.xlane.f32.xlu0 %v2600
    %v2602 = vpop.xlane.xlu0 %2601
    %v2603 = vsel %vm747, %v2575, 0.0
    %2604 = vadd.xlane.f32.xlu0 %v2603
    %v2605 = vpop.xlane.xlu0 %2604
    %v2606 = vsel %vm747, %v2576, 0.0
    %2607 = vadd.xlane.f32.xlu0 %v2606
    %v2608 = vpop.xlane.xlu0 %2607
    %v2609 = vsel %vm747, %v2577, 0.0
    %2610 = vadd.xlane.f32.xlu0 %v2609
    %v2611 = vpop.xlane.xlu0 %2610
    %v2612 = vsel %vm747, %v2578, 0.0
    %2613 = vadd.xlane.f32.xlu0 %v2612
    %v2614 = vpop.xlane.xlu0 %2613
    %v2615 = vsel %vm747, %v2579, 0.0
    %2616 = vadd.xlane.f32.xlu0 %v2615
    %v2617 = vpop.xlane.xlu0 %2616
    %v2618 = vsel %vm747, %v2580, 0.0
    %2619 = vadd.xlane.f32.xlu0 %v2618
    %v2620 = vpop.xlane.xlu0 %2619
    %v2621 = vsel %vm747, %v2581, 0.0
    %2622 = vadd.xlane.f32.xlu0 %v2621
    %v2623 = vpop.xlane.xlu0 %2622
    %v2624 = vsel %vm747, %v2582, 0.0
    %2625 = vadd.xlane.f32.xlu0 %v2624
    %v2626 = vpop.xlane.xlu0 %2625
    %v2627 = vsel %vm747, %v2583, 0.0
    %2628 = vadd.xlane.f32.xlu0 %v2627
    %v2629 = vpop.xlane.xlu0 %2628
    %v2630 = vsel %vm747, %v2584, 0.0
    %2631 = vadd.xlane.f32.xlu0 %v2630
    %v2632 = vpop.xlane.xlu0 %2631
    %v2633 = vmul.f32 %v2587, %v796
    %v2634 = vmul.f32 %v2590, %v796
    %v2635 = vmul.f32 %v2593, %v796
    %v2636 = vmul.f32 %v2596, %v796
    %v2637 = vmul.f32 %v2599, %v796
    %v2638 = vmul.f32 %v2602, %v796
    %v2639 = vmul.f32 %v2605, %v796
    %v2640 = vmul.f32 %v2608, %v796
    %v2641 = vmul.f32 %v2611, %v796
    %v2642 = vmul.f32 %v2614, %v796
    %v2643 = vmul.f32 %v2617, %v796
    %v2644 = vmul.f32 %v2620, %v796
    %v2645 = vmul.f32 %v2623, %v796
    %v2646 = vmul.f32 %v2626, %v796
    %v2647 = vmul.f32 %v2629, %v796
    %v2648 = vmul.f32 %v2632, %v796
    %v2649 = vadd.f32 %v2633, 1e-06
    %v2650 = vadd.f32 %v2634, 1e-06
    %v2651 = vadd.f32 %v2635, 1e-06
    %v2652 = vadd.f32 %v2636, 1e-06
    %v2653 = vadd.f32 %v2637, 1e-06
    %v2654 = vadd.f32 %v2638, 1e-06
    %v2655 = vadd.f32 %v2639, 1e-06
    %v2656 = vadd.f32 %v2640, 1e-06
    %v2657 = vadd.f32 %v2641, 1e-06
    %v2658 = vadd.f32 %v2642, 1e-06
    %v2659 = vadd.f32 %v2643, 1e-06
    %v2660 = vadd.f32 %v2644, 1e-06
    %v2661 = vadd.f32 %v2645, 1e-06
    %v2662 = vadd.f32 %v2646, 1e-06
    %v2663 = vadd.f32 %v2647, 1e-06
    %v2664 = vadd.f32 %v2648, 1e-06
    %v2665 = vrsqrt.pop %v2649
    %v2666 = vrsqrt.pop %v2650
    %v2667 = vrsqrt.pop %v2651
    %v2668 = vrsqrt.pop %v2652
    %v2669 = vrsqrt.pop %v2653
    %v2670 = vrsqrt.pop %v2654
    %v2671 = vrsqrt.pop %v2655
    %v2672 = vrsqrt.pop %v2656
    %v2673 = vrsqrt.pop %v2657
    %v2674 = vrsqrt.pop %v2658
    %v2675 = vrsqrt.pop %v2659
    %v2676 = vrsqrt.pop %v2660
    %v2677 = vrsqrt.pop %v2661
    %v2678 = vrsqrt.pop %v2662
    %v2679 = vrsqrt.pop %v2663
    %v2680 = vrsqrt.pop %v2664
    %v2681 = vmul.f32 %v2553, %v2665
    %v2682 = vmul.f32 %v2554, %v2666
    %v2683 = vmul.f32 %v2555, %v2667
    %v2684 = vmul.f32 %v2556, %v2668
    %v2685 = vmul.f32 %v2557, %v2669
    %v2686 = vmul.f32 %v2558, %v2670
    %v2687 = vmul.f32 %v2559, %v2671
    %v2688 = vmul.f32 %v2560, %v2672
    %v2689 = vmul.f32 %v2561, %v2673
    %v2690 = vmul.f32 %v2562, %v2674
    %v2691 = vmul.f32 %v2563, %v2675
    %v2692 = vmul.f32 %v2564, %v2676
    %v2693 = vmul.f32 %v2565, %v2677
    %v2694 = vmul.f32 %v2566, %v2678
    %v2695 = vmul.f32 %v2567, %v2679
    %v2696 = vmul.f32 %v2568, %v2680
    %v2698 = vlaneseq
    %v2699 = vshrl.u32 %v2698, 7
    %v2700 = vsub.s32 0, %v2699
    %v2701 = vrot.slane %v711, %v2700
    %v2703 = vmul.f32 %v2681, %v2701
    %v2704 = vmul.f32 %v2682, %v2701
    %v2705 = vmul.f32 %v2683, %v2701
    %v2706 = vmul.f32 %v2684, %v2701
    %v2707 = vmul.f32 %v2685, %v2701
    %v2708 = vmul.f32 %v2686, %v2701
    %v2709 = vmul.f32 %v2687, %v2701
    %v2710 = vmul.f32 %v2688, %v2701
    %v2711 = vmul.f32 %v2689, %v2701
    %v2712 = vmul.f32 %v2690, %v2701
    %v2713 = vmul.f32 %v2691, %v2701
    %v2714 = vmul.f32 %v2692, %v2701
    %v2715 = vmul.f32 %v2693, %v2701
    %v2716 = vmul.f32 %v2694, %v2701
    %v2717 = vmul.f32 %v2695, %v2701
    %v2718 = vmul.f32 %v2696, %v2701
    %v2720 = vlaneseq
    %v2721 = vshrl.u32 %v2720, 7
    %v2722 = vsub.s32 0, %v2721
    %v2723 = vrot.slane %v712, %v2722
    %v2725 = vadd.f32 %v2703, %v2723
    %v2726 = vadd.f32 %v2704, %v2723
    %v2727 = vadd.f32 %v2705, %v2723
    %v2728 = vadd.f32 %v2706, %v2723
    %v2729 = vadd.f32 %v2707, %v2723
    %v2730 = vadd.f32 %v2708, %v2723
    %v2731 = vadd.f32 %v2709, %v2723
    %v2732 = vadd.f32 %v2710, %v2723
    %v2733 = vadd.f32 %v2711, %v2723
    %v2734 = vadd.f32 %v2712, %v2723
    %v2735 = vadd.f32 %v2713, %v2723
    %v2736 = vadd.f32 %v2714, %v2723
    %v2737 = vadd.f32 %v2715, %v2723
    %v2738 = vadd.f32 %v2716, %v2723
    %v2739 = vadd.f32 %v2717, %v2723
    %v2740 = vadd.f32 %v2718, %v2723
    %v2742 = vlaneseq
    %v2743 = vshrl.u32 %v2742, 7
    %v2744 = vsub.s32 0, %v2743
    %v2745 = vrot.slane %v737, %v2744
    %v2748 = vsel %vm747, %v2725, 0
    %v2751 = vsel %vm747, %v2726, 0
    %v2754 = vsel %vm747, %v2727, 0
    %v2757 = vsel %vm747, %v2728, 0
    %v2760 = vsel %vm747, %v2729, 0
    %v2763 = vsel %vm747, %v2730, 0
    %v2766 = vsel %vm747, %v2731, 0
    %v2769 = vsel %vm747, %v2732, 0
    %v2772 = vsel %vm747, %v2733, 0
    %v2775 = vsel %vm747, %v2734, 0
    %v2778 = vsel %vm747, %v2735, 0
    %v2781 = vsel %vm747, %v2736, 0
    %v2784 = vsel %vm747, %v2737, 0
    %v2787 = vsel %vm747, %v2738, 0
    %v2790 = vsel %vm747, %v2739, 0
    %v2793 = vsel %vm747, %v2740, 0
    %2795 = vmatprep.subr.mxu0 0.0
    %2796 = vmatpush1.msra.mxu0 %v733
    %2797 = vmatprep.subr.mxu0 0.0
    %2798 = vmatpush1.msra.mxu0 %v734
    %2799 = vmatprep.subr.mxu0 0.0
    %2800 = vmatpush1.msra.mxu0 %v735
    %2801 = vmatprep.subr.mxu0 0.0
    %2802 = vmatpush1.msra.mxu0 %v736
    %2803 = vmatprep.subr.mxu0 0.0
    %2804 = vmatpush1.msra.mxu0 0.0
    %2805 = vmatprep.subr.mxu0 0.0
    %2806 = vmatpush1.msra.mxu0 0.0
    %2807 = vmatprep.subr.mxu0 0.0
    %2808 = vmatpush1.msra.mxu0 0.0
    %2809 = vmatprep.subr.mxu0 0.0
    %2810 = vmatpush1.msra.mxu0 0.0
    %2811 = vmatprep.subr.mxu0 0.0
    %2812 = vmatpush1.msra.mxu0 0.0
    %2813 = vmatprep.subr.mxu0 0.0
    %2814 = vmatpush1.msra.mxu0 0.0
    %2815 = vmatprep.subr.mxu0 0.0
    %2816 = vmatpush1.msra.mxu0 0.0
    %2817 = vmatprep.subr.mxu0 0.0
    %2818 = vmatpush1.msra.mxu0 0.0
    %2819 = vmatprep.subr.mxu0 0.0
    %2820 = vmatpush1.msra.mxu0 0.0
    %2821 = vmatprep.subr.mxu0 0.0
    %2822 = vmatpush1.msra.mxu0 0.0
    %2823 = vmatprep.subr.mxu0 0.0
    %2824 = vmatpush1.msra.mxu0 0.0
    %2825 = vmatprep.subr.mxu0 0.0
    %2826 = vmatpush1.msra.mxu0 0.0
    %2827 = vmatprep.subr.mxu0 0.0
    %2828 = vmatpush1.msra.mxu0 0.0
    %2829 = vmatprep.subr.mxu0 0.0
    %2830 = vmatpush1.msra.mxu0 0.0
    %2831 = vmatprep.subr.mxu0 0.0
    %2832 = vmatpush1.msra.mxu0 0.0
    %2833 = vmatprep.subr.mxu0 0.0
    %2834 = vmatpush1.msra.mxu0 0.0
    %2835 = vmatprep.subr.mxu0 0.0
    %2836 = vmatpush1.msra.mxu0 0.0
    %2837 = vmatprep.subr.mxu0 0.0
    %2838 = vmatpush1.msra.mxu0 0.0
    %2839 = vmatprep.subr.mxu0 0.0
    %2840 = vmatpush1.msra.mxu0 0.0
    %2841 = vmatprep.subr.mxu0 0.0
    %2842 = vmatpush1.msra.mxu0 0.0
    %2843 = vmatprep.subr.mxu0 0.0
    %2844 = vmatpush1.msra.mxu0 0.0
    %2845 = vmatprep.subr.mxu0 0.0
    %2846 = vmatpush1.msra.mxu0 0.0
    %2847 = vmatprep.subr.mxu0 0.0
    %2848 = vmatpush1.msra.mxu0 0.0
    %2849 = vmatprep.subr.mxu0 0.0
    %2850 = vmatpush1.msra.mxu0 0.0
    %2851 = vmatprep.subr.mxu0 0.0
    %2852 = vmatpush1.msra.mxu0 0.0
    %2853 = vmatprep.subr.mxu0 0.0
    %2854 = vmatpush1.msra.mxu0 0.0
    %2855 = vmatprep.subr.mxu0 0.0
    %2856 = vmatpush1.msra.mxu0 0.0
    %2857 = vmatprep.subr.mxu0 0.0
    %2858 = vmatpush1.msra.mxu0 0.0
    %2859 = vmatprep.mubr.f32.mxu0 0.0
    %2860 = vmatmul.mubr.f32.gmra.mrb[0].mxu0 %v2748
    %v2861 = vpop.f32.mrb[0].mxu0
    %v2862 = vadd.f32 %v2745, %v2861
    %v2863 = vpop.f32.mrb[0].mxu0
    %2864 = vmatprep.mubr.f32.mxu0 0.0
    %2865 = vmatmul.mubr.f32.gmra.mrb[0].mxu0 %v2751
    %v2866 = vpop.f32.mrb[0].mxu0
    %v2867 = vadd.f32 %v2745, %v2866
    %v2868 = vpop.f32.mrb[0].mxu0
    %2869 = vmatprep.mubr.f32.mxu0 0.0
    %2870 = vmatmul.mubr.f32.gmra.mrb[0].mxu0 %v2754
    %v2871 = vpop.f32.mrb[0].mxu0
    %v2872 = vadd.f32 %v2745, %v2871
    %v2873 = vpop.f32.mrb[0].mxu0
    %2874 = vmatprep.mubr.f32.mxu0 0.0
    %2875 = vmatmul.mubr.f32.gmra.mrb[0].mxu0 %v2757
    %v2876 = vpop.f32.mrb[0].mxu0
    %v2877 = vadd.f32 %v2745, %v2876
    %v2878 = vpop.f32.mrb[0].mxu0
    %2879 = vmatprep.mubr.f32.mxu0 0.0
    %2880 = vmatmul.mubr.f32.gmra.mrb[0].mxu0 %v2760
    %v2881 = vpop.f32.mrb[0].mxu0
    %v2882 = vadd.f32 %v2745, %v2881
    %v2883 = vpop.f32.mrb[0].mxu0
    %2884 = vmatprep.mubr.f32.mxu0 0.0
    %2885 = vmatmul.mubr.f32.gmra.mrb[0].mxu0 %v2763
    %v2886 = vpop.f32.mrb[0].mxu0
    %v2887 = vadd.f32 %v2745, %v2886
    %v2888 = vpop.f32.mrb[0].mxu0
    %2889 = vmatprep.mubr.f32.mxu0 0.0
    %2890 = vmatmul.mubr.f32.gmra.mrb[0].mxu0 %v2766
    %v2891 = vpop.f32.mrb[0].mxu0
    %v2892 = vadd.f32 %v2745, %v2891
    %v2893 = vpop.f32.mrb[0].mxu0
    %2894 = vmatprep.mubr.f32.mxu0 0.0
    %2895 = vmatmul.mubr.f32.gmra.mrb[0].mxu0 %v2769
    %v2896 = vpop.f32.mrb[0].mxu0
    %v2897 = vadd.f32 %v2745, %v2896
    %v2898 = vpop.f32.mrb[0].mxu0
    %2899 = vmatprep.mubr.f32.mxu0 0.0
    %2900 = vmatmul.mubr.f32.gmra.mrb[0].mxu0 %v2772
    %v2901 = vpop.f32.mrb[0].mxu0
    %v2902 = vadd.f32 %v2745, %v2901
    %v2903 = vpop.f32.mrb[0].mxu0
    %2904 = vmatprep.mubr.f32.mxu0 0.0
    %2905 = vmatmul.mubr.f32.gmra.mrb[0].mxu0 %v2775
    %v2906 = vpop.f32.mrb[0].mxu0
    %v2907 = vadd.f32 %v2745, %v2906
    %v2908 = vpop.f32.mrb[0].mxu0
    %2909 = vmatprep.mubr.f32.mxu0 0.0
    %2910 = vmatmul.mubr.f32.gmra.mrb[0].mxu0 %v2778
    %v2911 = vpop.f32.mrb[0].mxu0
    %v2912 = vadd.f32 %v2745, %v2911
    %v2913 = vpop.f32.mrb[0].mxu0
    %2914 = vmatprep.mubr.f32.mxu0 0.0
    %2915 = vmatmul.mubr.f32.gmra.mrb[0].mxu0 %v2781
    %v2916 = vpop.f32.mrb[0].mxu0
    %v2917 = vadd.f32 %v2745, %v2916
    %v2918 = vpop.f32.mrb[0].mxu0
    %2919 = vmatprep.mubr.f32.mxu0 0.0
    %2920 = vmatmul.mubr.f32.gmra.mrb[0].mxu0 %v2784
    %v2921 = vpop.f32.mrb[0].mxu0
    %v2922 = vadd.f32 %v2745, %v2921
    %v2923 = vpop.f32.mrb[0].mxu0
    %2924 = vmatprep.mubr.f32.mxu0 0.0
    %2925 = vmatmul.mubr.f32.gmra.mrb[0].mxu0 %v2787
    %v2926 = vpop.f32.mrb[0].mxu0
    %v2927 = vadd.f32 %v2745, %v2926
    %v2928 = vpop.f32.mrb[0].mxu0
    %2929 = vmatprep.mubr.f32.mxu0 0.0
    %2930 = vmatmul.mubr.f32.gmra.mrb[0].mxu0 %v2790
    %v2931 = vpop.f32.mrb[0].mxu0
    %v2932 = vadd.f32 %v2745, %v2931
    %v2933 = vpop.f32.mrb[0].mxu0
    %2934 = vmatprep.mubr.f32.mxu0 0.0
    %2935 = vmatmul.mubr.f32.gmra.mrb[0].mxu0 %v2793
    %v2936 = vpop.f32.mrb[0].mxu0
    %v2937 = vadd.f32 %v2745, %v2936
    %v2938 = vpop.f32.mrb[0].mxu0
    %2939 = vdwg.mxu0
    %v2940 = vmax.f32 %v2862, 0.0
    %v2941 = vmax.f32 %v2867, 0.0
    %v2942 = vmax.f32 %v2872, 0.0
    %v2943 = vmax.f32 %v2877, 0.0
    %v2944 = vmax.f32 %v2882, 0.0
    %v2945 = vmax.f32 %v2887, 0.0
    %v2946 = vmax.f32 %v2892, 0.0
    %v2947 = vmax.f32 %v2897, 0.0
    %v2948 = vmax.f32 %v2902, 0.0
    %v2949 = vmax.f32 %v2907, 0.0
    %v2950 = vmax.f32 %v2912, 0.0
    %v2951 = vmax.f32 %v2917, 0.0
    %v2952 = vmax.f32 %v2922, 0.0
    %v2953 = vmax.f32 %v2927, 0.0
    %v2954 = vmax.f32 %v2932, 0.0
    %v2955 = vmax.f32 %v2937, 0.0
    %v2957 = vlaneseq
    %v2958 = vshrl.u32 %v2957, 7
    %v2959 = vsub.s32 0, %v2958
    %v2960 = vrot.slane %v746, %v2959
    %vm2962 = vcmask 523264
    %v2964 = vsel %vm2962, %v2940, 0
    %v2967 = vsel %vm2962, %v2941, 0
    %v2970 = vsel %vm2962, %v2942, 0
    %v2973 = vsel %vm2962, %v2943, 0
    %v2976 = vsel %vm2962, %v2944, 0
    %v2979 = vsel %vm2962, %v2945, 0
    %v2982 = vsel %vm2962, %v2946, 0
    %v2985 = vsel %vm2962, %v2947, 0
    %v2988 = vsel %vm2962, %v2948, 0
    %v2991 = vsel %vm2962, %v2949, 0
    %v2994 = vsel %vm2962, %v2950, 0
    %v2997 = vsel %vm2962, %v2951, 0
    %v3000 = vsel %vm2962, %v2952, 0
    %v3003 = vsel %vm2962, %v2953, 0
    %v3006 = vsel %vm2962, %v2954, 0
    %v3009 = vsel %vm2962, %v2955, 0
    %3011 = vmatprep.subr.mxu0 0.0
    %3012 = vmatpush1.msra.mxu0 %v738
    %3013 = vmatprep.subr.mxu0 0.0
    %3014 = vmatpush1.msra.mxu0 %v739
    %3015 = vmatprep.subr.mxu0 0.0
    %3016 = vmatpush1.msra.mxu0 %v740
    %3017 = vmatprep.subr.mxu0 0.0
    %3018 = vmatpush1.msra.mxu0 %v741
    %3019 = vmatprep.subr.mxu0 0.0
    %3020 = vmatpush1.msra.mxu0 %v742
    %3021 = vmatprep.subr.mxu0 0.0
    %3022 = vmatpush1.msra.mxu0 %v743
    %3023 = vmatprep.subr.mxu0 0.0
    %3024 = vmatpush1.msra.mxu0 %v744
    %3025 = vmatprep.subr.mxu0 0.0
    %3026 = vmatpush1.msra.mxu0 %v745
    %3027 = vmatprep.subr.mxu0 0.0
    %3028 = vmatpush1.msra.mxu0 0.0
    %3029 = vmatprep.subr.mxu0 0.0
    %3030 = vmatpush1.msra.mxu0 0.0
    %3031 = vmatprep.subr.mxu0 0.0
    %3032 = vmatpush1.msra.mxu0 0.0
    %3033 = vmatprep.subr.mxu0 0.0
    %3034 = vmatpush1.msra.mxu0 0.0
    %3035 = vmatprep.subr.mxu0 0.0
    %3036 = vmatpush1.msra.mxu0 0.0
    %3037 = vmatprep.subr.mxu0 0.0
    %3038 = vmatpush1.msra.mxu0 0.0
    %3039 = vmatprep.subr.mxu0 0.0
    %3040 = vmatpush1.msra.mxu0 0.0
    %3041 = vmatprep.subr.mxu0 0.0
    %3042 = vmatpush1.msra.mxu0 0.0
    %3043 = vmatprep.subr.mxu0 0.0
    %3044 = vmatpush1.msra.mxu0 0.0
    %3045 = vmatprep.subr.mxu0 0.0
    %3046 = vmatpush1.msra.mxu0 0.0
    %3047 = vmatprep.subr.mxu0 0.0
    %3048 = vmatpush1.msra.mxu0 0.0
    %3049 = vmatprep.subr.mxu0 0.0
    %3050 = vmatpush1.msra.mxu0 0.0
    %3051 = vmatprep.subr.mxu0 0.0
    %3052 = vmatpush1.msra.mxu0 0.0
    %3053 = vmatprep.subr.mxu0 0.0
    %3054 = vmatpush1.msra.mxu0 0.0
    %3055 = vmatprep.subr.mxu0 0.0
    %3056 = vmatpush1.msra.mxu0 0.0
    %3057 = vmatprep.subr.mxu0 0.0
    %3058 = vmatpush1.msra.mxu0 0.0
    %3059 = vmatprep.subr.mxu0 0.0
    %3060 = vmatpush1.msra.mxu0 0.0
    %3061 = vmatprep.subr.mxu0 0.0
    %3062 = vmatpush1.msra.mxu0 0.0
    %3063 = vmatprep.subr.mxu0 0.0
    %3064 = vmatpush1.msra.mxu0 0.0
    %3065 = vmatprep.subr.mxu0 0.0
    %3066 = vmatpush1.msra.mxu0 0.0
    %3067 = vmatprep.subr.mxu0 0.0
    %3068 = vmatpush1.msra.mxu0 0.0
    %3069 = vmatprep.subr.mxu0 0.0
    %3070 = vmatpush1.msra.mxu0 0.0
    %3071 = vmatprep.subr.mxu0 0.0
    %3072 = vmatpush1.msra.mxu0 0.0
    %3073 = vmatprep.subr.mxu0 0.0
    %3074 = vmatpush1.msra.mxu0 0.0
    %3075 = vmatprep.mubr.f32.mxu0 0.0
    %3076 = vmatmul.mubr.f32.gmra.mrb[0].mxu0 %v2964
    %v3077 = vpop.f32.mrb[0].mxu0
    %v3078 = vadd.f32 %v2960, %v3077
    %v3079 = vpop.f32.mrb[0].mxu0
    %3080 = vmatprep.mubr.f32.mxu0 0.0
    %3081 = vmatmul.mubr.f32.gmra.mrb[0].mxu0 %v2967
    %v3082 = vpop.f32.mrb[0].mxu0
    %v3083 = vadd.f32 %v2960, %v3082
    %v3084 = vpop.f32.mrb[0].mxu0
    %3085 = vmatprep.mubr.f32.mxu0 0.0
    %3086 = vmatmul.mubr.f32.gmra.mrb[0].mxu0 %v2970
    %v3087 = vpop.f32.mrb[0].mxu0
    %v3088 = vadd.f32 %v2960, %v3087
    %v3089 = vpop.f32.mrb[0].mxu0
    %3090 = vmatprep.mubr.f32.mxu0 0.0
    %3091 = vmatmul.mubr.f32.gmra.mrb[0].mxu0 %v2973
    %v3092 = vpop.f32.mrb[0].mxu0
    %v3093 = vadd.f32 %v2960, %v3092
    %v3094 = vpop.f32.mrb[0].mxu0
    %3095 = vmatprep.mubr.f32.mxu0 0.0
    %3096 = vmatmul.mubr.f32.gmra.mrb[0].mxu0 %v2976
    %v3097 = vpop.f32.mrb[0].mxu0
    %v3098 = vadd.f32 %v2960, %v3097
    %v3099 = vpop.f32.mrb[0].mxu0
    %3100 = vmatprep.mubr.f32.mxu0 0.0
    %3101 = vmatmul.mubr.f32.gmra.mrb[0].mxu0 %v2979
    %v3102 = vpop.f32.mrb[0].mxu0
    %v3103 = vadd.f32 %v2960, %v3102
    %v3104 = vpop.f32.mrb[0].mxu0
    %3105 = vmatprep.mubr.f32.mxu0 0.0
    %3106 = vmatmul.mubr.f32.gmra.mrb[0].mxu0 %v2982
    %v3107 = vpop.f32.mrb[0].mxu0
    %v3108 = vadd.f32 %v2960, %v3107
    %v3109 = vpop.f32.mrb[0].mxu0
    %3110 = vmatprep.mubr.f32.mxu0 0.0
    %3111 = vmatmul.mubr.f32.gmra.mrb[0].mxu0 %v2985
    %v3112 = vpop.f32.mrb[0].mxu0
    %v3113 = vadd.f32 %v2960, %v3112
    %v3114 = vpop.f32.mrb[0].mxu0
    %3115 = vmatprep.mubr.f32.mxu0 0.0
    %3116 = vmatmul.mubr.f32.gmra.mrb[0].mxu0 %v2988
    %v3117 = vpop.f32.mrb[0].mxu0
    %v3118 = vadd.f32 %v2960, %v3117
    %v3119 = vpop.f32.mrb[0].mxu0
    %3120 = vmatprep.mubr.f32.mxu0 0.0
    %3121 = vmatmul.mubr.f32.gmra.mrb[0].mxu0 %v2991
    %v3122 = vpop.f32.mrb[0].mxu0
    %v3123 = vadd.f32 %v2960, %v3122
    %v3124 = vpop.f32.mrb[0].mxu0
    %3125 = vmatprep.mubr.f32.mxu0 0.0
    %3126 = vmatmul.mubr.f32.gmra.mrb[0].mxu0 %v2994
    %v3127 = vpop.f32.mrb[0].mxu0
    %v3128 = vadd.f32 %v2960, %v3127
    %v3129 = vpop.f32.mrb[0].mxu0
    %3130 = vmatprep.mubr.f32.mxu0 0.0
    %3131 = vmatmul.mubr.f32.gmra.mrb[0].mxu0 %v2997
    %v3132 = vpop.f32.mrb[0].mxu0
    %v3133 = vadd.f32 %v2960, %v3132
    %v3134 = vpop.f32.mrb[0].mxu0
    %3135 = vmatprep.mubr.f32.mxu0 0.0
    %3136 = vmatmul.mubr.f32.gmra.mrb[0].mxu0 %v3000
    %v3137 = vpop.f32.mrb[0].mxu0
    %v3138 = vadd.f32 %v2960, %v3137
    %v3139 = vpop.f32.mrb[0].mxu0
    %3140 = vmatprep.mubr.f32.mxu0 0.0
    %3141 = vmatmul.mubr.f32.gmra.mrb[0].mxu0 %v3003
    %v3142 = vpop.f32.mrb[0].mxu0
    %v3143 = vadd.f32 %v2960, %v3142
    %v3144 = vpop.f32.mrb[0].mxu0
    %3145 = vmatprep.mubr.f32.mxu0 0.0
    %3146 = vmatmul.mubr.f32.gmra.mrb[0].mxu0 %v3006
    %v3147 = vpop.f32.mrb[0].mxu0
    %v3148 = vadd.f32 %v2960, %v3147
    %v3149 = vpop.f32.mrb[0].mxu0
    %3150 = vmatprep.mubr.f32.mxu0 0.0
    %3151 = vmatmul.mubr.f32.gmra.mrb[0].mxu0 %v3009
    %v3152 = vpop.f32.mrb[0].mxu0
    %v3153 = vadd.f32 %v2960, %v3152
    %v3154 = vpop.f32.mrb[0].mxu0
    %3155 = vdwg.mxu0
    %v3156 = vadd.f32 %v2473, %v3078
    %v3157 = vadd.f32 %v2474, %v3083
    %v3158 = vadd.f32 %v2475, %v3088
    %v3159 = vadd.f32 %v2476, %v3093
    %v3160 = vadd.f32 %v2477, %v3098
    %v3161 = vadd.f32 %v2478, %v3103
    %v3162 = vadd.f32 %v2479, %v3108
    %v3163 = vadd.f32 %v2480, %v3113
    %v3164 = vadd.f32 %v2481, %v3118
    %v3165 = vadd.f32 %v2482, %v3123
    %v3166 = vadd.f32 %v2483, %v3128
    %v3167 = vadd.f32 %v2484, %v3133
    %v3168 = vadd.f32 %v2485, %v3138
    %v3169 = vadd.f32 %v2486, %v3143
    %v3170 = vadd.f32 %v2487, %v3148
    %v3171 = vadd.f32 %v2488, %v3153
    %3172 = vst.msk [vmem:[%s113] sm:$0xff] %vm747, %v3156
    %3173 = vst.msk [vmem:[%s113 + $0x8] sm:$0xff] %vm747, %v3157
    %3174 = vst.msk [vmem:[%s113 + $0x10] sm:$0xff] %vm747, %v3158
    %3175 = vst.msk [vmem:[%s113 + $0x18] sm:$0xff] %vm747, %v3159
    %3176 = vst.msk [vmem:[%s113 + $0x20] sm:$0xff] %vm747, %v3160
    %3177 = vst.msk [vmem:[%s113 + $0x28] sm:$0xff] %vm747, %v3161
    %3178 = vst.msk [vmem:[%s113 + $0x30] sm:$0xff] %vm747, %v3162
    %3179 = vst.msk [vmem:[%s113 + $0x38] sm:$0xff] %vm747, %v3163
    %3180 = vst.msk [vmem:[%s113 + $0x40] sm:$0xff] %vm747, %v3164
    %3181 = vst.msk [vmem:[%s113 + $0x48] sm:$0xff] %vm747, %v3165
    %3182 = vst.msk [vmem:[%s113 + $0x50] sm:$0xff] %vm747, %v3166
    %3183 = vst.msk [vmem:[%s113 + $0x58] sm:$0xff] %vm747, %v3167
    %3184 = vst.msk [vmem:[%s113 + $0x60] sm:$0xff] %vm747, %v3168
    %3185 = vst.msk [vmem:[%s113 + $0x68] sm:$0xff] %vm747, %v3169
    %3186 = vst.msk [vmem:[%s113 + $0x70] sm:$0xff] %vm747, %v3170
    %3187 = vst.msk [vmem:[%s113 + $0x78] sm:$0xff] %vm747, %v3171
    %v3188 = vld [vmem:[%s37] sm:$0xff]
    %v3189 = vld [vmem:[%s37 + $0x8] sm:$0xff]
    %v3190 = vld [vmem:[%s37 + $0x10] sm:$0xff]
    %v3191 = vld [vmem:[%s37 + $0x18] sm:$0xff]
    %v3192 = vld [vmem:[%s37 + $0x20] sm:$0xff]
    %v3193 = vld [vmem:[%s37 + $0x28] sm:$0xff]
    %v3194 = vld [vmem:[%s37 + $0x30] sm:$0xff]
    %v3195 = vld [vmem:[%s37 + $0x38] sm:$0xff]
    %v3196 = vld [vmem:[%s37 + $0x40] sm:$0xff]
    %v3197 = vld [vmem:[%s37 + $0x48] sm:$0xff]
    %v3198 = vld [vmem:[%s37 + $0x50] sm:$0xff]
    %v3199 = vld [vmem:[%s37 + $0x58] sm:$0xff]
    %v3200 = vld [vmem:[%s37 + $0x60] sm:$0xff]
    %v3201 = vld [vmem:[%s37 + $0x68] sm:$0xff]
    %v3202 = vld [vmem:[%s37 + $0x70] sm:$0xff]
    %v3203 = vld [vmem:[%s37 + $0x78] sm:$0xff]
    %v3204 = vld [vmem:[%s39] sm:$0xff]
    %v3205 = vld [vmem:[%s39 + $0x8] sm:$0xff]
    %v3206 = vld [vmem:[%s39 + $0x10] sm:$0xff]
    %v3207 = vld [vmem:[%s39 + $0x18] sm:$0xff]
    %v3208 = vld [vmem:[%s39 + $0x20] sm:$0xff]
    %v3209 = vld [vmem:[%s39 + $0x28] sm:$0xff]
    %v3210 = vld [vmem:[%s39 + $0x30] sm:$0xff]
    %v3211 = vld [vmem:[%s39 + $0x38] sm:$0xff]
    %v3212 = vld [vmem:[%s39 + $0x40] sm:$0xff]
    %v3213 = vld [vmem:[%s39 + $0x48] sm:$0xff]
    %v3214 = vld [vmem:[%s39 + $0x50] sm:$0xff]
    %v3215 = vld [vmem:[%s39 + $0x58] sm:$0xff]
    %v3216 = vld [vmem:[%s39 + $0x60] sm:$0xff]
    %v3217 = vld [vmem:[%s39 + $0x68] sm:$0xff]
    %v3218 = vld [vmem:[%s39 + $0x70] sm:$0xff]
    %v3219 = vld [vmem:[%s39 + $0x78] sm:$0xff]
    %v3220 = vld [vmem:[#allocation23] sm:$0x1]
    %3221 = vmatprep.subr.mxu0 0.0
    %3222 = vmatpush1.msra.mxu0 %v3156
    %3223 = vmatprep.subr.mxu0 0.0
    %3224 = vmatpush1.msra.mxu0 %v3157
    %3225 = vmatprep.subr.mxu0 0.0
    %3226 = vmatpush1.msra.mxu0 %v3158
    %3227 = vmatprep.subr.mxu0 0.0
    %3228 = vmatpush1.msra.mxu0 %v3159
    %3229 = vmatprep.subr.mxu0 0.0
    %3230 = vmatpush1.msra.mxu0 %v3160
    %3231 = vmatprep.subr.mxu0 0.0
    %3232 = vmatpush1.msra.mxu0 %v3161
    %3233 = vmatprep.subr.mxu0 0.0
    %3234 = vmatpush1.msra.mxu0 %v3162
    %3235 = vmatprep.subr.mxu0 0.0
    %3236 = vmatpush1.msra.mxu0 %v3163
    %3237 = vmatprep.subr.mxu0 0.0
    %3238 = vmatpush1.msra.mxu0 %v3164
    %3239 = vmatprep.subr.mxu0 0.0
    %3240 = vmatpush1.msra.mxu0 %v3165
    %3241 = vmatprep.subr.mxu0 0.0
    %3242 = vmatpush1.msra.mxu0 %v3166
    %3243 = vmatprep.subr.mxu0 0.0
    %3244 = vmatpush1.msra.mxu0 %v3167
    %3245 = vmatprep.subr.mxu0 0.0
    %3246 = vmatpush1.msra.mxu0 %v3168
    %3247 = vmatprep.subr.mxu0 0.0
    %3248 = vmatpush1.msra.mxu0 %v3169
    %3249 = vmatprep.subr.mxu0 0.0
    %3250 = vmatpush1.msra.mxu0 %v3170
    %3251 = vmatprep.subr.mxu0 0.0
    %3252 = vmatpush1.msra.mxu0 %v3171
    %3253 = vmatprep.subr.mxu0 0.0
    %3254 = vmatpush1.msra.mxu0 0.0
    %3255 = vmatprep.subr.mxu0 0.0
    %3256 = vmatpush1.msra.mxu0 0.0
    %3257 = vmatprep.subr.mxu0 0.0
    %3258 = vmatpush1.msra.mxu0 0.0
    %3259 = vmatprep.subr.mxu0 0.0
    %3260 = vmatpush1.msra.mxu0 0.0
    %3261 = vmatprep.subr.mxu0 0.0
    %3262 = vmatpush1.msra.mxu0 0.0
    %3263 = vmatprep.subr.mxu0 0.0
    %3264 = vmatpush1.msra.mxu0 0.0
    %3265 = vmatprep.subr.mxu0 0.0
    %3266 = vmatpush1.msra.mxu0 0.0
    %3267 = vmatprep.subr.mxu0 0.0
    %3268 = vmatpush1.msra.mxu0 0.0
    %3269 = vmatprep.subr.mxu0 0.0
    %3270 = vmatpush1.msra.mxu0 0.0
    %3271 = vmatprep.subr.mxu0 0.0
    %3272 = vmatpush1.msra.mxu0 0.0
    %3273 = vmatprep.subr.mxu0 0.0
    %3274 = vmatpush1.msra.mxu0 0.0
    %3275 = vmatprep.subr.mxu0 0.0
    %3276 = vmatpush1.msra.mxu0 0.0
    %3277 = vmatprep.subr.mxu0 0.0
    %3278 = vmatpush1.msra.mxu0 0.0
    %3279 = vmatprep.subr.mxu0 0.0
    %3280 = vmatpush1.msra.mxu0 0.0
    %3281 = vmatprep.subr.mxu0 0.0
    %3282 = vmatpush1.msra.mxu0 0.0
    %3283 = vmatprep.subr.mxu0 0.0
    %3284 = vmatpush1.msra.mxu0 0.0
    %3285 = vmatprep.mubr.f32.mxu0 0.0
    %3286 = vmatmul.mubr.f32.gmra.mrb[0].mxu0 %v3188
    %v3287 = vpop.f32.mrb[0].mxu0
    %v3288 = vadd.f32 0.0, %v3287
    %v3289 = vpop.f32.mrb[0].mxu0
    %3290 = vmatprep.mubr.f32.mxu0 0.0
    %3291 = vmatmul.mubr.f32.gmra.mrb[0].mxu0 %v3189
    %v3292 = vpop.f32.mrb[0].mxu0
    %v3293 = vadd.f32 0.0, %v3292
    %v3294 = vpop.f32.mrb[0].mxu0
    %3295 = vmatprep.mubr.f32.mxu0 0.0
    %3296 = vmatmul.mubr.f32.gmra.mrb[0].mxu0 %v3190
    %v3297 = vpop.f32.mrb[0].mxu0
    %v3298 = vadd.f32 0.0, %v3297
    %v3299 = vpop.f32.mrb[0].mxu0
    %3300 = vmatprep.mubr.f32.mxu0 0.0
    %3301 = vmatmul.mubr.f32.gmra.mrb[0].mxu0 %v3191
    %v3302 = vpop.f32.mrb[0].mxu0
    %v3303 = vadd.f32 0.0, %v3302
    %v3304 = vpop.f32.mrb[0].mxu0
    %3305 = vdwg.mxu0
    %v3307 = vsel %vm747, %v3288, 0
    %v3310 = vsel %vm747, %v3293, 0
    %v3313 = vsel %vm747, %v3298, 0
    %v3316 = vsel %vm747, %v3303, 0
    %3318 = vmatprep.subr.mxu0 0.0
    %3319 = vmatpush1.msra.mxu0 %v3204
    %3320 = vmatprep.subr.mxu0 0.0
    %3321 = vmatpush1.msra.mxu0 %v3205
    %3322 = vmatprep.subr.mxu0 0.0
    %3323 = vmatpush1.msra.mxu0 %v3206
    %3324 = vmatprep.subr.mxu0 0.0
    %3325 = vmatpush1.msra.mxu0 %v3207
    %3326 = vmatprep.subr.mxu0 0.0
    %3327 = vmatpush1.msra.mxu0 0.0
    %3328 = vmatprep.subr.mxu0 0.0
    %3329 = vmatpush1.msra.mxu0 0.0
    %3330 = vmatprep.subr.mxu0 0.0
    %3331 = vmatpush1.msra.mxu0 0.0
    %3332 = vmatprep.subr.mxu0 0.0
    %3333 = vmatpush1.msra.mxu0 0.0
    %3334 = vmatprep.subr.mxu0 0.0
    %3335 = vmatpush1.msra.mxu0 0.0
    %3336 = vmatprep.subr.mxu0 0.0
    %3337 = vmatpush1.msra.mxu0 0.0
    %3338 = vmatprep.subr.mxu0 0.0
    %3339 = vmatpush1.msra.mxu0 0.0
    %3340 = vmatprep.subr.mxu0 0.0
    %3341 = vmatpush1.msra.mxu0 0.0
    %3342 = vmatprep.subr.mxu0 0.0
    %3343 = vmatpush1.msra.mxu0 0.0
    %3344 = vmatprep.subr.mxu0 0.0
    %3345 = vmatpush1.msra.mxu0 0.0
    %3346 = vmatprep.subr.mxu0 0.0
    %3347 = vmatpush1.msra.mxu0 0.0
    %3348 = vmatprep.subr.mxu0 0.0
    %3349 = vmatpush1.msra.mxu0 0.0
    %3350 = vmatprep.subr.mxu0 0.0
    %3351 = vmatpush1.msra.mxu0 0.0
    %3352 = vmatprep.subr.mxu0 0.0
    %3353 = vmatpush1.msra.mxu0 0.0
    %3354 = vmatprep.subr.mxu0 0.0
    %3355 = vmatpush1.msra.mxu0 0.0
    %3356 = vmatprep.subr.mxu0 0.0
    %3357 = vmatpush1.msra.mxu0 0.0
    %3358 = vmatprep.subr.mxu0 0.0
    %3359 = vmatpush1.msra.mxu0 0.0
    %3360 = vmatprep.subr.mxu0 0.0
    %3361 = vmatpush1.msra.mxu0 0.0
    %3362 = vmatprep.subr.mxu0 0.0
    %3363 = vmatpush1.msra.mxu0 0.0
    %3364 = vmatprep.subr.mxu0 0.0
    %3365 = vmatpush1.msra.mxu0 0.0
    %3366 = vmatprep.subr.mxu0 0.0
    %3367 = vmatpush1.msra.mxu0 0.0
    %3368 = vmatprep.subr.mxu0 0.0
    %3369 = vmatpush1.msra.mxu0 0.0
    %3370 = vmatprep.subr.mxu0 0.0
    %3371 = vmatpush1.msra.mxu0 0.0
    %3372 = vmatprep.subr.mxu0 0.0
    %3373 = vmatpush1.msra.mxu0 0.0
    %3374 = vmatprep.subr.mxu0 0.0
    %3375 = vmatpush1.msra.mxu0 0.0
    %3376 = vmatprep.subr.mxu0 0.0
    %3377 = vmatpush1.msra.mxu0 0.0
    %3378 = vmatprep.subr.mxu0 0.0
    %3379 = vmatpush1.msra.mxu0 0.0
    %3380 = vmatprep.subr.mxu0 0.0
    %3381 = vmatpush1.msra.mxu0 0.0
    %3382 = vmatprep.mubr.f32.mxu0 0.0
    %3383 = vmatmul.mubr.f32.gmra.mrb[0].mxu0 %v3307
    %v3384 = vpop.f32.mrb[0].mxu0
    %v3385 = vadd.f32 0.0, %v3384
    %v3386 = vpop.f32.mrb[0].mxu0
    %3387 = vmatprep.mubr.f32.mxu0 0.0
    %3388 = vmatmul.mubr.f32.gmra.mrb[0].mxu0 %v3310
    %v3389 = vpop.f32.mrb[0].mxu0
    %v3390 = vadd.f32 0.0, %v3389
    %v3391 = vpop.f32.mrb[0].mxu0
    %3392 = vmatprep.mubr.f32.mxu0 0.0
    %3393 = vmatmul.mubr.f32.gmra.mrb[0].mxu0 %v3313
    %v3394 = vpop.f32.mrb[0].mxu0
    %v3395 = vadd.f32 0.0, %v3394
    %v3396 = vpop.f32.mrb[0].mxu0
    %3397 = vmatprep.mubr.f32.mxu0 0.0
    %3398 = vmatmul.mubr.f32.gmra.mrb[0].mxu0 %v3316
    %v3399 = vpop.f32.mrb[0].mxu0
    %v3400 = vadd.f32 0.0, %v3399
    %v3401 = vpop.f32.mrb[0].mxu0
    %3402 = vdwg.mxu0
    %v3404 = vlaneseq
    %v3405 = vshrl.u32 %v3404, 7
    %v3406 = vsub.s32 0, %v3405
    %v3407 = vrot.slane %v3220, %v3406
    %v3409 = vadd.f32 %v3407, %v3385
    %v3410 = vadd.f32 %v3407, %v3390
    %v3411 = vadd.f32 %v3407, %v3395
    %v3412 = vadd.f32 %v3407, %v3400
    %3413 = vmatprep.subr.mxu0 0.0
    %3414 = vmatpush1.msra.mxu0 %v3156
    %3415 = vmatprep.subr.mxu0 0.0
    %3416 = vmatpush1.msra.mxu0 %v3157
    %3417 = vmatprep.subr.mxu0 0.0
    %3418 = vmatpush1.msra.mxu0 %v3158
    %3419 = vmatprep.subr.mxu0 0.0
    %3420 = vmatpush1.msra.mxu0 %v3159
    %3421 = vmatprep.subr.mxu0 0.0
    %3422 = vmatpush1.msra.mxu0 %v3160
    %3423 = vmatprep.subr.mxu0 0.0
    %3424 = vmatpush1.msra.mxu0 %v3161
    %3425 = vmatprep.subr.mxu0 0.0
    %3426 = vmatpush1.msra.mxu0 %v3162
    %3427 = vmatprep.subr.mxu0 0.0
    %3428 = vmatpush1.msra.mxu0 %v3163
    %3429 = vmatprep.subr.mxu0 0.0
    %3430 = vmatpush1.msra.mxu0 %v3164
    %3431 = vmatprep.subr.mxu0 0.0
    %3432 = vmatpush1.msra.mxu0 %v3165
    %3433 = vmatprep.subr.mxu0 0.0
    %3434 = vmatpush1.msra.mxu0 %v3166
    %3435 = vmatprep.subr.mxu0 0.0
    %3436 = vmatpush1.msra.mxu0 %v3167
    %3437 = vmatprep.subr.mxu0 0.0
    %3438 = vmatpush1.msra.mxu0 %v3168
    %3439 = vmatprep.subr.mxu0 0.0
    %3440 = vmatpush1.msra.mxu0 %v3169
    %3441 = vmatprep.subr.mxu0 0.0
    %3442 = vmatpush1.msra.mxu0 %v3170
    %3443 = vmatprep.subr.mxu0 0.0
    %3444 = vmatpush1.msra.mxu0 %v3171
    %3445 = vmatprep.subr.mxu0 0.0
    %3446 = vmatpush1.msra.mxu0 0.0
    %3447 = vmatprep.subr.mxu0 0.0
    %3448 = vmatpush1.msra.mxu0 0.0
    %3449 = vmatprep.subr.mxu0 0.0
    %3450 = vmatpush1.msra.mxu0 0.0
    %3451 = vmatprep.subr.mxu0 0.0
    %3452 = vmatpush1.msra.mxu0 0.0
    %3453 = vmatprep.subr.mxu0 0.0
    %3454 = vmatpush1.msra.mxu0 0.0
    %3455 = vmatprep.subr.mxu0 0.0
    %3456 = vmatpush1.msra.mxu0 0.0
    %3457 = vmatprep.subr.mxu0 0.0
    %3458 = vmatpush1.msra.mxu0 0.0
    %3459 = vmatprep.subr.mxu0 0.0
    %3460 = vmatpush1.msra.mxu0 0.0
    %3461 = vmatprep.subr.mxu0 0.0
    %3462 = vmatpush1.msra.mxu0 0.0
    %3463 = vmatprep.subr.mxu0 0.0
    %3464 = vmatpush1.msra.mxu0 0.0
    %3465 = vmatprep.subr.mxu0 0.0
    %3466 = vmatpush1.msra.mxu0 0.0
    %3467 = vmatprep.subr.mxu0 0.0
    %3468 = vmatpush1.msra.mxu0 0.0
    %3469 = vmatprep.subr.mxu0 0.0
    %3470 = vmatpush1.msra.mxu0 0.0
    %3471 = vmatprep.subr.mxu0 0.0
    %3472 = vmatpush1.msra.mxu0 0.0
    %3473 = vmatprep.subr.mxu0 0.0
    %3474 = vmatpush1.msra.mxu0 0.0
    %3475 = vmatprep.subr.mxu0 0.0
    %3476 = vmatpush1.msra.mxu0 0.0
    %3477 = vmatprep.mubr.f32.mxu0 0.0
    %3478 = vmatmul.mubr.f32.gmra.mrb[0].mxu0 %v3192
    %v3479 = vpop.f32.mrb[0].mxu0
    %v3480 = vadd.f32 0.0, %v3479
    %v3481 = vpop.f32.mrb[0].mxu0
    %3482 = vmatprep.mubr.f32.mxu0 0.0
    %3483 = vmatmul.mubr.f32.gmra.mrb[0].mxu0 %v3193
    %v3484 = vpop.f32.mrb[0].mxu0
    %v3485 = vadd.f32 0.0, %v3484
    %v3486 = vpop.f32.mrb[0].mxu0
    %3487 = vmatprep.mubr.f32.mxu0 0.0
    %3488 = vmatmul.mubr.f32.gmra.mrb[0].mxu0 %v3194
    %v3489 = vpop.f32.mrb[0].mxu0
    %v3490 = vadd.f32 0.0, %v3489
    %v3491 = vpop.f32.mrb[0].mxu0
    %3492 = vmatprep.mubr.f32.mxu0 0.0
    %3493 = vmatmul.mubr.f32.gmra.mrb[0].mxu0 %v3195
    %v3494 = vpop.f32.mrb[0].mxu0
    %v3495 = vadd.f32 0.0, %v3494
    %v3496 = vpop.f32.mrb[0].mxu0
    %3497 = vdwg.mxu0
    %v3499 = vsel %vm747, %v3480, 0
    %v3502 = vsel %vm747, %v3485, 0
    %v3505 = vsel %vm747, %v3490, 0
    %v3508 = vsel %vm747, %v3495, 0
    %3510 = vmatprep.subr.mxu0 0.0
    %3511 = vmatpush1.msra.mxu0 %v3208
    %3512 = vmatprep.subr.mxu0 0.0
    %3513 = vmatpush1.msra.mxu0 %v3209
    %3514 = vmatprep.subr.mxu0 0.0
    %3515 = vmatpush1.msra.mxu0 %v3210
    %3516 = vmatprep.subr.mxu0 0.0
    %3517 = vmatpush1.msra.mxu0 %v3211
    %3518 = vmatprep.subr.mxu0 0.0
    %3519 = vmatpush1.msra.mxu0 0.0
    %3520 = vmatprep.subr.mxu0 0.0
    %3521 = vmatpush1.msra.mxu0 0.0
    %3522 = vmatprep.subr.mxu0 0.0
    %3523 = vmatpush1.msra.mxu0 0.0
    %3524 = vmatprep.subr.mxu0 0.0
    %3525 = vmatpush1.msra.mxu0 0.0
    %3526 = vmatprep.subr.mxu0 0.0
    %3527 = vmatpush1.msra.mxu0 0.0
    %3528 = vmatprep.subr.mxu0 0.0
    %3529 = vmatpush1.msra.mxu0 0.0
    %3530 = vmatprep.subr.mxu0 0.0
    %3531 = vmatpush1.msra.mxu0 0.0
    %3532 = vmatprep.subr.mxu0 0.0
    %3533 = vmatpush1.msra.mxu0 0.0
    %3534 = vmatprep.subr.mxu0 0.0
    %3535 = vmatpush1.msra.mxu0 0.0
    %3536 = vmatprep.subr.mxu0 0.0
    %3537 = vmatpush1.msra.mxu0 0.0
    %3538 = vmatprep.subr.mxu0 0.0
    %3539 = vmatpush1.msra.mxu0 0.0
    %3540 = vmatprep.subr.mxu0 0.0
    %3541 = vmatpush1.msra.mxu0 0.0
    %3542 = vmatprep.subr.mxu0 0.0
    %3543 = vmatpush1.msra.mxu0 0.0
    %3544 = vmatprep.subr.mxu0 0.0
    %3545 = vmatpush1.msra.mxu0 0.0
    %3546 = vmatprep.subr.mxu0 0.0
    %3547 = vmatpush1.msra.mxu0 0.0
    %3548 = vmatprep.subr.mxu0 0.0
    %3549 = vmatpush1.msra.mxu0 0.0
    %3550 = vmatprep.subr.mxu0 0.0
    %3551 = vmatpush1.msra.mxu0 0.0
    %3552 = vmatprep.subr.mxu0 0.0
    %3553 = vmatpush1.msra.mxu0 0.0
    %3554 = vmatprep.subr.mxu0 0.0
    %3555 = vmatpush1.msra.mxu0 0.0
    %3556 = vmatprep.subr.mxu0 0.0
    %3557 = vmatpush1.msra.mxu0 0.0
    %3558 = vmatprep.subr.mxu0 0.0
    %3559 = vmatpush1.msra.mxu0 0.0
    %3560 = vmatprep.subr.mxu0 0.0
    %3561 = vmatpush1.msra.mxu0 0.0
    %3562 = vmatprep.subr.mxu0 0.0
    %3563 = vmatpush1.msra.mxu0 0.0
    %3564 = vmatprep.subr.mxu0 0.0
    %3565 = vmatpush1.msra.mxu0 0.0
    %3566 = vmatprep.subr.mxu0 0.0
    %3567 = vmatpush1.msra.mxu0 0.0
    %3568 = vmatprep.subr.mxu0 0.0
    %3569 = vmatpush1.msra.mxu0 0.0
    %3570 = vmatprep.subr.mxu0 0.0
    %3571 = vmatpush1.msra.mxu0 0.0
    %3572 = vmatprep.subr.mxu0 0.0
    %3573 = vmatpush1.msra.mxu0 0.0
    %3574 = vmatprep.mubr.f32.mxu0 0.0
    %3575 = vmatmul.mubr.f32.gmra.mrb[0].mxu0 %v3499
    %v3576 = vpop.f32.mrb[0].mxu0
    %v3577 = vadd.f32 0.0, %v3576
    %v3578 = vpop.f32.mrb[0].mxu0
    %3579 = vmatprep.mubr.f32.mxu0 0.0
    %3580 = vmatmul.mubr.f32.gmra.mrb[0].mxu0 %v3502
    %v3581 = vpop.f32.mrb[0].mxu0
    %v3582 = vadd.f32 0.0, %v3581
    %v3583 = vpop.f32.mrb[0].mxu0
    %3584 = vmatprep.mubr.f32.mxu0 0.0
    %3585 = vmatmul.mubr.f32.gmra.mrb[0].mxu0 %v3505
    %v3586 = vpop.f32.mrb[0].mxu0
    %v3587 = vadd.f32 0.0, %v3586
    %v3588 = vpop.f32.mrb[0].mxu0
    %3589 = vmatprep.mubr.f32.mxu0 0.0
    %3590 = vmatmul.mubr.f32.gmra.mrb[0].mxu0 %v3508
    %v3591 = vpop.f32.mrb[0].mxu0
    %v3592 = vadd.f32 0.0, %v3591
    %v3593 = vpop.f32.mrb[0].mxu0
    %3594 = vdwg.mxu0
    %v3595 = vadd.f32 %v3409, %v3577
    %v3596 = vadd.f32 %v3410, %v3582
    %v3597 = vadd.f32 %v3411, %v3587
    %v3598 = vadd.f32 %v3412, %v3592
    %3599 = vmatprep.subr.mxu0 0.0
    %3600 = vmatpush1.msra.mxu0 %v3156
    %3601 = vmatprep.subr.mxu0 0.0
    %3602 = vmatpush1.msra.mxu0 %v3157
    %3603 = vmatprep.subr.mxu0 0.0
    %3604 = vmatpush1.msra.mxu0 %v3158
    %3605 = vmatprep.subr.mxu0 0.0
    %3606 = vmatpush1.msra.mxu0 %v3159
    %3607 = vmatprep.subr.mxu0 0.0
    %3608 = vmatpush1.msra.mxu0 %v3160
    %3609 = vmatprep.subr.mxu0 0.0
    %3610 = vmatpush1.msra.mxu0 %v3161
    %3611 = vmatprep.subr.mxu0 0.0
    %3612 = vmatpush1.msra.mxu0 %v3162
    %3613 = vmatprep.subr.mxu0 0.0
    %3614 = vmatpush1.msra.mxu0 %v3163
    %3615 = vmatprep.subr.mxu0 0.0
    %3616 = vmatpush1.msra.mxu0 %v3164
    %3617 = vmatprep.subr.mxu0 0.0
    %3618 = vmatpush1.msra.mxu0 %v3165
    %3619 = vmatprep.subr.mxu0 0.0
    %3620 = vmatpush1.msra.mxu0 %v3166
    %3621 = vmatprep.subr.mxu0 0.0
    %3622 = vmatpush1.msra.mxu0 %v3167
    %3623 = vmatprep.subr.mxu0 0.0
    %3624 = vmatpush1.msra.mxu0 %v3168
    %3625 = vmatprep.subr.mxu0 0.0
    %3626 = vmatpush1.msra.mxu0 %v3169
    %3627 = vmatprep.subr.mxu0 0.0
    %3628 = vmatpush1.msra.mxu0 %v3170
    %3629 = vmatprep.subr.mxu0 0.0
    %3630 = vmatpush1.msra.mxu0 %v3171
    %3631 = vmatprep.subr.mxu0 0.0
    %3632 = vmatpush1.msra.mxu0 0.0
    %3633 = vmatprep.subr.mxu0 0.0
    %3634 = vmatpush1.msra.mxu0 0.0
    %3635 = vmatprep.subr.mxu0 0.0
    %3636 = vmatpush1.msra.mxu0 0.0
    %3637 = vmatprep.subr.mxu0 0.0
    %3638 = vmatpush1.msra.mxu0 0.0
    %3639 = vmatprep.subr.mxu0 0.0
    %3640 = vmatpush1.msra.mxu0 0.0
    %3641 = vmatprep.subr.mxu0 0.0
    %3642 = vmatpush1.msra.mxu0 0.0
    %3643 = vmatprep.subr.mxu0 0.0
    %3644 = vmatpush1.msra.mxu0 0.0
    %3645 = vmatprep.subr.mxu0 0.0
    %3646 = vmatpush1.msra.mxu0 0.0
    %3647 = vmatprep.subr.mxu0 0.0
    %3648 = vmatpush1.msra.mxu0 0.0
    %3649 = vmatprep.subr.mxu0 0.0
    %3650 = vmatpush1.msra.mxu0 0.0
    %3651 = vmatprep.subr.mxu0 0.0
    %3652 = vmatpush1.msra.mxu0 0.0
    %3653 = vmatprep.subr.mxu0 0.0
    %3654 = vmatpush1.msra.mxu0 0.0
    %3655 = vmatprep.subr.mxu0 0.0
    %3656 = vmatpush1.msra.mxu0 0.0
    %3657 = vmatprep.subr.mxu0 0.0
    %3658 = vmatpush1.msra.mxu0 0.0
    %3659 = vmatprep.subr.mxu0 0.0
    %3660 = vmatpush1.msra.mxu0 0.0
    %3661 = vmatprep.subr.mxu0 0.0
    %3662 = vmatpush1.msra.mxu0 0.0
    %3663 = vmatprep.mubr.f32.mxu0 0.0
    %3664 = vmatmul.mubr.f32.gmra.mrb[0].mxu0 %v3196
    %v3665 = vpop.f32.mrb[0].mxu0
    %v3666 = vadd.f32 0.0, %v3665
    %v3667 = vpop.f32.mrb[0].mxu0
    %3668 = vmatprep.mubr.f32.mxu0 0.0
    %3669 = vmatmul.mubr.f32.gmra.mrb[0].mxu0 %v3197
    %v3670 = vpop.f32.mrb[0].mxu0
    %v3671 = vadd.f32 0.0, %v3670
    %v3672 = vpop.f32.mrb[0].mxu0
    %3673 = vmatprep.mubr.f32.mxu0 0.0
    %3674 = vmatmul.mubr.f32.gmra.mrb[0].mxu0 %v3198
    %v3675 = vpop.f32.mrb[0].mxu0
    %v3676 = vadd.f32 0.0, %v3675
    %v3677 = vpop.f32.mrb[0].mxu0
    %3678 = vmatprep.mubr.f32.mxu0 0.0
    %3679 = vmatmul.mubr.f32.gmra.mrb[0].mxu0 %v3199
    %v3680 = vpop.f32.mrb[0].mxu0
    %v3681 = vadd.f32 0.0, %v3680
    %v3682 = vpop.f32.mrb[0].mxu0
    %3683 = vdwg.mxu0
    %v3685 = vsel %vm747, %v3666, 0
    %v3688 = vsel %vm747, %v3671, 0
    %v3691 = vsel %vm747, %v3676, 0
    %v3694 = vsel %vm747, %v3681, 0
    %3696 = vmatprep.subr.mxu0 0.0
    %3697 = vmatpush1.msra.mxu0 %v3212
    %3698 = vmatprep.subr.mxu0 0.0
    %3699 = vmatpush1.msra.mxu0 %v3213
    %3700 = vmatprep.subr.mxu0 0.0
    %3701 = vmatpush1.msra.mxu0 %v3214
    %3702 = vmatprep.subr.mxu0 0.0
    %3703 = vmatpush1.msra.mxu0 %v3215
    %3704 = vmatprep.subr.mxu0 0.0
    %3705 = vmatpush1.msra.mxu0 0.0
    %3706 = vmatprep.subr.mxu0 0.0
    %3707 = vmatpush1.msra.mxu0 0.0
    %3708 = vmatprep.subr.mxu0 0.0
    %3709 = vmatpush1.msra.mxu0 0.0
    %3710 = vmatprep.subr.mxu0 0.0
    %3711 = vmatpush1.msra.mxu0 0.0
    %3712 = vmatprep.subr.mxu0 0.0
    %3713 = vmatpush1.msra.mxu0 0.0
    %3714 = vmatprep.subr.mxu0 0.0
    %3715 = vmatpush1.msra.mxu0 0.0
    %3716 = vmatprep.subr.mxu0 0.0
    %3717 = vmatpush1.msra.mxu0 0.0
    %3718 = vmatprep.subr.mxu0 0.0
    %3719 = vmatpush1.msra.mxu0 0.0
    %3720 = vmatprep.subr.mxu0 0.0
    %3721 = vmatpush1.msra.mxu0 0.0
    %3722 = vmatprep.subr.mxu0 0.0
    %3723 = vmatpush1.msra.mxu0 0.0
    %3724 = vmatprep.subr.mxu0 0.0
    %3725 = vmatpush1.msra.mxu0 0.0
    %3726 = vmatprep.subr.mxu0 0.0
    %3727 = vmatpush1.msra.mxu0 0.0
    %3728 = vmatprep.subr.mxu0 0.0
    %3729 = vmatpush1.msra.mxu0 0.0
    %3730 = vmatprep.subr.mxu0 0.0
    %3731 = vmatpush1.msra.mxu0 0.0
    %3732 = vmatprep.subr.mxu0 0.0
    %3733 = vmatpush1.msra.mxu0 0.0
    %3734 = vmatprep.subr.mxu0 0.0
    %3735 = vmatpush1.msra.mxu0 0.0
    %3736 = vmatprep.subr.mxu0 0.0
    %3737 = vmatpush1.msra.mxu0 0.0
    %3738 = vmatprep.subr.mxu0 0.0
    %3739 = vmatpush1.msra.mxu0 0.0
    %3740 = vmatprep.subr.mxu0 0.0
    %3741 = vmatpush1.msra.mxu0 0.0
    %3742 = vmatprep.subr.mxu0 0.0
    %3743 = vmatpush1.msra.mxu0 0.0
    %3744 = vmatprep.subr.mxu0 0.0
    %3745 = vmatpush1.msra.mxu0 0.0
    %3746 = vmatprep.subr.mxu0 0.0
    %3747 = vmatpush1.msra.mxu0 0.0
    %3748 = vmatprep.subr.mxu0 0.0
    %3749 = vmatpush1.msra.mxu0 0.0
    %3750 = vmatprep.subr.mxu0 0.0
    %3751 = vmatpush1.msra.mxu0 0.0
    %3752 = vmatprep.subr.mxu0 0.0
    %3753 = vmatpush1.msra.mxu0 0.0
    %3754 = vmatprep.subr.mxu0 0.0
    %3755 = vmatpush1.msra.mxu0 0.0
    %3756 = vmatprep.subr.mxu0 0.0
    %3757 = vmatpush1.msra.mxu0 0.0
    %3758 = vmatprep.subr.mxu0 0.0
    %3759 = vmatpush1.msra.mxu0 0.0
    %3760 = vmatprep.mubr.f32.mxu0 0.0
    %3761 = vmatmul.mubr.f32.gmra.mrb[0].mxu0 %v3685
    %v3762 = vpop.f32.mrb[0].mxu0
    %v3763 = vadd.f32 0.0, %v3762
    %v3764 = vpop.f32.mrb[0].mxu0
    %3765 = vmatprep.mubr.f32.mxu0 0.0
    %3766 = vmatmul.mubr.f32.gmra.mrb[0].mxu0 %v3688
    %v3767 = vpop.f32.mrb[0].mxu0
    %v3768 = vadd.f32 0.0, %v3767
    %v3769 = vpop.f32.mrb[0].mxu0
    %3770 = vmatprep.mubr.f32.mxu0 0.0
    %3771 = vmatmul.mubr.f32.gmra.mrb[0].mxu0 %v3691
    %v3772 = vpop.f32.mrb[0].mxu0
    %v3773 = vadd.f32 0.0, %v3772
    %v3774 = vpop.f32.mrb[0].mxu0
    %3775 = vmatprep.mubr.f32.mxu0 0.0
    %3776 = vmatmul.mubr.f32.gmra.mrb[0].mxu0 %v3694
    %v3777 = vpop.f32.mrb[0].mxu0
    %v3778 = vadd.f32 0.0, %v3777
    %v3779 = vpop.f32.mrb[0].mxu0
    %3780 = vdwg.mxu0
    %v3781 = vadd.f32 %v3595, %v3763
    %v3782 = vadd.f32 %v3596, %v3768
    %v3783 = vadd.f32 %v3597, %v3773
    %v3784 = vadd.f32 %v3598, %v3778
    %3785 = vmatprep.subr.mxu0 0.0
    %3786 = vmatpush1.msra.mxu0 %v3156
    %3787 = vmatprep.subr.mxu0 0.0
    %3788 = vmatpush1.msra.mxu0 %v3157
    %3789 = vmatprep.subr.mxu0 0.0
    %3790 = vmatpush1.msra.mxu0 %v3158
    %3791 = vmatprep.subr.mxu0 0.0
    %3792 = vmatpush1.msra.mxu0 %v3159
    %3793 = vmatprep.subr.mxu0 0.0
    %3794 = vmatpush1.msra.mxu0 %v3160
    %3795 = vmatprep.subr.mxu0 0.0
    %3796 = vmatpush1.msra.mxu0 %v3161
    %3797 = vmatprep.subr.mxu0 0.0
    %3798 = vmatpush1.msra.mxu0 %v3162
    %3799 = vmatprep.subr.mxu0 0.0
    %3800 = vmatpush1.msra.mxu0 %v3163
    %3801 = vmatprep.subr.mxu0 0.0
    %3802 = vmatpush1.msra.mxu0 %v3164
    %3803 = vmatprep.subr.mxu0 0.0
    %3804 = vmatpush1.msra.mxu0 %v3165
    %3805 = vmatprep.subr.mxu0 0.0
    %3806 = vmatpush1.msra.mxu0 %v3166
    %3807 = vmatprep.subr.mxu0 0.0
    %3808 = vmatpush1.msra.mxu0 %v3167
    %3809 = vmatprep.subr.mxu0 0.0
    %3810 = vmatpush1.msra.mxu0 %v3168
    %3811 = vmatprep.subr.mxu0 0.0
    %3812 = vmatpush1.msra.mxu0 %v3169
    %3813 = vmatprep.subr.mxu0 0.0
    %3814 = vmatpush1.msra.mxu0 %v3170
    %3815 = vmatprep.subr.mxu0 0.0
    %3816 = vmatpush1.msra.mxu0 %v3171
    %3817 = vmatprep.subr.mxu0 0.0
    %3818 = vmatpush1.msra.mxu0 0.0
    %3819 = vmatprep.subr.mxu0 0.0
    %3820 = vmatpush1.msra.mxu0 0.0
    %3821 = vmatprep.subr.mxu0 0.0
    %3822 = vmatpush1.msra.mxu0 0.0
    %3823 = vmatprep.subr.mxu0 0.0
    %3824 = vmatpush1.msra.mxu0 0.0
    %3825 = vmatprep.subr.mxu0 0.0
    %3826 = vmatpush1.msra.mxu0 0.0
    %3827 = vmatprep.subr.mxu0 0.0
    %3828 = vmatpush1.msra.mxu0 0.0
    %3829 = vmatprep.subr.mxu0 0.0
    %3830 = vmatpush1.msra.mxu0 0.0
    %3831 = vmatprep.subr.mxu0 0.0
    %3832 = vmatpush1.msra.mxu0 0.0
    %3833 = vmatprep.subr.mxu0 0.0
    %3834 = vmatpush1.msra.mxu0 0.0
    %3835 = vmatprep.subr.mxu0 0.0
    %3836 = vmatpush1.msra.mxu0 0.0
    %3837 = vmatprep.subr.mxu0 0.0
    %3838 = vmatpush1.msra.mxu0 0.0
    %3839 = vmatprep.subr.mxu0 0.0
    %3840 = vmatpush1.msra.mxu0 0.0
    %3841 = vmatprep.subr.mxu0 0.0
    %3842 = vmatpush1.msra.mxu0 0.0
    %3843 = vmatprep.subr.mxu0 0.0
    %3844 = vmatpush1.msra.mxu0 0.0
    %3845 = vmatprep.subr.mxu0 0.0
    %3846 = vmatpush1.msra.mxu0 0.0
    %3847 = vmatprep.subr.mxu0 0.0
    %3848 = vmatpush1.msra.mxu0 0.0
    %3849 = vmatprep.mubr.f32.mxu0 0.0
    %3850 = vmatmul.mubr.f32.gmra.mrb[0].mxu0 %v3200
    %v3851 = vpop.f32.mrb[0].mxu0
    %v3852 = vadd.f32 0.0, %v3851
    %v3853 = vpop.f32.mrb[0].mxu0
    %3854 = vmatprep.mubr.f32.mxu0 0.0
    %3855 = vmatmul.mubr.f32.gmra.mrb[0].mxu0 %v3201
    %v3856 = vpop.f32.mrb[0].mxu0
    %v3857 = vadd.f32 0.0, %v3856
    %v3858 = vpop.f32.mrb[0].mxu0
    %3859 = vmatprep.mubr.f32.mxu0 0.0
    %3860 = vmatmul.mubr.f32.gmra.mrb[0].mxu0 %v3202
    %v3861 = vpop.f32.mrb[0].mxu0
    %v3862 = vadd.f32 0.0, %v3861
    %v3863 = vpop.f32.mrb[0].mxu0
    %3864 = vmatprep.mubr.f32.mxu0 0.0
    %3865 = vmatmul.mubr.f32.gmra.mrb[0].mxu0 %v3203
    %v3866 = vpop.f32.mrb[0].mxu0
    %v3867 = vadd.f32 0.0, %v3866
    %v3868 = vpop.f32.mrb[0].mxu0
    %3869 = vdwg.mxu0
    %v3871 = vsel %vm747, %v3852, 0
    %v3874 = vsel %vm747, %v3857, 0
    %v3877 = vsel %vm747, %v3862, 0
    %v3880 = vsel %vm747, %v3867, 0
    %3882 = vmatprep.subr.mxu0 0.0
    %3883 = vmatpush1.msra.mxu0 %v3216
    %3884 = vmatprep.subr.mxu0 0.0
    %3885 = vmatpush1.msra.mxu0 %v3217
    %3886 = vmatprep.subr.mxu0 0.0
    %3887 = vmatpush1.msra.mxu0 %v3218
    %3888 = vmatprep.subr.mxu0 0.0
    %3889 = vmatpush1.msra.mxu0 %v3219
    %3890 = vmatprep.subr.mxu0 0.0
    %3891 = vmatpush1.msra.mxu0 0.0
    %3892 = vmatprep.subr.mxu0 0.0
    %3893 = vmatpush1.msra.mxu0 0.0
    %3894 = vmatprep.subr.mxu0 0.0
    %3895 = vmatpush1.msra.mxu0 0.0
    %3896 = vmatprep.subr.mxu0 0.0
    %3897 = vmatpush1.msra.mxu0 0.0
    %3898 = vmatprep.subr.mxu0 0.0
    %3899 = vmatpush1.msra.mxu0 0.0
    %3900 = vmatprep.subr.mxu0 0.0
    %3901 = vmatpush1.msra.mxu0 0.0
    %3902 = vmatprep.subr.mxu0 0.0
    %3903 = vmatpush1.msra.mxu0 0.0
    %3904 = vmatprep.subr.mxu0 0.0
    %3905 = vmatpush1.msra.mxu0 0.0
    %3906 = vmatprep.subr.mxu0 0.0
    %3907 = vmatpush1.msra.mxu0 0.0
    %3908 = vmatprep.subr.mxu0 0.0
    %3909 = vmatpush1.msra.mxu0 0.0
    %3910 = vmatprep.subr.mxu0 0.0
    %3911 = vmatpush1.msra.mxu0 0.0
    %3912 = vmatprep.subr.mxu0 0.0
    %3913 = vmatpush1.msra.mxu0 0.0
    %3914 = vmatprep.subr.mxu0 0.0
    %3915 = vmatpush1.msra.mxu0 0.0
    %3916 = vmatprep.subr.mxu0 0.0
    %3917 = vmatpush1.msra.mxu0 0.0
    %3918 = vmatprep.subr.mxu0 0.0
    %3919 = vmatpush1.msra.mxu0 0.0
    %3920 = vmatprep.subr.mxu0 0.0
    %3921 = vmatpush1.msra.mxu0 0.0
    %3922 = vmatprep.subr.mxu0 0.0
    %3923 = vmatpush1.msra.mxu0 0.0
    %3924 = vmatprep.subr.mxu0 0.0
    %3925 = vmatpush1.msra.mxu0 0.0
    %3926 = vmatprep.subr.mxu0 0.0
    %3927 = vmatpush1.msra.mxu0 0.0
    %3928 = vmatprep.subr.mxu0 0.0
    %3929 = vmatpush1.msra.mxu0 0.0
    %3930 = vmatprep.subr.mxu0 0.0
    %3931 = vmatpush1.msra.mxu0 0.0
    %3932 = vmatprep.subr.mxu0 0.0
    %3933 = vmatpush1.msra.mxu0 0.0
    %3934 = vmatprep.subr.mxu0 0.0
    %3935 = vmatpush1.msra.mxu0 0.0
    %3936 = vmatprep.subr.mxu0 0.0
    %3937 = vmatpush1.msra.mxu0 0.0
    %3938 = vmatprep.subr.mxu0 0.0
    %3939 = vmatpush1.msra.mxu0 0.0
    %3940 = vmatprep.subr.mxu0 0.0
    %3941 = vmatpush1.msra.mxu0 0.0
    %3942 = vmatprep.subr.mxu0 0.0
    %3943 = vmatpush1.msra.mxu0 0.0
    %3944 = vmatprep.subr.mxu0 0.0
    %3945 = vmatpush1.msra.mxu0 0.0
    %3946 = vmatprep.mubr.f32.mxu0 0.0
    %3947 = vmatmul.mubr.f32.gmra.mrb[0].mxu0 %v3871
    %v3948 = vpop.f32.mrb[0].mxu0
    %v3949 = vadd.f32 0.0, %v3948
    %v3950 = vpop.f32.mrb[0].mxu0
    %3951 = vmatprep.mubr.f32.mxu0 0.0
    %3952 = vmatmul.mubr.f32.gmra.mrb[0].mxu0 %v3874
    %v3953 = vpop.f32.mrb[0].mxu0
    %v3954 = vadd.f32 0.0, %v3953
    %v3955 = vpop.f32.mrb[0].mxu0
    %3956 = vmatprep.mubr.f32.mxu0 0.0
    %3957 = vmatmul.mubr.f32.gmra.mrb[0].mxu0 %v3877
    %v3958 = vpop.f32.mrb[0].mxu0
    %v3959 = vadd.f32 0.0, %v3958
    %v3960 = vpop.f32.mrb[0].mxu0
    %3961 = vmatprep.mubr.f32.mxu0 0.0
    %3962 = vmatmul.mubr.f32.gmra.mrb[0].mxu0 %v3880
    %v3963 = vpop.f32.mrb[0].mxu0
    %v3964 = vadd.f32 0.0, %v3963
    %v3965 = vpop.f32.mrb[0].mxu0
    %3966 = vdwg.mxu0
    %v3967 = vadd.f32 %v3781, %v3949
    %v3968 = vadd.f32 %v3782, %v3954
    %v3969 = vadd.f32 %v3783, %v3959
    %v3970 = vadd.f32 %v3784, %v3964
    %v3971 = vld [vmem:[#allocation25] sm:$0x1]
    %v3972 = vld [vmem:[#allocation26] sm:$0x1]
    %v3973 = vld [vmem:[#allocation28] sm:$0x1]
    %v3974 = vld [vmem:[#allocation29] sm:$0x1]
    %v3975 = vld [vmem:[#allocation31] sm:$0xff]
    %v3976 = vld [vmem:[#allocation31 + $0x8] sm:$0xff]
    %v3977 = vld [vmem:[#allocation31 + $0x10] sm:$0xff]
    %v3978 = vld [vmem:[#allocation31 + $0x18] sm:$0xff]
    %v3979 = vld [vmem:[#allocation32] sm:$0x1]
    %v3980 = vld [vmem:[%s55] sm:$0xff]
    %v3981 = vld [vmem:[%s55 + $0x8] sm:$0xff]
    %v3982 = vld [vmem:[%s55 + $0x10] sm:$0xff]
    %v3983 = vld [vmem:[%s55 + $0x18] sm:$0xff]
    %v3984 = vld [vmem:[#allocation34] sm:$0x1]
    %v3985 = vld [vmem:[#allocation35] sm:$0xff]
    %v3986 = vld [vmem:[#allocation35 + $0x8] sm:$0xff]
    %v3987 = vld [vmem:[#allocation35 + $0x10] sm:$0xff]
    %v3988 = vld [vmem:[#allocation35 + $0x18] sm:$0xff]
    %v3989 = vld [vmem:[#allocation37] sm:$0x1]
    %v3990 = vld [vmem:[#allocation38] sm:$0xff]
    %v3991 = vld [vmem:[#allocation38 + $0x8] sm:$0xff]
    %v3992 = vld [vmem:[#allocation38 + $0x10] sm:$0xff]
    %v3993 = vld [vmem:[#allocation38 + $0x18] sm:$0xff]
    %v3994 = vld [vmem:[#allocation40] sm:$0x1]
    %v3995 = vld [vmem:[#allocation41] sm:$0xff]
    %v3996 = vld [vmem:[#allocation41 + $0x8] sm:$0xff]
    %v3997 = vld [vmem:[#allocation41 + $0x10] sm:$0xff]
    %v3998 = vld [vmem:[#allocation41 + $0x18] sm:$0xff]
    %v3999 = vld [vmem:[#allocation43] sm:$0x1]
    %v4000 = vld [vmem:[%s71] sm:$0xff]
    %v4001 = vld [vmem:[%s71 + $0x8] sm:$0xff]
    %v4002 = vld [vmem:[%s71 + $0x10] sm:$0xff]
    %v4003 = vld [vmem:[%s71 + $0x18] sm:$0xff]
    %v4004 = vld [vmem:[%s71 + $0x20] sm:$0xff]
    %v4005 = vld [vmem:[%s71 + $0x28] sm:$0xff]
    %v4006 = vld [vmem:[%s71 + $0x30] sm:$0xff]
    %v4007 = vld [vmem:[%s71 + $0x38] sm:$0xff]
    %v4008 = vld [vmem:[%s73] sm:$0x1]
    %v4009 = vsel %vm747, %v3967, 0.0
    %4010 = vadd.xlane.f32.xlu0 %v4009
    %v4011 = vpop.xlane.xlu0 %4010
    %v4012 = vsel %vm747, %v3968, 0.0
    %4013 = vadd.xlane.f32.xlu0 %v4012
    %v4014 = vpop.xlane.xlu0 %4013
    %v4015 = vsel %vm747, %v3969, 0.0
    %4016 = vadd.xlane.f32.xlu0 %v4015
    %v4017 = vpop.xlane.xlu0 %4016
    %v4018 = vsel %vm747, %v3970, 0.0
    %4019 = vadd.xlane.f32.xlu0 %v4018
    %v4020 = vpop.xlane.xlu0 %4019
    %v4021 = vmul.f32 %v4011, %v796
    %v4022 = vmul.f32 %v4014, %v796
    %v4023 = vmul.f32 %v4017, %v796
    %v4024 = vmul.f32 %v4020, %v796
    %v4025 = vsub.f32 %v3967, %v4021
    %v4026 = vsub.f32 %v3968, %v4022
    %v4027 = vsub.f32 %v3969, %v4023
    %v4028 = vsub.f32 %v3970, %v4024
    %v4029 = vmul.f32 %v4025, %v4025
    %v4030 = vmul.f32 %v4026, %v4026
    %v4031 = vmul.f32 %v4027, %v4027
    %v4032 = vmul.f32 %v4028, %v4028
    %v4033 = vsel %vm747, %v4029, 0.0
    %4034 = vadd.xlane.f32.xlu0 %v4033
    %v4035 = vpop.xlane.xlu0 %4034
    %v4036 = vsel %vm747, %v4030, 0.0
    %4037 = vadd.xlane.f32.xlu0 %v4036
    %v4038 = vpop.xlane.xlu0 %4037
    %v4039 = vsel %vm747, %v4031, 0.0
    %4040 = vadd.xlane.f32.xlu0 %v4039
    %v4041 = vpop.xlane.xlu0 %4040
    %v4042 = vsel %vm747, %v4032, 0.0
    %4043 = vadd.xlane.f32.xlu0 %v4042
    %v4044 = vpop.xlane.xlu0 %4043
    %v4045 = vmul.f32 %v4035, %v796
    %v4046 = vmul.f32 %v4038, %v796
    %v4047 = vmul.f32 %v4041, %v796
    %v4048 = vmul.f32 %v4044, %v796
    %v4049 = vadd.f32 %v4045, 1e-06
    %v4050 = vadd.f32 %v4046, 1e-06
    %v4051 = vadd.f32 %v4047, 1e-06
    %v4052 = vadd.f32 %v4048, 1e-06
    %v4053 = vrsqrt.pop %v4049
    %v4054 = vrsqrt.pop %v4050
    %v4055 = vrsqrt.pop %v4051
    %v4056 = vrsqrt.pop %v4052
    %v4057 = vmul.f32 %v4025, %v4053
    %v4058 = vmul.f32 %v4026, %v4054
    %v4059 = vmul.f32 %v4027, %v4055
    %v4060 = vmul.f32 %v4028, %v4056
    %v4062 = vlaneseq
    %v4063 = vshrl.u32 %v4062, 7
    %v4064 = vsub.s32 0, %v4063
    %v4065 = vrot.slane %v3971, %v4064
    %v4067 = vmul.f32 %v4057, %v4065
    %v4068 = vmul.f32 %v4058, %v4065
    %v4069 = vmul.f32 %v4059, %v4065
    %v4070 = vmul.f32 %v4060, %v4065
    %v4072 = vlaneseq
    %v4073 = vshrl.u32 %v4072, 7
    %v4074 = vsub.s32 0, %v4073
    %v4075 = vrot.slane %v3972, %v4074
    %v4077 = vadd.f32 %v4067, %v4075
    %v4078 = vadd.f32 %v4068, %v4075
    %v4079 = vadd.f32 %v4069, %v4075
    %v4080 = vadd.f32 %v4070, %v4075
    %v4082 = vlaneseq
    %v4083 = vshrl.u32 %v4082, 7
    %v4084 = vsub.s32 0, %v4083
    %v4085 = vrot.slane %v3979, %v4084
    %v4088 = vsel %vm747, %v4077, 0
    %v4091 = vsel %vm747, %v4078, 0
    %v4094 = vsel %vm747, %v4079, 0
    %v4097 = vsel %vm747, %v4080, 0
    %4099 = vmatprep.subr.mxu0 0.0
    %4100 = vmatpush1.msra.mxu0 %v3975
    %4101 = vmatprep.subr.mxu0 0.0
    %4102 = vmatpush1.msra.mxu0 %v3976
    %4103 = vmatprep.subr.mxu0 0.0
    %4104 = vmatpush1.msra.mxu0 %v3977
    %4105 = vmatprep.subr.mxu0 0.0
    %4106 = vmatpush1.msra.mxu0 %v3978
    %4107 = vmatprep.subr.mxu0 0.0
    %4108 = vmatpush1.msra.mxu0 0.0
    %4109 = vmatprep.subr.mxu0 0.0
    %4110 = vmatpush1.msra.mxu0 0.0
    %4111 = vmatprep.subr.mxu0 0.0
    %4112 = vmatpush1.msra.mxu0 0.0
    %4113 = vmatprep.subr.mxu0 0.0
    %4114 = vmatpush1.msra.mxu0 0.0
    %4115 = vmatprep.subr.mxu0 0.0
    %4116 = vmatpush1.msra.mxu0 0.0
    %4117 = vmatprep.subr.mxu0 0.0
    %4118 = vmatpush1.msra.mxu0 0.0
    %4119 = vmatprep.subr.mxu0 0.0
    %4120 = vmatpush1.msra.mxu0 0.0
    %4121 = vmatprep.subr.mxu0 0.0
    %4122 = vmatpush1.msra.mxu0 0.0
    %4123 = vmatprep.subr.mxu0 0.0
    %4124 = vmatpush1.msra.mxu0 0.0
    %4125 = vmatprep.subr.mxu0 0.0
    %4126 = vmatpush1.msra.mxu0 0.0
    %4127 = vmatprep.subr.mxu0 0.0
    %4128 = vmatpush1.msra.mxu0 0.0
    %4129 = vmatprep.subr.mxu0 0.0
    %4130 = vmatpush1.msra.mxu0 0.0
    %4131 = vmatprep.subr.mxu0 0.0
    %4132 = vmatpush1.msra.mxu0 0.0
    %4133 = vmatprep.subr.mxu0 0.0
    %4134 = vmatpush1.msra.mxu0 0.0
    %4135 = vmatprep.subr.mxu0 0.0
    %4136 = vmatpush1.msra.mxu0 0.0
    %4137 = vmatprep.subr.mxu0 0.0
    %4138 = vmatpush1.msra.mxu0 0.0
    %4139 = vmatprep.subr.mxu0 0.0
    %4140 = vmatpush1.msra.mxu0 0.0
    %4141 = vmatprep.subr.mxu0 0.0
    %4142 = vmatpush1.msra.mxu0 0.0
    %4143 = vmatprep.subr.mxu0 0.0
    %4144 = vmatpush1.msra.mxu0 0.0
    %4145 = vmatprep.subr.mxu0 0.0
    %4146 = vmatpush1.msra.mxu0 0.0
    %4147 = vmatprep.subr.mxu0 0.0
    %4148 = vmatpush1.msra.mxu0 0.0
    %4149 = vmatprep.subr.mxu0 0.0
    %4150 = vmatpush1.msra.mxu0 0.0
    %4151 = vmatprep.subr.mxu0 0.0
    %4152 = vmatpush1.msra.mxu0 0.0
    %4153 = vmatprep.subr.mxu0 0.0
    %4154 = vmatpush1.msra.mxu0 0.0
    %4155 = vmatprep.subr.mxu0 0.0
    %4156 = vmatpush1.msra.mxu0 0.0
    %4157 = vmatprep.subr.mxu0 0.0
    %4158 = vmatpush1.msra.mxu0 0.0
    %4159 = vmatprep.subr.mxu0 0.0
    %4160 = vmatpush1.msra.mxu0 0.0
    %4161 = vmatprep.subr.mxu0 0.0
    %4162 = vmatpush1.msra.mxu0 0.0
    %4163 = vmatprep.mubr.f32.mxu0 0.0
    %4164 = vmatmul.mubr.f32.gmra.mrb[0].mxu0 %v4088
    %v4165 = vpop.f32.mrb[0].mxu0
    %v4166 = vadd.f32 %v4085, %v4165
    %v4167 = vpop.f32.mrb[0].mxu0
    %4168 = vmatprep.mubr.f32.mxu0 0.0
    %4169 = vmatmul.mubr.f32.gmra.mrb[0].mxu0 %v4091
    %v4170 = vpop.f32.mrb[0].mxu0
    %v4171 = vadd.f32 %v4085, %v4170
    %v4172 = vpop.f32.mrb[0].mxu0
    %4173 = vmatprep.mubr.f32.mxu0 0.0
    %4174 = vmatmul.mubr.f32.gmra.mrb[0].mxu0 %v4094
    %v4175 = vpop.f32.mrb[0].mxu0
    %v4176 = vadd.f32 %v4085, %v4175
    %v4177 = vpop.f32.mrb[0].mxu0
    %4178 = vmatprep.mubr.f32.mxu0 0.0
    %4179 = vmatmul.mubr.f32.gmra.mrb[0].mxu0 %v4097
    %v4180 = vpop.f32.mrb[0].mxu0
    %v4181 = vadd.f32 %v4085, %v4180
    %v4182 = vpop.f32.mrb[0].mxu0
    %4183 = vdwg.mxu0
    %v4185 = vlaneseq
    %v4186 = vshrl.u32 %v4185, 7
    %v4187 = vsub.s32 0, %v4186
    %v4188 = vrot.slane %v3984, %v4187
    %4190 = vmatprep.subr.mxu0 0.0
    %4191 = vmatpush1.msra.mxu0 %v3980
    %4192 = vmatprep.subr.mxu0 0.0
    %4193 = vmatpush1.msra.mxu0 %v3981
    %4194 = vmatprep.subr.mxu0 0.0
    %4195 = vmatpush1.msra.mxu0 %v3982
    %4196 = vmatprep.subr.mxu0 0.0
    %4197 = vmatpush1.msra.mxu0 %v3983
    %4198 = vmatprep.subr.mxu0 0.0
    %4199 = vmatpush1.msra.mxu0 0.0
    %4200 = vmatprep.subr.mxu0 0.0
    %4201 = vmatpush1.msra.mxu0 0.0
    %4202 = vmatprep.subr.mxu0 0.0
    %4203 = vmatpush1.msra.mxu0 0.0
    %4204 = vmatprep.subr.mxu0 0.0
    %4205 = vmatpush1.msra.mxu0 0.0
    %4206 = vmatprep.subr.mxu0 0.0
    %4207 = vmatpush1.msra.mxu0 0.0
    %4208 = vmatprep.subr.mxu0 0.0
    %4209 = vmatpush1.msra.mxu0 0.0
    %4210 = vmatprep.subr.mxu0 0.0
    %4211 = vmatpush1.msra.mxu0 0.0
    %4212 = vmatprep.subr.mxu0 0.0
    %4213 = vmatpush1.msra.mxu0 0.0
    %4214 = vmatprep.subr.mxu0 0.0
    %4215 = vmatpush1.msra.mxu0 0.0
    %4216 = vmatprep.subr.mxu0 0.0
    %4217 = vmatpush1.msra.mxu0 0.0
    %4218 = vmatprep.subr.mxu0 0.0
    %4219 = vmatpush1.msra.mxu0 0.0
    %4220 = vmatprep.subr.mxu0 0.0
    %4221 = vmatpush1.msra.mxu0 0.0
    %4222 = vmatprep.subr.mxu0 0.0
    %4223 = vmatpush1.msra.mxu0 0.0
    %4224 = vmatprep.subr.mxu0 0.0
    %4225 = vmatpush1.msra.mxu0 0.0
    %4226 = vmatprep.subr.mxu0 0.0
    %4227 = vmatpush1.msra.mxu0 0.0
    %4228 = vmatprep.subr.mxu0 0.0
    %4229 = vmatpush1.msra.mxu0 0.0
    %4230 = vmatprep.subr.mxu0 0.0
    %4231 = vmatpush1.msra.mxu0 0.0
    %4232 = vmatprep.subr.mxu0 0.0
    %4233 = vmatpush1.msra.mxu0 0.0
    %4234 = vmatprep.subr.mxu0 0.0
    %4235 = vmatpush1.msra.mxu0 0.0
    %4236 = vmatprep.subr.mxu0 0.0
    %4237 = vmatpush1.msra.mxu0 0.0
    %4238 = vmatprep.subr.mxu0 0.0
    %4239 = vmatpush1.msra.mxu0 0.0
    %4240 = vmatprep.subr.mxu0 0.0
    %4241 = vmatpush1.msra.mxu0 0.0
    %4242 = vmatprep.subr.mxu0 0.0
    %4243 = vmatpush1.msra.mxu0 0.0
    %4244 = vmatprep.subr.mxu0 0.0
    %4245 = vmatpush1.msra.mxu0 0.0
    %4246 = vmatprep.subr.mxu0 0.0
    %4247 = vmatpush1.msra.mxu0 0.0
    %4248 = vmatprep.subr.mxu0 0.0
    %4249 = vmatpush1.msra.mxu0 0.0
    %4250 = vmatprep.subr.mxu0 0.0
    %4251 = vmatpush1.msra.mxu0 0.0
    %4252 = vmatprep.subr.mxu0 0.0
    %4253 = vmatpush1.msra.mxu0 0.0
    %4254 = vmatprep.mubr.f32.mxu0 0.0
    %4255 = vmatmul.mubr.f32.gmra.mrb[0].mxu0 %v4088
    %v4256 = vpop.f32.mrb[0].mxu0
    %v4257 = vadd.f32 %v4188, %v4256
    %v4258 = vpop.f32.mrb[0].mxu0
    %4259 = vmatprep.mubr.f32.mxu0 0.0
    %4260 = vmatmul.mubr.f32.gmra.mrb[0].mxu0 %v4091
    %v4261 = vpop.f32.mrb[0].mxu0
    %v4262 = vadd.f32 %v4188, %v4261
    %v4263 = vpop.f32.mrb[0].mxu0
    %4264 = vmatprep.mubr.f32.mxu0 0.0
    %4265 = vmatmul.mubr.f32.gmra.mrb[0].mxu0 %v4094
    %v4266 = vpop.f32.mrb[0].mxu0
    %v4267 = vadd.f32 %v4188, %v4266
    %v4268 = vpop.f32.mrb[0].mxu0
    %4269 = vmatprep.mubr.f32.mxu0 0.0
    %4270 = vmatmul.mubr.f32.gmra.mrb[0].mxu0 %v4097
    %v4271 = vpop.f32.mrb[0].mxu0
    %v4272 = vadd.f32 %v4188, %v4271
    %v4273 = vpop.f32.mrb[0].mxu0
    %4274 = vdwg.mxu0
    %v4276 = vlaneseq
    %v4277 = vshrl.u32 %v4276, 7
    %v4278 = vsub.s32 0, %v4277
    %v4279 = vrot.slane %v3989, %v4278
    %4281 = vmatprep.subr.mxu0 0.0
    %4282 = vmatpush1.msra.mxu0 %v3985
    %4283 = vmatprep.subr.mxu0 0.0
    %4284 = vmatpush1.msra.mxu0 %v3986
    %4285 = vmatprep.subr.mxu0 0.0
    %4286 = vmatpush1.msra.mxu0 %v3987
    %4287 = vmatprep.subr.mxu0 0.0
    %4288 = vmatpush1.msra.mxu0 %v3988
    %4289 = vmatprep.subr.mxu0 0.0
    %4290 = vmatpush1.msra.mxu0 0.0
    %4291 = vmatprep.subr.mxu0 0.0
    %4292 = vmatpush1.msra.mxu0 0.0
    %4293 = vmatprep.subr.mxu0 0.0
    %4294 = vmatpush1.msra.mxu0 0.0
    %4295 = vmatprep.subr.mxu0 0.0
    %4296 = vmatpush1.msra.mxu0 0.0
    %4297 = vmatprep.subr.mxu0 0.0
    %4298 = vmatpush1.msra.mxu0 0.0
    %4299 = vmatprep.subr.mxu0 0.0
    %4300 = vmatpush1.msra.mxu0 0.0
    %4301 = vmatprep.subr.mxu0 0.0
    %4302 = vmatpush1.msra.mxu0 0.0
    %4303 = vmatprep.subr.mxu0 0.0
    %4304 = vmatpush1.msra.mxu0 0.0
    %4305 = vmatprep.subr.mxu0 0.0
    %4306 = vmatpush1.msra.mxu0 0.0
    %4307 = vmatprep.subr.mxu0 0.0
    %4308 = vmatpush1.msra.mxu0 0.0
    %4309 = vmatprep.subr.mxu0 0.0
    %4310 = vmatpush1.msra.mxu0 0.0
    %4311 = vmatprep.subr.mxu0 0.0
    %4312 = vmatpush1.msra.mxu0 0.0
    %4313 = vmatprep.subr.mxu0 0.0
    %4314 = vmatpush1.msra.mxu0 0.0
    %4315 = vmatprep.subr.mxu0 0.0
    %4316 = vmatpush1.msra.mxu0 0.0
    %4317 = vmatprep.subr.mxu0 0.0
    %4318 = vmatpush1.msra.mxu0 0.0
    %4319 = vmatprep.subr.mxu0 0.0
    %4320 = vmatpush1.msra.mxu0 0.0
    %4321 = vmatprep.subr.mxu0 0.0
    %4322 = vmatpush1.msra.mxu0 0.0
    %4323 = vmatprep.subr.mxu0 0.0
    %4324 = vmatpush1.msra.mxu0 0.0
    %4325 = vmatprep.subr.mxu0 0.0
    %4326 = vmatpush1.msra.mxu0 0.0
    %4327 = vmatprep.subr.mxu0 0.0
    %4328 = vmatpush1.msra.mxu0 0.0
    %4329 = vmatprep.subr.mxu0 0.0
    %4330 = vmatpush1.msra.mxu0 0.0
    %4331 = vmatprep.subr.mxu0 0.0
    %4332 = vmatpush1.msra.mxu0 0.0
    %4333 = vmatprep.subr.mxu0 0.0
    %4334 = vmatpush1.msra.mxu0 0.0
    %4335 = vmatprep.subr.mxu0 0.0
    %4336 = vmatpush1.msra.mxu0 0.0
    %4337 = vmatprep.subr.mxu0 0.0
    %4338 = vmatpush1.msra.mxu0 0.0
    %4339 = vmatprep.subr.mxu0 0.0
    %4340 = vmatpush1.msra.mxu0 0.0
    %4341 = vmatprep.subr.mxu0 0.0
    %4342 = vmatpush1.msra.mxu0 0.0
    %4343 = vmatprep.subr.mxu0 0.0
    %4344 = vmatpush1.msra.mxu0 0.0
    %4345 = vmatprep.mubr.f32.mxu0 0.0
    %4346 = vmatmul.mubr.f32.gmra.mrb[0].mxu0 %v4088
    %v4347 = vpop.f32.mrb[0].mxu0
    %v4348 = vadd.f32 %v4279, %v4347
    %v4349 = vpop.f32.mrb[0].mxu0
    %4350 = vmatprep.mubr.f32.mxu0 0.0
    %4351 = vmatmul.mubr.f32.gmra.mrb[0].mxu0 %v4091
    %v4352 = vpop.f32.mrb[0].mxu0
    %v4353 = vadd.f32 %v4279, %v4352
    %v4354 = vpop.f32.mrb[0].mxu0
    %4355 = vmatprep.mubr.f32.mxu0 0.0
    %4356 = vmatmul.mubr.f32.gmra.mrb[0].mxu0 %v4094
    %v4357 = vpop.f32.mrb[0].mxu0
    %v4358 = vadd.f32 %v4279, %v4357
    %v4359 = vpop.f32.mrb[0].mxu0
    %4360 = vmatprep.mubr.f32.mxu0 0.0
    %4361 = vmatmul.mubr.f32.gmra.mrb[0].mxu0 %v4097
    %v4362 = vpop.f32.mrb[0].mxu0
    %v4363 = vadd.f32 %v4279, %v4362
    %v4364 = vpop.f32.mrb[0].mxu0
    %4365 = vdwg.mxu0
    %v4366 = vmul.f32 %v4166, %v4257
    %v4367 = vmul.f32 %v4171, %v4262
    %v4369 = vsel %vm747, %v4366, 0
    %v4372 = vsel %vm747, %v4367, 0
    %4374 = vmatprep.subr.mxu0 0.0
    %4375 = vmatpush1.msra.mxu0 %v705
    %4376 = vmatprep.subr.mxu0 0.0
    %4377 = vmatpush1.msra.mxu0 %v706
    %4378 = vmatprep.subr.mxu0 0.0
    %4379 = vmatpush1.msra.mxu0 %v707
    %4380 = vmatprep.subr.mxu0 0.0
    %4381 = vmatpush1.msra.mxu0 %v708
    %4382 = vmatprep.subr.mxu0 0.0
    %4383 = vmatpush1.msra.mxu0 0.0
    %4384 = vmatprep.subr.mxu0 0.0
    %4385 = vmatpush1.msra.mxu0 0.0
    %4386 = vmatprep.subr.mxu0 0.0
    %4387 = vmatpush1.msra.mxu0 0.0
    %4388 = vmatprep.subr.mxu0 0.0
    %4389 = vmatpush1.msra.mxu0 0.0
    %4390 = vmatprep.subr.mxu0 0.0
    %4391 = vmatpush1.msra.mxu0 0.0
    %4392 = vmatprep.subr.mxu0 0.0
    %4393 = vmatpush1.msra.mxu0 0.0
    %4394 = vmatprep.subr.mxu0 0.0
    %4395 = vmatpush1.msra.mxu0 0.0
    %4396 = vmatprep.subr.mxu0 0.0
    %4397 = vmatpush1.msra.mxu0 0.0
    %4398 = vmatprep.subr.mxu0 0.0
    %4399 = vmatpush1.msra.mxu0 0.0
    %4400 = vmatprep.subr.mxu0 0.0
    %4401 = vmatpush1.msra.mxu0 0.0
    %4402 = vmatprep.subr.mxu0 0.0
    %4403 = vmatpush1.msra.mxu0 0.0
    %4404 = vmatprep.subr.mxu0 0.0
    %4405 = vmatpush1.msra.mxu0 0.0
    %4406 = vmatprep.subr.mxu0 0.0
    %4407 = vmatpush1.msra.mxu0 0.0
    %4408 = vmatprep.subr.mxu0 0.0
    %4409 = vmatpush1.msra.mxu0 0.0
    %4410 = vmatprep.subr.mxu0 0.0
    %4411 = vmatpush1.msra.mxu0 0.0
    %4412 = vmatprep.subr.mxu0 0.0
    %4413 = vmatpush1.msra.mxu0 0.0
    %4414 = vmatprep.subr.mxu0 0.0
    %4415 = vmatpush1.msra.mxu0 0.0
    %4416 = vmatprep.subr.mxu0 0.0
    %4417 = vmatpush1.msra.mxu0 0.0
    %4418 = vmatprep.subr.mxu0 0.0
    %4419 = vmatpush1.msra.mxu0 0.0
    %4420 = vmatprep.subr.mxu0 0.0
    %4421 = vmatpush1.msra.mxu0 0.0
    %4422 = vmatprep.subr.mxu0 0.0
    %4423 = vmatpush1.msra.mxu0 0.0
    %4424 = vmatprep.subr.mxu0 0.0
    %4425 = vmatpush1.msra.mxu0 0.0
    %4426 = vmatprep.subr.mxu0 0.0
    %4427 = vmatpush1.msra.mxu0 0.0
    %4428 = vmatprep.subr.mxu0 0.0
    %4429 = vmatpush1.msra.mxu0 0.0
    %4430 = vmatprep.subr.mxu0 0.0
    %4431 = vmatpush1.msra.mxu0 0.0
    %4432 = vmatprep.subr.mxu0 0.0
    %4433 = vmatpush1.msra.mxu0 0.0
    %4434 = vmatprep.subr.mxu0 0.0
    %4435 = vmatpush1.msra.mxu0 0.0
    %4436 = vmatprep.subr.mxu0 0.0
    %4437 = vmatpush1.msra.mxu0 0.0
    %4438 = vmatprep.mubr.f32.mxu0 0.0
    %4439 = vmatmul.mubr.f32.gmra.mrb[0].mxu0 %v4369
    %v4440 = vpop.f32.mrb[0].mxu0
    %v4441 = vadd.f32 0.0, %v4440
    %v4442 = vpop.f32.mrb[0].mxu0
    %4443 = vmatprep.mubr.f32.mxu0 0.0
    %4444 = vmatmul.mubr.f32.gmra.mrb[0].mxu0 %v4372
    %v4445 = vpop.f32.mrb[0].mxu0
    %v4446 = vadd.f32 0.0, %v4445
    %v4447 = vpop.f32.mrb[0].mxu0
    %4448 = vdwg.mxu0
    %v4449 = vmul.f32 %v4166, %v4267
    %v4450 = vmul.f32 %v4171, %v4272
    %v4452 = vsel %vm747, %v4449, 0
    %v4455 = vsel %vm747, %v4450, 0
    %4457 = vmatprep.subr.mxu0 0.0
    %4458 = vmatpush1.msra.mxu0 %v705
    %4459 = vmatprep.subr.mxu0 0.0
    %4460 = vmatpush1.msra.mxu0 %v706
    %4461 = vmatprep.subr.mxu0 0.0
    %4462 = vmatpush1.msra.mxu0 %v707
    %4463 = vmatprep.subr.mxu0 0.0
    %4464 = vmatpush1.msra.mxu0 %v708
    %4465 = vmatprep.subr.mxu0 0.0
    %4466 = vmatpush1.msra.mxu0 0.0
    %4467 = vmatprep.subr.mxu0 0.0
    %4468 = vmatpush1.msra.mxu0 0.0
    %4469 = vmatprep.subr.mxu0 0.0
    %4470 = vmatpush1.msra.mxu0 0.0
    %4471 = vmatprep.subr.mxu0 0.0
    %4472 = vmatpush1.msra.mxu0 0.0
    %4473 = vmatprep.subr.mxu0 0.0
    %4474 = vmatpush1.msra.mxu0 0.0
    %4475 = vmatprep.subr.mxu0 0.0
    %4476 = vmatpush1.msra.mxu0 0.0
    %4477 = vmatprep.subr.mxu0 0.0
    %4478 = vmatpush1.msra.mxu0 0.0
    %4479 = vmatprep.subr.mxu0 0.0
    %4480 = vmatpush1.msra.mxu0 0.0
    %4481 = vmatprep.subr.mxu0 0.0
    %4482 = vmatpush1.msra.mxu0 0.0
    %4483 = vmatprep.subr.mxu0 0.0
    %4484 = vmatpush1.msra.mxu0 0.0
    %4485 = vmatprep.subr.mxu0 0.0
    %4486 = vmatpush1.msra.mxu0 0.0
    %4487 = vmatprep.subr.mxu0 0.0
    %4488 = vmatpush1.msra.mxu0 0.0
    %4489 = vmatprep.subr.mxu0 0.0
    %4490 = vmatpush1.msra.mxu0 0.0
    %4491 = vmatprep.subr.mxu0 0.0
    %4492 = vmatpush1.msra.mxu0 0.0
    %4493 = vmatprep.subr.mxu0 0.0
    %4494 = vmatpush1.msra.mxu0 0.0
    %4495 = vmatprep.subr.mxu0 0.0
    %4496 = vmatpush1.msra.mxu0 0.0
    %4497 = vmatprep.subr.mxu0 0.0
    %4498 = vmatpush1.msra.mxu0 0.0
    %4499 = vmatprep.subr.mxu0 0.0
    %4500 = vmatpush1.msra.mxu0 0.0
    %4501 = vmatprep.subr.mxu0 0.0
    %4502 = vmatpush1.msra.mxu0 0.0
    %4503 = vmatprep.subr.mxu0 0.0
    %4504 = vmatpush1.msra.mxu0 0.0
    %4505 = vmatprep.subr.mxu0 0.0
    %4506 = vmatpush1.msra.mxu0 0.0
    %4507 = vmatprep.subr.mxu0 0.0
    %4508 = vmatpush1.msra.mxu0 0.0
    %4509 = vmatprep.subr.mxu0 0.0
    %4510 = vmatpush1.msra.mxu0 0.0
    %4511 = vmatprep.subr.mxu0 0.0
    %4512 = vmatpush1.msra.mxu0 0.0
    %4513 = vmatprep.subr.mxu0 0.0
    %4514 = vmatpush1.msra.mxu0 0.0
    %4515 = vmatprep.subr.mxu0 0.0
    %4516 = vmatpush1.msra.mxu0 0.0
    %4517 = vmatprep.subr.mxu0 0.0
    %4518 = vmatpush1.msra.mxu0 0.0
    %4519 = vmatprep.subr.mxu0 0.0
    %4520 = vmatpush1.msra.mxu0 0.0
    %4521 = vmatprep.mubr.f32.mxu0 0.0
    %4522 = vmatmul.mubr.f32.gmra.mrb[0].mxu0 %v4452
    %v4523 = vpop.f32.mrb[0].mxu0
    %v4524 = vadd.f32 0.0, %v4523
    %v4525 = vpop.f32.mrb[0].mxu0
    %4526 = vmatprep.mubr.f32.mxu0 0.0
    %4527 = vmatmul.mubr.f32.gmra.mrb[0].mxu0 %v4455
    %v4528 = vpop.f32.mrb[0].mxu0
    %v4529 = vadd.f32 0.0, %v4528
    %v4530 = vpop.f32.mrb[0].mxu0
    %4531 = vdwg.mxu0
    %v4532 = vmul.f32 %v4176, %v4257
    %v4533 = vmul.f32 %v4181, %v4262
    %v4535 = vsel %vm747, %v4532, 0
    %v4538 = vsel %vm747, %v4533, 0
    %4540 = vmatprep.subr.mxu0 0.0
    %4541 = vmatpush1.msra.mxu0 %v705
    %4542 = vmatprep.subr.mxu0 0.0
    %4543 = vmatpush1.msra.mxu0 %v706
    %4544 = vmatprep.subr.mxu0 0.0
    %4545 = vmatpush1.msra.mxu0 %v707
    %4546 = vmatprep.subr.mxu0 0.0
    %4547 = vmatpush1.msra.mxu0 %v708
    %4548 = vmatprep.subr.mxu0 0.0
    %4549 = vmatpush1.msra.mxu0 0.0
    %4550 = vmatprep.subr.mxu0 0.0
    %4551 = vmatpush1.msra.mxu0 0.0
    %4552 = vmatprep.subr.mxu0 0.0
    %4553 = vmatpush1.msra.mxu0 0.0
    %4554 = vmatprep.subr.mxu0 0.0
    %4555 = vmatpush1.msra.mxu0 0.0
    %4556 = vmatprep.subr.mxu0 0.0
    %4557 = vmatpush1.msra.mxu0 0.0
    %4558 = vmatprep.subr.mxu0 0.0
    %4559 = vmatpush1.msra.mxu0 0.0
    %4560 = vmatprep.subr.mxu0 0.0
    %4561 = vmatpush1.msra.mxu0 0.0
    %4562 = vmatprep.subr.mxu0 0.0
    %4563 = vmatpush1.msra.mxu0 0.0
    %4564 = vmatprep.subr.mxu0 0.0
    %4565 = vmatpush1.msra.mxu0 0.0
    %4566 = vmatprep.subr.mxu0 0.0
    %4567 = vmatpush1.msra.mxu0 0.0
    %4568 = vmatprep.subr.mxu0 0.0
    %4569 = vmatpush1.msra.mxu0 0.0
    %4570 = vmatprep.subr.mxu0 0.0
    %4571 = vmatpush1.msra.mxu0 0.0
    %4572 = vmatprep.subr.mxu0 0.0
    %4573 = vmatpush1.msra.mxu0 0.0
    %4574 = vmatprep.subr.mxu0 0.0
    %4575 = vmatpush1.msra.mxu0 0.0
    %4576 = vmatprep.subr.mxu0 0.0
    %4577 = vmatpush1.msra.mxu0 0.0
    %4578 = vmatprep.subr.mxu0 0.0
    %4579 = vmatpush1.msra.mxu0 0.0
    %4580 = vmatprep.subr.mxu0 0.0
    %4581 = vmatpush1.msra.mxu0 0.0
    %4582 = vmatprep.subr.mxu0 0.0
    %4583 = vmatpush1.msra.mxu0 0.0
    %4584 = vmatprep.subr.mxu0 0.0
    %4585 = vmatpush1.msra.mxu0 0.0
    %4586 = vmatprep.subr.mxu0 0.0
    %4587 = vmatpush1.msra.mxu0 0.0
    %4588 = vmatprep.subr.mxu0 0.0
    %4589 = vmatpush1.msra.mxu0 0.0
    %4590 = vmatprep.subr.mxu0 0.0
    %4591 = vmatpush1.msra.mxu0 0.0
    %4592 = vmatprep.subr.mxu0 0.0
    %4593 = vmatpush1.msra.mxu0 0.0
    %4594 = vmatprep.subr.mxu0 0.0
    %4595 = vmatpush1.msra.mxu0 0.0
    %4596 = vmatprep.subr.mxu0 0.0
    %4597 = vmatpush1.msra.mxu0 0.0
    %4598 = vmatprep.subr.mxu0 0.0
    %4599 = vmatpush1.msra.mxu0 0.0
    %4600 = vmatprep.subr.mxu0 0.0
    %4601 = vmatpush1.msra.mxu0 0.0
    %4602 = vmatprep.subr.mxu0 0.0
    %4603 = vmatpush1.msra.mxu0 0.0
    %4604 = vmatprep.mubr.f32.mxu0 0.0
    %4605 = vmatmul.mubr.f32.gmra.mrb[0].mxu0 %v4535
    %v4606 = vpop.f32.mrb[0].mxu0
    %v4607 = vadd.f32 0.0, %v4606
    %v4608 = vpop.f32.mrb[0].mxu0
    %4609 = vmatprep.mubr.f32.mxu0 0.0
    %4610 = vmatmul.mubr.f32.gmra.mrb[0].mxu0 %v4538
    %v4611 = vpop.f32.mrb[0].mxu0
    %v4612 = vadd.f32 0.0, %v4611
    %v4613 = vpop.f32.mrb[0].mxu0
    %4614 = vdwg.mxu0
    %v4615 = vmul.f32 %v4176, %v4267
    %v4616 = vmul.f32 %v4181, %v4272
    %v4618 = vsel %vm747, %v4615, 0
    %v4621 = vsel %vm747, %v4616, 0
    %4623 = vmatprep.subr.mxu0 0.0
    %4624 = vmatpush1.msra.mxu0 %v705
    %4625 = vmatprep.subr.mxu0 0.0
    %4626 = vmatpush1.msra.mxu0 %v706
    %4627 = vmatprep.subr.mxu0 0.0
    %4628 = vmatpush1.msra.mxu0 %v707
    %4629 = vmatprep.subr.mxu0 0.0
    %4630 = vmatpush1.msra.mxu0 %v708
    %4631 = vmatprep.subr.mxu0 0.0
    %4632 = vmatpush1.msra.mxu0 0.0
    %4633 = vmatprep.subr.mxu0 0.0
    %4634 = vmatpush1.msra.mxu0 0.0
    %4635 = vmatprep.subr.mxu0 0.0
    %4636 = vmatpush1.msra.mxu0 0.0
    %4637 = vmatprep.subr.mxu0 0.0
    %4638 = vmatpush1.msra.mxu0 0.0
    %4639 = vmatprep.subr.mxu0 0.0
    %4640 = vmatpush1.msra.mxu0 0.0
    %4641 = vmatprep.subr.mxu0 0.0
    %4642 = vmatpush1.msra.mxu0 0.0
    %4643 = vmatprep.subr.mxu0 0.0
    %4644 = vmatpush1.msra.mxu0 0.0
    %4645 = vmatprep.subr.mxu0 0.0
    %4646 = vmatpush1.msra.mxu0 0.0
    %4647 = vmatprep.subr.mxu0 0.0
    %4648 = vmatpush1.msra.mxu0 0.0
    %4649 = vmatprep.subr.mxu0 0.0
    %4650 = vmatpush1.msra.mxu0 0.0
    %4651 = vmatprep.subr.mxu0 0.0
    %4652 = vmatpush1.msra.mxu0 0.0
    %4653 = vmatprep.subr.mxu0 0.0
    %4654 = vmatpush1.msra.mxu0 0.0
    %4655 = vmatprep.subr.mxu0 0.0
    %4656 = vmatpush1.msra.mxu0 0.0
    %4657 = vmatprep.subr.mxu0 0.0
    %4658 = vmatpush1.msra.mxu0 0.0
    %4659 = vmatprep.subr.mxu0 0.0
    %4660 = vmatpush1.msra.mxu0 0.0
    %4661 = vmatprep.subr.mxu0 0.0
    %4662 = vmatpush1.msra.mxu0 0.0
    %4663 = vmatprep.subr.mxu0 0.0
    %4664 = vmatpush1.msra.mxu0 0.0
    %4665 = vmatprep.subr.mxu0 0.0
    %4666 = vmatpush1.msra.mxu0 0.0
    %4667 = vmatprep.subr.mxu0 0.0
    %4668 = vmatpush1.msra.mxu0 0.0
    %4669 = vmatprep.subr.mxu0 0.0
    %4670 = vmatpush1.msra.mxu0 0.0
    %4671 = vmatprep.subr.mxu0 0.0
    %4672 = vmatpush1.msra.mxu0 0.0
    %4673 = vmatprep.subr.mxu0 0.0
    %4674 = vmatpush1.msra.mxu0 0.0
    %4675 = vmatprep.subr.mxu0 0.0
    %4676 = vmatpush1.msra.mxu0 0.0
    %4677 = vmatprep.subr.mxu0 0.0
    %4678 = vmatpush1.msra.mxu0 0.0
    %4679 = vmatprep.subr.mxu0 0.0
    %4680 = vmatpush1.msra.mxu0 0.0
    %4681 = vmatprep.subr.mxu0 0.0
    %4682 = vmatpush1.msra.mxu0 0.0
    %4683 = vmatprep.subr.mxu0 0.0
    %4684 = vmatpush1.msra.mxu0 0.0
    %4685 = vmatprep.subr.mxu0 0.0
    %4686 = vmatpush1.msra.mxu0 0.0
    %4687 = vmatprep.mubr.f32.mxu0 0.0
    %4688 = vmatmul.mubr.f32.gmra.mrb[0].mxu0 %v4618
    %v4689 = vpop.f32.mrb[0].mxu0
    %v4690 = vadd.f32 0.0, %v4689
    %v4691 = vpop.f32.mrb[0].mxu0
    %4692 = vmatprep.mubr.f32.mxu0 0.0
    %4693 = vmatmul.mubr.f32.gmra.mrb[0].mxu0 %v4621
    %v4694 = vpop.f32.mrb[0].mxu0
    %v4695 = vadd.f32 0.0, %v4694
    %v4696 = vpop.f32.mrb[0].mxu0
    %4697 = vdwg.mxu0
    %v4698 = vmax.f32 %v4441, %v4524
    %v4699 = vmax.f32 %v4446, %v4529
    %v4700 = vsub.f32 %v4441, %v4698
    %v4701 = vsub.f32 %v4446, %v4699
    %v4702 = vmul.f32 %v4700, 1.442695
    %v4703 = vpow.pop %v4702
    %v4704 = vmul.f32 %v4701, 1.442695
    %v4705 = vpow.pop %v4704
    %v4706 = vsub.f32 %v4524, %v4698
    %v4707 = vsub.f32 %v4529, %v4699
    %v4708 = vmul.f32 %v4706, 1.442695
    %v4709 = vpow.pop %v4708
    %v4710 = vmul.f32 %v4707, 1.442695
    %v4711 = vpow.pop %v4710
    %v4712 = vadd.f32 %v4703, %v4709
    %v4713 = vadd.f32 %v4705, %v4711
    %v4714 = vrcp.pop %v4712
    %v4715 = vrcp.pop %v4713
    %v4716 = vmul.f32 %v4703, %v4714
    %v4717 = vmul.f32 %v4705, %v4715
    %v4718 = vmul.f32 %v4716, %v4348
    %v4719 = vmul.f32 %v4717, %v4353
    %v4720 = vmul.f32 %v4709, %v4714
    %v4721 = vmul.f32 %v4711, %v4715
    %v4722 = vmul.f32 %v4720, %v4358
    %v4723 = vmul.f32 %v4721, %v4363
    %v4724 = vadd.f32 %v4718, %v4722
    %v4725 = vadd.f32 %v4719, %v4723
    %v4726 = vmax.f32 %v4607, %v4690
    %v4727 = vmax.f32 %v4612, %v4695
    %v4728 = vsub.f32 %v4607, %v4726
    %v4729 = vsub.f32 %v4612, %v4727
    %v4730 = vmul.f32 %v4728, 1.442695
    %v4731 = vpow.pop %v4730
    %v4732 = vmul.f32 %v4729, 1.442695
    %v4733 = vpow.pop %v4732
    %v4734 = vsub.f32 %v4690, %v4726
    %v4735 = vsub.f32 %v4695, %v4727
    %v4736 = vmul.f32 %v4734, 1.442695
    %v4737 = vpow.pop %v4736
    %v4738 = vmul.f32 %v4735, 1.442695
    %v4739 = vpow.pop %v4738
    %v4740 = vadd.f32 %v4731, %v4737
    %v4741 = vadd.f32 %v4733, %v4739
    %v4742 = vrcp.pop %v4740
    %v4743 = vrcp.pop %v4741
    %v4744 = vmul.f32 %v4731, %v4742
    %v4745 = vmul.f32 %v4733, %v4743
    %v4746 = vmul.f32 %v4744, %v4348
    %v4747 = vmul.f32 %v4745, %v4353
    %v4748 = vmul.f32 %v4737, %v4742
    %v4749 = vmul.f32 %v4739, %v4743
    %v4750 = vmul.f32 %v4748, %v4358
    %v4751 = vmul.f32 %v4749, %v4363
    %v4752 = vadd.f32 %v4746, %v4750
    %v4753 = vadd.f32 %v4747, %v4751
    %v4755 = vlaneseq
    %v4756 = vshrl.u32 %v4755, 7
    %v4757 = vsub.s32 0, %v4756
    %v4758 = vrot.slane %v3994, %v4757
    %v4761 = vsel %vm747, %v4724, 0
    %v4764 = vsel %vm747, %v4725, 0
    %v4767 = vsel %vm747, %v4752, 0
    %v4770 = vsel %vm747, %v4753, 0
    %4772 = vmatprep.subr.mxu0 0.0
    %4773 = vmatpush1.msra.mxu0 %v3990
    %4774 = vmatprep.subr.mxu0 0.0
    %4775 = vmatpush1.msra.mxu0 %v3991
    %4776 = vmatprep.subr.mxu0 0.0
    %4777 = vmatpush1.msra.mxu0 %v3992
    %4778 = vmatprep.subr.mxu0 0.0
    %4779 = vmatpush1.msra.mxu0 %v3993
    %4780 = vmatprep.subr.mxu0 0.0
    %4781 = vmatpush1.msra.mxu0 0.0
    %4782 = vmatprep.subr.mxu0 0.0
    %4783 = vmatpush1.msra.mxu0 0.0
    %4784 = vmatprep.subr.mxu0 0.0
    %4785 = vmatpush1.msra.mxu0 0.0
    %4786 = vmatprep.subr.mxu0 0.0
    %4787 = vmatpush1.msra.mxu0 0.0
    %4788 = vmatprep.subr.mxu0 0.0
    %4789 = vmatpush1.msra.mxu0 0.0
    %4790 = vmatprep.subr.mxu0 0.0
    %4791 = vmatpush1.msra.mxu0 0.0
    %4792 = vmatprep.subr.mxu0 0.0
    %4793 = vmatpush1.msra.mxu0 0.0
    %4794 = vmatprep.subr.mxu0 0.0
    %4795 = vmatpush1.msra.mxu0 0.0
    %4796 = vmatprep.subr.mxu0 0.0
    %4797 = vmatpush1.msra.mxu0 0.0
    %4798 = vmatprep.subr.mxu0 0.0
    %4799 = vmatpush1.msra.mxu0 0.0
    %4800 = vmatprep.subr.mxu0 0.0
    %4801 = vmatpush1.msra.mxu0 0.0
    %4802 = vmatprep.subr.mxu0 0.0
    %4803 = vmatpush1.msra.mxu0 0.0
    %4804 = vmatprep.subr.mxu0 0.0
    %4805 = vmatpush1.msra.mxu0 0.0
    %4806 = vmatprep.subr.mxu0 0.0
    %4807 = vmatpush1.msra.mxu0 0.0
    %4808 = vmatprep.subr.mxu0 0.0
    %4809 = vmatpush1.msra.mxu0 0.0
    %4810 = vmatprep.subr.mxu0 0.0
    %4811 = vmatpush1.msra.mxu0 0.0
    %4812 = vmatprep.subr.mxu0 0.0
    %4813 = vmatpush1.msra.mxu0 0.0
    %4814 = vmatprep.subr.mxu0 0.0
    %4815 = vmatpush1.msra.mxu0 0.0
    %4816 = vmatprep.subr.mxu0 0.0
    %4817 = vmatpush1.msra.mxu0 0.0
    %4818 = vmatprep.subr.mxu0 0.0
    %4819 = vmatpush1.msra.mxu0 0.0
    %4820 = vmatprep.subr.mxu0 0.0
    %4821 = vmatpush1.msra.mxu0 0.0
    %4822 = vmatprep.subr.mxu0 0.0
    %4823 = vmatpush1.msra.mxu0 0.0
    %4824 = vmatprep.subr.mxu0 0.0
    %4825 = vmatpush1.msra.mxu0 0.0
    %4826 = vmatprep.subr.mxu0 0.0
    %4827 = vmatpush1.msra.mxu0 0.0
    %4828 = vmatprep.subr.mxu0 0.0
    %4829 = vmatpush1.msra.mxu0 0.0
    %4830 = vmatprep.subr.mxu0 0.0
    %4831 = vmatpush1.msra.mxu0 0.0
    %4832 = vmatprep.subr.mxu0 0.0
    %4833 = vmatpush1.msra.mxu0 0.0
    %4834 = vmatprep.subr.mxu0 0.0
    %4835 = vmatpush1.msra.mxu0 0.0
    %4836 = vmatprep.mubr.f32.mxu0 0.0
    %4837 = vmatmul.mubr.f32.gmra.mrb[0].mxu0 %v4761
    %v4838 = vpop.f32.mrb[0].mxu0
    %v4839 = vadd.f32 %v4758, %v4838
    %v4840 = vpop.f32.mrb[0].mxu0
    %4841 = vmatprep.mubr.f32.mxu0 0.0
    %4842 = vmatmul.mubr.f32.gmra.mrb[0].mxu0 %v4764
    %v4843 = vpop.f32.mrb[0].mxu0
    %v4844 = vadd.f32 %v4758, %v4843
    %v4845 = vpop.f32.mrb[0].mxu0
    %4846 = vmatprep.mubr.f32.mxu0 0.0
    %4847 = vmatmul.mubr.f32.gmra.mrb[0].mxu0 %v4767
    %v4848 = vpop.f32.mrb[0].mxu0
    %v4849 = vadd.f32 %v4758, %v4848
    %v4850 = vpop.f32.mrb[0].mxu0
    %4851 = vmatprep.mubr.f32.mxu0 0.0
    %4852 = vmatmul.mubr.f32.gmra.mrb[0].mxu0 %v4770
    %v4853 = vpop.f32.mrb[0].mxu0
    %v4854 = vadd.f32 %v4758, %v4853
    %v4855 = vpop.f32.mrb[0].mxu0
    %4856 = vdwg.mxu0
    %v4857 = vadd.f32 %v3967, %v4839
    %v4858 = vadd.f32 %v3968, %v4844
    %v4859 = vadd.f32 %v3969, %v4849
    %v4860 = vadd.f32 %v3970, %v4854
    %v4861 = vsel %vm747, %v4857, 0.0
    %4862 = vadd.xlane.f32.xlu0 %v4861
    %v4863 = vpop.xlane.xlu0 %4862
    %v4864 = vsel %vm747, %v4858, 0.0
    %4865 = vadd.xlane.f32.xlu0 %v4864
    %v4866 = vpop.xlane.xlu0 %4865
    %v4867 = vsel %vm747, %v4859, 0.0
    %4868 = vadd.xlane.f32.xlu0 %v4867
    %v4869 = vpop.xlane.xlu0 %4868
    %v4870 = vsel %vm747, %v4860, 0.0
    %4871 = vadd.xlane.f32.xlu0 %v4870
    %v4872 = vpop.xlane.xlu0 %4871
    %v4873 = vmul.f32 %v4863, %v796
    %v4874 = vmul.f32 %v4866, %v796
    %v4875 = vmul.f32 %v4869, %v796
    %v4876 = vmul.f32 %v4872, %v796
    %v4877 = vsub.f32 %v4857, %v4873
    %v4878 = vsub.f32 %v4858, %v4874
    %v4879 = vsub.f32 %v4859, %v4875
    %v4880 = vsub.f32 %v4860, %v4876
    %v4881 = vmul.f32 %v4877, %v4877
    %v4882 = vmul.f32 %v4878, %v4878
    %v4883 = vmul.f32 %v4879, %v4879
    %v4884 = vmul.f32 %v4880, %v4880
    %v4885 = vsel %vm747, %v4881, 0.0
    %4886 = vadd.xlane.f32.xlu0 %v4885
    %v4887 = vpop.xlane.xlu0 %4886
    %v4888 = vsel %vm747, %v4882, 0.0
    %4889 = vadd.xlane.f32.xlu0 %v4888
    %v4890 = vpop.xlane.xlu0 %4889
    %v4891 = vsel %vm747, %v4883, 0.0
    %4892 = vadd.xlane.f32.xlu0 %v4891
    %v4893 = vpop.xlane.xlu0 %4892
    %v4894 = vsel %vm747, %v4884, 0.0
    %4895 = vadd.xlane.f32.xlu0 %v4894
    %v4896 = vpop.xlane.xlu0 %4895
    %v4897 = vmul.f32 %v4887, %v796
    %v4898 = vmul.f32 %v4890, %v796
    %v4899 = vmul.f32 %v4893, %v796
    %v4900 = vmul.f32 %v4896, %v796
    %v4901 = vadd.f32 %v4897, 1e-06
    %v4902 = vadd.f32 %v4898, 1e-06
    %v4903 = vadd.f32 %v4899, 1e-06
    %v4904 = vadd.f32 %v4900, 1e-06
    %v4905 = vrsqrt.pop %v4901
    %v4906 = vrsqrt.pop %v4902
    %v4907 = vrsqrt.pop %v4903
    %v4908 = vrsqrt.pop %v4904
    %v4909 = vmul.f32 %v4877, %v4905
    %v4910 = vmul.f32 %v4878, %v4906
    %v4911 = vmul.f32 %v4879, %v4907
    %v4912 = vmul.f32 %v4880, %v4908
    %v4914 = vlaneseq
    %v4915 = vshrl.u32 %v4914, 7
    %v4916 = vsub.s32 0, %v4915
    %v4917 = vrot.slane %v3973, %v4916
    %v4919 = vmul.f32 %v4909, %v4917
    %v4920 = vmul.f32 %v4910, %v4917
    %v4921 = vmul.f32 %v4911, %v4917
    %v4922 = vmul.f32 %v4912, %v4917
    %v4924 = vlaneseq
    %v4925 = vshrl.u32 %v4924, 7
    %v4926 = vsub.s32 0, %v4925
    %v4927 = vrot.slane %v3974, %v4926
    %v4929 = vadd.f32 %v4919, %v4927
    %v4930 = vadd.f32 %v4920, %v4927
    %v4931 = vadd.f32 %v4921, %v4927
    %v4932 = vadd.f32 %v4922, %v4927
    %v4934 = vlaneseq
    %v4935 = vshrl.u32 %v4934, 7
    %v4936 = vsub.s32 0, %v4935
    %v4937 = vrot.slane %v3999, %v4936
    %v4940 = vsel %vm747, %v4929, 0
    %v4943 = vsel %vm747, %v4930, 0
    %v4946 = vsel %vm747, %v4931, 0
    %v4949 = vsel %vm747, %v4932, 0
    %4951 = vmatprep.subr.mxu0 0.0
    %4952 = vmatpush1.msra.mxu0 %v3995
    %4953 = vmatprep.subr.mxu0 0.0
    %4954 = vmatpush1.msra.mxu0 %v3996
    %4955 = vmatprep.subr.mxu0 0.0
    %4956 = vmatpush1.msra.mxu0 %v3997
    %4957 = vmatprep.subr.mxu0 0.0
    %4958 = vmatpush1.msra.mxu0 %v3998
    %4959 = vmatprep.subr.mxu0 0.0
    %4960 = vmatpush1.msra.mxu0 0.0
    %4961 = vmatprep.subr.mxu0 0.0
    %4962 = vmatpush1.msra.mxu0 0.0
    %4963 = vmatprep.subr.mxu0 0.0
    %4964 = vmatpush1.msra.mxu0 0.0
    %4965 = vmatprep.subr.mxu0 0.0
    %4966 = vmatpush1.msra.mxu0 0.0
    %4967 = vmatprep.subr.mxu0 0.0
    %4968 = vmatpush1.msra.mxu0 0.0
    %4969 = vmatprep.subr.mxu0 0.0
    %4970 = vmatpush1.msra.mxu0 0.0
    %4971 = vmatprep.subr.mxu0 0.0
    %4972 = vmatpush1.msra.mxu0 0.0
    %4973 = vmatprep.subr.mxu0 0.0
    %4974 = vmatpush1.msra.mxu0 0.0
    %4975 = vmatprep.subr.mxu0 0.0
    %4976 = vmatpush1.msra.mxu0 0.0
    %4977 = vmatprep.subr.mxu0 0.0
    %4978 = vmatpush1.msra.mxu0 0.0
    %4979 = vmatprep.subr.mxu0 0.0
    %4980 = vmatpush1.msra.mxu0 0.0
    %4981 = vmatprep.subr.mxu0 0.0
    %4982 = vmatpush1.msra.mxu0 0.0
    %4983 = vmatprep.subr.mxu0 0.0
    %4984 = vmatpush1.msra.mxu0 0.0
    %4985 = vmatprep.subr.mxu0 0.0
    %4986 = vmatpush1.msra.mxu0 0.0
    %4987 = vmatprep.subr.mxu0 0.0
    %4988 = vmatpush1.msra.mxu0 0.0
    %4989 = vmatprep.subr.mxu0 0.0
    %4990 = vmatpush1.msra.mxu0 0.0
    %4991 = vmatprep.subr.mxu0 0.0
    %4992 = vmatpush1.msra.mxu0 0.0
    %4993 = vmatprep.subr.mxu0 0.0
    %4994 = vmatpush1.msra.mxu0 0.0
    %4995 = vmatprep.subr.mxu0 0.0
    %4996 = vmatpush1.msra.mxu0 0.0
    %4997 = vmatprep.subr.mxu0 0.0
    %4998 = vmatpush1.msra.mxu0 0.0
    %4999 = vmatprep.subr.mxu0 0.0
    %5000 = vmatpush1.msra.mxu0 0.0
    %5001 = vmatprep.subr.mxu0 0.0
    %5002 = vmatpush1.msra.mxu0 0.0
    %5003 = vmatprep.subr.mxu0 0.0
    %5004 = vmatpush1.msra.mxu0 0.0
    %5005 = vmatprep.subr.mxu0 0.0
    %5006 = vmatpush1.msra.mxu0 0.0
    %5007 = vmatprep.subr.mxu0 0.0
    %5008 = vmatpush1.msra.mxu0 0.0
    %5009 = vmatprep.subr.mxu0 0.0
    %5010 = vmatpush1.msra.mxu0 0.0
    %5011 = vmatprep.subr.mxu0 0.0
    %5012 = vmatpush1.msra.mxu0 0.0
    %5013 = vmatprep.subr.mxu0 0.0
    %5014 = vmatpush1.msra.mxu0 0.0
    %5015 = vmatprep.mubr.f32.mxu0 0.0
    %5016 = vmatmul.mubr.f32.gmra.mrb[0].mxu0 %v4940
    %v5017 = vpop.f32.mrb[0].mxu0
    %v5018 = vadd.f32 %v4937, %v5017
    %v5019 = vpop.f32.mrb[0].mxu0
    %5020 = vmatprep.mubr.f32.mxu0 0.0
    %5021 = vmatmul.mubr.f32.gmra.mrb[0].mxu0 %v4943
    %v5022 = vpop.f32.mrb[0].mxu0
    %v5023 = vadd.f32 %v4937, %v5022
    %v5024 = vpop.f32.mrb[0].mxu0
    %5025 = vmatprep.mubr.f32.mxu0 0.0
    %5026 = vmatmul.mubr.f32.gmra.mrb[0].mxu0 %v4946
    %v5027 = vpop.f32.mrb[0].mxu0
    %v5028 = vadd.f32 %v4937, %v5027
    %v5029 = vpop.f32.mrb[0].mxu0
    %5030 = vmatprep.mubr.f32.mxu0 0.0
    %5031 = vmatmul.mubr.f32.gmra.mrb[0].mxu0 %v4949
    %v5032 = vpop.f32.mrb[0].mxu0
    %v5033 = vadd.f32 %v4937, %v5032
    %v5034 = vpop.f32.mrb[0].mxu0
    %5035 = vdwg.mxu0
    %v5036 = vmax.f32 %v5018, 0.0
    %v5037 = vmax.f32 %v5023, 0.0
    %v5038 = vmax.f32 %v5028, 0.0
    %v5039 = vmax.f32 %v5033, 0.0
    %v5041 = vlaneseq
    %v5042 = vshrl.u32 %v5041, 7
    %v5043 = vsub.s32 0, %v5042
    %v5044 = vrot.slane %v4008, %v5043
    %v5047 = vsel %vm2962, %v5036, 0
    %v5050 = vsel %vm2962, %v5037, 0
    %v5053 = vsel %vm2962, %v5038, 0
    %v5056 = vsel %vm2962, %v5039, 0
    %5058 = vmatprep.subr.mxu0 0.0
    %5059 = vmatpush1.msra.mxu0 %v4000
    %5060 = vmatprep.subr.mxu0 0.0
    %5061 = vmatpush1.msra.mxu0 %v4001
    %5062 = vmatprep.subr.mxu0 0.0
    %5063 = vmatpush1.msra.mxu0 %v4002
    %5064 = vmatprep.subr.mxu0 0.0
    %5065 = vmatpush1.msra.mxu0 %v4003
    %5066 = vmatprep.subr.mxu0 0.0
    %5067 = vmatpush1.msra.mxu0 %v4004
    %5068 = vmatprep.subr.mxu0 0.0
    %5069 = vmatpush1.msra.mxu0 %v4005
    %5070 = vmatprep.subr.mxu0 0.0
    %5071 = vmatpush1.msra.mxu0 %v4006
    %5072 = vmatprep.subr.mxu0 0.0
    %5073 = vmatpush1.msra.mxu0 %v4007
    %5074 = vmatprep.subr.mxu0 0.0
    %5075 = vmatpush1.msra.mxu0 0.0
    %5076 = vmatprep.subr.mxu0 0.0
    %5077 = vmatpush1.msra.mxu0 0.0
    %5078 = vmatprep.subr.mxu0 0.0
    %5079 = vmatpush1.msra.mxu0 0.0
    %5080 = vmatprep.subr.mxu0 0.0
    %5081 = vmatpush1.msra.mxu0 0.0
    %5082 = vmatprep.subr.mxu0 0.0
    %5083 = vmatpush1.msra.mxu0 0.0
    %5084 = vmatprep.subr.mxu0 0.0
    %5085 = vmatpush1.msra.mxu0 0.0
    %5086 = vmatprep.subr.mxu0 0.0
    %5087 = vmatpush1.msra.mxu0 0.0
    %5088 = vmatprep.subr.mxu0 0.0
    %5089 = vmatpush1.msra.mxu0 0.0
    %5090 = vmatprep.subr.mxu0 0.0
    %5091 = vmatpush1.msra.mxu0 0.0
    %5092 = vmatprep.subr.mxu0 0.0
    %5093 = vmatpush1.msra.mxu0 0.0
    %5094 = vmatprep.subr.mxu0 0.0
    %5095 = vmatpush1.msra.mxu0 0.0
    %5096 = vmatprep.subr.mxu0 0.0
    %5097 = vmatpush1.msra.mxu0 0.0
    %5098 = vmatprep.subr.mxu0 0.0
    %5099 = vmatpush1.msra.mxu0 0.0
    %5100 = vmatprep.subr.mxu0 0.0
    %5101 = vmatpush1.msra.mxu0 0.0
    %5102 = vmatprep.subr.mxu0 0.0
    %5103 = vmatpush1.msra.mxu0 0.0
    %5104 = vmatprep.subr.mxu0 0.0
    %5105 = vmatpush1.msra.mxu0 0.0
    %5106 = vmatprep.subr.mxu0 0.0
    %5107 = vmatpush1.msra.mxu0 0.0
    %5108 = vmatprep.subr.mxu0 0.0
    %5109 = vmatpush1.msra.mxu0 0.0
    %5110 = vmatprep.subr.mxu0 0.0
    %5111 = vmatpush1.msra.mxu0 0.0
    %5112 = vmatprep.subr.mxu0 0.0
    %5113 = vmatpush1.msra.mxu0 0.0
    %5114 = vmatprep.subr.mxu0 0.0
    %5115 = vmatpush1.msra.mxu0 0.0
    %5116 = vmatprep.subr.mxu0 0.0
    %5117 = vmatpush1.msra.mxu0 0.0
    %5118 = vmatprep.subr.mxu0 0.0
    %5119 = vmatpush1.msra.mxu0 0.0
    %5120 = vmatprep.subr.mxu0 0.0
    %5121 = vmatpush1.msra.mxu0 0.0
    %5122 = vmatprep.mubr.f32.mxu0 0.0
    %5123 = vmatmul.mubr.f32.gmra.mrb[0].mxu0 %v5047
    %v5124 = vpop.f32.mrb[0].mxu0
    %v5125 = vadd.f32 %v5044, %v5124
    %v5126 = vpop.f32.mrb[0].mxu0
    %5127 = vmatprep.mubr.f32.mxu0 0.0
    %5128 = vmatmul.mubr.f32.gmra.mrb[0].mxu0 %v5050
    %v5129 = vpop.f32.mrb[0].mxu0
    %v5130 = vadd.f32 %v5044, %v5129
    %v5131 = vpop.f32.mrb[0].mxu0
    %5132 = vmatprep.mubr.f32.mxu0 0.0
    %5133 = vmatmul.mubr.f32.gmra.mrb[0].mxu0 %v5053
    %v5134 = vpop.f32.mrb[0].mxu0
    %v5135 = vadd.f32 %v5044, %v5134
    %v5136 = vpop.f32.mrb[0].mxu0
    %5137 = vmatprep.mubr.f32.mxu0 0.0
    %5138 = vmatmul.mubr.f32.gmra.mrb[0].mxu0 %v5056
    %v5139 = vpop.f32.mrb[0].mxu0
    %v5140 = vadd.f32 %v5044, %v5139
    %v5141 = vpop.f32.mrb[0].mxu0
    %5142 = vdwg.mxu0
    %v5143 = vadd.f32 %v4857, %v5125
    %v5144 = vadd.f32 %v4858, %v5130
    %v5145 = vadd.f32 %v4859, %v5135
    %v5146 = vadd.f32 %v4860, %v5140
    %5147 = vst.msk [vmem:[#allocation59] sm:$0xff] %vm747, %v5143
    %5148 = vst.msk [vmem:[#allocation59 + $0x8] sm:$0xff] %vm747, %v5144
    %5149 = vst.msk [vmem:[#allocation59 + $0x10] sm:$0xff] %vm747, %v5145
    %5150 = vst.msk [vmem:[#allocation59 + $0x18] sm:$0xff] %vm747, %v5146
    %v5151 = vld [vmem:[%s75] sm:$0xff]
    %v5152 = vld [vmem:[%s75 + $0x8] sm:$0xff]
    %v5153 = vld [vmem:[%s75 + $0x10] sm:$0xff]
    %v5154 = vld [vmem:[%s75 + $0x18] sm:$0xff]
    %v5155 = vld [vmem:[%s77] sm:$0xff]
    %v5156 = vld [vmem:[%s77 + $0x8] sm:$0xff]
    %v5157 = vld [vmem:[%s77 + $0x10] sm:$0xff]
    %v5158 = vld [vmem:[%s77 + $0x18] sm:$0xff]
    %v5159 = vld [vmem:[%s77 + $0x20] sm:$0xff]
    %v5160 = vld [vmem:[%s77 + $0x28] sm:$0xff]
    %v5161 = vld [vmem:[%s77 + $0x30] sm:$0xff]
    %v5162 = vld [vmem:[%s77 + $0x38] sm:$0xff]
    %v5163 = vld [vmem:[%s77 + $0x40] sm:$0xff]
    %v5164 = vld [vmem:[%s77 + $0x48] sm:$0xff]
    %v5165 = vld [vmem:[%s77 + $0x50] sm:$0xff]
    %v5166 = vld [vmem:[%s77 + $0x58] sm:$0xff]
    %v5167 = vld [vmem:[%s77 + $0x60] sm:$0xff]
    %v5168 = vld [vmem:[%s77 + $0x68] sm:$0xff]
    %v5169 = vld [vmem:[%s77 + $0x70] sm:$0xff]
    %v5170 = vld [vmem:[%s77 + $0x78] sm:$0xff]
    %v5171 = vld [vmem:[%s79] sm:$0x1]
    %v5173 = vsel %vm747, %v5151, 0
    %5175 = vmatprep.subr.mxu0 0.0
    %5176 = vmatpush1.msra.mxu0 %v5143
    %5177 = vmatprep.subr.mxu0 0.0
    %5178 = vmatpush1.msra.mxu0 %v5144
    %5179 = vmatprep.subr.mxu0 0.0
    %5180 = vmatpush1.msra.mxu0 %v5145
    %5181 = vmatprep.subr.mxu0 0.0
    %5182 = vmatpush1.msra.mxu0 %v5146
    %5183 = vmatprep.subr.mxu0 0.0
    %5184 = vmatpush1.msra.mxu0 0.0
    %5185 = vmatprep.subr.mxu0 0.0
    %5186 = vmatpush1.msra.mxu0 0.0
    %5187 = vmatprep.subr.mxu0 0.0
    %5188 = vmatpush1.msra.mxu0 0.0
    %5189 = vmatprep.subr.mxu0 0.0
    %5190 = vmatpush1.msra.mxu0 0.0
    %5191 = vmatprep.subr.mxu0 0.0
    %5192 = vmatpush1.msra.mxu0 0.0
    %5193 = vmatprep.subr.mxu0 0.0
    %5194 = vmatpush1.msra.mxu0 0.0
    %5195 = vmatprep.subr.mxu0 0.0
    %5196 = vmatpush1.msra.mxu0 0.0
    %5197 = vmatprep.subr.mxu0 0.0
    %5198 = vmatpush1.msra.mxu0 0.0
    %5199 = vmatprep.subr.mxu0 0.0
    %5200 = vmatpush1.msra.mxu0 0.0
    %5201 = vmatprep.subr.mxu0 0.0
    %5202 = vmatpush1.msra.mxu0 0.0
    %5203 = vmatprep.subr.mxu0 0.0
    %5204 = vmatpush1.msra.mxu0 0.0
    %5205 = vmatprep.subr.mxu0 0.0
    %5206 = vmatpush1.msra.mxu0 0.0
    %5207 = vmatprep.subr.mxu0 0.0
    %5208 = vmatpush1.msra.mxu0 0.0
    %5209 = vmatprep.subr.mxu0 0.0
    %5210 = vmatpush1.msra.mxu0 0.0
    %5211 = vmatprep.subr.mxu0 0.0
    %5212 = vmatpush1.msra.mxu0 0.0
    %5213 = vmatprep.subr.mxu0 0.0
    %5214 = vmatpush1.msra.mxu0 0.0
    %5215 = vmatprep.subr.mxu0 0.0
    %5216 = vmatpush1.msra.mxu0 0.0
    %5217 = vmatprep.subr.mxu0 0.0
    %5218 = vmatpush1.msra.mxu0 0.0
    %5219 = vmatprep.subr.mxu0 0.0
    %5220 = vmatpush1.msra.mxu0 0.0
    %5221 = vmatprep.subr.mxu0 0.0
    %5222 = vmatpush1.msra.mxu0 0.0
    %5223 = vmatprep.subr.mxu0 0.0
    %5224 = vmatpush1.msra.mxu0 0.0
    %5225 = vmatprep.subr.mxu0 0.0
    %5226 = vmatpush1.msra.mxu0 0.0
    %5227 = vmatprep.subr.mxu0 0.0
    %5228 = vmatpush1.msra.mxu0 0.0
    %5229 = vmatprep.subr.mxu0 0.0
    %5230 = vmatpush1.msra.mxu0 0.0
    %5231 = vmatprep.subr.mxu0 0.0
    %5232 = vmatpush1.msra.mxu0 0.0
    %5233 = vmatprep.subr.mxu0 0.0
    %5234 = vmatpush1.msra.mxu0 0.0
    %5235 = vmatprep.subr.mxu0 0.0
    %5236 = vmatpush1.msra.mxu0 0.0
    %5237 = vmatprep.subr.mxu0 0.0
    %5238 = vmatpush1.msra.mxu0 0.0
    %5239 = vmatprep.mubr.f32.mxu0 0.0
    %5240 = vmatmul.mubr.f32.gmra.mrb[0].mxu0 %v5173
    %v5241 = vpop.f32.mrb[0].mxu0
    %v5242 = vadd.f32 0.0, %v5241
    %v5243 = vpop.f32.mrb[0].mxu0
    %5244 = vdwg.mxu0
    %v5246 = vsel %vm747, %v5242, 0
    %5248 = vmatprep.subr.mxu0 0.0
    %5249 = vmatpush1.msra.mxu0 %v5155
    %5250 = vmatprep.subr.mxu0 0.0
    %5251 = vmatpush1.msra.mxu0 %v5156
    %5252 = vmatprep.subr.mxu0 0.0
    %5253 = vmatpush1.msra.mxu0 %v5157
    %5254 = vmatprep.subr.mxu0 0.0
    %5255 = vmatpush1.msra.mxu0 %v5158
    %5256 = vmatprep.subr.mxu0 0.0
    %5257 = vmatpush1.msra.mxu0 0.0
    %5258 = vmatprep.subr.mxu0 0.0
    %5259 = vmatpush1.msra.mxu0 0.0
    %5260 = vmatprep.subr.mxu0 0.0
    %5261 = vmatpush1.msra.mxu0 0.0
    %5262 = vmatprep.subr.mxu0 0.0
    %5263 = vmatpush1.msra.mxu0 0.0
    %5264 = vmatprep.subr.mxu0 0.0
    %5265 = vmatpush1.msra.mxu0 0.0
    %5266 = vmatprep.subr.mxu0 0.0
    %5267 = vmatpush1.msra.mxu0 0.0
    %5268 = vmatprep.subr.mxu0 0.0
    %5269 = vmatpush1.msra.mxu0 0.0
    %5270 = vmatprep.subr.mxu0 0.0
    %5271 = vmatpush1.msra.mxu0 0.0
    %5272 = vmatprep.subr.mxu0 0.0
    %5273 = vmatpush1.msra.mxu0 0.0
    %5274 = vmatprep.subr.mxu0 0.0
    %5275 = vmatpush1.msra.mxu0 0.0
    %5276 = vmatprep.subr.mxu0 0.0
    %5277 = vmatpush1.msra.mxu0 0.0
    %5278 = vmatprep.subr.mxu0 0.0
    %5279 = vmatpush1.msra.mxu0 0.0
    %5280 = vmatprep.subr.mxu0 0.0
    %5281 = vmatpush1.msra.mxu0 0.0
    %5282 = vmatprep.subr.mxu0 0.0
    %5283 = vmatpush1.msra.mxu0 0.0
    %5284 = vmatprep.subr.mxu0 0.0
    %5285 = vmatpush1.msra.mxu0 0.0
    %5286 = vmatprep.subr.mxu0 0.0
    %5287 = vmatpush1.msra.mxu0 0.0
    %5288 = vmatprep.subr.mxu0 0.0
    %5289 = vmatpush1.msra.mxu0 0.0
    %5290 = vmatprep.subr.mxu0 0.0
    %5291 = vmatpush1.msra.mxu0 0.0
    %5292 = vmatprep.subr.mxu0 0.0
    %5293 = vmatpush1.msra.mxu0 0.0
    %5294 = vmatprep.subr.mxu0 0.0
    %5295 = vmatpush1.msra.mxu0 0.0
    %5296 = vmatprep.subr.mxu0 0.0
    %5297 = vmatpush1.msra.mxu0 0.0
    %5298 = vmatprep.subr.mxu0 0.0
    %5299 = vmatpush1.msra.mxu0 0.0
    %5300 = vmatprep.subr.mxu0 0.0
    %5301 = vmatpush1.msra.mxu0 0.0
    %5302 = vmatprep.subr.mxu0 0.0
    %5303 = vmatpush1.msra.mxu0 0.0
    %5304 = vmatprep.subr.mxu0 0.0
    %5305 = vmatpush1.msra.mxu0 0.0
    %5306 = vmatprep.subr.mxu0 0.0
    %5307 = vmatpush1.msra.mxu0 0.0
    %5308 = vmatprep.subr.mxu0 0.0
    %5309 = vmatpush1.msra.mxu0 0.0
    %5310 = vmatprep.subr.mxu0 0.0
    %5311 = vmatpush1.msra.mxu0 0.0
    %5312 = vmatprep.mubr.f32.mxu0 0.0
    %5313 = vmatmul.mubr.f32.gmra.mrb[0].mxu0 %v5246
    %v5314 = vpop.f32.mrb[0].mxu0
    %v5315 = vadd.f32 0.0, %v5314
    %v5316 = vpop.f32.mrb[0].mxu0
    %5317 = vdwg.mxu0
    %v5319 = vlaneseq
    %v5320 = vshrl.u32 %v5319, 7
    %v5321 = vsub.s32 0, %v5320
    %v5322 = vrot.slane %v5171, %v5321
    %v5324 = vadd.f32 %v5322, %v5315
    %v5326 = vsel %vm747, %v5152, 0
    %5328 = vmatprep.subr.mxu0 0.0
    %5329 = vmatpush1.msra.mxu0 %v5143
    %5330 = vmatprep.subr.mxu0 0.0
    %5331 = vmatpush1.msra.mxu0 %v5144
    %5332 = vmatprep.subr.mxu0 0.0
    %5333 = vmatpush1.msra.mxu0 %v5145
    %5334 = vmatprep.subr.mxu0 0.0
    %5335 = vmatpush1.msra.mxu0 %v5146
    %5336 = vmatprep.subr.mxu0 0.0
    %5337 = vmatpush1.msra.mxu0 0.0
    %5338 = vmatprep.subr.mxu0 0.0
    %5339 = vmatpush1.msra.mxu0 0.0
    %5340 = vmatprep.subr.mxu0 0.0
    %5341 = vmatpush1.msra.mxu0 0.0
    %5342 = vmatprep.subr.mxu0 0.0
    %5343 = vmatpush1.msra.mxu0 0.0
    %5344 = vmatprep.subr.mxu0 0.0
    %5345 = vmatpush1.msra.mxu0 0.0
    %5346 = vmatprep.subr.mxu0 0.0
    %5347 = vmatpush1.msra.mxu0 0.0
    %5348 = vmatprep.subr.mxu0 0.0
    %5349 = vmatpush1.msra.mxu0 0.0
    %5350 = vmatprep.subr.mxu0 0.0
    %5351 = vmatpush1.msra.mxu0 0.0
    %5352 = vmatprep.subr.mxu0 0.0
    %5353 = vmatpush1.msra.mxu0 0.0
    %5354 = vmatprep.subr.mxu0 0.0
    %5355 = vmatpush1.msra.mxu0 0.0
    %5356 = vmatprep.subr.mxu0 0.0
    %5357 = vmatpush1.msra.mxu0 0.0
    %5358 = vmatprep.subr.mxu0 0.0
    %5359 = vmatpush1.msra.mxu0 0.0
    %5360 = vmatprep.subr.mxu0 0.0
    %5361 = vmatpush1.msra.mxu0 0.0
    %5362 = vmatprep.subr.mxu0 0.0
    %5363 = vmatpush1.msra.mxu0 0.0
    %5364 = vmatprep.subr.mxu0 0.0
    %5365 = vmatpush1.msra.mxu0 0.0
    %5366 = vmatprep.subr.mxu0 0.0
    %5367 = vmatpush1.msra.mxu0 0.0
    %5368 = vmatprep.subr.mxu0 0.0
    %5369 = vmatpush1.msra.mxu0 0.0
    %5370 = vmatprep.subr.mxu0 0.0
    %5371 = vmatpush1.msra.mxu0 0.0
    %5372 = vmatprep.subr.mxu0 0.0
    %5373 = vmatpush1.msra.mxu0 0.0
    %5374 = vmatprep.subr.mxu0 0.0
    %5375 = vmatpush1.msra.mxu0 0.0
    %5376 = vmatprep.subr.mxu0 0.0
    %5377 = vmatpush1.msra.mxu0 0.0
    %5378 = vmatprep.subr.mxu0 0.0
    %5379 = vmatpush1.msra.mxu0 0.0
    %5380 = vmatprep.subr.mxu0 0.0
    %5381 = vmatpush1.msra.mxu0 0.0
    %5382 = vmatprep.subr.mxu0 0.0
    %5383 = vmatpush1.msra.mxu0 0.0
    %5384 = vmatprep.subr.mxu0 0.0
    %5385 = vmatpush1.msra.mxu0 0.0
    %5386 = vmatprep.subr.mxu0 0.0
    %5387 = vmatpush1.msra.mxu0 0.0
    %5388 = vmatprep.subr.mxu0 0.0
    %5389 = vmatpush1.msra.mxu0 0.0
    %5390 = vmatprep.subr.mxu0 0.0
    %5391 = vmatpush1.msra.mxu0 0.0
    %5392 = vmatprep.mubr.f32.mxu0 0.0
    %5393 = vmatmul.mubr.f32.gmra.mrb[0].mxu0 %v5326
    %v5394 = vpop.f32.mrb[0].mxu0
    %v5395 = vadd.f32 0.0, %v5394
    %v5396 = vpop.f32.mrb[0].mxu0
    %5397 = vdwg.mxu0
    %v5399 = vsel %vm747, %v5395, 0
    %5401 = vmatprep.subr.mxu0 0.0
    %5402 = vmatpush1.msra.mxu0 %v5159
    %5403 = vmatprep.subr.mxu0 0.0
    %5404 = vmatpush1.msra.mxu0 %v5160
    %5405 = vmatprep.subr.mxu0 0.0
    %5406 = vmatpush1.msra.mxu0 %v5161
    %5407 = vmatprep.subr.mxu0 0.0
    %5408 = vmatpush1.msra.mxu0 %v5162
    %5409 = vmatprep.subr.mxu0 0.0
    %5410 = vmatpush1.msra.mxu0 0.0
    %5411 = vmatprep.subr.mxu0 0.0
    %5412 = vmatpush1.msra.mxu0 0.0
    %5413 = vmatprep.subr.mxu0 0.0
    %5414 = vmatpush1.msra.mxu0 0.0
    %5415 = vmatprep.subr.mxu0 0.0
    %5416 = vmatpush1.msra.mxu0 0.0
    %5417 = vmatprep.subr.mxu0 0.0
    %5418 = vmatpush1.msra.mxu0 0.0
    %5419 = vmatprep.subr.mxu0 0.0
    %5420 = vmatpush1.msra.mxu0 0.0
    %5421 = vmatprep.subr.mxu0 0.0
    %5422 = vmatpush1.msra.mxu0 0.0
    %5423 = vmatprep.subr.mxu0 0.0
    %5424 = vmatpush1.msra.mxu0 0.0
    %5425 = vmatprep.subr.mxu0 0.0
    %5426 = vmatpush1.msra.mxu0 0.0
    %5427 = vmatprep.subr.mxu0 0.0
    %5428 = vmatpush1.msra.mxu0 0.0
    %5429 = vmatprep.subr.mxu0 0.0
    %5430 = vmatpush1.msra.mxu0 0.0
    %5431 = vmatprep.subr.mxu0 0.0
    %5432 = vmatpush1.msra.mxu0 0.0
    %5433 = vmatprep.subr.mxu0 0.0
    %5434 = vmatpush1.msra.mxu0 0.0
    %5435 = vmatprep.subr.mxu0 0.0
    %5436 = vmatpush1.msra.mxu0 0.0
    %5437 = vmatprep.subr.mxu0 0.0
    %5438 = vmatpush1.msra.mxu0 0.0
    %5439 = vmatprep.subr.mxu0 0.0
    %5440 = vmatpush1.msra.mxu0 0.0
    %5441 = vmatprep.subr.mxu0 0.0
    %5442 = vmatpush1.msra.mxu0 0.0
    %5443 = vmatprep.subr.mxu0 0.0
    %5444 = vmatpush1.msra.mxu0 0.0
    %5445 = vmatprep.subr.mxu0 0.0
    %5446 = vmatpush1.msra.mxu0 0.0
    %5447 = vmatprep.subr.mxu0 0.0
    %5448 = vmatpush1.msra.mxu0 0.0
    %5449 = vmatprep.subr.mxu0 0.0
    %5450 = vmatpush1.msra.mxu0 0.0
    %5451 = vmatprep.subr.mxu0 0.0
    %5452 = vmatpush1.msra.mxu0 0.0
    %5453 = vmatprep.subr.mxu0 0.0
    %5454 = vmatpush1.msra.mxu0 0.0
    %5455 = vmatprep.subr.mxu0 0.0
    %5456 = vmatpush1.msra.mxu0 0.0
    %5457 = vmatprep.subr.mxu0 0.0
    %5458 = vmatpush1.msra.mxu0 0.0
    %5459 = vmatprep.subr.mxu0 0.0
    %5460 = vmatpush1.msra.mxu0 0.0
    %5461 = vmatprep.subr.mxu0 0.0
    %5462 = vmatpush1.msra.mxu0 0.0
    %5463 = vmatprep.subr.mxu0 0.0
    %5464 = vmatpush1.msra.mxu0 0.0
    %5465 = vmatprep.mubr.f32.mxu0 0.0
    %5466 = vmatmul.mubr.f32.gmra.mrb[0].mxu0 %v5399
    %v5467 = vpop.f32.mrb[0].mxu0
    %v5468 = vadd.f32 0.0, %v5467
    %v5469 = vpop.f32.mrb[0].mxu0
    %5470 = vdwg.mxu0
    %v5471 = vadd.f32 %v5324, %v5468
    %v5473 = vsel %vm747, %v5153, 0
    %5475 = vmatprep.subr.mxu0 0.0
    %5476 = vmatpush1.msra.mxu0 %v5143
    %5477 = vmatprep.subr.mxu0 0.0
    %5478 = vmatpush1.msra.mxu0 %v5144
    %5479 = vmatprep.subr.mxu0 0.0
    %5480 = vmatpush1.msra.mxu0 %v5145
    %5481 = vmatprep.subr.mxu0 0.0
    %5482 = vmatpush1.msra.mxu0 %v5146
    %5483 = vmatprep.subr.mxu0 0.0
    %5484 = vmatpush1.msra.mxu0 0.0
    %5485 = vmatprep.subr.mxu0 0.0
    %5486 = vmatpush1.msra.mxu0 0.0
    %5487 = vmatprep.subr.mxu0 0.0
    %5488 = vmatpush1.msra.mxu0 0.0
    %5489 = vmatprep.subr.mxu0 0.0
    %5490 = vmatpush1.msra.mxu0 0.0
    %5491 = vmatprep.subr.mxu0 0.0
    %5492 = vmatpush1.msra.mxu0 0.0
    %5493 = vmatprep.subr.mxu0 0.0
    %5494 = vmatpush1.msra.mxu0 0.0
    %5495 = vmatprep.subr.mxu0 0.0
    %5496 = vmatpush1.msra.mxu0 0.0
    %5497 = vmatprep.subr.mxu0 0.0
    %5498 = vmatpush1.msra.mxu0 0.0
    %5499 = vmatprep.subr.mxu0 0.0
    %5500 = vmatpush1.msra.mxu0 0.0
    %5501 = vmatprep.subr.mxu0 0.0
    %5502 = vmatpush1.msra.mxu0 0.0
    %5503 = vmatprep.subr.mxu0 0.0
    %5504 = vmatpush1.msra.mxu0 0.0
    %5505 = vmatprep.subr.mxu0 0.0
    %5506 = vmatpush1.msra.mxu0 0.0
    %5507 = vmatprep.subr.mxu0 0.0
    %5508 = vmatpush1.msra.mxu0 0.0
    %5509 = vmatprep.subr.mxu0 0.0
    %5510 = vmatpush1.msra.mxu0 0.0
    %5511 = vmatprep.subr.mxu0 0.0
    %5512 = vmatpush1.msra.mxu0 0.0
    %5513 = vmatprep.subr.mxu0 0.0
    %5514 = vmatpush1.msra.mxu0 0.0
    %5515 = vmatprep.subr.mxu0 0.0
    %5516 = vmatpush1.msra.mxu0 0.0
    %5517 = vmatprep.subr.mxu0 0.0
    %5518 = vmatpush1.msra.mxu0 0.0
    %5519 = vmatprep.subr.mxu0 0.0
    %5520 = vmatpush1.msra.mxu0 0.0
    %5521 = vmatprep.subr.mxu0 0.0
    %5522 = vmatpush1.msra.mxu0 0.0
    %5523 = vmatprep.subr.mxu0 0.0
    %5524 = vmatpush1.msra.mxu0 0.0
    %5525 = vmatprep.subr.mxu0 0.0
    %5526 = vmatpush1.msra.mxu0 0.0
    %5527 = vmatprep.subr.mxu0 0.0
    %5528 = vmatpush1.msra.mxu0 0.0
    %5529 = vmatprep.subr.mxu0 0.0
    %5530 = vmatpush1.msra.mxu0 0.0
    %5531 = vmatprep.subr.mxu0 0.0
    %5532 = vmatpush1.msra.mxu0 0.0
    %5533 = vmatprep.subr.mxu0 0.0
    %5534 = vmatpush1.msra.mxu0 0.0
    %5535 = vmatprep.subr.mxu0 0.0
    %5536 = vmatpush1.msra.mxu0 0.0
    %5537 = vmatprep.subr.mxu0 0.0
    %5538 = vmatpush1.msra.mxu0 0.0
    %5539 = vmatprep.mubr.f32.mxu0 0.0
    %5540 = vmatmul.mubr.f32.gmra.mrb[0].mxu0 %v5473
    %v5541 = vpop.f32.mrb[0].mxu0
    %v5542 = vadd.f32 0.0, %v5541
    %v5543 = vpop.f32.mrb[0].mxu0
    %5544 = vdwg.mxu0
    %v5546 = vsel %vm747, %v5542, 0
    %5548 = vmatprep.subr.mxu0 0.0
    %5549 = vmatpush1.msra.mxu0 %v5163
    %5550 = vmatprep.subr.mxu0 0.0
    %5551 = vmatpush1.msra.mxu0 %v5164
    %5552 = vmatprep.subr.mxu0 0.0
    %5553 = vmatpush1.msra.mxu0 %v5165
    %5554 = vmatprep.subr.mxu0 0.0
    %5555 = vmatpush1.msra.mxu0 %v5166
    %5556 = vmatprep.subr.mxu0 0.0
    %5557 = vmatpush1.msra.mxu0 0.0
    %5558 = vmatprep.subr.mxu0 0.0
    %5559 = vmatpush1.msra.mxu0 0.0
    %5560 = vmatprep.subr.mxu0 0.0
    %5561 = vmatpush1.msra.mxu0 0.0
    %5562 = vmatprep.subr.mxu0 0.0
    %5563 = vmatpush1.msra.mxu0 0.0
    %5564 = vmatprep.subr.mxu0 0.0
    %5565 = vmatpush1.msra.mxu0 0.0
    %5566 = vmatprep.subr.mxu0 0.0
    %5567 = vmatpush1.msra.mxu0 0.0
    %5568 = vmatprep.subr.mxu0 0.0
    %5569 = vmatpush1.msra.mxu0 0.0
    %5570 = vmatprep.subr.mxu0 0.0
    %5571 = vmatpush1.msra.mxu0 0.0
    %5572 = vmatprep.subr.mxu0 0.0
    %5573 = vmatpush1.msra.mxu0 0.0
    %5574 = vmatprep.subr.mxu0 0.0
    %5575 = vmatpush1.msra.mxu0 0.0
    %5576 = vmatprep.subr.mxu0 0.0
    %5577 = vmatpush1.msra.mxu0 0.0
    %5578 = vmatprep.subr.mxu0 0.0
    %5579 = vmatpush1.msra.mxu0 0.0
    %5580 = vmatprep.subr.mxu0 0.0
    %5581 = vmatpush1.msra.mxu0 0.0
    %5582 = vmatprep.subr.mxu0 0.0
    %5583 = vmatpush1.msra.mxu0 0.0
    %5584 = vmatprep.subr.mxu0 0.0
    %5585 = vmatpush1.msra.mxu0 0.0
    %5586 = vmatprep.subr.mxu0 0.0
    %5587 = vmatpush1.msra.mxu0 0.0
    %5588 = vmatprep.subr.mxu0 0.0
    %5589 = vmatpush1.msra.mxu0 0.0
    %5590 = vmatprep.subr.mxu0 0.0
    %5591 = vmatpush1.msra.mxu0 0.0
    %5592 = vmatprep.subr.mxu0 0.0
    %5593 = vmatpush1.msra.mxu0 0.0
    %5594 = vmatprep.subr.mxu0 0.0
    %5595 = vmatpush1.msra.mxu0 0.0
    %5596 = vmatprep.subr.mxu0 0.0
    %5597 = vmatpush1.msra.mxu0 0.0
    %5598 = vmatprep.subr.mxu0 0.0
    %5599 = vmatpush1.msra.mxu0 0.0
    %5600 = vmatprep.subr.mxu0 0.0
    %5601 = vmatpush1.msra.mxu0 0.0
    %5602 = vmatprep.subr.mxu0 0.0
    %5603 = vmatpush1.msra.mxu0 0.0
    %5604 = vmatprep.subr.mxu0 0.0
    %5605 = vmatpush1.msra.mxu0 0.0
    %5606 = vmatprep.subr.mxu0 0.0
    %5607 = vmatpush1.msra.mxu0 0.0
    %5608 = vmatprep.subr.mxu0 0.0
    %5609 = vmatpush1.msra.mxu0 0.0
    %5610 = vmatprep.subr.mxu0 0.0
    %5611 = vmatpush1.msra.mxu0 0.0
    %5612 = vmatprep.mubr.f32.mxu0 0.0
    %5613 = vmatmul.mubr.f32.gmra.mrb[0].mxu0 %v5546
    %v5614 = vpop.f32.mrb[0].mxu0
    %v5615 = vadd.f32 0.0, %v5614
    %v5616 = vpop.f32.mrb[0].mxu0
    %5617 = vdwg.mxu0
    %v5618 = vadd.f32 %v5471, %v5615
    %v5620 = vsel %vm747, %v5154, 0
    %5622 = vmatprep.subr.mxu0 0.0
    %5623 = vmatpush1.msra.mxu0 %v5143
    %5624 = vmatprep.subr.mxu0 0.0
    %5625 = vmatpush1.msra.mxu0 %v5144
    %5626 = vmatprep.subr.mxu0 0.0
    %5627 = vmatpush1.msra.mxu0 %v5145
    %5628 = vmatprep.subr.mxu0 0.0
    %5629 = vmatpush1.msra.mxu0 %v5146
    %5630 = vmatprep.subr.mxu0 0.0
    %5631 = vmatpush1.msra.mxu0 0.0
    %5632 = vmatprep.subr.mxu0 0.0
    %5633 = vmatpush1.msra.mxu0 0.0
    %5634 = vmatprep.subr.mxu0 0.0
    %5635 = vmatpush1.msra.mxu0 0.0
    %5636 = vmatprep.subr.mxu0 0.0
    %5637 = vmatpush1.msra.mxu0 0.0
    %5638 = vmatprep.subr.mxu0 0.0
    %5639 = vmatpush1.msra.mxu0 0.0
    %5640 = vmatprep.subr.mxu0 0.0
    %5641 = vmatpush1.msra.mxu0 0.0
    %5642 = vmatprep.subr.mxu0 0.0
    %5643 = vmatpush1.msra.mxu0 0.0
    %5644 = vmatprep.subr.mxu0 0.0
    %5645 = vmatpush1.msra.mxu0 0.0
    %5646 = vmatprep.subr.mxu0 0.0
    %5647 = vmatpush1.msra.mxu0 0.0
    %5648 = vmatprep.subr.mxu0 0.0
    %5649 = vmatpush1.msra.mxu0 0.0
    %5650 = vmatprep.subr.mxu0 0.0
    %5651 = vmatpush1.msra.mxu0 0.0
    %5652 = vmatprep.subr.mxu0 0.0
    %5653 = vmatpush1.msra.mxu0 0.0
    %5654 = vmatprep.subr.mxu0 0.0
    %5655 = vmatpush1.msra.mxu0 0.0
    %5656 = vmatprep.subr.mxu0 0.0
    %5657 = vmatpush1.msra.mxu0 0.0
    %5658 = vmatprep.subr.mxu0 0.0
    %5659 = vmatpush1.msra.mxu0 0.0
    %5660 = vmatprep.subr.mxu0 0.0
    %5661 = vmatpush1.msra.mxu0 0.0
    %5662 = vmatprep.subr.mxu0 0.0
    %5663 = vmatpush1.msra.mxu0 0.0
    %5664 = vmatprep.subr.mxu0 0.0
    %5665 = vmatpush1.msra.mxu0 0.0
    %5666 = vmatprep.subr.mxu0 0.0
    %5667 = vmatpush1.msra.mxu0 0.0
    %5668 = vmatprep.subr.mxu0 0.0
    %5669 = vmatpush1.msra.mxu0 0.0
    %5670 = vmatprep.subr.mxu0 0.0
    %5671 = vmatpush1.msra.mxu0 0.0
    %5672 = vmatprep.subr.mxu0 0.0
    %5673 = vmatpush1.msra.mxu0 0.0
    %5674 = vmatprep.subr.mxu0 0.0
    %5675 = vmatpush1.msra.mxu0 0.0
    %5676 = vmatprep.subr.mxu0 0.0
    %5677 = vmatpush1.msra.mxu0 0.0
    %5678 = vmatprep.subr.mxu0 0.0
    %5679 = vmatpush1.msra.mxu0 0.0
    %5680 = vmatprep.subr.mxu0 0.0
    %5681 = vmatpush1.msra.mxu0 0.0
    %5682 = vmatprep.subr.mxu0 0.0
    %5683 = vmatpush1.msra.mxu0 0.0
    %5684 = vmatprep.subr.mxu0 0.0
    %5685 = vmatpush1.msra.mxu0 0.0
    %5686 = vmatprep.mubr.f32.mxu0 0.0
    %5687 = vmatmul.mubr.f32.gmra.mrb[0].mxu0 %v5620
    %v5688 = vpop.f32.mrb[0].mxu0
    %v5689 = vadd.f32 0.0, %v5688
    %v5690 = vpop.f32.mrb[0].mxu0
    %5691 = vdwg.mxu0
    %v5693 = vsel %vm747, %v5689, 0
    %5695 = vmatprep.subr.mxu0 0.0
    %5696 = vmatpush1.msra.mxu0 %v5167
    %5697 = vmatprep.subr.mxu0 0.0
    %5698 = vmatpush1.msra.mxu0 %v5168
    %5699 = vmatprep.subr.mxu0 0.0
    %5700 = vmatpush1.msra.mxu0 %v5169
    %5701 = vmatprep.subr.mxu0 0.0
    %5702 = vmatpush1.msra.mxu0 %v5170
    %5703 = vmatprep.subr.mxu0 0.0
    %5704 = vmatpush1.msra.mxu0 0.0
    %5705 = vmatprep.subr.mxu0 0.0
    %5706 = vmatpush1.msra.mxu0 0.0
    %5707 = vmatprep.subr.mxu0 0.0
    %5708 = vmatpush1.msra.mxu0 0.0
    %5709 = vmatprep.subr.mxu0 0.0
    %5710 = vmatpush1.msra.mxu0 0.0
    %5711 = vmatprep.subr.mxu0 0.0
    %5712 = vmatpush1.msra.mxu0 0.0
    %5713 = vmatprep.subr.mxu0 0.0
    %5714 = vmatpush1.msra.mxu0 0.0
    %5715 = vmatprep.subr.mxu0 0.0
    %5716 = vmatpush1.msra.mxu0 0.0
    %5717 = vmatprep.subr.mxu0 0.0
    %5718 = vmatpush1.msra.mxu0 0.0
    %5719 = vmatprep.subr.mxu0 0.0
    %5720 = vmatpush1.msra.mxu0 0.0
    %5721 = vmatprep.subr.mxu0 0.0
    %5722 = vmatpush1.msra.mxu0 0.0
    %5723 = vmatprep.subr.mxu0 0.0
    %5724 = vmatpush1.msra.mxu0 0.0
    %5725 = vmatprep.subr.mxu0 0.0
    %5726 = vmatpush1.msra.mxu0 0.0
    %5727 = vmatprep.subr.mxu0 0.0
    %5728 = vmatpush1.msra.mxu0 0.0
    %5729 = vmatprep.subr.mxu0 0.0
    %5730 = vmatpush1.msra.mxu0 0.0
    %5731 = vmatprep.subr.mxu0 0.0
    %5732 = vmatpush1.msra.mxu0 0.0
    %5733 = vmatprep.subr.mxu0 0.0
    %5734 = vmatpush1.msra.mxu0 0.0
    %5735 = vmatprep.subr.mxu0 0.0
    %5736 = vmatpush1.msra.mxu0 0.0
    %5737 = vmatprep.subr.mxu0 0.0
    %5738 = vmatpush1.msra.mxu0 0.0
    %5739 = vmatprep.subr.mxu0 0.0
    %5740 = vmatpush1.msra.mxu0 0.0
    %5741 = vmatprep.subr.mxu0 0.0
    %5742 = vmatpush1.msra.mxu0 0.0
    %5743 = vmatprep.subr.mxu0 0.0
    %5744 = vmatpush1.msra.mxu0 0.0
    %5745 = vmatprep.subr.mxu0 0.0
    %5746 = vmatpush1.msra.mxu0 0.0
    %5747 = vmatprep.subr.mxu0 0.0
    %5748 = vmatpush1.msra.mxu0 0.0
    %5749 = vmatprep.subr.mxu0 0.0
    %5750 = vmatpush1.msra.mxu0 0.0
    %5751 = vmatprep.subr.mxu0 0.0
    %5752 = vmatpush1.msra.mxu0 0.0
    %5753 = vmatprep.subr.mxu0 0.0
    %5754 = vmatpush1.msra.mxu0 0.0
    %5755 = vmatprep.subr.mxu0 0.0
    %5756 = vmatpush1.msra.mxu0 0.0
    %5757 = vmatprep.subr.mxu0 0.0
    %5758 = vmatpush1.msra.mxu0 0.0
    %5759 = vmatprep.mubr.f32.mxu0 0.0
    %5760 = vmatmul.mubr.f32.gmra.mrb[0].mxu0 %v5693
    %v5761 = vpop.f32.mrb[0].mxu0
    %v5762 = vadd.f32 0.0, %v5761
    %v5763 = vpop.f32.mrb[0].mxu0
    %5764 = vdwg.mxu0
    %v5765 = vadd.f32 %v5618, %v5762
    %v5766 = vld [vmem:[%s81] sm:$0x1]
    %v5767 = vld [vmem:[%s83] sm:$0x1]
    %v5768 = vld [vmem:[#allocation44] sm:$0x1]
    %v5769 = vld [vmem:[#allocation46] sm:$0x1]
    %v5770 = vld [vmem:[%s89] sm:$0xff]
    %v5771 = vld [vmem:[%s89 + $0x8] sm:$0xff]
    %v5772 = vld [vmem:[%s89 + $0x10] sm:$0xff]
    %v5773 = vld [vmem:[%s89 + $0x18] sm:$0xff]
    %v5774 = vld [vmem:[#allocation47] sm:$0x1]
    %v5775 = vld [vmem:[#allocation49] sm:$0xff]
    %v5776 = vld [vmem:[#allocation49 + $0x8] sm:$0xff]
    %v5777 = vld [vmem:[#allocation49 + $0x10] sm:$0xff]
    %v5778 = vld [vmem:[#allocation49 + $0x18] sm:$0xff]
    %v5779 = vld [vmem:[#allocation50] sm:$0x1]
    %v5780 = vld [vmem:[#allocation52] sm:$0xff]
    %v5781 = vld [vmem:[#allocation52 + $0x8] sm:$0xff]
    %v5782 = vld [vmem:[#allocation52 + $0x10] sm:$0xff]
    %v5783 = vld [vmem:[#allocation52 + $0x18] sm:$0xff]
    %v5784 = vld [vmem:[#allocation53] sm:$0x1]
    %v5785 = vld [vmem:[#allocation55] sm:$0xff]
    %v5786 = vld [vmem:[#allocation55 + $0x8] sm:$0xff]
    %v5787 = vld [vmem:[#allocation55 + $0x10] sm:$0xff]
    %v5788 = vld [vmem:[#allocation55 + $0x18] sm:$0xff]
    %v5789 = vld [vmem:[#allocation56] sm:$0x1]
    %v5790 = vld [vmem:[%s105] sm:$0xff]
    %v5791 = vld [vmem:[%s105 + $0x8] sm:$0xff]
    %v5792 = vld [vmem:[%s105 + $0x10] sm:$0xff]
    %v5793 = vld [vmem:[%s105 + $0x18] sm:$0xff]
    %v5794 = vld [vmem:[#allocation58] sm:$0x1]
    %v5795 = vld [vmem:[%s109] sm:$0xff]
    %v5796 = vld [vmem:[%s109 + $0x8] sm:$0xff]
    %v5797 = vld [vmem:[%s109 + $0x10] sm:$0xff]
    %v5798 = vld [vmem:[%s109 + $0x18] sm:$0xff]
    %v5799 = vld [vmem:[%s109 + $0x20] sm:$0xff]
    %v5800 = vld [vmem:[%s109 + $0x28] sm:$0xff]
    %v5801 = vld [vmem:[%s109 + $0x30] sm:$0xff]
    %v5802 = vld [vmem:[%s109 + $0x38] sm:$0xff]
    %v5803 = vld [vmem:[%s111] sm:$0x1]
    %v5804 = vsel %vm747, %v5765, 0.0
    %5805 = vadd.xlane.f32.xlu0 %v5804
    %v5806 = vpop.xlane.xlu0 %5805
    %v5807 = vmul.f32 %v5806, %v796
    %v5808 = vsub.f32 %v5765, %v5807
    %v5809 = vmul.f32 %v5808, %v5808
    %v5810 = vsel %vm747, %v5809, 0.0
    %5811 = vadd.xlane.f32.xlu0 %v5810
    %v5812 = vpop.xlane.xlu0 %5811
    %v5813 = vmul.f32 %v5812, %v796
    %v5814 = vadd.f32 %v5813, 1e-06
    %v5815 = vrsqrt.pop %v5814
    %v5816 = vmul.f32 %v5808, %v5815
    %v5818 = vlaneseq
    %v5819 = vshrl.u32 %v5818, 7
    %v5820 = vsub.s32 0, %v5819
    %v5821 = vrot.slane %v5766, %v5820
    %v5823 = vmul.f32 %v5816, %v5821
    %v5825 = vlaneseq
    %v5826 = vshrl.u32 %v5825, 7
    %v5827 = vsub.s32 0, %v5826
    %v5828 = vrot.slane %v5767, %v5827
    %v5830 = vadd.f32 %v5823, %v5828
    %v5832 = vlaneseq
    %v5833 = vshrl.u32 %v5832, 7
    %v5834 = vsub.s32 0, %v5833
    %v5835 = vrot.slane %v5774, %v5834
    %v5838 = vsel %vm747, %v5830, 0
    %5840 = vmatprep.subr.mxu0 0.0
    %5841 = vmatpush1.msra.mxu0 %v5770
    %5842 = vmatprep.subr.mxu0 0.0
    %5843 = vmatpush1.msra.mxu0 %v5771
    %5844 = vmatprep.subr.mxu0 0.0
    %5845 = vmatpush1.msra.mxu0 %v5772
    %5846 = vmatprep.subr.mxu0 0.0
    %5847 = vmatpush1.msra.mxu0 %v5773
    %5848 = vmatprep.subr.mxu0 0.0
    %5849 = vmatpush1.msra.mxu0 0.0
    %5850 = vmatprep.subr.mxu0 0.0
    %5851 = vmatpush1.msra.mxu0 0.0
    %5852 = vmatprep.subr.mxu0 0.0
    %5853 = vmatpush1.msra.mxu0 0.0
    %5854 = vmatprep.subr.mxu0 0.0
    %5855 = vmatpush1.msra.mxu0 0.0
    %5856 = vmatprep.subr.mxu0 0.0
    %5857 = vmatpush1.msra.mxu0 0.0
    %5858 = vmatprep.subr.mxu0 0.0
    %5859 = vmatpush1.msra.mxu0 0.0
    %5860 = vmatprep.subr.mxu0 0.0
    %5861 = vmatpush1.msra.mxu0 0.0
    %5862 = vmatprep.subr.mxu0 0.0
    %5863 = vmatpush1.msra.mxu0 0.0
    %5864 = vmatprep.subr.mxu0 0.0
    %5865 = vmatpush1.msra.mxu0 0.0
    %5866 = vmatprep.subr.mxu0 0.0
    %5867 = vmatpush1.msra.mxu0 0.0
    %5868 = vmatprep.subr.mxu0 0.0
    %5869 = vmatpush1.msra.mxu0 0.0
    %5870 = vmatprep.subr.mxu0 0.0
    %5871 = vmatpush1.msra.mxu0 0.0
    %5872 = vmatprep.subr.mxu0 0.0
    %5873 = vmatpush1.msra.mxu0 0.0
    %5874 = vmatprep.subr.mxu0 0.0
    %5875 = vmatpush1.msra.mxu0 0.0
    %5876 = vmatprep.subr.mxu0 0.0
    %5877 = vmatpush1.msra.mxu0 0.0
    %5878 = vmatprep.subr.mxu0 0.0
    %5879 = vmatpush1.msra.mxu0 0.0
    %5880 = vmatprep.subr.mxu0 0.0
    %5881 = vmatpush1.msra.mxu0 0.0
    %5882 = vmatprep.subr.mxu0 0.0
    %5883 = vmatpush1.msra.mxu0 0.0
    %5884 = vmatprep.subr.mxu0 0.0
    %5885 = vmatpush1.msra.mxu0 0.0
    %5886 = vmatprep.subr.mxu0 0.0
    %5887 = vmatpush1.msra.mxu0 0.0
    %5888 = vmatprep.subr.mxu0 0.0
    %5889 = vmatpush1.msra.mxu0 0.0
    %5890 = vmatprep.subr.mxu0 0.0
    %5891 = vmatpush1.msra.mxu0 0.0
    %5892 = vmatprep.subr.mxu0 0.0
    %5893 = vmatpush1.msra.mxu0 0.0
    %5894 = vmatprep.subr.mxu0 0.0
    %5895 = vmatpush1.msra.mxu0 0.0
    %5896 = vmatprep.subr.mxu0 0.0
    %5897 = vmatpush1.msra.mxu0 0.0
    %5898 = vmatprep.subr.mxu0 0.0
    %5899 = vmatpush1.msra.mxu0 0.0
    %5900 = vmatprep.subr.mxu0 0.0
    %5901 = vmatpush1.msra.mxu0 0.0
    %5902 = vmatprep.subr.mxu0 0.0
    %5903 = vmatpush1.msra.mxu0 0.0
    %5904 = vmatprep.mubr.f32.mxu0 0.0
    %5905 = vmatmul.mubr.f32.gmra.mrb[0].mxu0 %v5838
    %v5906 = vpop.f32.mrb[0].mxu0
    %v5907 = vadd.f32 %v5835, %v5906
    %v5908 = vpop.f32.mrb[0].mxu0
    %5909 = vdwg.mxu0
    %v5911 = vlaneseq
    %v5912 = vshrl.u32 %v5911, 7
    %v5913 = vsub.s32 0, %v5912
    %v5914 = vrot.slane %v5779, %v5913
    %5916 = vmatprep.subr.mxu0 0.0
    %5917 = vmatpush1.msra.mxu0 %v5775
    %5918 = vmatprep.subr.mxu0 0.0
    %5919 = vmatpush1.msra.mxu0 %v5776
    %5920 = vmatprep.subr.mxu0 0.0
    %5921 = vmatpush1.msra.mxu0 %v5777
    %5922 = vmatprep.subr.mxu0 0.0
    %5923 = vmatpush1.msra.mxu0 %v5778
    %5924 = vmatprep.subr.mxu0 0.0
    %5925 = vmatpush1.msra.mxu0 0.0
    %5926 = vmatprep.subr.mxu0 0.0
    %5927 = vmatpush1.msra.mxu0 0.0
    %5928 = vmatprep.subr.mxu0 0.0
    %5929 = vmatpush1.msra.mxu0 0.0
    %5930 = vmatprep.subr.mxu0 0.0
    %5931 = vmatpush1.msra.mxu0 0.0
    %5932 = vmatprep.subr.mxu0 0.0
    %5933 = vmatpush1.msra.mxu0 0.0
    %5934 = vmatprep.subr.mxu0 0.0
    %5935 = vmatpush1.msra.mxu0 0.0
    %5936 = vmatprep.subr.mxu0 0.0
    %5937 = vmatpush1.msra.mxu0 0.0
    %5938 = vmatprep.subr.mxu0 0.0
    %5939 = vmatpush1.msra.mxu0 0.0
    %5940 = vmatprep.subr.mxu0 0.0
    %5941 = vmatpush1.msra.mxu0 0.0
    %5942 = vmatprep.subr.mxu0 0.0
    %5943 = vmatpush1.msra.mxu0 0.0
    %5944 = vmatprep.subr.mxu0 0.0
    %5945 = vmatpush1.msra.mxu0 0.0
    %5946 = vmatprep.subr.mxu0 0.0
    %5947 = vmatpush1.msra.mxu0 0.0
    %5948 = vmatprep.subr.mxu0 0.0
    %5949 = vmatpush1.msra.mxu0 0.0
    %5950 = vmatprep.subr.mxu0 0.0
    %5951 = vmatpush1.msra.mxu0 0.0
    %5952 = vmatprep.subr.mxu0 0.0
    %5953 = vmatpush1.msra.mxu0 0.0
    %5954 = vmatprep.subr.mxu0 0.0
    %5955 = vmatpush1.msra.mxu0 0.0
    %5956 = vmatprep.subr.mxu0 0.0
    %5957 = vmatpush1.msra.mxu0 0.0
    %5958 = vmatprep.subr.mxu0 0.0
    %5959 = vmatpush1.msra.mxu0 0.0
    %5960 = vmatprep.subr.mxu0 0.0
    %5961 = vmatpush1.msra.mxu0 0.0
    %5962 = vmatprep.subr.mxu0 0.0
    %5963 = vmatpush1.msra.mxu0 0.0
    %5964 = vmatprep.subr.mxu0 0.0
    %5965 = vmatpush1.msra.mxu0 0.0
    %5966 = vmatprep.subr.mxu0 0.0
    %5967 = vmatpush1.msra.mxu0 0.0
    %5968 = vmatprep.subr.mxu0 0.0
    %5969 = vmatpush1.msra.mxu0 0.0
    %5970 = vmatprep.subr.mxu0 0.0
    %5971 = vmatpush1.msra.mxu0 0.0
    %5972 = vmatprep.subr.mxu0 0.0
    %5973 = vmatpush1.msra.mxu0 0.0
    %5974 = vmatprep.subr.mxu0 0.0
    %5975 = vmatpush1.msra.mxu0 0.0
    %5976 = vmatprep.subr.mxu0 0.0
    %5977 = vmatpush1.msra.mxu0 0.0
    %5978 = vmatprep.subr.mxu0 0.0
    %5979 = vmatpush1.msra.mxu0 0.0
    %5980 = vmatprep.mubr.f32.mxu0 0.0
    %5981 = vmatmul.mubr.f32.gmra.mrb[0].mxu0 %v5838
    %v5982 = vpop.f32.mrb[0].mxu0
    %v5983 = vadd.f32 %v5914, %v5982
    %v5984 = vpop.f32.mrb[0].mxu0
    %5985 = vdwg.mxu0
    %v5987 = vlaneseq
    %v5988 = vshrl.u32 %v5987, 7
    %v5989 = vsub.s32 0, %v5988
    %v5990 = vrot.slane %v5784, %v5989
    %5992 = vmatprep.subr.mxu0 0.0
    %5993 = vmatpush1.msra.mxu0 %v5780
    %5994 = vmatprep.subr.mxu0 0.0
    %5995 = vmatpush1.msra.mxu0 %v5781
    %5996 = vmatprep.subr.mxu0 0.0
    %5997 = vmatpush1.msra.mxu0 %v5782
    %5998 = vmatprep.subr.mxu0 0.0
    %5999 = vmatpush1.msra.mxu0 %v5783
    %6000 = vmatprep.subr.mxu0 0.0
    %6001 = vmatpush1.msra.mxu0 0.0
    %6002 = vmatprep.subr.mxu0 0.0
    %6003 = vmatpush1.msra.mxu0 0.0
    %6004 = vmatprep.subr.mxu0 0.0
    %6005 = vmatpush1.msra.mxu0 0.0
    %6006 = vmatprep.subr.mxu0 0.0
    %6007 = vmatpush1.msra.mxu0 0.0
    %6008 = vmatprep.subr.mxu0 0.0
    %6009 = vmatpush1.msra.mxu0 0.0
    %6010 = vmatprep.subr.mxu0 0.0
    %6011 = vmatpush1.msra.mxu0 0.0
    %6012 = vmatprep.subr.mxu0 0.0
    %6013 = vmatpush1.msra.mxu0 0.0
    %6014 = vmatprep.subr.mxu0 0.0
    %6015 = vmatpush1.msra.mxu0 0.0
    %6016 = vmatprep.subr.mxu0 0.0
    %6017 = vmatpush1.msra.mxu0 0.0
    %6018 = vmatprep.subr.mxu0 0.0
    %6019 = vmatpush1.msra.mxu0 0.0
    %6020 = vmatprep.subr.mxu0 0.0
    %6021 = vmatpush1.msra.mxu0 0.0
    %6022 = vmatprep.subr.mxu0 0.0
    %6023 = vmatpush1.msra.mxu0 0.0
    %6024 = vmatprep.subr.mxu0 0.0
    %6025 = vmatpush1.msra.mxu0 0.0
    %6026 = vmatprep.subr.mxu0 0.0
    %6027 = vmatpush1.msra.mxu0 0.0
    %6028 = vmatprep.subr.mxu0 0.0
    %6029 = vmatpush1.msra.mxu0 0.0
    %6030 = vmatprep.subr.mxu0 0.0
    %6031 = vmatpush1.msra.mxu0 0.0
    %6032 = vmatprep.subr.mxu0 0.0
    %6033 = vmatpush1.msra.mxu0 0.0
    %6034 = vmatprep.subr.mxu0 0.0
    %6035 = vmatpush1.msra.mxu0 0.0
    %6036 = vmatprep.subr.mxu0 0.0
    %6037 = vmatpush1.msra.mxu0 0.0
    %6038 = vmatprep.subr.mxu0 0.0
    %6039 = vmatpush1.msra.mxu0 0.0
    %6040 = vmatprep.subr.mxu0 0.0
    %6041 = vmatpush1.msra.mxu0 0.0
    %6042 = vmatprep.subr.mxu0 0.0
    %6043 = vmatpush1.msra.mxu0 0.0
    %6044 = vmatprep.subr.mxu0 0.0
    %6045 = vmatpush1.msra.mxu0 0.0
    %6046 = vmatprep.subr.mxu0 0.0
    %6047 = vmatpush1.msra.mxu0 0.0
    %6048 = vmatprep.subr.mxu0 0.0
    %6049 = vmatpush1.msra.mxu0 0.0
    %6050 = vmatprep.subr.mxu0 0.0
    %6051 = vmatpush1.msra.mxu0 0.0
    %6052 = vmatprep.subr.mxu0 0.0
    %6053 = vmatpush1.msra.mxu0 0.0
    %6054 = vmatprep.subr.mxu0 0.0
    %6055 = vmatpush1.msra.mxu0 0.0
    %6056 = vmatprep.mubr.f32.mxu0 0.0
    %6057 = vmatmul.mubr.f32.gmra.mrb[0].mxu0 %v5838
    %v6058 = vpop.f32.mrb[0].mxu0
    %v6059 = vadd.f32 %v5990, %v6058
    %v6060 = vpop.f32.mrb[0].mxu0
    %6061 = vdwg.mxu0
    %v6062 = vmul.f32 %v5907, %v5983
    %v6064 = vsel %vm747, %v6062, 0
    %6066 = vmatprep.subr.mxu0 0.0
    %6067 = vmatpush1.msra.mxu0 %v705
    %6068 = vmatprep.subr.mxu0 0.0
    %6069 = vmatpush1.msra.mxu0 %v706
    %6070 = vmatprep.subr.mxu0 0.0
    %6071 = vmatpush1.msra.mxu0 %v707
    %6072 = vmatprep.subr.mxu0 0.0
    %6073 = vmatpush1.msra.mxu0 %v708
    %6074 = vmatprep.subr.mxu0 0.0
    %6075 = vmatpush1.msra.mxu0 0.0
    %6076 = vmatprep.subr.mxu0 0.0
    %6077 = vmatpush1.msra.mxu0 0.0
    %6078 = vmatprep.subr.mxu0 0.0
    %6079 = vmatpush1.msra.mxu0 0.0
    %6080 = vmatprep.subr.mxu0 0.0
    %6081 = vmatpush1.msra.mxu0 0.0
    %6082 = vmatprep.subr.mxu0 0.0
    %6083 = vmatpush1.msra.mxu0 0.0
    %6084 = vmatprep.subr.mxu0 0.0
    %6085 = vmatpush1.msra.mxu0 0.0
    %6086 = vmatprep.subr.mxu0 0.0
    %6087 = vmatpush1.msra.mxu0 0.0
    %6088 = vmatprep.subr.mxu0 0.0
    %6089 = vmatpush1.msra.mxu0 0.0
    %6090 = vmatprep.subr.mxu0 0.0
    %6091 = vmatpush1.msra.mxu0 0.0
    %6092 = vmatprep.subr.mxu0 0.0
    %6093 = vmatpush1.msra.mxu0 0.0
    %6094 = vmatprep.subr.mxu0 0.0
    %6095 = vmatpush1.msra.mxu0 0.0
    %6096 = vmatprep.subr.mxu0 0.0
    %6097 = vmatpush1.msra.mxu0 0.0
    %6098 = vmatprep.subr.mxu0 0.0
    %6099 = vmatpush1.msra.mxu0 0.0
    %6100 = vmatprep.subr.mxu0 0.0
    %6101 = vmatpush1.msra.mxu0 0.0
    %6102 = vmatprep.subr.mxu0 0.0
    %6103 = vmatpush1.msra.mxu0 0.0
    %6104 = vmatprep.subr.mxu0 0.0
    %6105 = vmatpush1.msra.mxu0 0.0
    %6106 = vmatprep.subr.mxu0 0.0
    %6107 = vmatpush1.msra.mxu0 0.0
    %6108 = vmatprep.subr.mxu0 0.0
    %6109 = vmatpush1.msra.mxu0 0.0
    %6110 = vmatprep.subr.mxu0 0.0
    %6111 = vmatpush1.msra.mxu0 0.0
    %6112 = vmatprep.subr.mxu0 0.0
    %6113 = vmatpush1.msra.mxu0 0.0
    %6114 = vmatprep.subr.mxu0 0.0
    %6115 = vmatpush1.msra.mxu0 0.0
    %6116 = vmatprep.subr.mxu0 0.0
    %6117 = vmatpush1.msra.mxu0 0.0
    %6118 = vmatprep.subr.mxu0 0.0
    %6119 = vmatpush1.msra.mxu0 0.0
    %6120 = vmatprep.subr.mxu0 0.0
    %6121 = vmatpush1.msra.mxu0 0.0
    %6122 = vmatprep.subr.mxu0 0.0
    %6123 = vmatpush1.msra.mxu0 0.0
    %6124 = vmatprep.subr.mxu0 0.0
    %6125 = vmatpush1.msra.mxu0 0.0
    %6126 = vmatprep.subr.mxu0 0.0
    %6127 = vmatpush1.msra.mxu0 0.0
    %6128 = vmatprep.subr.mxu0 0.0
    %6129 = vmatpush1.msra.mxu0 0.0
    %6130 = vmatprep.mubr.f32.mxu0 0.0
    %6131 = vmatmul.mubr.f32.gmra.mrb[0].mxu0 %v6064
    %v6132 = vpop.f32.mrb[0].mxu0
    %v6133 = vadd.f32 0.0, %v6132
    %v6134 = vpop.f32.mrb[0].mxu0
    %6135 = vdwg.mxu0
    %v6137 = vrot.slane %v5983, 4
    %v6139 = vmul.f32 %v5907, %v6137
    %v6141 = vsel %vm747, %v6139, 0
    %6143 = vmatprep.subr.mxu0 0.0
    %6144 = vmatpush1.msra.mxu0 %v705
    %6145 = vmatprep.subr.mxu0 0.0
    %6146 = vmatpush1.msra.mxu0 %v706
    %6147 = vmatprep.subr.mxu0 0.0
    %6148 = vmatpush1.msra.mxu0 %v707
    %6149 = vmatprep.subr.mxu0 0.0
    %6150 = vmatpush1.msra.mxu0 %v708
    %6151 = vmatprep.subr.mxu0 0.0
    %6152 = vmatpush1.msra.mxu0 0.0
    %6153 = vmatprep.subr.mxu0 0.0
    %6154 = vmatpush1.msra.mxu0 0.0
    %6155 = vmatprep.subr.mxu0 0.0
    %6156 = vmatpush1.msra.mxu0 0.0
    %6157 = vmatprep.subr.mxu0 0.0
    %6158 = vmatpush1.msra.mxu0 0.0
    %6159 = vmatprep.subr.mxu0 0.0
    %6160 = vmatpush1.msra.mxu0 0.0
    %6161 = vmatprep.subr.mxu0 0.0
    %6162 = vmatpush1.msra.mxu0 0.0
    %6163 = vmatprep.subr.mxu0 0.0
    %6164 = vmatpush1.msra.mxu0 0.0
    %6165 = vmatprep.subr.mxu0 0.0
    %6166 = vmatpush1.msra.mxu0 0.0
    %6167 = vmatprep.subr.mxu0 0.0
    %6168 = vmatpush1.msra.mxu0 0.0
    %6169 = vmatprep.subr.mxu0 0.0
    %6170 = vmatpush1.msra.mxu0 0.0
    %6171 = vmatprep.subr.mxu0 0.0
    %6172 = vmatpush1.msra.mxu0 0.0
    %6173 = vmatprep.subr.mxu0 0.0
    %6174 = vmatpush1.msra.mxu0 0.0
    %6175 = vmatprep.subr.mxu0 0.0
    %6176 = vmatpush1.msra.mxu0 0.0
    %6177 = vmatprep.subr.mxu0 0.0
    %6178 = vmatpush1.msra.mxu0 0.0
    %6179 = vmatprep.subr.mxu0 0.0
    %6180 = vmatpush1.msra.mxu0 0.0
    %6181 = vmatprep.subr.mxu0 0.0
    %6182 = vmatpush1.msra.mxu0 0.0
    %6183 = vmatprep.subr.mxu0 0.0
    %6184 = vmatpush1.msra.mxu0 0.0
    %6185 = vmatprep.subr.mxu0 0.0
    %6186 = vmatpush1.msra.mxu0 0.0
    %6187 = vmatprep.subr.mxu0 0.0
    %6188 = vmatpush1.msra.mxu0 0.0
    %6189 = vmatprep.subr.mxu0 0.0
    %6190 = vmatpush1.msra.mxu0 0.0
    %6191 = vmatprep.subr.mxu0 0.0
    %6192 = vmatpush1.msra.mxu0 0.0
    %6193 = vmatprep.subr.mxu0 0.0
    %6194 = vmatpush1.msra.mxu0 0.0
    %6195 = vmatprep.subr.mxu0 0.0
    %6196 = vmatpush1.msra.mxu0 0.0
    %6197 = vmatprep.subr.mxu0 0.0
    %6198 = vmatpush1.msra.mxu0 0.0
    %6199 = vmatprep.subr.mxu0 0.0
    %6200 = vmatpush1.msra.mxu0 0.0
    %6201 = vmatprep.subr.mxu0 0.0
    %6202 = vmatpush1.msra.mxu0 0.0
    %6203 = vmatprep.subr.mxu0 0.0
    %6204 = vmatpush1.msra.mxu0 0.0
    %6205 = vmatprep.subr.mxu0 0.0
    %6206 = vmatpush1.msra.mxu0 0.0
    %6207 = vmatprep.mubr.f32.mxu0 0.0
    %6208 = vmatmul.mubr.f32.gmra.mrb[0].mxu0 %v6141
    %v6209 = vpop.f32.mrb[0].mxu0
    %v6210 = vadd.f32 0.0, %v6209
    %v6211 = vpop.f32.mrb[0].mxu0
    %6212 = vdwg.mxu0
    %v6213 = vrot.slane %v6139, 4
    %v6214 = vsel %vm747, %v6213, 0
    %6216 = vmatprep.subr.mxu0 0.0
    %6217 = vmatpush1.msra.mxu0 %v705
    %6218 = vmatprep.subr.mxu0 0.0
    %6219 = vmatpush1.msra.mxu0 %v706
    %6220 = vmatprep.subr.mxu0 0.0
    %6221 = vmatpush1.msra.mxu0 %v707
    %6222 = vmatprep.subr.mxu0 0.0
    %6223 = vmatpush1.msra.mxu0 %v708
    %6224 = vmatprep.subr.mxu0 0.0
    %6225 = vmatpush1.msra.mxu0 0.0
    %6226 = vmatprep.subr.mxu0 0.0
    %6227 = vmatpush1.msra.mxu0 0.0
    %6228 = vmatprep.subr.mxu0 0.0
    %6229 = vmatpush1.msra.mxu0 0.0
    %6230 = vmatprep.subr.mxu0 0.0
    %6231 = vmatpush1.msra.mxu0 0.0
    %6232 = vmatprep.subr.mxu0 0.0
    %6233 = vmatpush1.msra.mxu0 0.0
    %6234 = vmatprep.subr.mxu0 0.0
    %6235 = vmatpush1.msra.mxu0 0.0
    %6236 = vmatprep.subr.mxu0 0.0
    %6237 = vmatpush1.msra.mxu0 0.0
    %6238 = vmatprep.subr.mxu0 0.0
    %6239 = vmatpush1.msra.mxu0 0.0
    %6240 = vmatprep.subr.mxu0 0.0
    %6241 = vmatpush1.msra.mxu0 0.0
    %6242 = vmatprep.subr.mxu0 0.0
    %6243 = vmatpush1.msra.mxu0 0.0
    %6244 = vmatprep.subr.mxu0 0.0
    %6245 = vmatpush1.msra.mxu0 0.0
    %6246 = vmatprep.subr.mxu0 0.0
    %6247 = vmatpush1.msra.mxu0 0.0
    %6248 = vmatprep.subr.mxu0 0.0
    %6249 = vmatpush1.msra.mxu0 0.0
    %6250 = vmatprep.subr.mxu0 0.0
    %6251 = vmatpush1.msra.mxu0 0.0
    %6252 = vmatprep.subr.mxu0 0.0
    %6253 = vmatpush1.msra.mxu0 0.0
    %6254 = vmatprep.subr.mxu0 0.0
    %6255 = vmatpush1.msra.mxu0 0.0
    %6256 = vmatprep.subr.mxu0 0.0
    %6257 = vmatpush1.msra.mxu0 0.0
    %6258 = vmatprep.subr.mxu0 0.0
    %6259 = vmatpush1.msra.mxu0 0.0
    %6260 = vmatprep.subr.mxu0 0.0
    %6261 = vmatpush1.msra.mxu0 0.0
    %6262 = vmatprep.subr.mxu0 0.0
    %6263 = vmatpush1.msra.mxu0 0.0
    %6264 = vmatprep.subr.mxu0 0.0
    %6265 = vmatpush1.msra.mxu0 0.0
    %6266 = vmatprep.subr.mxu0 0.0
    %6267 = vmatpush1.msra.mxu0 0.0
    %6268 = vmatprep.subr.mxu0 0.0
    %6269 = vmatpush1.msra.mxu0 0.0
    %6270 = vmatprep.subr.mxu0 0.0
    %6271 = vmatpush1.msra.mxu0 0.0
    %6272 = vmatprep.subr.mxu0 0.0
    %6273 = vmatpush1.msra.mxu0 0.0
    %6274 = vmatprep.subr.mxu0 0.0
    %6275 = vmatpush1.msra.mxu0 0.0
    %6276 = vmatprep.subr.mxu0 0.0
    %6277 = vmatpush1.msra.mxu0 0.0
    %6278 = vmatprep.subr.mxu0 0.0
    %6279 = vmatpush1.msra.mxu0 0.0
    %6280 = vmatprep.mubr.f32.mxu0 0.0
    %6281 = vmatmul.mubr.f32.gmra.mrb[0].mxu0 %v6214
    %v6282 = vpop.f32.mrb[0].mxu0
    %v6283 = vadd.f32 0.0, %v6282
    %v6284 = vpop.f32.mrb[0].mxu0
    %6285 = vdwg.mxu0
    %v6286 = vrot.slane %v6062, 4
    %v6287 = vsel %vm747, %v6286, 0
    %6289 = vmatprep.subr.mxu0 0.0
    %6290 = vmatpush1.msra.mxu0 %v705
    %6291 = vmatprep.subr.mxu0 0.0
    %6292 = vmatpush1.msra.mxu0 %v706
    %6293 = vmatprep.subr.mxu0 0.0
    %6294 = vmatpush1.msra.mxu0 %v707
    %6295 = vmatprep.subr.mxu0 0.0
    %6296 = vmatpush1.msra.mxu0 %v708
    %6297 = vmatprep.subr.mxu0 0.0
    %6298 = vmatpush1.msra.mxu0 0.0
    %6299 = vmatprep.subr.mxu0 0.0
    %6300 = vmatpush1.msra.mxu0 0.0
    %6301 = vmatprep.subr.mxu0 0.0
    %6302 = vmatpush1.msra.mxu0 0.0
    %6303 = vmatprep.subr.mxu0 0.0
    %6304 = vmatpush1.msra.mxu0 0.0
    %6305 = vmatprep.subr.mxu0 0.0
    %6306 = vmatpush1.msra.mxu0 0.0
    %6307 = vmatprep.subr.mxu0 0.0
    %6308 = vmatpush1.msra.mxu0 0.0
    %6309 = vmatprep.subr.mxu0 0.0
    %6310 = vmatpush1.msra.mxu0 0.0
    %6311 = vmatprep.subr.mxu0 0.0
    %6312 = vmatpush1.msra.mxu0 0.0
    %6313 = vmatprep.subr.mxu0 0.0
    %6314 = vmatpush1.msra.mxu0 0.0
    %6315 = vmatprep.subr.mxu0 0.0
    %6316 = vmatpush1.msra.mxu0 0.0
    %6317 = vmatprep.subr.mxu0 0.0
    %6318 = vmatpush1.msra.mxu0 0.0
    %6319 = vmatprep.subr.mxu0 0.0
    %6320 = vmatpush1.msra.mxu0 0.0
    %6321 = vmatprep.subr.mxu0 0.0
    %6322 = vmatpush1.msra.mxu0 0.0
    %6323 = vmatprep.subr.mxu0 0.0
    %6324 = vmatpush1.msra.mxu0 0.0
    %6325 = vmatprep.subr.mxu0 0.0
    %6326 = vmatpush1.msra.mxu0 0.0
    %6327 = vmatprep.subr.mxu0 0.0
    %6328 = vmatpush1.msra.mxu0 0.0
    %6329 = vmatprep.subr.mxu0 0.0
    %6330 = vmatpush1.msra.mxu0 0.0
    %6331 = vmatprep.subr.mxu0 0.0
    %6332 = vmatpush1.msra.mxu0 0.0
    %6333 = vmatprep.subr.mxu0 0.0
    %6334 = vmatpush1.msra.mxu0 0.0
    %6335 = vmatprep.subr.mxu0 0.0
    %6336 = vmatpush1.msra.mxu0 0.0
    %6337 = vmatprep.subr.mxu0 0.0
    %6338 = vmatpush1.msra.mxu0 0.0
    %6339 = vmatprep.subr.mxu0 0.0
    %6340 = vmatpush1.msra.mxu0 0.0
    %6341 = vmatprep.subr.mxu0 0.0
    %6342 = vmatpush1.msra.mxu0 0.0
    %6343 = vmatprep.subr.mxu0 0.0
    %6344 = vmatpush1.msra.mxu0 0.0
    %6345 = vmatprep.subr.mxu0 0.0
    %6346 = vmatpush1.msra.mxu0 0.0
    %6347 = vmatprep.subr.mxu0 0.0
    %6348 = vmatpush1.msra.mxu0 0.0
    %6349 = vmatprep.subr.mxu0 0.0
    %6350 = vmatpush1.msra.mxu0 0.0
    %6351 = vmatprep.subr.mxu0 0.0
    %6352 = vmatpush1.msra.mxu0 0.0
    %6353 = vmatprep.mubr.f32.mxu0 0.0
    %6354 = vmatmul.mubr.f32.gmra.mrb[0].mxu0 %v6287
    %v6355 = vpop.f32.mrb[0].mxu0
    %v6356 = vadd.f32 0.0, %v6355
    %v6357 = vpop.f32.mrb[0].mxu0
    %6358 = vdwg.mxu0
    %v6359 = vmax.f32 %v6133, %v6210
    %v6360 = vsub.f32 %v6133, %v6359
    %v6361 = vmul.f32 %v6360, 1.442695
    %v6362 = vpow.pop %v6361
    %v6363 = vsub.f32 %v6210, %v6359
    %v6364 = vmul.f32 %v6363, 1.442695
    %v6365 = vpow.pop %v6364
    %v6366 = vadd.f32 %v6362, %v6365
    %v6367 = vrcp.pop %v6366
    %v6368 = vmul.f32 %v6362, %v6367
    %v6369 = vmul.f32 %v6368, %v6059
    %v6370 = vmul.f32 %v6365, %v6367
    %v6372 = vrot.slane %v6059, 4
    %v6374 = vmul.f32 %v6370, %v6372
    %v6375 = vadd.f32 %v6369, %v6374
    %v6376 = vmax.f32 %v6283, %v6356
    %v6377 = vsub.f32 %v6283, %v6376
    %v6378 = vmul.f32 %v6377, 1.442695
    %v6379 = vpow.pop %v6378
    %v6380 = vsub.f32 %v6356, %v6376
    %v6381 = vmul.f32 %v6380, 1.442695
    %v6382 = vpow.pop %v6381
    %v6383 = vadd.f32 %v6379, %v6382
    %v6384 = vrcp.pop %v6383
    %v6385 = vmul.f32 %v6379, %v6384
    %v6386 = vmul.f32 %v6385, %v6059
    %v6387 = vmul.f32 %v6382, %v6384
    %v6388 = vmul.f32 %v6387, %v6372
    %v6389 = vadd.f32 %v6386, %v6388
    %v6391 = vrot.slane %v6389, 4
    %vm6393 = vcmask 1043456
    %v6394 = vsel %vm6393, %v6375, %v6391
    %v6396 = vlaneseq
    %v6397 = vshrl.u32 %v6396, 7
    %v6398 = vsub.s32 0, %v6397
    %v6399 = vrot.slane %v5789, %v6398
    %v6402 = vsel %vm747, %v6394, 0
    %6404 = vmatprep.subr.mxu0 0.0
    %6405 = vmatpush1.msra.mxu0 %v5785
    %6406 = vmatprep.subr.mxu0 0.0
    %6407 = vmatpush1.msra.mxu0 %v5786
    %6408 = vmatprep.subr.mxu0 0.0
    %6409 = vmatpush1.msra.mxu0 %v5787
    %6410 = vmatprep.subr.mxu0 0.0
    %6411 = vmatpush1.msra.mxu0 %v5788
    %6412 = vmatprep.subr.mxu0 0.0
    %6413 = vmatpush1.msra.mxu0 0.0
    %6414 = vmatprep.subr.mxu0 0.0
    %6415 = vmatpush1.msra.mxu0 0.0
    %6416 = vmatprep.subr.mxu0 0.0
    %6417 = vmatpush1.msra.mxu0 0.0
    %6418 = vmatprep.subr.mxu0 0.0
    %6419 = vmatpush1.msra.mxu0 0.0
    %6420 = vmatprep.subr.mxu0 0.0
    %6421 = vmatpush1.msra.mxu0 0.0
    %6422 = vmatprep.subr.mxu0 0.0
    %6423 = vmatpush1.msra.mxu0 0.0
    %6424 = vmatprep.subr.mxu0 0.0
    %6425 = vmatpush1.msra.mxu0 0.0
    %6426 = vmatprep.subr.mxu0 0.0
    %6427 = vmatpush1.msra.mxu0 0.0
    %6428 = vmatprep.subr.mxu0 0.0
    %6429 = vmatpush1.msra.mxu0 0.0
    %6430 = vmatprep.subr.mxu0 0.0
    %6431 = vmatpush1.msra.mxu0 0.0
    %6432 = vmatprep.subr.mxu0 0.0
    %6433 = vmatpush1.msra.mxu0 0.0
    %6434 = vmatprep.subr.mxu0 0.0
    %6435 = vmatpush1.msra.mxu0 0.0
    %6436 = vmatprep.subr.mxu0 0.0
    %6437 = vmatpush1.msra.mxu0 0.0
    %6438 = vmatprep.subr.mxu0 0.0
    %6439 = vmatpush1.msra.mxu0 0.0
    %6440 = vmatprep.subr.mxu0 0.0
    %6441 = vmatpush1.msra.mxu0 0.0
    %6442 = vmatprep.subr.mxu0 0.0
    %6443 = vmatpush1.msra.mxu0 0.0
    %6444 = vmatprep.subr.mxu0 0.0
    %6445 = vmatpush1.msra.mxu0 0.0
    %6446 = vmatprep.subr.mxu0 0.0
    %6447 = vmatpush1.msra.mxu0 0.0
    %6448 = vmatprep.subr.mxu0 0.0
    %6449 = vmatpush1.msra.mxu0 0.0
    %6450 = vmatprep.subr.mxu0 0.0
    %6451 = vmatpush1.msra.mxu0 0.0
    %6452 = vmatprep.subr.mxu0 0.0
    %6453 = vmatpush1.msra.mxu0 0.0
    %6454 = vmatprep.subr.mxu0 0.0
    %6455 = vmatpush1.msra.mxu0 0.0
    %6456 = vmatprep.subr.mxu0 0.0
    %6457 = vmatpush1.msra.mxu0 0.0
    %6458 = vmatprep.subr.mxu0 0.0
    %6459 = vmatpush1.msra.mxu0 0.0
    %6460 = vmatprep.subr.mxu0 0.0
    %6461 = vmatpush1.msra.mxu0 0.0
    %6462 = vmatprep.subr.mxu0 0.0
    %6463 = vmatpush1.msra.mxu0 0.0
    %6464 = vmatprep.subr.mxu0 0.0
    %6465 = vmatpush1.msra.mxu0 0.0
    %6466 = vmatprep.subr.mxu0 0.0
    %6467 = vmatpush1.msra.mxu0 0.0
    %6468 = vmatprep.mubr.f32.mxu0 0.0
    %6469 = vmatmul.mubr.f32.gmra.mrb[0].mxu0 %v6402
    %v6470 = vpop.f32.mrb[0].mxu0
    %v6471 = vadd.f32 %v6399, %v6470
    %v6472 = vpop.f32.mrb[0].mxu0
    %6473 = vdwg.mxu0
    %v6474 = vadd.f32 %v5765, %v6471
    %v6475 = vsel %vm747, %v6474, 0.0
    %6476 = vadd.xlane.f32.xlu0 %v6475
    %v6477 = vpop.xlane.xlu0 %6476
    %v6478 = vmul.f32 %v6477, %v796
    %v6479 = vsub.f32 %v6474, %v6478
    %v6480 = vmul.f32 %v6479, %v6479
    %v6481 = vsel %vm747, %v6480, 0.0
    %6482 = vadd.xlane.f32.xlu0 %v6481
    %v6483 = vpop.xlane.xlu0 %6482
    %v6484 = vmul.f32 %v6483, %v796
    %v6485 = vadd.f32 %v6484, 1e-06
    %v6486 = vrsqrt.pop %v6485
    %v6487 = vmul.f32 %v6479, %v6486
    %v6489 = vlaneseq
    %v6490 = vshrl.u32 %v6489, 7
    %v6491 = vsub.s32 0, %v6490
    %v6492 = vrot.slane %v5768, %v6491
    %v6494 = vmul.f32 %v6487, %v6492
    %v6496 = vlaneseq
    %v6497 = vshrl.u32 %v6496, 7
    %v6498 = vsub.s32 0, %v6497
    %v6499 = vrot.slane %v5769, %v6498
    %v6501 = vadd.f32 %v6494, %v6499
    %v6503 = vlaneseq
    %v6504 = vshrl.u32 %v6503, 7
    %v6505 = vsub.s32 0, %v6504
    %v6506 = vrot.slane %v5794, %v6505
    %v6509 = vsel %vm747, %v6501, 0
    %6511 = vmatprep.subr.mxu0 0.0
    %6512 = vmatpush1.msra.mxu0 %v5790
    %6513 = vmatprep.subr.mxu0 0.0
    %6514 = vmatpush1.msra.mxu0 %v5791
    %6515 = vmatprep.subr.mxu0 0.0
    %6516 = vmatpush1.msra.mxu0 %v5792
    %6517 = vmatprep.subr.mxu0 0.0
    %6518 = vmatpush1.msra.mxu0 %v5793
    %6519 = vmatprep.subr.mxu0 0.0
    %6520 = vmatpush1.msra.mxu0 0.0
    %6521 = vmatprep.subr.mxu0 0.0
    %6522 = vmatpush1.msra.mxu0 0.0
    %6523 = vmatprep.subr.mxu0 0.0
    %6524 = vmatpush1.msra.mxu0 0.0
    %6525 = vmatprep.subr.mxu0 0.0
    %6526 = vmatpush1.msra.mxu0 0.0
    %6527 = vmatprep.subr.mxu0 0.0
    %6528 = vmatpush1.msra.mxu0 0.0
    %6529 = vmatprep.subr.mxu0 0.0
    %6530 = vmatpush1.msra.mxu0 0.0
    %6531 = vmatprep.subr.mxu0 0.0
    %6532 = vmatpush1.msra.mxu0 0.0
    %6533 = vmatprep.subr.mxu0 0.0
    %6534 = vmatpush1.msra.mxu0 0.0
    %6535 = vmatprep.subr.mxu0 0.0
    %6536 = vmatpush1.msra.mxu0 0.0
    %6537 = vmatprep.subr.mxu0 0.0
    %6538 = vmatpush1.msra.mxu0 0.0
    %6539 = vmatprep.subr.mxu0 0.0
    %6540 = vmatpush1.msra.mxu0 0.0
    %6541 = vmatprep.subr.mxu0 0.0
    %6542 = vmatpush1.msra.mxu0 0.0
    %6543 = vmatprep.subr.mxu0 0.0
    %6544 = vmatpush1.msra.mxu0 0.0
    %6545 = vmatprep.subr.mxu0 0.0
    %6546 = vmatpush1.msra.mxu0 0.0
    %6547 = vmatprep.subr.mxu0 0.0
    %6548 = vmatpush1.msra.mxu0 0.0
    %6549 = vmatprep.subr.mxu0 0.0
    %6550 = vmatpush1.msra.mxu0 0.0
    %6551 = vmatprep.subr.mxu0 0.0
    %6552 = vmatpush1.msra.mxu0 0.0
    %6553 = vmatprep.subr.mxu0 0.0
    %6554 = vmatpush1.msra.mxu0 0.0
    %6555 = vmatprep.subr.mxu0 0.0
    %6556 = vmatpush1.msra.mxu0 0.0
    %6557 = vmatprep.subr.mxu0 0.0
    %6558 = vmatpush1.msra.mxu0 0.0
    %6559 = vmatprep.subr.mxu0 0.0
    %6560 = vmatpush1.msra.mxu0 0.0
    %6561 = vmatprep.subr.mxu0 0.0
    %6562 = vmatpush1.msra.mxu0 0.0
    %6563 = vmatprep.subr.mxu0 0.0
    %6564 = vmatpush1.msra.mxu0 0.0
    %6565 = vmatprep.subr.mxu0 0.0
    %6566 = vmatpush1.msra.mxu0 0.0
    %6567 = vmatprep.subr.mxu0 0.0
    %6568 = vmatpush1.msra.mxu0 0.0
    %6569 = vmatprep.subr.mxu0 0.0
    %6570 = vmatpush1.msra.mxu0 0.0
    %6571 = vmatprep.subr.mxu0 0.0
    %6572 = vmatpush1.msra.mxu0 0.0
    %6573 = vmatprep.subr.mxu0 0.0
    %6574 = vmatpush1.msra.mxu0 0.0
    %6575 = vmatprep.mubr.f32.mxu0 0.0
    %6576 = vmatmul.mubr.f32.gmra.mrb[0].mxu0 %v6509
    %v6577 = vpop.f32.mrb[0].mxu0
    %v6578 = vadd.f32 %v6506, %v6577
    %v6579 = vpop.f32.mrb[0].mxu0
    %6580 = vdwg.mxu0
    %v6581 = vmax.f32 %v6578, 0.0
    %v6583 = vlaneseq
    %v6584 = vshrl.u32 %v6583, 7
    %v6585 = vsub.s32 0, %v6584
    %v6586 = vrot.slane %v5803, %v6585
    %v6589 = vsel %vm2962, %v6581, 0
    %6591 = vmatprep.subr.mxu0 0.0
    %6592 = vmatpush1.msra.mxu0 %v5795
    %6593 = vmatprep.subr.mxu0 0.0
    %6594 = vmatpush1.msra.mxu0 %v5796
    %6595 = vmatprep.subr.mxu0 0.0
    %6596 = vmatpush1.msra.mxu0 %v5797
    %6597 = vmatprep.subr.mxu0 0.0
    %6598 = vmatpush1.msra.mxu0 %v5798
    %6599 = vmatprep.subr.mxu0 0.0
    %6600 = vmatpush1.msra.mxu0 %v5799
    %6601 = vmatprep.subr.mxu0 0.0
    %6602 = vmatpush1.msra.mxu0 %v5800
    %6603 = vmatprep.subr.mxu0 0.0
    %6604 = vmatpush1.msra.mxu0 %v5801
    %6605 = vmatprep.subr.mxu0 0.0
    %6606 = vmatpush1.msra.mxu0 %v5802
    %6607 = vmatprep.subr.mxu0 0.0
    %6608 = vmatpush1.msra.mxu0 0.0
    %6609 = vmatprep.subr.mxu0 0.0
    %6610 = vmatpush1.msra.mxu0 0.0
    %6611 = vmatprep.subr.mxu0 0.0
    %6612 = vmatpush1.msra.mxu0 0.0
    %6613 = vmatprep.subr.mxu0 0.0
    %6614 = vmatpush1.msra.mxu0 0.0
    %6615 = vmatprep.subr.mxu0 0.0
    %6616 = vmatpush1.msra.mxu0 0.0
    %6617 = vmatprep.subr.mxu0 0.0
    %6618 = vmatpush1.msra.mxu0 0.0
    %6619 = vmatprep.subr.mxu0 0.0
    %6620 = vmatpush1.msra.mxu0 0.0
    %6621 = vmatprep.subr.mxu0 0.0
    %6622 = vmatpush1.msra.mxu0 0.0
    %6623 = vmatprep.subr.mxu0 0.0
    %6624 = vmatpush1.msra.mxu0 0.0
    %6625 = vmatprep.subr.mxu0 0.0
    %6626 = vmatpush1.msra.mxu0 0.0
    %6627 = vmatprep.subr.mxu0 0.0
    %6628 = vmatpush1.msra.mxu0 0.0
    %6629 = vmatprep.subr.mxu0 0.0
    %6630 = vmatpush1.msra.mxu0 0.0
    %6631 = vmatprep.subr.mxu0 0.0
    %6632 = vmatpush1.msra.mxu0 0.0
    %6633 = vmatprep.subr.mxu0 0.0
    %6634 = vmatpush1.msra.mxu0 0.0
    %6635 = vmatprep.subr.mxu0 0.0
    %6636 = vmatpush1.msra.mxu0 0.0
    %6637 = vmatprep.subr.mxu0 0.0
    %6638 = vmatpush1.msra.mxu0 0.0
    %6639 = vmatprep.subr.mxu0 0.0
    %6640 = vmatpush1.msra.mxu0 0.0
    %6641 = vmatprep.subr.mxu0 0.0
    %6642 = vmatpush1.msra.mxu0 0.0
    %6643 = vmatprep.subr.mxu0 0.0
    %6644 = vmatpush1.msra.mxu0 0.0
    %6645 = vmatprep.subr.mxu0 0.0
    %6646 = vmatpush1.msra.mxu0 0.0
    %6647 = vmatprep.subr.mxu0 0.0
    %6648 = vmatpush1.msra.mxu0 0.0
    %6649 = vmatprep.subr.mxu0 0.0
    %6650 = vmatpush1.msra.mxu0 0.0
    %6651 = vmatprep.subr.mxu0 0.0
    %6652 = vmatpush1.msra.mxu0 0.0
    %6653 = vmatprep.subr.mxu0 0.0
    %6654 = vmatpush1.msra.mxu0 0.0
    %6655 = vmatprep.mubr.f32.mxu0 0.0
    %6656 = vmatmul.mubr.f32.gmra.mrb[0].mxu0 %v6589
    %v6657 = vpop.f32.mrb[0].mxu0
    %v6658 = vadd.f32 %v6586, %v6657
    %v6659 = vpop.f32.mrb[0].mxu0
    %6660 = vdwg.mxu0
    %v6661 = vadd.f32 %v6474, %v6658
    %6662 = vst.msk [vmem:[#allocation60] sm:$0xff] %vm747, %v6661
    // Predicated region
    $region374: #{forward.1} parent=1 // pred_check
      _
    $region375: #{forward.1} parent=1 // pred_check_branch
      %6664 = sbr.rel (0) target = $region377
    $region376: #{forward.1} parent=1 // pred_region
      _
    $region377: #{forward.1} parent=1 // pred_fallthru
      _
    // Predicated region
    $region378: #{forward.1} parent=1 // pred_check
      _
    $region379: #{forward.1} parent=1 // pred_check_branch
      %6666 = sbr.rel (0) target = $region381
    $region380: #{forward.1} parent=1 // pred_region
      %s6668 = ssub.s32 512, 512
      %6669 = vsyncadd [#allocation4], %s6668
      %s6670 = sshll.u32 [#allocation59], 4
      %s6671 = int_to_ptr.vmem [resolvable:$true] %s6670
      %6676 = dma.vmem_to_hbm [thread:$0]  %s6671, 512, %s115, [#allocation4], 128, 128, 8
    $region381: #{forward.1} parent=1 // pred_fallthru
      _
    // Predicated region
    $region382: #{forward.1} parent=1 // pred_check
      _
    $region383: #{forward.1} parent=1 // pred_check_branch
      %6678 = sbr.rel (0) target = $region385
    $region384: #{forward.1} parent=1 // pred_region
      %s6680 = ssub.s32 128, 128
      %6681 = vsyncadd [#allocation61], %s6680
      %s6683 = sshll.u32 [#allocation60], 4
      %s6684 = int_to_ptr.vmem [resolvable:$true] %s6683
      %6686 = dma.vmem_to_hbm [thread:$0]  %s6684, 128, %s117, [#allocation61]
    $region385: #{forward.1} parent=1 // pred_fallthru
      _
    // Predicated region
    $region386: #{forward.1} parent=1 // pred_check
      _
    $region387: #{forward.1} parent=1 // pred_check_branch
      %6688 = sbr.rel (0) target = $region389
    $region388: #{forward.1} parent=1 // pred_region
      _
    $region389: #{forward.1} parent=1 // pred_fallthru
      _
    // Predicated region
    $region390: #{forward.1} parent=1 // pred_check
      _
    $region391: #{forward.1} parent=1 // pred_check_branch
      %6690 = sbr.rel (0) target = $region393
    $region392: #{forward.1} parent=1 // pred_region
      %6691 = dma.done [#allocation4], 512
    $region393: #{forward.1} parent=1 // pred_fallthru
      _
    // Predicated region
    $region394: #{forward.1} parent=1 // pred_check
      _
    $region395: #{forward.1} parent=1 // pred_check_branch
      %6693 = sbr.rel (0) target = $region397
    $region396: #{forward.1} parent=1 // pred_region
      %6694 = dma.done [#allocation61], 128
    $region397: #{forward.1} parent=1 // pred_fallthru
      _
    %6695 = vsyncpa [#allocation3], 1
    %6696 = vsyncpa [#allocation6], 1
    %6697 = vsyncpa [#allocation9], 1
    %6698 = vsyncpa [#allocation12], 1
    %6699 = vsyncpa [#allocation15], 1
    %6700 = vsyncpa [#allocation18], 1
    %6701 = vsyncpa [#allocation21], 1
    %6702 = vsyncpa [#allocation24], 1
    %6703 = vsyncpa [#allocation27], 1
    %6704 = vsyncpa [#allocation30], 1
    %6705 = vsyncpa [#allocation33], 1
    %6706 = vsyncpa [#allocation36], 1
    %6707 = vsyncpa [#allocation39], 1
    %6708 = vsyncpa [#allocation42], 1
    %6709 = vsyncpa [#allocation45], 1
    %6710 = vsyncpa [#allocation48], 1
    %6711 = vsyncpa [#allocation51], 1
    %6712 = vsyncpa [#allocation54], 1
    %6713 = vsyncpa [#allocation57], 1
    %6714 = vsyncpa [#allocation4], 1
    %6715 = vsyncpa [#allocation61], 1

</llo_original>
